<compile_context>
chip_gen: v7x
topology: tpu7x:2x2x1
jax: 0.10.0
libtpu: 0.0.40
codegen_flags: <defaults>
</compile_context>

<pallas_src>
import jax
import jax.numpy as jnp
from jax import lax
from jax.experimental import pallas as pl
from jax.experimental.pallas import tpu as pltpu

BN_EPS = 1e-5
LANE = 128


def _round_up(v, m):
    return (v + m - 1) // m * m


# ----------------------------------------------------------------------------
# Fused BasicBlock kernel (one batch element per grid step)
# ----------------------------------------------------------------------------
def _basicblock_kernel(xp_ref, w1_ref, b1_ref, w2_ref, b2_ref, o_ref,
                       acc_ref, y_ref):
    """Fused conv1+BN1+ReLU -> conv2+BN2 -> +residual for one batch element.

    xp_ref : (1, H+2, W+2, Cp) compute dtype  spatially + channel padded input
    w1_ref : (9, Cp, Cp) compute dtype        conv1 weights (BN1 folded), tap-major
    b1_ref : (1, Cp) f32                      folded BN1 bias
    w2_ref : (9, Cp, Cp) compute dtype        conv2 weights (BN2 folded)
    b2_ref : (1, Cp) f32                      folded BN2 bias
    o_ref  : (1, H, W, Cp) f32                output (lane-dense, full stores)
    acc_ref: VMEM (H*W, Cp) f32               shared matmul accumulator
    y_ref  : VMEM (H+2, W+2, Cp) compute      post-ReLU intermediate w/ zero halo
    """
    _, H, W, Cp = o_ref.shape
    xp = xp_ref[0]                                          # (H+2, W+2, Cp)

    def conv3x3(src, w_ref):
        # 9 lane-dense K=Cp MXU matmuls, f32 accumulation in VMEM scratch.
        for dy in range(3):
            for dx in range(3):
                patch = lax.slice(src, (dy, dx, 0), (dy + H, dx + W, Cp))
                m = jnp.dot(patch.reshape(H * W, Cp), w_ref[dy * 3 + dx],
                            preferred_element_type=jnp.float32)
                if dy == 0 and dx == 0:
                    acc_ref[...] = m          # init with first tap (no zero-fill)
                else:
                    acc_ref[...] += m

    # conv1 + folded BN1 + ReLU -> VMEM intermediate (halo kept zero).
    conv3x3(xp, w1_ref)
    y = jnp.maximum(acc_ref[...] + b1_ref[...], 0.0)        # f32 elementwise
    # Zero-fill each step (cheap; keeps the kernel correct under "parallel"
    # grid ordering / megacore), then overwrite the interior.
    y_ref[...] = jnp.zeros_like(y_ref)
    y_ref[1:H + 1, 1:W + 1, :] = y.reshape(H, W, Cp).astype(y_ref.dtype)

    # conv2 + folded BN2 + residual add (residual read from the resident input).
    conv3x3(y_ref[...], w2_ref)
    res = lax.slice(xp, (1, 1, 0), (1 + H, 1 + W, Cp)).astype(jnp.float32)
    out = acc_ref[...] + b2_ref[...] + res.reshape(H * W, Cp)
    o_ref[...] = out.reshape(1, H, W, Cp).astype(o_ref.dtype)


# ----------------------------------------------------------------------------
# BatchNorm (eval mode) folding: convbn(x) == conv(x, w*scale) + (beta - mean*scale)
# ----------------------------------------------------------------------------
def fold_bn(w_hwio, gamma, beta, mean, var, eps=BN_EPS):
    scale = gamma / jnp.sqrt(var + eps)          # (Cout,)
    return w_hwio * scale, beta - mean * scale


# ----------------------------------------------------------------------------
# BasicBlock forward (stride=1, dilation=1, downsample=None), NHWC
# ----------------------------------------------------------------------------
def basicblock_forward(x, p, *, compute_dtype=jnp.bfloat16):
    """out = convbn2(relu(convbn1(x))) + x, as ONE fused pallas_call.

    x: (N, H, W, C) f32 NHWC.  MXU operands / intermediate use `compute_dtype`
    (bf16 default for v6e/v7x); accumulation, bias, ReLU and residual are f32.
    """
    N, H, W, C = x.shape
    assert p["w1"].shape[2] == C and p["w1"].shape[3] == C, (
        "Pallas path assumes inplanes == planes (no downsample).")
    Cp = _round_up(C, LANE)                      # lane-dense channel padding

    w1, b1 = fold_bn(p["w1"], p["bn1_gamma"], p["bn1_beta"], p["bn1_mean"], p["bn1_var"])
    w2, b2 = fold_bn(p["w2"], p["bn2_gamma"], p["bn2_beta"], p["bn2_mean"], p["bn2_var"])

    # Spatial 1-pixel halo + channel pad to lane width; cast once at the edge.
    xp = jnp.pad(x, ((0, 0), (1, 1), (1, 1), (0, Cp - C))).astype(compute_dtype)

    def prep_w(w):  # (3,3,C,C) -> (9, Cp, Cp), tap-major, zero padded channels
        wp = jnp.pad(w, ((0, 0), (0, 0), (0, Cp - C), (0, Cp - C)))
        return wp.reshape(9, Cp, Cp).astype(compute_dtype)

    def prep_b(b):
        return jnp.pad(b, (0, Cp - C)).reshape(1, Cp).astype(jnp.float32)

    w1p, w2p = prep_w(w1), prep_w(w2)
    b1p, b2p = prep_b(b1), prep_b(b2)

    itemsize = jnp.dtype(compute_dtype).itemsize
    cost = pl.CostEstimate(
        flops=2 * (2 * N * H * W * 9 * Cp * Cp),          # two 3x3 convs
        transcendentals=0,
        bytes_accessed=int(xp.size * itemsize
                           + (w1p.size + w2p.size) * itemsize
                           + (b1p.size + b2p.size) * 4
                           + N * H * W * Cp * 4),
    )

    out = pl.pallas_call(
        _basicblock_kernel,
        out_shape=jax.ShapeDtypeStruct((N, H, W, Cp), jnp.float32),
        grid=(N,),
        in_specs=[
            pl.BlockSpec((1, H + 2, W + 2, Cp), lambda n: (n, 0, 0, 0)),
            pl.BlockSpec((9, Cp, Cp), lambda n: (0, 0, 0)),
            pl.BlockSpec((1, Cp), lambda n: (0, 0)),
            pl.BlockSpec((9, Cp, Cp), lambda n: (0, 0, 0)),
            pl.BlockSpec((1, Cp), lambda n: (0, 0)),
        ],
        out_specs=pl.BlockSpec((1, H, W, Cp), lambda n: (n, 0, 0, 0)),
        scratch_shapes=[
            pltpu.VMEM((H * W, Cp), jnp.float32),             # matmul accumulator
            pltpu.VMEM((H + 2, W + 2, Cp), compute_dtype),    # padded post-ReLU y
        ],
        compiler_params=pltpu.CompilerParams(dimension_semantics=("parallel",)),
        cost_estimate=cost,
    )(xp, w1p, b1p, w2p, b2p)
    return out[..., :C]                                       # drop channel pad


# ----------------------------------------------------------------------------
# Deterministic parameter init (Conv2d kaiming-uniform-like bound, non-trivial BN stats)
# ----------------------------------------------------------------------------
def init_params(key, inplanes, planes):
    ks = jax.random.split(key, 10)

    def conv_w(k, cin, cout):
        bound = 1.0 / float(cin * 9) ** 0.5
        return jax.random.uniform(k, (3, 3, cin, cout), jnp.float32, -bound, bound)

    return dict(
        w1=conv_w(ks[0], inplanes, planes),
        bn1_gamma=jax.random.uniform(ks[1], (planes,), jnp.float32, 0.5, 1.5),
        bn1_beta=jax.random.uniform(ks[2], (planes,), jnp.float32, -0.5, 0.5),
        bn1_mean=0.1 * jax.random.normal(ks[3], (planes,), jnp.float32),
        bn1_var=jax.random.uniform(ks[4], (planes,), jnp.float32, 0.5, 1.5),
        w2=conv_w(ks[5], planes, planes),
        bn2_gamma=jax.random.uniform(ks[6], (planes,), jnp.float32, 0.5, 1.5),
        bn2_beta=jax.random.uniform(ks[7], (planes,), jnp.float32, -0.5, 0.5),
        bn2_mean=0.1 * jax.random.normal(ks[8], (planes,), jnp.float32),
        bn2_var=jax.random.uniform(ks[9], (planes,), jnp.float32, 0.5, 1.5),
    )


# ----------------------------------------------------------------------------
# Pure-JAX reference (lax.conv + explicit eval-mode BN) for verification
# ----------------------------------------------------------------------------
def ref_forward(x, p, eps=BN_EPS):
    def convbn(v, w, g, b, m, var):
        y = lax.conv_general_dilated(
            v, w, (1, 1), [(1, 1), (1, 1)],
            dimension_numbers=("NHWC", "HWIO", "NHWC"))
        return (y - m) * (g / jnp.sqrt(var + eps)) + b

    y = jax.nn.relu(convbn(x, p["w1"], p["bn1_gamma"], p["bn1_beta"],
                           p["bn1_mean"], p["bn1_var"]))
    y = convbn(y, p["w2"], p["bn2_gamma"], p["bn2_beta"],
               p["bn2_mean"], p["bn2_var"])
    return y + x


if __name__ == "__main__":
    N, C, H, W = 2, 4, 16, 16         # batch=2, inplanes=planes=4, spatial=16
    key = jax.random.PRNGKey(0)
    kx, kp = jax.random.split(key)

    # PyTorch-style NCHW input, transposed once to the kernel's NHWC layout.
    x_nchw = jax.random.normal(kx, (N, C, H, W), jnp.float32)
    x = jnp.transpose(x_nchw, (0, 2, 3, 1))

    params = init_params(kp, inplanes=C, planes=C)
    ref = ref_forward(x, params)

    # f32-operand path (exact check).
    out_f32 = jax.block_until_ready(
        basicblock_forward(x, params, compute_dtype=jnp.float32))
    assert out_f32.shape == (N, H, W, C)
    assert jnp.allclose(out_f32, ref, rtol=1e-3, atol=1e-3), (
        float(jnp.max(jnp.abs(out_f32 - ref))))

    # Default bf16-operand path (f32 accumulate / bias / ReLU / residual math).
    out_bf16 = jax.block_until_ready(basicblock_forward(x, params))
    assert jnp.allclose(out_bf16, ref, rtol=7e-2, atol=7e-2), (
        float(jnp.max(jnp.abs(out_bf16 - ref))))

    # back to PyTorch's NCHW at the edge
    out_nchw = jnp.transpose(out_f32, (0, 3, 1, 2))
    assert out_nchw.shape == x_nchw.shape

    print("KERNEL_OK")
</pallas_src>

<mosaic_0001>
module attributes {stable_mosaic.version = 11 : i64} {
  func.func @_basicblock_kernel(%arg0: i32, %arg1: memref<1x18x18x128xf32, #tpu.memory_space<vmem>>, %arg2: memref<9x128x128xf32, #tpu.memory_space<vmem>>, %arg3: memref<1x128xf32, #tpu.memory_space<vmem>>, %arg4: memref<9x128x128xf32, #tpu.memory_space<vmem>>, %arg5: memref<1x128xf32, #tpu.memory_space<vmem>>, %arg6: memref<1x16x16x128xf32, #tpu.memory_space<vmem>>, %arg7: memref<256x128xf32, #tpu.memory_space<vmem>>, %arg8: memref<18x18x128xf32, #tpu.memory_space<vmem>>) attributes {dimension_semantics = [#tpu.dimension_semantics<parallel>], iteration_bounds = array<i64: 2>, scalar_prefetch = 0 : i64, scratch_operands = 2 : i64, tpu.core_type = #tpu.core_type<tc>, window_params = [{transform_indices = @transform_0, window_bounds = array<i64: 1, 18, 18, 128>}, {pipeline_mode = #tpu.pipeline_mode<synchronous>, transform_indices = @transform_1, window_bounds = array<i64: 9, 128, 128>}, {pipeline_mode = #tpu.pipeline_mode<synchronous>, transform_indices = @transform_2, window_bounds = array<i64: 1, 128>}, {pipeline_mode = #tpu.pipeline_mode<synchronous>, transform_indices = @transform_3, window_bounds = array<i64: 9, 128, 128>}, {pipeline_mode = #tpu.pipeline_mode<synchronous>, transform_indices = @transform_4, window_bounds = array<i64: 1, 128>}, {transform_indices = @transform_5, window_bounds = array<i64: 1, 16, 16, 128>}]} {
    %c0 = arith.constant 0 : index
    %c0_0 = arith.constant 0 : index
    %c0_1 = arith.constant 0 : index
    %c0_2 = arith.constant 0 : index
    %0 = vector.load %arg1[%c0, %c0_0, %c0_1, %c0_2] : memref<1x18x18x128xf32, #tpu.memory_space<vmem>>, vector<1x18x18x128xf32>
    %1 = vector.shape_cast %0 : vector<1x18x18x128xf32> to vector<18x18x128xf32>
    %2 = vector.extract_strided_slice %1 {offsets = [0, 0, 0], sizes = [16, 16, 128], strides = [1, 1, 1]} : vector<18x18x128xf32> to vector<16x16x128xf32>
    %3 = vector.shape_cast %2 : vector<16x16x128xf32> to vector<256x128xf32>
    %c0_3 = arith.constant 0 : index
    %c0_4 = arith.constant 0 : index
    %c0_5 = arith.constant 0 : index
    %4 = vector.load %arg2[%c0_3, %c0_4, %c0_5] : memref<9x128x128xf32, #tpu.memory_space<vmem>>, vector<1x128x128xf32>
    %5 = vector.shape_cast %4 : vector<1x128x128xf32> to vector<128x128xf32>
    %cst = arith.constant dense<0.000000e+00> : vector<256x128xf32>
    %6 = tpu.matmul %3, %5, %cst {dimension_numbers = #tpu.dot_dimension_numbers<[1], [0], [0], [1], [0, 0, 1, 1], [], []>} : vector<256x128xf32>, vector<128x128xf32>, vector<256x128xf32> -> vector<256x128xf32>
    %c0_6 = arith.constant 0 : index
    %c0_7 = arith.constant 0 : index
    %7 = vector.load %arg7[%c0_6, %c0_7] : memref<256x128xf32, #tpu.memory_space<vmem>>, vector<256x128xf32>
    tpu.vector_store %arg7[%c0_6, %c0_7], %6 {strides = array<i32>} : memref<256x128xf32, #tpu.memory_space<vmem>>, vector<256x128xf32>,
    %8 = vector.extract_strided_slice %1 {offsets = [0, 1, 0], sizes = [16, 16, 128], strides = [1, 1, 1]} : vector<18x18x128xf32> to vector<16x16x128xf32>
    %9 = vector.shape_cast %8 : vector<16x16x128xf32> to vector<256x128xf32>
    %c1 = arith.constant 1 : index
    %c0_8 = arith.constant 0 : index
    %c0_9 = arith.constant 0 : index
    %10 = vector.load %arg2[%c1, %c0_8, %c0_9] : memref<9x128x128xf32, #tpu.memory_space<vmem>>, vector<1x128x128xf32>
    %11 = vector.shape_cast %10 : vector<1x128x128xf32> to vector<128x128xf32>
    %cst_10 = arith.constant dense<0.000000e+00> : vector<256x128xf32>
    %12 = tpu.matmul %9, %11, %cst_10 {dimension_numbers = #tpu.dot_dimension_numbers<[1], [0], [0], [1], [0, 0, 1, 1], [], []>} : vector<256x128xf32>, vector<128x128xf32>, vector<256x128xf32> -> vector<256x128xf32>
    %c0_11 = arith.constant 0 : index
    %c0_12 = arith.constant 0 : index
    %13 = vector.load %arg7[%c0_11, %c0_12] : memref<256x128xf32, #tpu.memory_space<vmem>>, vector<256x128xf32>
    %14 = arith.addf %13, %12 : vector<256x128xf32>
    %c0_13 = arith.constant 0 : index
    %c0_14 = arith.constant 0 : index
    %15 = vector.load %arg7[%c0_13, %c0_14] : memref<256x128xf32, #tpu.memory_space<vmem>>, vector<256x128xf32>
    tpu.vector_store %arg7[%c0_13, %c0_14], %14 {strides = array<i32>} : memref<256x128xf32, #tpu.memory_space<vmem>>, vector<256x128xf32>,
    %16 = vector.extract_strided_slice %1 {offsets = [0, 2, 0], sizes = [16, 16, 128], strides = [1, 1, 1]} : vector<18x18x128xf32> to vector<16x16x128xf32>
    %17 = vector.shape_cast %16 : vector<16x16x128xf32> to vector<256x128xf32>
    %c2 = arith.constant 2 : index
    %c0_15 = arith.constant 0 : index
    %c0_16 = arith.constant 0 : index
    %18 = vector.load %arg2[%c2, %c0_15, %c0_16] : memref<9x128x128xf32, #tpu.memory_space<vmem>>, vector<1x128x128xf32>
    %19 = vector.shape_cast %18 : vector<1x128x128xf32> to vector<128x128xf32>
    %cst_17 = arith.constant dense<0.000000e+00> : vector<256x128xf32>
    %20 = tpu.matmul %17, %19, %cst_17 {dimension_numbers = #tpu.dot_dimension_numbers<[1], [0], [0], [1], [0, 0, 1, 1], [], []>} : vector<256x128xf32>, vector<128x128xf32>, vector<256x128xf32> -> vector<256x128xf32>
    %c0_18 = arith.constant 0 : index
    %c0_19 = arith.constant 0 : index
    %21 = vector.load %arg7[%c0_18, %c0_19] : memref<256x128xf32, #tpu.memory_space<vmem>>, vector<256x128xf32>
    %22 = arith.addf %21, %20 : vector<256x128xf32>
    %c0_20 = arith.constant 0 : index
    %c0_21 = arith.constant 0 : index
    %23 = vector.load %arg7[%c0_20, %c0_21] : memref<256x128xf32, #tpu.memory_space<vmem>>, vector<256x128xf32>
    tpu.vector_store %arg7[%c0_20, %c0_21], %22 {strides = array<i32>} : memref<256x128xf32, #tpu.memory_space<vmem>>, vector<256x128xf32>,
    %24 = vector.extract_strided_slice %1 {offsets = [1, 0, 0], sizes = [16, 16, 128], strides = [1, 1, 1]} : vector<18x18x128xf32> to vector<16x16x128xf32>
    %25 = vector.shape_cast %24 : vector<16x16x128xf32> to vector<256x128xf32>
    %c3 = arith.constant 3 : index
    %c0_22 = arith.constant 0 : index
    %c0_23 = arith.constant 0 : index
    %26 = vector.load %arg2[%c3, %c0_22, %c0_23] : memref<9x128x128xf32, #tpu.memory_space<vmem>>, vector<1x128x128xf32>
    %27 = vector.shape_cast %26 : vector<1x128x128xf32> to vector<128x128xf32>
    %cst_24 = arith.constant dense<0.000000e+00> : vector<256x128xf32>
    %28 = tpu.matmul %25, %27, %cst_24 {dimension_numbers = #tpu.dot_dimension_numbers<[1], [0], [0], [1], [0, 0, 1, 1], [], []>} : vector<256x128xf32>, vector<128x128xf32>, vector<256x128xf32> -> vector<256x128xf32>
    %c0_25 = arith.constant 0 : index
    %c0_26 = arith.constant 0 : index
    %29 = vector.load %arg7[%c0_25, %c0_26] : memref<256x128xf32, #tpu.memory_space<vmem>>, vector<256x128xf32>
    %30 = arith.addf %29, %28 : vector<256x128xf32>
    %c0_27 = arith.constant 0 : index
    %c0_28 = arith.constant 0 : index
    %31 = vector.load %arg7[%c0_27, %c0_28] : memref<256x128xf32, #tpu.memory_space<vmem>>, vector<256x128xf32>
    tpu.vector_store %arg7[%c0_27, %c0_28], %30 {strides = array<i32>} : memref<256x128xf32, #tpu.memory_space<vmem>>, vector<256x128xf32>,
    %32 = vector.extract_strided_slice %1 {offsets = [1, 1, 0], sizes = [16, 16, 128], strides = [1, 1, 1]} : vector<18x18x128xf32> to vector<16x16x128xf32>
    %33 = vector.shape_cast %32 : vector<16x16x128xf32> to vector<256x128xf32>
    %c4 = arith.constant 4 : index
    %c0_29 = arith.constant 0 : index
    %c0_30 = arith.constant 0 : index
    %34 = vector.load %arg2[%c4, %c0_29, %c0_30] : memref<9x128x128xf32, #tpu.memory_space<vmem>>, vector<1x128x128xf32>
    %35 = vector.shape_cast %34 : vector<1x128x128xf32> to vector<128x128xf32>
    %cst_31 = arith.constant dense<0.000000e+00> : vector<256x128xf32>
    %36 = tpu.matmul %33, %35, %cst_31 {dimension_numbers = #tpu.dot_dimension_numbers<[1], [0], [0], [1], [0, 0, 1, 1], [], []>} : vector<256x128xf32>, vector<128x128xf32>, vector<256x128xf32> -> vector<256x128xf32>
    %c0_32 = arith.constant 0 : index
    %c0_33 = arith.constant 0 : index
    %37 = vector.load %arg7[%c0_32, %c0_33] : memref<256x128xf32, #tpu.memory_space<vmem>>, vector<256x128xf32>
    %38 = arith.addf %37, %36 : vector<256x128xf32>
    %c0_34 = arith.constant 0 : index
    %c0_35 = arith.constant 0 : index
    %39 = vector.load %arg7[%c0_34, %c0_35] : memref<256x128xf32, #tpu.memory_space<vmem>>, vector<256x128xf32>
    tpu.vector_store %arg7[%c0_34, %c0_35], %38 {strides = array<i32>} : memref<256x128xf32, #tpu.memory_space<vmem>>, vector<256x128xf32>,
    %40 = vector.extract_strided_slice %1 {offsets = [1, 2, 0], sizes = [16, 16, 128], strides = [1, 1, 1]} : vector<18x18x128xf32> to vector<16x16x128xf32>
    %41 = vector.shape_cast %40 : vector<16x16x128xf32> to vector<256x128xf32>
    %c5 = arith.constant 5 : index
    %c0_36 = arith.constant 0 : index
    %c0_37 = arith.constant 0 : index
    %42 = vector.load %arg2[%c5, %c0_36, %c0_37] : memref<9x128x128xf32, #tpu.memory_space<vmem>>, vector<1x128x128xf32>
    %43 = vector.shape_cast %42 : vector<1x128x128xf32> to vector<128x128xf32>
    %cst_38 = arith.constant dense<0.000000e+00> : vector<256x128xf32>
    %44 = tpu.matmul %41, %43, %cst_38 {dimension_numbers = #tpu.dot_dimension_numbers<[1], [0], [0], [1], [0, 0, 1, 1], [], []>} : vector<256x128xf32>, vector<128x128xf32>, vector<256x128xf32> -> vector<256x128xf32>
    %c0_39 = arith.constant 0 : index
    %c0_40 = arith.constant 0 : index
    %45 = vector.load %arg7[%c0_39, %c0_40] : memref<256x128xf32, #tpu.memory_space<vmem>>, vector<256x128xf32>
    %46 = arith.addf %45, %44 : vector<256x128xf32>
    %c0_41 = arith.constant 0 : index
    %c0_42 = arith.constant 0 : index
    %47 = vector.load %arg7[%c0_41, %c0_42] : memref<256x128xf32, #tpu.memory_space<vmem>>, vector<256x128xf32>
    tpu.vector_store %arg7[%c0_41, %c0_42], %46 {strides = array<i32>} : memref<256x128xf32, #tpu.memory_space<vmem>>, vector<256x128xf32>,
    %48 = vector.extract_strided_slice %1 {offsets = [2, 0, 0], sizes = [16, 16, 128], strides = [1, 1, 1]} : vector<18x18x128xf32> to vector<16x16x128xf32>
    %49 = vector.shape_cast %48 : vector<16x16x128xf32> to vector<256x128xf32>
    %c6 = arith.constant 6 : index
    %c0_43 = arith.constant 0 : index
    %c0_44 = arith.constant 0 : index
    %50 = vector.load %arg2[%c6, %c0_43, %c0_44] : memref<9x128x128xf32, #tpu.memory_space<vmem>>, vector<1x128x128xf32>
    %51 = vector.shape_cast %50 : vector<1x128x128xf32> to vector<128x128xf32>
    %cst_45 = arith.constant dense<0.000000e+00> : vector<256x128xf32>
    %52 = tpu.matmul %49, %51, %cst_45 {dimension_numbers = #tpu.dot_dimension_numbers<[1], [0], [0], [1], [0, 0, 1, 1], [], []>} : vector<256x128xf32>, vector<128x128xf32>, vector<256x128xf32> -> vector<256x128xf32>
    %c0_46 = arith.constant 0 : index
    %c0_47 = arith.constant 0 : index
    %53 = vector.load %arg7[%c0_46, %c0_47] : memref<256x128xf32, #tpu.memory_space<vmem>>, vector<256x128xf32>
    %54 = arith.addf %53, %52 : vector<256x128xf32>
    %c0_48 = arith.constant 0 : index
    %c0_49 = arith.constant 0 : index
    %55 = vector.load %arg7[%c0_48, %c0_49] : memref<256x128xf32, #tpu.memory_space<vmem>>, vector<256x128xf32>
    tpu.vector_store %arg7[%c0_48, %c0_49], %54 {strides = array<i32>} : memref<256x128xf32, #tpu.memory_space<vmem>>, vector<256x128xf32>,
    %56 = vector.extract_strided_slice %1 {offsets = [2, 1, 0], sizes = [16, 16, 128], strides = [1, 1, 1]} : vector<18x18x128xf32> to vector<16x16x128xf32>
    %57 = vector.shape_cast %56 : vector<16x16x128xf32> to vector<256x128xf32>
    %c7 = arith.constant 7 : index
    %c0_50 = arith.constant 0 : index
    %c0_51 = arith.constant 0 : index
    %58 = vector.load %arg2[%c7, %c0_50, %c0_51] : memref<9x128x128xf32, #tpu.memory_space<vmem>>, vector<1x128x128xf32>
    %59 = vector.shape_cast %58 : vector<1x128x128xf32> to vector<128x128xf32>
    %cst_52 = arith.constant dense<0.000000e+00> : vector<256x128xf32>
    %60 = tpu.matmul %57, %59, %cst_52 {dimension_numbers = #tpu.dot_dimension_numbers<[1], [0], [0], [1], [0, 0, 1, 1], [], []>} : vector<256x128xf32>, vector<128x128xf32>, vector<256x128xf32> -> vector<256x128xf32>
    %c0_53 = arith.constant 0 : index
    %c0_54 = arith.constant 0 : index
    %61 = vector.load %arg7[%c0_53, %c0_54] : memref<256x128xf32, #tpu.memory_space<vmem>>, vector<256x128xf32>
    %62 = arith.addf %61, %60 : vector<256x128xf32>
    %c0_55 = arith.constant 0 : index
    %c0_56 = arith.constant 0 : index
    %63 = vector.load %arg7[%c0_55, %c0_56] : memref<256x128xf32, #tpu.memory_space<vmem>>, vector<256x128xf32>
    tpu.vector_store %arg7[%c0_55, %c0_56], %62 {strides = array<i32>} : memref<256x128xf32, #tpu.memory_space<vmem>>, vector<256x128xf32>,
    %64 = vector.extract_strided_slice %1 {offsets = [2, 2, 0], sizes = [16, 16, 128], strides = [1, 1, 1]} : vector<18x18x128xf32> to vector<16x16x128xf32>
    %65 = vector.shape_cast %64 : vector<16x16x128xf32> to vector<256x128xf32>
    %c8 = arith.constant 8 : index
    %c0_57 = arith.constant 0 : index
    %c0_58 = arith.constant 0 : index
    %66 = vector.load %arg2[%c8, %c0_57, %c0_58] : memref<9x128x128xf32, #tpu.memory_space<vmem>>, vector<1x128x128xf32>
    %67 = vector.shape_cast %66 : vector<1x128x128xf32> to vector<128x128xf32>
    %cst_59 = arith.constant dense<0.000000e+00> : vector<256x128xf32>
    %68 = tpu.matmul %65, %67, %cst_59 {dimension_numbers = #tpu.dot_dimension_numbers<[1], [0], [0], [1], [0, 0, 1, 1], [], []>} : vector<256x128xf32>, vector<128x128xf32>, vector<256x128xf32> -> vector<256x128xf32>
    %c0_60 = arith.constant 0 : index
    %c0_61 = arith.constant 0 : index
    %69 = vector.load %arg7[%c0_60, %c0_61] : memref<256x128xf32, #tpu.memory_space<vmem>>, vector<256x128xf32>
    %70 = arith.addf %69, %68 : vector<256x128xf32>
    %c0_62 = arith.constant 0 : index
    %c0_63 = arith.constant 0 : index
    %71 = vector.load %arg7[%c0_62, %c0_63] : memref<256x128xf32, #tpu.memory_space<vmem>>, vector<256x128xf32>
    tpu.vector_store %arg7[%c0_62, %c0_63], %70 {strides = array<i32>} : memref<256x128xf32, #tpu.memory_space<vmem>>, vector<256x128xf32>,
    %c0_64 = arith.constant 0 : index
    %c0_65 = arith.constant 0 : index
    %72 = vector.load %arg7[%c0_64, %c0_65] : memref<256x128xf32, #tpu.memory_space<vmem>>, vector<256x128xf32>
    %c0_66 = arith.constant 0 : index
    %c0_67 = arith.constant 0 : index
    %73 = vector.load %arg3[%c0_66, %c0_67] : memref<1x128xf32, #tpu.memory_space<vmem>>, vector<1x128xf32>
    %74 = vector.broadcast %73 : vector<1x128xf32> to vector<256x128xf32>
    %75 = arith.addf %72, %74 : vector<256x128xf32>
    %cst_68 = arith.constant 0.000000e+00 : f32
    %76 = vector.broadcast %cst_68 : f32 to vector<256x128xf32>
    %77 = arith.maximumf %75, %76 : vector<256x128xf32>
    %cst_69 = arith.constant 0.000000e+00 : f32
    %78 = vector.broadcast %cst_69 : f32 to vector<18x18x128xf32>
    %c0_70 = arith.constant 0 : index
    %c0_71 = arith.constant 0 : index
    %c0_72 = arith.constant 0 : index
    %79 = vector.load %arg8[%c0_70, %c0_71, %c0_72] : memref<18x18x128xf32, #tpu.memory_space<vmem>>, vector<18x18x128xf32>
    tpu.vector_store %arg8[%c0_70, %c0_71, %c0_72], %78 {strides = array<i32>} : memref<18x18x128xf32, #tpu.memory_space<vmem>>, vector<18x18x128xf32>,
    %80 = vector.shape_cast %77 : vector<256x128xf32> to vector<16x16x128xf32>
    %c1_73 = arith.constant 1 : index
    %c1_74 = arith.constant 1 : index
    %c0_75 = arith.constant 0 : index
    %81 = vector.load %arg8[%c1_73, %c1_74, %c0_75] : memref<18x18x128xf32, #tpu.memory_space<vmem>>, vector<16x16x128xf32>
    tpu.vector_store %arg8[%c1_73, %c1_74, %c0_75], %80 {strides = array<i32>} : memref<18x18x128xf32, #tpu.memory_space<vmem>>, vector<16x16x128xf32>,
    %c0_76 = arith.constant 0 : index
    %c0_77 = arith.constant 0 : index
    %c0_78 = arith.constant 0 : index
    %82 = vector.load %arg8[%c0_76, %c0_77, %c0_78] : memref<18x18x128xf32, #tpu.memory_space<vmem>>, vector<18x18x128xf32>
    %83 = vector.extract_strided_slice %82 {offsets = [0, 0, 0], sizes = [16, 16, 128], strides = [1, 1, 1]} : vector<18x18x128xf32> to vector<16x16x128xf32>
    %84 = vector.shape_cast %83 : vector<16x16x128xf32> to vector<256x128xf32>
    %c0_79 = arith.constant 0 : index
    %c0_80 = arith.constant 0 : index
    %c0_81 = arith.constant 0 : index
    %85 = vector.load %arg4[%c0_79, %c0_80, %c0_81] : memref<9x128x128xf32, #tpu.memory_space<vmem>>, vector<1x128x128xf32>
    %86 = vector.shape_cast %85 : vector<1x128x128xf32> to vector<128x128xf32>
    %cst_82 = arith.constant dense<0.000000e+00> : vector<256x128xf32>
    %87 = tpu.matmul %84, %86, %cst_82 {dimension_numbers = #tpu.dot_dimension_numbers<[1], [0], [0], [1], [0, 0, 1, 1], [], []>} : vector<256x128xf32>, vector<128x128xf32>, vector<256x128xf32> -> vector<256x128xf32>
    %c0_83 = arith.constant 0 : index
    %c0_84 = arith.constant 0 : index
    %88 = vector.load %arg7[%c0_83, %c0_84] : memref<256x128xf32, #tpu.memory_space<vmem>>, vector<256x128xf32>
    tpu.vector_store %arg7[%c0_83, %c0_84], %87 {strides = array<i32>} : memref<256x128xf32, #tpu.memory_space<vmem>>, vector<256x128xf32>,
    %89 = vector.extract_strided_slice %82 {offsets = [0, 1, 0], sizes = [16, 16, 128], strides = [1, 1, 1]} : vector<18x18x128xf32> to vector<16x16x128xf32>
    %90 = vector.shape_cast %89 : vector<16x16x128xf32> to vector<256x128xf32>
    %c1_85 = arith.constant 1 : index
    %c0_86 = arith.constant 0 : index
    %c0_87 = arith.constant 0 : index
    %91 = vector.load %arg4[%c1_85, %c0_86, %c0_87] : memref<9x128x128xf32, #tpu.memory_space<vmem>>, vector<1x128x128xf32>
    %92 = vector.shape_cast %91 : vector<1x128x128xf32> to vector<128x128xf32>
    %cst_88 = arith.constant dense<0.000000e+00> : vector<256x128xf32>
    %93 = tpu.matmul %90, %92, %cst_88 {dimension_numbers = #tpu.dot_dimension_numbers<[1], [0], [0], [1], [0, 0, 1, 1], [], []>} : vector<256x128xf32>, vector<128x128xf32>, vector<256x128xf32> -> vector<256x128xf32>
    %c0_89 = arith.constant 0 : index
    %c0_90 = arith.constant 0 : index
    %94 = vector.load %arg7[%c0_89, %c0_90] : memref<256x128xf32, #tpu.memory_space<vmem>>, vector<256x128xf32>
    %95 = arith.addf %94, %93 : vector<256x128xf32>
    %c0_91 = arith.constant 0 : index
    %c0_92 = arith.constant 0 : index
    %96 = vector.load %arg7[%c0_91, %c0_92] : memref<256x128xf32, #tpu.memory_space<vmem>>, vector<256x128xf32>
    tpu.vector_store %arg7[%c0_91, %c0_92], %95 {strides = array<i32>} : memref<256x128xf32, #tpu.memory_space<vmem>>, vector<256x128xf32>,
    %97 = vector.extract_strided_slice %82 {offsets = [0, 2, 0], sizes = [16, 16, 128], strides = [1, 1, 1]} : vector<18x18x128xf32> to vector<16x16x128xf32>
    %98 = vector.shape_cast %97 : vector<16x16x128xf32> to vector<256x128xf32>
    %c2_93 = arith.constant 2 : index
    %c0_94 = arith.constant 0 : index
    %c0_95 = arith.constant 0 : index
    %99 = vector.load %arg4[%c2_93, %c0_94, %c0_95] : memref<9x128x128xf32, #tpu.memory_space<vmem>>, vector<1x128x128xf32>
    %100 = vector.shape_cast %99 : vector<1x128x128xf32> to vector<128x128xf32>
    %cst_96 = arith.constant dense<0.000000e+00> : vector<256x128xf32>
    %101 = tpu.matmul %98, %100, %cst_96 {dimension_numbers = #tpu.dot_dimension_numbers<[1], [0], [0], [1], [0, 0, 1, 1], [], []>} : vector<256x128xf32>, vector<128x128xf32>, vector<256x128xf32> -> vector<256x128xf32>
    %c0_97 = arith.constant 0 : index
    %c0_98 = arith.constant 0 : index
    %102 = vector.load %arg7[%c0_97, %c0_98] : memref<256x128xf32, #tpu.memory_space<vmem>>, vector<256x128xf32>
    %103 = arith.addf %102, %101 : vector<256x128xf32>
    %c0_99 = arith.constant 0 : index
    %c0_100 = arith.constant 0 : index
    %104 = vector.load %arg7[%c0_99, %c0_100] : memref<256x128xf32, #tpu.memory_space<vmem>>, vector<256x128xf32>
    tpu.vector_store %arg7[%c0_99, %c0_100], %103 {strides = array<i32>} : memref<256x128xf32, #tpu.memory_space<vmem>>, vector<256x128xf32>,
    %105 = vector.extract_strided_slice %82 {offsets = [1, 0, 0], sizes = [16, 16, 128], strides = [1, 1, 1]} : vector<18x18x128xf32> to vector<16x16x128xf32>
    %106 = vector.shape_cast %105 : vector<16x16x128xf32> to vector<256x128xf32>
    %c3_101 = arith.constant 3 : index
    %c0_102 = arith.constant 0 : index
    %c0_103 = arith.constant 0 : index
    %107 = vector.load %arg4[%c3_101, %c0_102, %c0_103] : memref<9x128x128xf32, #tpu.memory_space<vmem>>, vector<1x128x128xf32>
    %108 = vector.shape_cast %107 : vector<1x128x128xf32> to vector<128x128xf32>
    %cst_104 = arith.constant dense<0.000000e+00> : vector<256x128xf32>
    %109 = tpu.matmul %106, %108, %cst_104 {dimension_numbers = #tpu.dot_dimension_numbers<[1], [0], [0], [1], [0, 0, 1, 1], [], []>} : vector<256x128xf32>, vector<128x128xf32>, vector<256x128xf32> -> vector<256x128xf32>
    %c0_105 = arith.constant 0 : index
    %c0_106 = arith.constant 0 : index
    %110 = vector.load %arg7[%c0_105, %c0_106] : memref<256x128xf32, #tpu.memory_space<vmem>>, vector<256x128xf32>
    %111 = arith.addf %110, %109 : vector<256x128xf32>
    %c0_107 = arith.constant 0 : index
    %c0_108 = arith.constant 0 : index
    %112 = vector.load %arg7[%c0_107, %c0_108] : memref<256x128xf32, #tpu.memory_space<vmem>>, vector<256x128xf32>
    tpu.vector_store %arg7[%c0_107, %c0_108], %111 {strides = array<i32>} : memref<256x128xf32, #tpu.memory_space<vmem>>, vector<256x128xf32>,
    %113 = vector.extract_strided_slice %82 {offsets = [1, 1, 0], sizes = [16, 16, 128], strides = [1, 1, 1]} : vector<18x18x128xf32> to vector<16x16x128xf32>
    %114 = vector.shape_cast %113 : vector<16x16x128xf32> to vector<256x128xf32>
    %c4_109 = arith.constant 4 : index
    %c0_110 = arith.constant 0 : index
    %c0_111 = arith.constant 0 : index
    %115 = vector.load %arg4[%c4_109, %c0_110, %c0_111] : memref<9x128x128xf32, #tpu.memory_space<vmem>>, vector<1x128x128xf32>
    %116 = vector.shape_cast %115 : vector<1x128x128xf32> to vector<128x128xf32>
    %cst_112 = arith.constant dense<0.000000e+00> : vector<256x128xf32>
    %117 = tpu.matmul %114, %116, %cst_112 {dimension_numbers = #tpu.dot_dimension_numbers<[1], [0], [0], [1], [0, 0, 1, 1], [], []>} : vector<256x128xf32>, vector<128x128xf32>, vector<256x128xf32> -> vector<256x128xf32>
    %c0_113 = arith.constant 0 : index
    %c0_114 = arith.constant 0 : index
    %118 = vector.load %arg7[%c0_113, %c0_114] : memref<256x128xf32, #tpu.memory_space<vmem>>, vector<256x128xf32>
    %119 = arith.addf %118, %117 : vector<256x128xf32>
    %c0_115 = arith.constant 0 : index
    %c0_116 = arith.constant 0 : index
    %120 = vector.load %arg7[%c0_115, %c0_116] : memref<256x128xf32, #tpu.memory_space<vmem>>, vector<256x128xf32>
    tpu.vector_store %arg7[%c0_115, %c0_116], %119 {strides = array<i32>} : memref<256x128xf32, #tpu.memory_space<vmem>>, vector<256x128xf32>,
    %121 = vector.extract_strided_slice %82 {offsets = [1, 2, 0], sizes = [16, 16, 128], strides = [1, 1, 1]} : vector<18x18x128xf32> to vector<16x16x128xf32>
    %122 = vector.shape_cast %121 : vector<16x16x128xf32> to vector<256x128xf32>
    %c5_117 = arith.constant 5 : index
    %c0_118 = arith.constant 0 : index
    %c0_119 = arith.constant 0 : index
    %123 = vector.load %arg4[%c5_117, %c0_118, %c0_119] : memref<9x128x128xf32, #tpu.memory_space<vmem>>, vector<1x128x128xf32>
    %124 = vector.shape_cast %123 : vector<1x128x128xf32> to vector<128x128xf32>
    %cst_120 = arith.constant dense<0.000000e+00> : vector<256x128xf32>
    %125 = tpu.matmul %122, %124, %cst_120 {dimension_numbers = #tpu.dot_dimension_numbers<[1], [0], [0], [1], [0, 0, 1, 1], [], []>} : vector<256x128xf32>, vector<128x128xf32>, vector<256x128xf32> -> vector<256x128xf32>
    %c0_121 = arith.constant 0 : index
    %c0_122 = arith.constant 0 : index
    %126 = vector.load %arg7[%c0_121, %c0_122] : memref<256x128xf32, #tpu.memory_space<vmem>>, vector<256x128xf32>
    %127 = arith.addf %126, %125 : vector<256x128xf32>
    %c0_123 = arith.constant 0 : index
    %c0_124 = arith.constant 0 : index
    %128 = vector.load %arg7[%c0_123, %c0_124] : memref<256x128xf32, #tpu.memory_space<vmem>>, vector<256x128xf32>
    tpu.vector_store %arg7[%c0_123, %c0_124], %127 {strides = array<i32>} : memref<256x128xf32, #tpu.memory_space<vmem>>, vector<256x128xf32>,
    %129 = vector.extract_strided_slice %82 {offsets = [2, 0, 0], sizes = [16, 16, 128], strides = [1, 1, 1]} : vector<18x18x128xf32> to vector<16x16x128xf32>
    %130 = vector.shape_cast %129 : vector<16x16x128xf32> to vector<256x128xf32>
    %c6_125 = arith.constant 6 : index
    %c0_126 = arith.constant 0 : index
    %c0_127 = arith.constant 0 : index
    %131 = vector.load %arg4[%c6_125, %c0_126, %c0_127] : memref<9x128x128xf32, #tpu.memory_space<vmem>>, vector<1x128x128xf32>
    %132 = vector.shape_cast %131 : vector<1x128x128xf32> to vector<128x128xf32>
    %cst_128 = arith.constant dense<0.000000e+00> : vector<256x128xf32>
    %133 = tpu.matmul %130, %132, %cst_128 {dimension_numbers = #tpu.dot_dimension_numbers<[1], [0], [0], [1], [0, 0, 1, 1], [], []>} : vector<256x128xf32>, vector<128x128xf32>, vector<256x128xf32> -> vector<256x128xf32>
    %c0_129 = arith.constant 0 : index
    %c0_130 = arith.constant 0 : index
    %134 = vector.load %arg7[%c0_129, %c0_130] : memref<256x128xf32, #tpu.memory_space<vmem>>, vector<256x128xf32>
    %135 = arith.addf %134, %133 : vector<256x128xf32>
    %c0_131 = arith.constant 0 : index
    %c0_132 = arith.constant 0 : index
    %136 = vector.load %arg7[%c0_131, %c0_132] : memref<256x128xf32, #tpu.memory_space<vmem>>, vector<256x128xf32>
    tpu.vector_store %arg7[%c0_131, %c0_132], %135 {strides = array<i32>} : memref<256x128xf32, #tpu.memory_space<vmem>>, vector<256x128xf32>,
    %137 = vector.extract_strided_slice %82 {offsets = [2, 1, 0], sizes = [16, 16, 128], strides = [1, 1, 1]} : vector<18x18x128xf32> to vector<16x16x128xf32>
    %138 = vector.shape_cast %137 : vector<16x16x128xf32> to vector<256x128xf32>
    %c7_133 = arith.constant 7 : index
    %c0_134 = arith.constant 0 : index
    %c0_135 = arith.constant 0 : index
    %139 = vector.load %arg4[%c7_133, %c0_134, %c0_135] : memref<9x128x128xf32, #tpu.memory_space<vmem>>, vector<1x128x128xf32>
    %140 = vector.shape_cast %139 : vector<1x128x128xf32> to vector<128x128xf32>
    %cst_136 = arith.constant dense<0.000000e+00> : vector<256x128xf32>
    %141 = tpu.matmul %138, %140, %cst_136 {dimension_numbers = #tpu.dot_dimension_numbers<[1], [0], [0], [1], [0, 0, 1, 1], [], []>} : vector<256x128xf32>, vector<128x128xf32>, vector<256x128xf32> -> vector<256x128xf32>
    %c0_137 = arith.constant 0 : index
    %c0_138 = arith.constant 0 : index
    %142 = vector.load %arg7[%c0_137, %c0_138] : memref<256x128xf32, #tpu.memory_space<vmem>>, vector<256x128xf32>
    %143 = arith.addf %142, %141 : vector<256x128xf32>
    %c0_139 = arith.constant 0 : index
    %c0_140 = arith.constant 0 : index
    %144 = vector.load %arg7[%c0_139, %c0_140] : memref<256x128xf32, #tpu.memory_space<vmem>>, vector<256x128xf32>
    tpu.vector_store %arg7[%c0_139, %c0_140], %143 {strides = array<i32>} : memref<256x128xf32, #tpu.memory_space<vmem>>, vector<256x128xf32>,
    %145 = vector.extract_strided_slice %82 {offsets = [2, 2, 0], sizes = [16, 16, 128], strides = [1, 1, 1]} : vector<18x18x128xf32> to vector<16x16x128xf32>
    %146 = vector.shape_cast %145 : vector<16x16x128xf32> to vector<256x128xf32>
    %c8_141 = arith.constant 8 : index
    %c0_142 = arith.constant 0 : index
    %c0_143 = arith.constant 0 : index
    %147 = vector.load %arg4[%c8_141, %c0_142, %c0_143] : memref<9x128x128xf32, #tpu.memory_space<vmem>>, vector<1x128x128xf32>
    %148 = vector.shape_cast %147 : vector<1x128x128xf32> to vector<128x128xf32>
    %cst_144 = arith.constant dense<0.000000e+00> : vector<256x128xf32>
    %149 = tpu.matmul %146, %148, %cst_144 {dimension_numbers = #tpu.dot_dimension_numbers<[1], [0], [0], [1], [0, 0, 1, 1], [], []>} : vector<256x128xf32>, vector<128x128xf32>, vector<256x128xf32> -> vector<256x128xf32>
    %c0_145 = arith.constant 0 : index
    %c0_146 = arith.constant 0 : index
    %150 = vector.load %arg7[%c0_145, %c0_146] : memref<256x128xf32, #tpu.memory_space<vmem>>, vector<256x128xf32>
    %151 = arith.addf %150, %149 : vector<256x128xf32>
    %c0_147 = arith.constant 0 : index
    %c0_148 = arith.constant 0 : index
    %152 = vector.load %arg7[%c0_147, %c0_148] : memref<256x128xf32, #tpu.memory_space<vmem>>, vector<256x128xf32>
    tpu.vector_store %arg7[%c0_147, %c0_148], %151 {strides = array<i32>} : memref<256x128xf32, #tpu.memory_space<vmem>>, vector<256x128xf32>,
    %153 = vector.extract_strided_slice %1 {offsets = [1, 1, 0], sizes = [16, 16, 128], strides = [1, 1, 1]} : vector<18x18x128xf32> to vector<16x16x128xf32>
    %c0_149 = arith.constant 0 : index
    %c0_150 = arith.constant 0 : index
    %154 = vector.load %arg7[%c0_149, %c0_150] : memref<256x128xf32, #tpu.memory_space<vmem>>, vector<256x128xf32>
    %c0_151 = arith.constant 0 : index
    %c0_152 = arith.constant 0 : index
    %155 = vector.load %arg5[%c0_151, %c0_152] : memref<1x128xf32, #tpu.memory_space<vmem>>, vector<1x128xf32>
    %156 = vector.broadcast %155 : vector<1x128xf32> to vector<256x128xf32>
    %157 = arith.addf %154, %156 : vector<256x128xf32>
    %158 = vector.shape_cast %153 : vector<16x16x128xf32> to vector<256x128xf32>
    %159 = arith.addf %157, %158 : vector<256x128xf32>
    %160 = vector.shape_cast %159 : vector<256x128xf32> to vector<1x16x16x128xf32>
    %c0_153 = arith.constant 0 : index
    %c0_154 = arith.constant 0 : index
    %c0_155 = arith.constant 0 : index
    %c0_156 = arith.constant 0 : index
    %161 = vector.load %arg6[%c0_153, %c0_154, %c0_155, %c0_156] : memref<1x16x16x128xf32, #tpu.memory_space<vmem>>, vector<1x16x16x128xf32>
    tpu.vector_store %arg6[%c0_153, %c0_154, %c0_155, %c0_156], %160 {strides = array<i32>} : memref<1x16x16x128xf32, #tpu.memory_space<vmem>>, vector<1x16x16x128xf32>,
    return
  }
  func.func @transform_0(%arg0: i32) -> (i32, i32, i32, i32) {
    %c0_i32 = arith.constant 0 : i32
    %c0_i32_0 = arith.constant 0 : i32
    %c0_i32_1 = arith.constant 0 : i32
    %c0_i32_2 = arith.constant 0 : i32
    return %arg0, %c0_i32, %c0_i32_0, %c0_i32_1 : i32, i32, i32, i32
  }
  func.func @transform_1(%arg0: i32) -> (i32, i32, i32) {
    %c0_i32 = arith.constant 0 : i32
    %c0_i32_0 = arith.constant 0 : i32
    %c0_i32_1 = arith.constant 0 : i32
    %c0_i32_2 = arith.constant 0 : i32
    return %c0_i32, %c0_i32_0, %c0_i32_1 : i32, i32, i32
  }
  func.func @transform_2(%arg0: i32) -> (i32, i32) {
    %c0_i32 = arith.constant 0 : i32
    %c0_i32_0 = arith.constant 0 : i32
    %c0_i32_1 = arith.constant 0 : i32
    return %c0_i32, %c0_i32_0 : i32, i32
  }
  func.func @transform_3(%arg0: i32) -> (i32, i32, i32) {
    %c0_i32 = arith.constant 0 : i32
    %c0_i32_0 = arith.constant 0 : i32
    %c0_i32_1 = arith.constant 0 : i32
    %c0_i32_2 = arith.constant 0 : i32
    return %c0_i32, %c0_i32_0, %c0_i32_1 : i32, i32, i32
  }
  func.func @transform_4(%arg0: i32) -> (i32, i32) {
    %c0_i32 = arith.constant 0 : i32
    %c0_i32_0 = arith.constant 0 : i32
    %c0_i32_1 = arith.constant 0 : i32
    return %c0_i32, %c0_i32_0 : i32, i32
  }
  func.func @transform_5(%arg0: i32) -> (i32, i32, i32, i32) {
    %c0_i32 = arith.constant 0 : i32
    %c0_i32_0 = arith.constant 0 : i32
    %c0_i32_1 = arith.constant 0 : i32
    %c0_i32_2 = arith.constant 0 : i32
    return %arg0, %c0_i32, %c0_i32_0, %c0_i32_1 : i32, i32, i32, i32
  }
}

</mosaic_0001>

<llo_original>
// kernel: tpu_custom_call.1
$region0: #{tpu_custom_call.1}
  #allocation0 [shape = 'u32[]', space=smem, size = 0x4, offset = 0x4, fixed_abs, tag = 'smem constant byte address 0x4 - core index']
  #allocation1 [shape = 'u32[144,128]{1,0:T(1,128)}', space=vmem, size = 0x12000, scoped, tag = 'internal scratch']
  #allocation2 [shape = 'f32[256,128]{1,0:T(8,128)}', space=vmem, size = 0x20000, scoped, tag = 'scratch operand']
  #allocation3 [shape = 'f32[18,18,128]{2,1,0:T(8,128)}', space=vmem, size = 0x36000, scoped, tag = 'scratch operand']
  %s0 = inlined_call_operand.vmem [shape: f32[2,18,18,128], index: 0, kind: input, shape index: {}]
  %s1 = inlined_call_operand.vmem [shape: f32[9,128,128], index: 1, kind: input, shape index: {}]
  %s2 = inlined_call_operand.vmem [shape: f32[1,128], index: 2, kind: input, shape index: {}]
  %s3 = inlined_call_operand.hbm [shape: f32[9,128,128], index: 3, kind: input, shape index: {}]
  %s4 = inlined_call_operand.vmem [shape: f32[1,128], index: 4, kind: input, shape index: {}]
  %s5 = inlined_call_operand.hbm [shape: f32[2,16,16,128], index: 5, kind: output, shape index: {}]
  %s6 = sld [smem:[#allocation0]]
  $region57: #{tpu_custom_call.1} parent=0
    _
  %s8 = ssub.s32 1, %s6
  %s9 = scalar_select 0, %s8, %s6
  $region1: #{tpu_custom_call.1} parent=0
    #allocation4 [shape = 'u8[589824]{0}', space=vmem, size = 0x90000, scoped, tag = 'input window, operand 3, single buffered']
    #allocation5 [shape = 's32[2]{0}', space=sflag, size = 0x8, scoped, tag = 'scoped memory for tpu_custom_call.1']
    #allocation6 [shape = 's32[2]{0}', space=sflag, size = 0x8, scoped, tag = 'scoped memory for tpu_custom_call.1']
    #allocation7 [shape = 'u8[262144]{0}', space=vmem, size = 0x40000, scoped, tag = 'output window, operand 0']
    %10 = vsyncpa [#allocation5], 0
    %11 = vsyncpa [#allocation6], 0
    %s12 = scalar_lea.sflag [#allocation6], 1
    %13 = vsyncpa %s12, 0
    loop: start=0, step=1, limit=4
    $region2: #{tpu_custom_call.1} parent=1 // loop_pre_header
      _
    $region3: #{tpu_custom_call.1} parent=1 // loop_header
      %s15 = sphi 0, %s19
      %p16 = scmp.ge.s32.totalorder %s15, 4
      %s25 = sphi 0, %s27
      %s28 = sphi 0, %s25
      %s29 = sphi 0, %s28
      %s45 = sphi 0, %s29
      %s49 = sphi 0, %s49
      %s51 = sphi 0, %s49
      %s52 = sphi 0, %s51
      %s66 = sphi 0, %s52
      %s70 = sphi 0, %s70
      %s72 = sphi 0, %s70
      %s73 = sphi 0, %s72
      %s87 = sphi 0, %s73
      %s91 = sphi 0, %s91
      %s93 = sphi 0, %s91
      %s94 = sphi 0, %s93
      %s108 = sphi 0, %s94
      %s112 = sphi 0, %s112
      %s114 = sphi 0, %s112
      %s115 = sphi 0, %s114
      %s129 = sphi 0, %s115
      %s135 = sphi 0, %s137
      %s138 = sphi 0, %s135
      %s139 = sphi 0, %s138
      %s155 = sphi 0, %s139
    $region4: #{tpu_custom_call.1} parent=1 // loop_header_branch
      %18 = sbr.rel (%p16) target = $region8
    $region5: #{tpu_custom_call.1} parent=1 // loop_body
      %s20 = ssub.s32 %s15, 1
      %s21 = ssub.s32 %s15, 2
      %s22 = sadd.s32 %s15, 1
      %s23 = ssub.s32 %s15, %s22
      %p24 = scmp.eq.s32.totalorder %s23, 0
      %s26 = sadd.s32 %s25, 1
      %s27 = scalar_select %p24, %s25, %s26
      %p30 = pneg %p24
      %p31 = scmp.eq.s32.totalorder %s15, 1
      %p32 = por %p30, %p31
      %p33 = scmp.ne.s32.totalorder %s25, %s28
      %p34 = scmp.eq.s32.totalorder %s15, 0
      %p35 = por %p33, %p34
      %p36 = scmp.ne.s32.totalorder %s25, %s28
      %p37 = scmp.eq.s32.totalorder %s20, 1
      %p38 = por %p36, %p37
      %p39 = scmp.ne.s32.totalorder %s28, %s29
      %p40 = scmp.eq.s32.totalorder %s20, 0
      %p41 = por %p39, %p40
      %p42 = scmp.ne.s32.totalorder %s28, %s29
      %p43 = scmp.eq.s32.totalorder %s21, 1
      %p44 = por %p42, %p43
      %p46 = scmp.ne.s32.totalorder %s29, %s45
      %p47 = scmp.eq.s32.totalorder %s21, 0
      %p48 = por %p46, %p47
      %s50 = sadd.s32 %s49, 1
      %p53 = scmp.eq.s32.totalorder %s15, 1
      %p54 = scmp.ne.s32.totalorder %s49, %s51
      %p55 = scmp.eq.s32.totalorder %s15, 0
      %p56 = por %p54, %p55
      %p57 = scmp.ne.s32.totalorder %s49, %s51
      %p58 = scmp.eq.s32.totalorder %s20, 1
      %p59 = por %p57, %p58
      %p60 = scmp.ne.s32.totalorder %s51, %s52
      %p61 = scmp.eq.s32.totalorder %s20, 0
      %p62 = por %p60, %p61
      %p63 = scmp.ne.s32.totalorder %s51, %s52
      %p64 = scmp.eq.s32.totalorder %s21, 1
      %p65 = por %p63, %p64
      %p67 = scmp.ne.s32.totalorder %s52, %s66
      %p68 = scmp.eq.s32.totalorder %s21, 0
      %p69 = por %p67, %p68
      %s71 = sadd.s32 %s70, 1
      %p74 = scmp.eq.s32.totalorder %s15, 1
      %p75 = scmp.ne.s32.totalorder %s70, %s72
      %p76 = scmp.eq.s32.totalorder %s15, 0
      %p77 = por %p75, %p76
      %p78 = scmp.ne.s32.totalorder %s70, %s72
      %p79 = scmp.eq.s32.totalorder %s20, 1
      %p80 = por %p78, %p79
      %p81 = scmp.ne.s32.totalorder %s72, %s73
      %p82 = scmp.eq.s32.totalorder %s20, 0
      %p83 = por %p81, %p82
      %p84 = scmp.ne.s32.totalorder %s72, %s73
      %p85 = scmp.eq.s32.totalorder %s21, 1
      %p86 = por %p84, %p85
      %p88 = scmp.ne.s32.totalorder %s73, %s87
      %p89 = scmp.eq.s32.totalorder %s21, 0
      %p90 = por %p88, %p89
      %s92 = sadd.s32 %s91, 1
      %p95 = scmp.eq.s32.totalorder %s15, 1
      %p96 = scmp.ne.s32.totalorder %s91, %s93
      %p97 = scmp.eq.s32.totalorder %s15, 0
      %p98 = por %p96, %p97
      %p99 = scmp.ne.s32.totalorder %s91, %s93
      %p100 = scmp.eq.s32.totalorder %s20, 1
      %p101 = por %p99, %p100
      %p102 = scmp.ne.s32.totalorder %s93, %s94
      %p103 = scmp.eq.s32.totalorder %s20, 0
      %p104 = por %p102, %p103
      %p105 = scmp.ne.s32.totalorder %s93, %s94
      %p106 = scmp.eq.s32.totalorder %s21, 1
      %p107 = por %p105, %p106
      %p109 = scmp.ne.s32.totalorder %s94, %s108
      %p110 = scmp.eq.s32.totalorder %s21, 0
      %p111 = por %p109, %p110
      %s113 = sadd.s32 %s112, 1
      %p116 = scmp.eq.s32.totalorder %s15, 1
      %p117 = scmp.ne.s32.totalorder %s112, %s114
      %p118 = scmp.eq.s32.totalorder %s15, 0
      %p119 = por %p117, %p118
      %p120 = scmp.ne.s32.totalorder %s112, %s114
      %p121 = scmp.eq.s32.totalorder %s20, 1
      %p122 = por %p120, %p121
      %p123 = scmp.ne.s32.totalorder %s114, %s115
      %p124 = scmp.eq.s32.totalorder %s20, 0
      %p125 = por %p123, %p124
      %p126 = scmp.ne.s32.totalorder %s114, %s115
      %p127 = scmp.eq.s32.totalorder %s21, 1
      %p128 = por %p126, %p127
      %p130 = scmp.ne.s32.totalorder %s115, %s129
      %p131 = scmp.eq.s32.totalorder %s21, 0
      %p132 = por %p130, %p131
      %s133 = ssub.s32 %s15, %s22
      %p134 = scmp.eq.s32.totalorder %s133, 0
      %s136 = sadd.s32 %s135, 1
      %s137 = scalar_select %p134, %s135, %s136
      %p140 = pneg %p134
      %p141 = scmp.eq.s32.totalorder %s15, 1
      %p142 = por %p140, %p141
      %p143 = scmp.ne.s32.totalorder %s135, %s138
      %p144 = scmp.eq.s32.totalorder %s15, 0
      %p145 = por %p143, %p144
      %p146 = scmp.ne.s32.totalorder %s135, %s138
      %p147 = scmp.eq.s32.totalorder %s20, 1
      %p148 = por %p146, %p147
      %p149 = scmp.ne.s32.totalorder %s138, %s139
      %p150 = scmp.eq.s32.totalorder %s20, 0
      %p151 = por %p149, %p150
      %p152 = scmp.ne.s32.totalorder %s138, %s139
      %p153 = scmp.eq.s32.totalorder %s21, 1
      %p154 = por %p152, %p153
      %p156 = scmp.ne.s32.totalorder %s139, %s155
      %p157 = scmp.eq.s32.totalorder %s21, 0
      %p158 = por %p156, %p157
      %p159 = scmp.le.s32.totalorder 1, %s15
      %p160 = scmp.lt.s32.totalorder %s15, 3
      %p161 = pnand %p159, %p160
      %p162 = pneg %p161
      // Predicated region
      $region9: #{tpu_custom_call.1} parent=5 // pred_check
        _
      $region10: #{tpu_custom_call.1} parent=5 // pred_check_branch
        %164 = sbr.rel (%p161) target = $region12
      $region11: #{tpu_custom_call.1} parent=5 // pred_region
        %s165 = ssub.s32 %s15, 1
        // Predicated region
        $region13: #{tpu_custom_call.1} parent=11 // pred_check
          %p166 = pneg %p62
        $region14: #{tpu_custom_call.1} parent=11 // pred_check_branch
          %168 = sbr.rel (%p166) target = $region16
        $region15: #{tpu_custom_call.1} parent=11 // pred_region
          _
        $region16: #{tpu_custom_call.1} parent=11 // pred_fallthru
          _
        // Predicated region
        $region17: #{tpu_custom_call.1} parent=11 // pred_check
          %p169 = pneg %p83
        $region18: #{tpu_custom_call.1} parent=11 // pred_check_branch
          %171 = sbr.rel (%p169) target = $region20
        $region19: #{tpu_custom_call.1} parent=11 // pred_region
          _
        $region20: #{tpu_custom_call.1} parent=11 // pred_fallthru
          _
        // Predicated region
        $region21: #{tpu_custom_call.1} parent=11 // pred_check
          %p172 = pneg %p104
        $region22: #{tpu_custom_call.1} parent=11 // pred_check_branch
          %174 = sbr.rel (%p172) target = $region24
        $region23: #{tpu_custom_call.1} parent=11 // pred_region
          %s176 = ssub.s32 18432, 18432
          %177 = vsyncadd [#allocation5], %s176
          %s178 = sshll.u32 [#allocation4], 4
          %s179 = int_to_ptr.vmem [resolvable:$true] %s178
          %184 = dma.hbm_to_vmem [thread:$0]  %s3, 18432, %s179, [#allocation5], 128, 128, 8
        $region24: #{tpu_custom_call.1} parent=11 // pred_fallthru
          _
        // Predicated region
        $region25: #{tpu_custom_call.1} parent=11 // pred_check
          %p185 = pneg %p125
        $region26: #{tpu_custom_call.1} parent=11 // pred_check_branch
          %187 = sbr.rel (%p185) target = $region28
        $region27: #{tpu_custom_call.1} parent=11 // pred_region
          _
        $region28: #{tpu_custom_call.1} parent=11 // pred_fallthru
          _
      $region12: #{tpu_custom_call.1} parent=5 // pred_fallthru
        _
      %p188 = scmp.lt.s32.totalorder %s15, 2
      // Predicated region
      $region29: #{tpu_custom_call.1} parent=5 // pred_check
        %p189 = pneg %p188
      $region30: #{tpu_custom_call.1} parent=5 // pred_check_branch
        %191 = sbr.rel (%p189) target = $region32
      $region31: #{tpu_custom_call.1} parent=5 // pred_region
        // Predicated region
        $region33: #{tpu_custom_call.1} parent=31 // pred_check
          %p192 = pneg %p35
        $region34: #{tpu_custom_call.1} parent=31 // pred_check_branch
          %194 = sbr.rel (%p192) target = $region36
        $region35: #{tpu_custom_call.1} parent=31 // pred_region
          %p195 = scmp.lt.s32.totalorder %s15, 1
          %s196 = scalar_select %p195, %s15, 1
          %s197 = smul.addr %s196, 54
          %s198 = smul.addr %s197, 8
          %s199 = scalar_lea.vmem %s0, %s198
        $region36: #{tpu_custom_call.1} parent=31 // pred_fallthru
          _
      $region32: #{tpu_custom_call.1} parent=5 // pred_fallthru
        _
      %p200 = scmp.le.s32.totalorder 1, %s15
      %p201 = scmp.lt.s32.totalorder %s15, 3
      %p202 = pnand %p200, %p201
      %p203 = pneg %p202
      // Predicated region
      $region37: #{tpu_custom_call.1} parent=5 // pred_check
        _
      $region38: #{tpu_custom_call.1} parent=5 // pred_check_branch
        %205 = sbr.rel (%p202) target = $region40
      $region39: #{tpu_custom_call.1} parent=5 // pred_region
        %s206 = ssub.s32 %s15, 1
        // Predicated region
        $region41: #{tpu_custom_call.1} parent=39 // pred_check
          %p207 = pneg %p104
        $region42: #{tpu_custom_call.1} parent=39 // pred_check_branch
          %209 = sbr.rel (%p207) target = $region44
        $region43: #{tpu_custom_call.1} parent=39 // pred_region
          %210 = dma.done [#allocation5], 18432
        $region44: #{tpu_custom_call.1} parent=39 // pred_fallthru
          _
        %p211 = scmp.lt.s32.totalorder %s20, 1
        %s212 = scalar_select %p211, %s20, 1
        %s213 = smul.addr %s212, 54
        %s214 = smul.addr %s213, 8
        %s215 = scalar_lea.vmem %s0, %s214
        %p216 = pneg %p41
        %p217 = pneg %p38
        %p218 = pneg %p62
        %p219 = pneg %p59
        %p220 = pneg %p83
        %p221 = pneg %p80
        %p222 = pneg %p104
        %p223 = pneg %p101
        %p224 = pneg %p125
        %p225 = pneg %p122
        %p226 = pneg %p151
        %p227 = pneg %p148
        %s228 = sand.u32 %s138, 1
        %s229 = scalar_lea.sflag [#allocation6], %s228
        %s230 = sand.u32 %s138, 1
        %s231 = smul.addr %s230, 256
        %s232 = scalar_lea.vmem [#allocation7], %s231
        %p233 = scmp.lt.s32.totalorder %s20, 1
        %s234 = scalar_select %p233, %s20, 1
        %s235 = smul.addr %s234, 54
        %s236 = smul.addr %s235, 8
        %s237 = scalar_lea.vmem %s0, %s236
        %v238 = vld [vmem:[%s237] sm:$0xff]
        %v239 = vld [vmem:[%s237 + $0x8] sm:$0xff]
        %v240 = vld [vmem:[%s237 + $0x10] sm:$0x3]
        %v241 = vld [vmem:[%s237 + $0x18] sm:$0xff]
        %v242 = vld [vmem:[%s237 + $0x20] sm:$0xff]
        %v243 = vld [vmem:[%s237 + $0x28] sm:$0x3]
        %v244 = vld [vmem:[%s237 + $0x30] sm:$0xff]
        %v245 = vld [vmem:[%s237 + $0x38] sm:$0xff]
        %v246 = vld [vmem:[%s237 + $0x40] sm:$0x3]
        %v247 = vld [vmem:[%s237 + $0x48] sm:$0xff]
        %v248 = vld [vmem:[%s237 + $0x50] sm:$0xff]
        %v249 = vld [vmem:[%s237 + $0x58] sm:$0x3]
        %v250 = vld [vmem:[%s237 + $0x60] sm:$0xff]
        %v251 = vld [vmem:[%s237 + $0x68] sm:$0xff]
        %v252 = vld [vmem:[%s237 + $0x70] sm:$0x3]
        %v253 = vld [vmem:[%s237 + $0x78] sm:$0xff]
        %v254 = vld [vmem:[%s237 + $0x80] sm:$0xff]
        %v255 = vld [vmem:[%s237 + $0x88] sm:$0x3]
        %v256 = vld [vmem:[%s237 + $0x90] sm:$0xff]
        %v257 = vld [vmem:[%s237 + $0x98] sm:$0xff]
        %v258 = vld [vmem:[%s237 + $0xa0] sm:$0x3]
        %v259 = vld [vmem:[%s237 + $0xa8] sm:$0xff]
        %v260 = vld [vmem:[%s237 + $0xb0] sm:$0xff]
        %v261 = vld [vmem:[%s237 + $0xb8] sm:$0x3]
        %v262 = vld [vmem:[%s237 + $0xc0] sm:$0xff]
        %v263 = vld [vmem:[%s237 + $0xc8] sm:$0xff]
        %v264 = vld [vmem:[%s237 + $0xd0] sm:$0x3]
        %v265 = vld [vmem:[%s237 + $0xd8] sm:$0xff]
        %v266 = vld [vmem:[%s237 + $0xe0] sm:$0xff]
        %v267 = vld [vmem:[%s237 + $0xe8] sm:$0x3]
        %v268 = vld [vmem:[%s237 + $0xf0] sm:$0xff]
        %v269 = vld [vmem:[%s237 + $0xf8] sm:$0xff]
        %v270 = vld [vmem:[%s237 + $0x100] sm:$0x3]
        %v271 = vld [vmem:[%s237 + $0x108] sm:$0xff]
        %v272 = vld [vmem:[%s237 + $0x110] sm:$0xff]
        %v273 = vld [vmem:[%s237 + $0x118] sm:$0x3]
        %v274 = vld [vmem:[%s237 + $0x120] sm:$0xff]
        %v275 = vld [vmem:[%s237 + $0x128] sm:$0xff]
        %v276 = vld [vmem:[%s237 + $0x130] sm:$0x3]
        %v277 = vld [vmem:[%s237 + $0x138] sm:$0xff]
        %v278 = vld [vmem:[%s237 + $0x140] sm:$0xff]
        %v279 = vld [vmem:[%s237 + $0x148] sm:$0x3]
        %v280 = vld [vmem:[%s237 + $0x150] sm:$0xff]
        %v281 = vld [vmem:[%s237 + $0x158] sm:$0xff]
        %v282 = vld [vmem:[%s237 + $0x160] sm:$0x3]
        %v283 = vld [vmem:[%s237 + $0x168] sm:$0xff]
        %v284 = vld [vmem:[%s237 + $0x170] sm:$0xff]
        %v285 = vld [vmem:[%s237 + $0x178] sm:$0x3]
        %v286 = vld [vmem:[%s237 + $0x180] sm:$0xff]
        %v287 = vld [vmem:[%s237 + $0x188] sm:$0xff]
        %v288 = vld [vmem:[%s237 + $0x190] sm:$0x3]
        %v289 = vld [vmem:[%s237 + $0x198] sm:$0xff]
        %v290 = vld [vmem:[%s237 + $0x1a0] sm:$0xff]
        %v291 = vld [vmem:[%s237 + $0x1a8] sm:$0x3]
        %v292 = vld [vmem:[%s1] sm:$0xff]
        %v293 = vld [vmem:[%s1 + $0x8] sm:$0xff]
        %v294 = vld [vmem:[%s1 + $0x10] sm:$0xff]
        %v295 = vld [vmem:[%s1 + $0x18] sm:$0xff]
        %v296 = vld [vmem:[%s1 + $0x20] sm:$0xff]
        %v297 = vld [vmem:[%s1 + $0x28] sm:$0xff]
        %v298 = vld [vmem:[%s1 + $0x30] sm:$0xff]
        %v299 = vld [vmem:[%s1 + $0x38] sm:$0xff]
        %v300 = vld [vmem:[%s1 + $0x40] sm:$0xff]
        %v301 = vld [vmem:[%s1 + $0x48] sm:$0xff]
        %v302 = vld [vmem:[%s1 + $0x50] sm:$0xff]
        %v303 = vld [vmem:[%s1 + $0x58] sm:$0xff]
        %v304 = vld [vmem:[%s1 + $0x60] sm:$0xff]
        %v305 = vld [vmem:[%s1 + $0x68] sm:$0xff]
        %v306 = vld [vmem:[%s1 + $0x70] sm:$0xff]
        %v307 = vld [vmem:[%s1 + $0x78] sm:$0xff]
        %308 = vmatprep.subr.mxu0 0.0
        %309 = vmatpush1.msra.mxu0 %v292
        %310 = vmatprep.subr.mxu0 0.0
        %311 = vmatpush1.msra.mxu0 %v293
        %312 = vmatprep.subr.mxu0 0.0
        %313 = vmatpush1.msra.mxu0 %v294
        %314 = vmatprep.subr.mxu0 0.0
        %315 = vmatpush1.msra.mxu0 %v295
        %316 = vmatprep.subr.mxu0 0.0
        %317 = vmatpush1.msra.mxu0 %v296
        %318 = vmatprep.subr.mxu0 0.0
        %319 = vmatpush1.msra.mxu0 %v297
        %320 = vmatprep.subr.mxu0 0.0
        %321 = vmatpush1.msra.mxu0 %v298
        %322 = vmatprep.subr.mxu0 0.0
        %323 = vmatpush1.msra.mxu0 %v299
        %324 = vmatprep.subr.mxu0 0.0
        %325 = vmatpush1.msra.mxu0 %v300
        %326 = vmatprep.subr.mxu0 0.0
        %327 = vmatpush1.msra.mxu0 %v301
        %328 = vmatprep.subr.mxu0 0.0
        %329 = vmatpush1.msra.mxu0 %v302
        %330 = vmatprep.subr.mxu0 0.0
        %331 = vmatpush1.msra.mxu0 %v303
        %332 = vmatprep.subr.mxu0 0.0
        %333 = vmatpush1.msra.mxu0 %v304
        %334 = vmatprep.subr.mxu0 0.0
        %335 = vmatpush1.msra.mxu0 %v305
        %336 = vmatprep.subr.mxu0 0.0
        %337 = vmatpush1.msra.mxu0 %v306
        %338 = vmatprep.subr.mxu0 0.0
        %339 = vmatpush1.msra.mxu0 %v307
        %340 = vmatprep.subr.mxu0 0.0
        %341 = vmatpush1.msra.mxu0 0.0
        %342 = vmatprep.subr.mxu0 0.0
        %343 = vmatpush1.msra.mxu0 0.0
        %344 = vmatprep.subr.mxu0 0.0
        %345 = vmatpush1.msra.mxu0 0.0
        %346 = vmatprep.subr.mxu0 0.0
        %347 = vmatpush1.msra.mxu0 0.0
        %348 = vmatprep.subr.mxu0 0.0
        %349 = vmatpush1.msra.mxu0 0.0
        %350 = vmatprep.subr.mxu0 0.0
        %351 = vmatpush1.msra.mxu0 0.0
        %352 = vmatprep.subr.mxu0 0.0
        %353 = vmatpush1.msra.mxu0 0.0
        %354 = vmatprep.subr.mxu0 0.0
        %355 = vmatpush1.msra.mxu0 0.0
        %356 = vmatprep.subr.mxu0 0.0
        %357 = vmatpush1.msra.mxu0 0.0
        %358 = vmatprep.subr.mxu0 0.0
        %359 = vmatpush1.msra.mxu0 0.0
        %360 = vmatprep.subr.mxu0 0.0
        %361 = vmatpush1.msra.mxu0 0.0
        %362 = vmatprep.subr.mxu0 0.0
        %363 = vmatpush1.msra.mxu0 0.0
        %364 = vmatprep.subr.mxu0 0.0
        %365 = vmatpush1.msra.mxu0 0.0
        %366 = vmatprep.subr.mxu0 0.0
        %367 = vmatpush1.msra.mxu0 0.0
        %368 = vmatprep.subr.mxu0 0.0
        %369 = vmatpush1.msra.mxu0 0.0
        %370 = vmatprep.subr.mxu0 0.0
        %371 = vmatpush1.msra.mxu0 0.0
        %372 = vmatprep.mubr.f32.mxu0 0.0
        %373 = vmatmul.mubr.f32.gmra.mrb[0].mxu0 %v238
        %v374 = vpop.f32.mrb[0].mxu0
        %v375 = vadd.f32 0.0, %v374
        %v376 = vpop.f32.mrb[0].mxu0
        %377 = vmatprep.mubr.f32.mxu0 0.0
        %378 = vmatmul.mubr.f32.gmra.mrb[0].mxu0 %v239
        %v379 = vpop.f32.mrb[0].mxu0
        %v380 = vadd.f32 0.0, %v379
        %v381 = vpop.f32.mrb[0].mxu0
        %382 = vmatprep.mubr.f32.mxu0 0.0
        %383 = vmatmul.mubr.f32.gmra.mrb[0].mxu0 %v241
        %v384 = vpop.f32.mrb[0].mxu0
        %v385 = vadd.f32 0.0, %v384
        %v386 = vpop.f32.mrb[0].mxu0
        %387 = vmatprep.mubr.f32.mxu0 0.0
        %388 = vmatmul.mubr.f32.gmra.mrb[0].mxu0 %v242
        %v389 = vpop.f32.mrb[0].mxu0
        %v390 = vadd.f32 0.0, %v389
        %v391 = vpop.f32.mrb[0].mxu0
        %392 = vmatprep.mubr.f32.mxu0 0.0
        %393 = vmatmul.mubr.f32.gmra.mrb[0].mxu0 %v244
        %v394 = vpop.f32.mrb[0].mxu0
        %v395 = vadd.f32 0.0, %v394
        %v396 = vpop.f32.mrb[0].mxu0
        %397 = vmatprep.mubr.f32.mxu0 0.0
        %398 = vmatmul.mubr.f32.gmra.mrb[0].mxu0 %v245
        %v399 = vpop.f32.mrb[0].mxu0
        %v400 = vadd.f32 0.0, %v399
        %v401 = vpop.f32.mrb[0].mxu0
        %402 = vmatprep.mubr.f32.mxu0 0.0
        %403 = vmatmul.mubr.f32.gmra.mrb[0].mxu0 %v247
        %v404 = vpop.f32.mrb[0].mxu0
        %v405 = vadd.f32 0.0, %v404
        %v406 = vpop.f32.mrb[0].mxu0
        %407 = vmatprep.mubr.f32.mxu0 0.0
        %408 = vmatmul.mubr.f32.gmra.mrb[0].mxu0 %v248
        %v409 = vpop.f32.mrb[0].mxu0
        %v410 = vadd.f32 0.0, %v409
        %v411 = vpop.f32.mrb[0].mxu0
        %412 = vmatprep.mubr.f32.mxu0 0.0
        %413 = vmatmul.mubr.f32.gmra.mrb[0].mxu0 %v250
        %v414 = vpop.f32.mrb[0].mxu0
        %v415 = vadd.f32 0.0, %v414
        %v416 = vpop.f32.mrb[0].mxu0
        %417 = vmatprep.mubr.f32.mxu0 0.0
        %418 = vmatmul.mubr.f32.gmra.mrb[0].mxu0 %v251
        %v419 = vpop.f32.mrb[0].mxu0
        %v420 = vadd.f32 0.0, %v419
        %v421 = vpop.f32.mrb[0].mxu0
        %422 = vmatprep.mubr.f32.mxu0 0.0
        %423 = vmatmul.mubr.f32.gmra.mrb[0].mxu0 %v253
        %v424 = vpop.f32.mrb[0].mxu0
        %v425 = vadd.f32 0.0, %v424
        %v426 = vpop.f32.mrb[0].mxu0
        %427 = vmatprep.mubr.f32.mxu0 0.0
        %428 = vmatmul.mubr.f32.gmra.mrb[0].mxu0 %v254
        %v429 = vpop.f32.mrb[0].mxu0
        %v430 = vadd.f32 0.0, %v429
        %v431 = vpop.f32.mrb[0].mxu0
        %432 = vmatprep.mubr.f32.mxu0 0.0
        %433 = vmatmul.mubr.f32.gmra.mrb[0].mxu0 %v256
        %v434 = vpop.f32.mrb[0].mxu0
        %v435 = vadd.f32 0.0, %v434
        %v436 = vpop.f32.mrb[0].mxu0
        %437 = vmatprep.mubr.f32.mxu0 0.0
        %438 = vmatmul.mubr.f32.gmra.mrb[0].mxu0 %v257
        %v439 = vpop.f32.mrb[0].mxu0
        %v440 = vadd.f32 0.0, %v439
        %v441 = vpop.f32.mrb[0].mxu0
        %442 = vmatprep.mubr.f32.mxu0 0.0
        %443 = vmatmul.mubr.f32.gmra.mrb[0].mxu0 %v259
        %v444 = vpop.f32.mrb[0].mxu0
        %v445 = vadd.f32 0.0, %v444
        %v446 = vpop.f32.mrb[0].mxu0
        %447 = vmatprep.mubr.f32.mxu0 0.0
        %448 = vmatmul.mubr.f32.gmra.mrb[0].mxu0 %v260
        %v449 = vpop.f32.mrb[0].mxu0
        %v450 = vadd.f32 0.0, %v449
        %v451 = vpop.f32.mrb[0].mxu0
        %452 = vmatprep.mubr.f32.mxu0 0.0
        %453 = vmatmul.mubr.f32.gmra.mrb[0].mxu0 %v262
        %v454 = vpop.f32.mrb[0].mxu0
        %v455 = vadd.f32 0.0, %v454
        %v456 = vpop.f32.mrb[0].mxu0
        %457 = vmatprep.mubr.f32.mxu0 0.0
        %458 = vmatmul.mubr.f32.gmra.mrb[0].mxu0 %v263
        %v459 = vpop.f32.mrb[0].mxu0
        %v460 = vadd.f32 0.0, %v459
        %v461 = vpop.f32.mrb[0].mxu0
        %462 = vmatprep.mubr.f32.mxu0 0.0
        %463 = vmatmul.mubr.f32.gmra.mrb[0].mxu0 %v265
        %v464 = vpop.f32.mrb[0].mxu0
        %v465 = vadd.f32 0.0, %v464
        %v466 = vpop.f32.mrb[0].mxu0
        %467 = vmatprep.mubr.f32.mxu0 0.0
        %468 = vmatmul.mubr.f32.gmra.mrb[0].mxu0 %v266
        %v469 = vpop.f32.mrb[0].mxu0
        %v470 = vadd.f32 0.0, %v469
        %v471 = vpop.f32.mrb[0].mxu0
        %472 = vmatprep.mubr.f32.mxu0 0.0
        %473 = vmatmul.mubr.f32.gmra.mrb[0].mxu0 %v268
        %v474 = vpop.f32.mrb[0].mxu0
        %v475 = vadd.f32 0.0, %v474
        %v476 = vpop.f32.mrb[0].mxu0
        %477 = vmatprep.mubr.f32.mxu0 0.0
        %478 = vmatmul.mubr.f32.gmra.mrb[0].mxu0 %v269
        %v479 = vpop.f32.mrb[0].mxu0
        %v480 = vadd.f32 0.0, %v479
        %v481 = vpop.f32.mrb[0].mxu0
        %482 = vmatprep.mubr.f32.mxu0 0.0
        %483 = vmatmul.mubr.f32.gmra.mrb[0].mxu0 %v271
        %v484 = vpop.f32.mrb[0].mxu0
        %v485 = vadd.f32 0.0, %v484
        %v486 = vpop.f32.mrb[0].mxu0
        %487 = vmatprep.mubr.f32.mxu0 0.0
        %488 = vmatmul.mubr.f32.gmra.mrb[0].mxu0 %v272
        %v489 = vpop.f32.mrb[0].mxu0
        %v490 = vadd.f32 0.0, %v489
        %v491 = vpop.f32.mrb[0].mxu0
        %492 = vmatprep.mubr.f32.mxu0 0.0
        %493 = vmatmul.mubr.f32.gmra.mrb[0].mxu0 %v274
        %v494 = vpop.f32.mrb[0].mxu0
        %v495 = vadd.f32 0.0, %v494
        %v496 = vpop.f32.mrb[0].mxu0
        %497 = vmatprep.mubr.f32.mxu0 0.0
        %498 = vmatmul.mubr.f32.gmra.mrb[0].mxu0 %v275
        %v499 = vpop.f32.mrb[0].mxu0
        %v500 = vadd.f32 0.0, %v499
        %v501 = vpop.f32.mrb[0].mxu0
        %502 = vmatprep.mubr.f32.mxu0 0.0
        %503 = vmatmul.mubr.f32.gmra.mrb[0].mxu0 %v277
        %v504 = vpop.f32.mrb[0].mxu0
        %v505 = vadd.f32 0.0, %v504
        %v506 = vpop.f32.mrb[0].mxu0
        %507 = vmatprep.mubr.f32.mxu0 0.0
        %508 = vmatmul.mubr.f32.gmra.mrb[0].mxu0 %v278
        %v509 = vpop.f32.mrb[0].mxu0
        %v510 = vadd.f32 0.0, %v509
        %v511 = vpop.f32.mrb[0].mxu0
        %512 = vmatprep.mubr.f32.mxu0 0.0
        %513 = vmatmul.mubr.f32.gmra.mrb[0].mxu0 %v280
        %v514 = vpop.f32.mrb[0].mxu0
        %v515 = vadd.f32 0.0, %v514
        %v516 = vpop.f32.mrb[0].mxu0
        %517 = vmatprep.mubr.f32.mxu0 0.0
        %518 = vmatmul.mubr.f32.gmra.mrb[0].mxu0 %v281
        %v519 = vpop.f32.mrb[0].mxu0
        %v520 = vadd.f32 0.0, %v519
        %v521 = vpop.f32.mrb[0].mxu0
        %522 = vmatprep.mubr.f32.mxu0 0.0
        %523 = vmatmul.mubr.f32.gmra.mrb[0].mxu0 %v283
        %v524 = vpop.f32.mrb[0].mxu0
        %v525 = vadd.f32 0.0, %v524
        %v526 = vpop.f32.mrb[0].mxu0
        %527 = vmatprep.mubr.f32.mxu0 0.0
        %528 = vmatmul.mubr.f32.gmra.mrb[0].mxu0 %v284
        %v529 = vpop.f32.mrb[0].mxu0
        %v530 = vadd.f32 0.0, %v529
        %v531 = vpop.f32.mrb[0].mxu0
        %532 = vdwg.mxu0
        %533 = vst [vmem:[#allocation2] sm:$0xff] %v375
        %534 = vst [vmem:[#allocation2 + $0x8] sm:$0xff] %v380
        %535 = vst [vmem:[#allocation2 + $0x10] sm:$0xff] %v385
        %536 = vst [vmem:[#allocation2 + $0x18] sm:$0xff] %v390
        %537 = vst [vmem:[#allocation2 + $0x20] sm:$0xff] %v395
        %538 = vst [vmem:[#allocation2 + $0x28] sm:$0xff] %v400
        %539 = vst [vmem:[#allocation2 + $0x30] sm:$0xff] %v405
        %540 = vst [vmem:[#allocation2 + $0x38] sm:$0xff] %v410
        %541 = vst [vmem:[#allocation2 + $0x40] sm:$0xff] %v415
        %542 = vst [vmem:[#allocation2 + $0x48] sm:$0xff] %v420
        %543 = vst [vmem:[#allocation2 + $0x50] sm:$0xff] %v425
        %544 = vst [vmem:[#allocation2 + $0x58] sm:$0xff] %v430
        %545 = vst [vmem:[#allocation2 + $0x60] sm:$0xff] %v435
        %546 = vst [vmem:[#allocation2 + $0x68] sm:$0xff] %v440
        %547 = vst [vmem:[#allocation2 + $0x70] sm:$0xff] %v445
        %548 = vst [vmem:[#allocation2 + $0x78] sm:$0xff] %v450
        %549 = vst [vmem:[#allocation2 + $0x80] sm:$0xff] %v455
        %550 = vst [vmem:[#allocation2 + $0x88] sm:$0xff] %v460
        %551 = vst [vmem:[#allocation2 + $0x90] sm:$0xff] %v465
        %552 = vst [vmem:[#allocation2 + $0x98] sm:$0xff] %v470
        %553 = vst [vmem:[#allocation2 + $0xa0] sm:$0xff] %v475
        %554 = vst [vmem:[#allocation2 + $0xa8] sm:$0xff] %v480
        %555 = vst [vmem:[#allocation2 + $0xb0] sm:$0xff] %v485
        %556 = vst [vmem:[#allocation2 + $0xb8] sm:$0xff] %v490
        %557 = vst [vmem:[#allocation2 + $0xc0] sm:$0xff] %v495
        %558 = vst [vmem:[#allocation2 + $0xc8] sm:$0xff] %v500
        %559 = vst [vmem:[#allocation2 + $0xd0] sm:$0xff] %v505
        %560 = vst [vmem:[#allocation2 + $0xd8] sm:$0xff] %v510
        %561 = vst [vmem:[#allocation2 + $0xe0] sm:$0xff] %v515
        %562 = vst [vmem:[#allocation2 + $0xe8] sm:$0xff] %v520
        %563 = vst [vmem:[#allocation2 + $0xf0] sm:$0xff] %v525
        %564 = vst [vmem:[#allocation2 + $0xf8] sm:$0xff] %v530
        %vm613 = vcmask 1046528
        %v614 = vrot.slane %v238, 1
        %v615 = vrot.slane %v239, 1
        %v616 = vsel %vm613, %v614, %v615
        %v617 = vrot.slane %v240, 1
        %v618 = vsel %vm613, %v615, %v617
        %v619 = vrot.slane %v241, 1
        %v620 = vrot.slane %v242, 1
        %v621 = vsel %vm613, %v619, %v620
        %v622 = vrot.slane %v243, 1
        %v623 = vsel %vm613, %v620, %v622
        %v624 = vrot.slane %v244, 1
        %v625 = vrot.slane %v245, 1
        %v626 = vsel %vm613, %v624, %v625
        %v627 = vrot.slane %v246, 1
        %v628 = vsel %vm613, %v625, %v627
        %v629 = vrot.slane %v247, 1
        %v630 = vrot.slane %v248, 1
        %v631 = vsel %vm613, %v629, %v630
        %v632 = vrot.slane %v249, 1
        %v633 = vsel %vm613, %v630, %v632
        %v634 = vrot.slane %v250, 1
        %v635 = vrot.slane %v251, 1
        %v636 = vsel %vm613, %v634, %v635
        %v637 = vrot.slane %v252, 1
        %v638 = vsel %vm613, %v635, %v637
        %v639 = vrot.slane %v253, 1
        %v640 = vrot.slane %v254, 1
        %v641 = vsel %vm613, %v639, %v640
        %v642 = vrot.slane %v255, 1
        %v643 = vsel %vm613, %v640, %v642
        %v644 = vrot.slane %v256, 1
        %v645 = vrot.slane %v257, 1
        %v646 = vsel %vm613, %v644, %v645
        %v647 = vrot.slane %v258, 1
        %v648 = vsel %vm613, %v645, %v647
        %v649 = vrot.slane %v259, 1
        %v650 = vrot.slane %v260, 1
        %v651 = vsel %vm613, %v649, %v650
        %v652 = vrot.slane %v261, 1
        %v653 = vsel %vm613, %v650, %v652
        %v654 = vrot.slane %v262, 1
        %v655 = vrot.slane %v263, 1
        %v656 = vsel %vm613, %v654, %v655
        %v657 = vrot.slane %v264, 1
        %v658 = vsel %vm613, %v655, %v657
        %v659 = vrot.slane %v265, 1
        %v660 = vrot.slane %v266, 1
        %v661 = vsel %vm613, %v659, %v660
        %v662 = vrot.slane %v267, 1
        %v663 = vsel %vm613, %v660, %v662
        %v664 = vrot.slane %v268, 1
        %v665 = vrot.slane %v269, 1
        %v666 = vsel %vm613, %v664, %v665
        %v667 = vrot.slane %v270, 1
        %v668 = vsel %vm613, %v665, %v667
        %v669 = vrot.slane %v271, 1
        %v670 = vrot.slane %v272, 1
        %v671 = vsel %vm613, %v669, %v670
        %v672 = vrot.slane %v273, 1
        %v673 = vsel %vm613, %v670, %v672
        %v674 = vrot.slane %v274, 1
        %v675 = vrot.slane %v275, 1
        %v676 = vsel %vm613, %v674, %v675
        %v677 = vrot.slane %v276, 1
        %v678 = vsel %vm613, %v675, %v677
        %v679 = vrot.slane %v277, 1
        %v680 = vrot.slane %v278, 1
        %v681 = vsel %vm613, %v679, %v680
        %v682 = vrot.slane %v279, 1
        %v683 = vsel %vm613, %v680, %v682
        %v684 = vrot.slane %v280, 1
        %v685 = vrot.slane %v281, 1
        %v686 = vsel %vm613, %v684, %v685
        %v687 = vrot.slane %v282, 1
        %v688 = vsel %vm613, %v685, %v687
        %v689 = vrot.slane %v283, 1
        %v690 = vrot.slane %v284, 1
        %v691 = vsel %vm613, %v689, %v690
        %v692 = vrot.slane %v285, 1
        %v693 = vsel %vm613, %v690, %v692
        %s726 = scalar_lea.vmem %s1, 128
        %v727 = vld [vmem:[%s726] sm:$0xff]
        %v728 = vld [vmem:[%s726 + $0x8] sm:$0xff]
        %v729 = vld [vmem:[%s726 + $0x10] sm:$0xff]
        %v730 = vld [vmem:[%s726 + $0x18] sm:$0xff]
        %v731 = vld [vmem:[%s726 + $0x20] sm:$0xff]
        %v732 = vld [vmem:[%s726 + $0x28] sm:$0xff]
        %v733 = vld [vmem:[%s726 + $0x30] sm:$0xff]
        %v734 = vld [vmem:[%s726 + $0x38] sm:$0xff]
        %v735 = vld [vmem:[%s726 + $0x40] sm:$0xff]
        %v736 = vld [vmem:[%s726 + $0x48] sm:$0xff]
        %v737 = vld [vmem:[%s726 + $0x50] sm:$0xff]
        %v738 = vld [vmem:[%s726 + $0x58] sm:$0xff]
        %v739 = vld [vmem:[%s726 + $0x60] sm:$0xff]
        %v740 = vld [vmem:[%s726 + $0x68] sm:$0xff]
        %v741 = vld [vmem:[%s726 + $0x70] sm:$0xff]
        %v742 = vld [vmem:[%s726 + $0x78] sm:$0xff]
        %743 = vmatprep.subr.mxu0 0.0
        %744 = vmatpush1.msra.mxu0 %v727
        %745 = vmatprep.subr.mxu0 0.0
        %746 = vmatpush1.msra.mxu0 %v728
        %747 = vmatprep.subr.mxu0 0.0
        %748 = vmatpush1.msra.mxu0 %v729
        %749 = vmatprep.subr.mxu0 0.0
        %750 = vmatpush1.msra.mxu0 %v730
        %751 = vmatprep.subr.mxu0 0.0
        %752 = vmatpush1.msra.mxu0 %v731
        %753 = vmatprep.subr.mxu0 0.0
        %754 = vmatpush1.msra.mxu0 %v732
        %755 = vmatprep.subr.mxu0 0.0
        %756 = vmatpush1.msra.mxu0 %v733
        %757 = vmatprep.subr.mxu0 0.0
        %758 = vmatpush1.msra.mxu0 %v734
        %759 = vmatprep.subr.mxu0 0.0
        %760 = vmatpush1.msra.mxu0 %v735
        %761 = vmatprep.subr.mxu0 0.0
        %762 = vmatpush1.msra.mxu0 %v736
        %763 = vmatprep.subr.mxu0 0.0
        %764 = vmatpush1.msra.mxu0 %v737
        %765 = vmatprep.subr.mxu0 0.0
        %766 = vmatpush1.msra.mxu0 %v738
        %767 = vmatprep.subr.mxu0 0.0
        %768 = vmatpush1.msra.mxu0 %v739
        %769 = vmatprep.subr.mxu0 0.0
        %770 = vmatpush1.msra.mxu0 %v740
        %771 = vmatprep.subr.mxu0 0.0
        %772 = vmatpush1.msra.mxu0 %v741
        %773 = vmatprep.subr.mxu0 0.0
        %774 = vmatpush1.msra.mxu0 %v742
        %775 = vmatprep.subr.mxu0 0.0
        %776 = vmatpush1.msra.mxu0 0.0
        %777 = vmatprep.subr.mxu0 0.0
        %778 = vmatpush1.msra.mxu0 0.0
        %779 = vmatprep.subr.mxu0 0.0
        %780 = vmatpush1.msra.mxu0 0.0
        %781 = vmatprep.subr.mxu0 0.0
        %782 = vmatpush1.msra.mxu0 0.0
        %783 = vmatprep.subr.mxu0 0.0
        %784 = vmatpush1.msra.mxu0 0.0
        %785 = vmatprep.subr.mxu0 0.0
        %786 = vmatpush1.msra.mxu0 0.0
        %787 = vmatprep.subr.mxu0 0.0
        %788 = vmatpush1.msra.mxu0 0.0
        %789 = vmatprep.subr.mxu0 0.0
        %790 = vmatpush1.msra.mxu0 0.0
        %791 = vmatprep.subr.mxu0 0.0
        %792 = vmatpush1.msra.mxu0 0.0
        %793 = vmatprep.subr.mxu0 0.0
        %794 = vmatpush1.msra.mxu0 0.0
        %795 = vmatprep.subr.mxu0 0.0
        %796 = vmatpush1.msra.mxu0 0.0
        %797 = vmatprep.subr.mxu0 0.0
        %798 = vmatpush1.msra.mxu0 0.0
        %799 = vmatprep.subr.mxu0 0.0
        %800 = vmatpush1.msra.mxu0 0.0
        %801 = vmatprep.subr.mxu0 0.0
        %802 = vmatpush1.msra.mxu0 0.0
        %803 = vmatprep.subr.mxu0 0.0
        %804 = vmatpush1.msra.mxu0 0.0
        %805 = vmatprep.subr.mxu0 0.0
        %806 = vmatpush1.msra.mxu0 0.0
        %807 = vmatprep.mubr.f32.mxu0 0.0
        %808 = vmatmul.mubr.f32.gmra.mrb[0].mxu0 %v616
        %v809 = vpop.f32.mrb[0].mxu0
        %v810 = vadd.f32 0.0, %v809
        %v811 = vpop.f32.mrb[0].mxu0
        %812 = vmatprep.mubr.f32.mxu0 0.0
        %813 = vmatmul.mubr.f32.gmra.mrb[0].mxu0 %v618
        %v814 = vpop.f32.mrb[0].mxu0
        %v815 = vadd.f32 0.0, %v814
        %v816 = vpop.f32.mrb[0].mxu0
        %817 = vmatprep.mubr.f32.mxu0 0.0
        %818 = vmatmul.mubr.f32.gmra.mrb[0].mxu0 %v621
        %v819 = vpop.f32.mrb[0].mxu0
        %v820 = vadd.f32 0.0, %v819
        %v821 = vpop.f32.mrb[0].mxu0
        %822 = vmatprep.mubr.f32.mxu0 0.0
        %823 = vmatmul.mubr.f32.gmra.mrb[0].mxu0 %v623
        %v824 = vpop.f32.mrb[0].mxu0
        %v825 = vadd.f32 0.0, %v824
        %v826 = vpop.f32.mrb[0].mxu0
        %827 = vmatprep.mubr.f32.mxu0 0.0
        %828 = vmatmul.mubr.f32.gmra.mrb[0].mxu0 %v626
        %v829 = vpop.f32.mrb[0].mxu0
        %v830 = vadd.f32 0.0, %v829
        %v831 = vpop.f32.mrb[0].mxu0
        %832 = vmatprep.mubr.f32.mxu0 0.0
        %833 = vmatmul.mubr.f32.gmra.mrb[0].mxu0 %v628
        %v834 = vpop.f32.mrb[0].mxu0
        %v835 = vadd.f32 0.0, %v834
        %v836 = vpop.f32.mrb[0].mxu0
        %837 = vmatprep.mubr.f32.mxu0 0.0
        %838 = vmatmul.mubr.f32.gmra.mrb[0].mxu0 %v631
        %v839 = vpop.f32.mrb[0].mxu0
        %v840 = vadd.f32 0.0, %v839
        %v841 = vpop.f32.mrb[0].mxu0
        %842 = vmatprep.mubr.f32.mxu0 0.0
        %843 = vmatmul.mubr.f32.gmra.mrb[0].mxu0 %v633
        %v844 = vpop.f32.mrb[0].mxu0
        %v845 = vadd.f32 0.0, %v844
        %v846 = vpop.f32.mrb[0].mxu0
        %847 = vmatprep.mubr.f32.mxu0 0.0
        %848 = vmatmul.mubr.f32.gmra.mrb[0].mxu0 %v636
        %v849 = vpop.f32.mrb[0].mxu0
        %v850 = vadd.f32 0.0, %v849
        %v851 = vpop.f32.mrb[0].mxu0
        %852 = vmatprep.mubr.f32.mxu0 0.0
        %853 = vmatmul.mubr.f32.gmra.mrb[0].mxu0 %v638
        %v854 = vpop.f32.mrb[0].mxu0
        %v855 = vadd.f32 0.0, %v854
        %v856 = vpop.f32.mrb[0].mxu0
        %857 = vmatprep.mubr.f32.mxu0 0.0
        %858 = vmatmul.mubr.f32.gmra.mrb[0].mxu0 %v641
        %v859 = vpop.f32.mrb[0].mxu0
        %v860 = vadd.f32 0.0, %v859
        %v861 = vpop.f32.mrb[0].mxu0
        %862 = vmatprep.mubr.f32.mxu0 0.0
        %863 = vmatmul.mubr.f32.gmra.mrb[0].mxu0 %v643
        %v864 = vpop.f32.mrb[0].mxu0
        %v865 = vadd.f32 0.0, %v864
        %v866 = vpop.f32.mrb[0].mxu0
        %867 = vmatprep.mubr.f32.mxu0 0.0
        %868 = vmatmul.mubr.f32.gmra.mrb[0].mxu0 %v646
        %v869 = vpop.f32.mrb[0].mxu0
        %v870 = vadd.f32 0.0, %v869
        %v871 = vpop.f32.mrb[0].mxu0
        %872 = vmatprep.mubr.f32.mxu0 0.0
        %873 = vmatmul.mubr.f32.gmra.mrb[0].mxu0 %v648
        %v874 = vpop.f32.mrb[0].mxu0
        %v875 = vadd.f32 0.0, %v874
        %v876 = vpop.f32.mrb[0].mxu0
        %877 = vmatprep.mubr.f32.mxu0 0.0
        %878 = vmatmul.mubr.f32.gmra.mrb[0].mxu0 %v651
        %v879 = vpop.f32.mrb[0].mxu0
        %v880 = vadd.f32 0.0, %v879
        %v881 = vpop.f32.mrb[0].mxu0
        %882 = vmatprep.mubr.f32.mxu0 0.0
        %883 = vmatmul.mubr.f32.gmra.mrb[0].mxu0 %v653
        %v884 = vpop.f32.mrb[0].mxu0
        %v885 = vadd.f32 0.0, %v884
        %v886 = vpop.f32.mrb[0].mxu0
        %887 = vmatprep.mubr.f32.mxu0 0.0
        %888 = vmatmul.mubr.f32.gmra.mrb[0].mxu0 %v656
        %v889 = vpop.f32.mrb[0].mxu0
        %v890 = vadd.f32 0.0, %v889
        %v891 = vpop.f32.mrb[0].mxu0
        %892 = vmatprep.mubr.f32.mxu0 0.0
        %893 = vmatmul.mubr.f32.gmra.mrb[0].mxu0 %v658
        %v894 = vpop.f32.mrb[0].mxu0
        %v895 = vadd.f32 0.0, %v894
        %v896 = vpop.f32.mrb[0].mxu0
        %897 = vmatprep.mubr.f32.mxu0 0.0
        %898 = vmatmul.mubr.f32.gmra.mrb[0].mxu0 %v661
        %v899 = vpop.f32.mrb[0].mxu0
        %v900 = vadd.f32 0.0, %v899
        %v901 = vpop.f32.mrb[0].mxu0
        %902 = vmatprep.mubr.f32.mxu0 0.0
        %903 = vmatmul.mubr.f32.gmra.mrb[0].mxu0 %v663
        %v904 = vpop.f32.mrb[0].mxu0
        %v905 = vadd.f32 0.0, %v904
        %v906 = vpop.f32.mrb[0].mxu0
        %907 = vmatprep.mubr.f32.mxu0 0.0
        %908 = vmatmul.mubr.f32.gmra.mrb[0].mxu0 %v666
        %v909 = vpop.f32.mrb[0].mxu0
        %v910 = vadd.f32 0.0, %v909
        %v911 = vpop.f32.mrb[0].mxu0
        %912 = vmatprep.mubr.f32.mxu0 0.0
        %913 = vmatmul.mubr.f32.gmra.mrb[0].mxu0 %v668
        %v914 = vpop.f32.mrb[0].mxu0
        %v915 = vadd.f32 0.0, %v914
        %v916 = vpop.f32.mrb[0].mxu0
        %917 = vmatprep.mubr.f32.mxu0 0.0
        %918 = vmatmul.mubr.f32.gmra.mrb[0].mxu0 %v671
        %v919 = vpop.f32.mrb[0].mxu0
        %v920 = vadd.f32 0.0, %v919
        %v921 = vpop.f32.mrb[0].mxu0
        %922 = vmatprep.mubr.f32.mxu0 0.0
        %923 = vmatmul.mubr.f32.gmra.mrb[0].mxu0 %v673
        %v924 = vpop.f32.mrb[0].mxu0
        %v925 = vadd.f32 0.0, %v924
        %v926 = vpop.f32.mrb[0].mxu0
        %927 = vmatprep.mubr.f32.mxu0 0.0
        %928 = vmatmul.mubr.f32.gmra.mrb[0].mxu0 %v676
        %v929 = vpop.f32.mrb[0].mxu0
        %v930 = vadd.f32 0.0, %v929
        %v931 = vpop.f32.mrb[0].mxu0
        %932 = vmatprep.mubr.f32.mxu0 0.0
        %933 = vmatmul.mubr.f32.gmra.mrb[0].mxu0 %v678
        %v934 = vpop.f32.mrb[0].mxu0
        %v935 = vadd.f32 0.0, %v934
        %v936 = vpop.f32.mrb[0].mxu0
        %937 = vmatprep.mubr.f32.mxu0 0.0
        %938 = vmatmul.mubr.f32.gmra.mrb[0].mxu0 %v681
        %v939 = vpop.f32.mrb[0].mxu0
        %v940 = vadd.f32 0.0, %v939
        %v941 = vpop.f32.mrb[0].mxu0
        %942 = vmatprep.mubr.f32.mxu0 0.0
        %943 = vmatmul.mubr.f32.gmra.mrb[0].mxu0 %v683
        %v944 = vpop.f32.mrb[0].mxu0
        %v945 = vadd.f32 0.0, %v944
        %v946 = vpop.f32.mrb[0].mxu0
        %947 = vmatprep.mubr.f32.mxu0 0.0
        %948 = vmatmul.mubr.f32.gmra.mrb[0].mxu0 %v686
        %v949 = vpop.f32.mrb[0].mxu0
        %v950 = vadd.f32 0.0, %v949
        %v951 = vpop.f32.mrb[0].mxu0
        %952 = vmatprep.mubr.f32.mxu0 0.0
        %953 = vmatmul.mubr.f32.gmra.mrb[0].mxu0 %v688
        %v954 = vpop.f32.mrb[0].mxu0
        %v955 = vadd.f32 0.0, %v954
        %v956 = vpop.f32.mrb[0].mxu0
        %957 = vmatprep.mubr.f32.mxu0 0.0
        %958 = vmatmul.mubr.f32.gmra.mrb[0].mxu0 %v691
        %v959 = vpop.f32.mrb[0].mxu0
        %v960 = vadd.f32 0.0, %v959
        %v961 = vpop.f32.mrb[0].mxu0
        %962 = vmatprep.mubr.f32.mxu0 0.0
        %963 = vmatmul.mubr.f32.gmra.mrb[0].mxu0 %v693
        %v964 = vpop.f32.mrb[0].mxu0
        %v965 = vadd.f32 0.0, %v964
        %v966 = vpop.f32.mrb[0].mxu0
        %967 = vdwg.mxu0
        %v968 = vld [vmem:[#allocation2] sm:$0xff]
        %v969 = vld [vmem:[#allocation2 + $0x8] sm:$0xff]
        %v970 = vld [vmem:[#allocation2 + $0x10] sm:$0xff]
        %v971 = vld [vmem:[#allocation2 + $0x18] sm:$0xff]
        %v972 = vld [vmem:[#allocation2 + $0x20] sm:$0xff]
        %v973 = vld [vmem:[#allocation2 + $0x28] sm:$0xff]
        %v974 = vld [vmem:[#allocation2 + $0x30] sm:$0xff]
        %v975 = vld [vmem:[#allocation2 + $0x38] sm:$0xff]
        %v976 = vld [vmem:[#allocation2 + $0x40] sm:$0xff]
        %v977 = vld [vmem:[#allocation2 + $0x48] sm:$0xff]
        %v978 = vld [vmem:[#allocation2 + $0x50] sm:$0xff]
        %v979 = vld [vmem:[#allocation2 + $0x58] sm:$0xff]
        %v980 = vld [vmem:[#allocation2 + $0x60] sm:$0xff]
        %v981 = vld [vmem:[#allocation2 + $0x68] sm:$0xff]
        %v982 = vld [vmem:[#allocation2 + $0x70] sm:$0xff]
        %v983 = vld [vmem:[#allocation2 + $0x78] sm:$0xff]
        %v984 = vld [vmem:[#allocation2 + $0x80] sm:$0xff]
        %v985 = vld [vmem:[#allocation2 + $0x88] sm:$0xff]
        %v986 = vld [vmem:[#allocation2 + $0x90] sm:$0xff]
        %v987 = vld [vmem:[#allocation2 + $0x98] sm:$0xff]
        %v988 = vld [vmem:[#allocation2 + $0xa0] sm:$0xff]
        %v989 = vld [vmem:[#allocation2 + $0xa8] sm:$0xff]
        %v990 = vld [vmem:[#allocation2 + $0xb0] sm:$0xff]
        %v991 = vld [vmem:[#allocation2 + $0xb8] sm:$0xff]
        %v992 = vld [vmem:[#allocation2 + $0xc0] sm:$0xff]
        %v993 = vld [vmem:[#allocation2 + $0xc8] sm:$0xff]
        %v994 = vld [vmem:[#allocation2 + $0xd0] sm:$0xff]
        %v995 = vld [vmem:[#allocation2 + $0xd8] sm:$0xff]
        %v996 = vld [vmem:[#allocation2 + $0xe0] sm:$0xff]
        %v997 = vld [vmem:[#allocation2 + $0xe8] sm:$0xff]
        %v998 = vld [vmem:[#allocation2 + $0xf0] sm:$0xff]
        %v999 = vld [vmem:[#allocation2 + $0xf8] sm:$0xff]
        %v1000 = vadd.f32 %v968, %v810
        %v1001 = vadd.f32 %v969, %v815
        %v1002 = vadd.f32 %v970, %v820
        %v1003 = vadd.f32 %v971, %v825
        %v1004 = vadd.f32 %v972, %v830
        %v1005 = vadd.f32 %v973, %v835
        %v1006 = vadd.f32 %v974, %v840
        %v1007 = vadd.f32 %v975, %v845
        %v1008 = vadd.f32 %v976, %v850
        %v1009 = vadd.f32 %v977, %v855
        %v1010 = vadd.f32 %v978, %v860
        %v1011 = vadd.f32 %v979, %v865
        %v1012 = vadd.f32 %v980, %v870
        %v1013 = vadd.f32 %v981, %v875
        %v1014 = vadd.f32 %v982, %v880
        %v1015 = vadd.f32 %v983, %v885
        %v1016 = vadd.f32 %v984, %v890
        %v1017 = vadd.f32 %v985, %v895
        %v1018 = vadd.f32 %v986, %v900
        %v1019 = vadd.f32 %v987, %v905
        %v1020 = vadd.f32 %v988, %v910
        %v1021 = vadd.f32 %v989, %v915
        %v1022 = vadd.f32 %v990, %v920
        %v1023 = vadd.f32 %v991, %v925
        %v1024 = vadd.f32 %v992, %v930
        %v1025 = vadd.f32 %v993, %v935
        %v1026 = vadd.f32 %v994, %v940
        %v1027 = vadd.f32 %v995, %v945
        %v1028 = vadd.f32 %v996, %v950
        %v1029 = vadd.f32 %v997, %v955
        %v1030 = vadd.f32 %v998, %v960
        %v1031 = vadd.f32 %v999, %v965
        %1032 = vst [vmem:[#allocation2] sm:$0xff] %v1000
        %1033 = vst [vmem:[#allocation2 + $0x8] sm:$0xff] %v1001
        %1034 = vst [vmem:[#allocation2 + $0x10] sm:$0xff] %v1002
        %1035 = vst [vmem:[#allocation2 + $0x18] sm:$0xff] %v1003
        %1036 = vst [vmem:[#allocation2 + $0x20] sm:$0xff] %v1004
        %1037 = vst [vmem:[#allocation2 + $0x28] sm:$0xff] %v1005
        %1038 = vst [vmem:[#allocation2 + $0x30] sm:$0xff] %v1006
        %1039 = vst [vmem:[#allocation2 + $0x38] sm:$0xff] %v1007
        %1040 = vst [vmem:[#allocation2 + $0x40] sm:$0xff] %v1008
        %1041 = vst [vmem:[#allocation2 + $0x48] sm:$0xff] %v1009
        %1042 = vst [vmem:[#allocation2 + $0x50] sm:$0xff] %v1010
        %1043 = vst [vmem:[#allocation2 + $0x58] sm:$0xff] %v1011
        %1044 = vst [vmem:[#allocation2 + $0x60] sm:$0xff] %v1012
        %1045 = vst [vmem:[#allocation2 + $0x68] sm:$0xff] %v1013
        %1046 = vst [vmem:[#allocation2 + $0x70] sm:$0xff] %v1014
        %1047 = vst [vmem:[#allocation2 + $0x78] sm:$0xff] %v1015
        %1048 = vst [vmem:[#allocation2 + $0x80] sm:$0xff] %v1016
        %1049 = vst [vmem:[#allocation2 + $0x88] sm:$0xff] %v1017
        %1050 = vst [vmem:[#allocation2 + $0x90] sm:$0xff] %v1018
        %1051 = vst [vmem:[#allocation2 + $0x98] sm:$0xff] %v1019
        %1052 = vst [vmem:[#allocation2 + $0xa0] sm:$0xff] %v1020
        %1053 = vst [vmem:[#allocation2 + $0xa8] sm:$0xff] %v1021
        %1054 = vst [vmem:[#allocation2 + $0xb0] sm:$0xff] %v1022
        %1055 = vst [vmem:[#allocation2 + $0xb8] sm:$0xff] %v1023
        %1056 = vst [vmem:[#allocation2 + $0xc0] sm:$0xff] %v1024
        %1057 = vst [vmem:[#allocation2 + $0xc8] sm:$0xff] %v1025
        %1058 = vst [vmem:[#allocation2 + $0xd0] sm:$0xff] %v1026
        %1059 = vst [vmem:[#allocation2 + $0xd8] sm:$0xff] %v1027
        %1060 = vst [vmem:[#allocation2 + $0xe0] sm:$0xff] %v1028
        %1061 = vst [vmem:[#allocation2 + $0xe8] sm:$0xff] %v1029
        %1062 = vst [vmem:[#allocation2 + $0xf0] sm:$0xff] %v1030
        %1063 = vst [vmem:[#allocation2 + $0xf8] sm:$0xff] %v1031
        %vm1064 = vcmask 1045504
        %v1065 = vrot.slane %v238, 2
        %v1066 = vrot.slane %v239, 2
        %v1067 = vsel %vm1064, %v1065, %v1066
        %v1068 = vrot.slane %v240, 2
        %v1069 = vsel %vm1064, %v1066, %v1068
        %v1070 = vrot.slane %v241, 2
        %v1071 = vrot.slane %v242, 2
        %v1072 = vsel %vm1064, %v1070, %v1071
        %v1073 = vrot.slane %v243, 2
        %v1074 = vsel %vm1064, %v1071, %v1073
        %v1075 = vrot.slane %v244, 2
        %v1076 = vrot.slane %v245, 2
        %v1077 = vsel %vm1064, %v1075, %v1076
        %v1078 = vrot.slane %v246, 2
        %v1079 = vsel %vm1064, %v1076, %v1078
        %v1080 = vrot.slane %v247, 2
        %v1081 = vrot.slane %v248, 2
        %v1082 = vsel %vm1064, %v1080, %v1081
        %v1083 = vrot.slane %v249, 2
        %v1084 = vsel %vm1064, %v1081, %v1083
        %v1085 = vrot.slane %v250, 2
        %v1086 = vrot.slane %v251, 2
        %v1087 = vsel %vm1064, %v1085, %v1086
        %v1088 = vrot.slane %v252, 2
        %v1089 = vsel %vm1064, %v1086, %v1088
        %v1090 = vrot.slane %v253, 2
        %v1091 = vrot.slane %v254, 2
        %v1092 = vsel %vm1064, %v1090, %v1091
        %v1093 = vrot.slane %v255, 2
        %v1094 = vsel %vm1064, %v1091, %v1093
        %v1095 = vrot.slane %v256, 2
        %v1096 = vrot.slane %v257, 2
        %v1097 = vsel %vm1064, %v1095, %v1096
        %v1098 = vrot.slane %v258, 2
        %v1099 = vsel %vm1064, %v1096, %v1098
        %v1100 = vrot.slane %v259, 2
        %v1101 = vrot.slane %v260, 2
        %v1102 = vsel %vm1064, %v1100, %v1101
        %v1103 = vrot.slane %v261, 2
        %v1104 = vsel %vm1064, %v1101, %v1103
        %v1105 = vrot.slane %v262, 2
        %v1106 = vrot.slane %v263, 2
        %v1107 = vsel %vm1064, %v1105, %v1106
        %v1108 = vrot.slane %v264, 2
        %v1109 = vsel %vm1064, %v1106, %v1108
        %v1110 = vrot.slane %v265, 2
        %v1111 = vrot.slane %v266, 2
        %v1112 = vsel %vm1064, %v1110, %v1111
        %v1113 = vrot.slane %v267, 2
        %v1114 = vsel %vm1064, %v1111, %v1113
        %v1115 = vrot.slane %v268, 2
        %v1116 = vrot.slane %v269, 2
        %v1117 = vsel %vm1064, %v1115, %v1116
        %v1118 = vrot.slane %v270, 2
        %v1119 = vsel %vm1064, %v1116, %v1118
        %v1120 = vrot.slane %v271, 2
        %v1121 = vrot.slane %v272, 2
        %v1122 = vsel %vm1064, %v1120, %v1121
        %v1123 = vrot.slane %v273, 2
        %v1124 = vsel %vm1064, %v1121, %v1123
        %v1125 = vrot.slane %v274, 2
        %v1126 = vrot.slane %v275, 2
        %v1127 = vsel %vm1064, %v1125, %v1126
        %v1128 = vrot.slane %v276, 2
        %v1129 = vsel %vm1064, %v1126, %v1128
        %v1130 = vrot.slane %v277, 2
        %v1131 = vrot.slane %v278, 2
        %v1132 = vsel %vm1064, %v1130, %v1131
        %v1133 = vrot.slane %v279, 2
        %v1134 = vsel %vm1064, %v1131, %v1133
        %v1135 = vrot.slane %v280, 2
        %v1136 = vrot.slane %v281, 2
        %v1137 = vsel %vm1064, %v1135, %v1136
        %v1138 = vrot.slane %v282, 2
        %v1139 = vsel %vm1064, %v1136, %v1138
        %v1140 = vrot.slane %v283, 2
        %v1141 = vrot.slane %v284, 2
        %v1142 = vsel %vm1064, %v1140, %v1141
        %v1143 = vrot.slane %v285, 2
        %v1144 = vsel %vm1064, %v1141, %v1143
        %s1177 = scalar_lea.vmem %s1, 256
        %v1178 = vld [vmem:[%s1177] sm:$0xff]
        %v1179 = vld [vmem:[%s1177 + $0x8] sm:$0xff]
        %v1180 = vld [vmem:[%s1177 + $0x10] sm:$0xff]
        %v1181 = vld [vmem:[%s1177 + $0x18] sm:$0xff]
        %v1182 = vld [vmem:[%s1177 + $0x20] sm:$0xff]
        %v1183 = vld [vmem:[%s1177 + $0x28] sm:$0xff]
        %v1184 = vld [vmem:[%s1177 + $0x30] sm:$0xff]
        %v1185 = vld [vmem:[%s1177 + $0x38] sm:$0xff]
        %v1186 = vld [vmem:[%s1177 + $0x40] sm:$0xff]
        %v1187 = vld [vmem:[%s1177 + $0x48] sm:$0xff]
        %v1188 = vld [vmem:[%s1177 + $0x50] sm:$0xff]
        %v1189 = vld [vmem:[%s1177 + $0x58] sm:$0xff]
        %v1190 = vld [vmem:[%s1177 + $0x60] sm:$0xff]
        %v1191 = vld [vmem:[%s1177 + $0x68] sm:$0xff]
        %v1192 = vld [vmem:[%s1177 + $0x70] sm:$0xff]
        %v1193 = vld [vmem:[%s1177 + $0x78] sm:$0xff]
        %1194 = vmatprep.subr.mxu0 0.0
        %1195 = vmatpush1.msra.mxu0 %v1178
        %1196 = vmatprep.subr.mxu0 0.0
        %1197 = vmatpush1.msra.mxu0 %v1179
        %1198 = vmatprep.subr.mxu0 0.0
        %1199 = vmatpush1.msra.mxu0 %v1180
        %1200 = vmatprep.subr.mxu0 0.0
        %1201 = vmatpush1.msra.mxu0 %v1181
        %1202 = vmatprep.subr.mxu0 0.0
        %1203 = vmatpush1.msra.mxu0 %v1182
        %1204 = vmatprep.subr.mxu0 0.0
        %1205 = vmatpush1.msra.mxu0 %v1183
        %1206 = vmatprep.subr.mxu0 0.0
        %1207 = vmatpush1.msra.mxu0 %v1184
        %1208 = vmatprep.subr.mxu0 0.0
        %1209 = vmatpush1.msra.mxu0 %v1185
        %1210 = vmatprep.subr.mxu0 0.0
        %1211 = vmatpush1.msra.mxu0 %v1186
        %1212 = vmatprep.subr.mxu0 0.0
        %1213 = vmatpush1.msra.mxu0 %v1187
        %1214 = vmatprep.subr.mxu0 0.0
        %1215 = vmatpush1.msra.mxu0 %v1188
        %1216 = vmatprep.subr.mxu0 0.0
        %1217 = vmatpush1.msra.mxu0 %v1189
        %1218 = vmatprep.subr.mxu0 0.0
        %1219 = vmatpush1.msra.mxu0 %v1190
        %1220 = vmatprep.subr.mxu0 0.0
        %1221 = vmatpush1.msra.mxu0 %v1191
        %1222 = vmatprep.subr.mxu0 0.0
        %1223 = vmatpush1.msra.mxu0 %v1192
        %1224 = vmatprep.subr.mxu0 0.0
        %1225 = vmatpush1.msra.mxu0 %v1193
        %1226 = vmatprep.subr.mxu0 0.0
        %1227 = vmatpush1.msra.mxu0 0.0
        %1228 = vmatprep.subr.mxu0 0.0
        %1229 = vmatpush1.msra.mxu0 0.0
        %1230 = vmatprep.subr.mxu0 0.0
        %1231 = vmatpush1.msra.mxu0 0.0
        %1232 = vmatprep.subr.mxu0 0.0
        %1233 = vmatpush1.msra.mxu0 0.0
        %1234 = vmatprep.subr.mxu0 0.0
        %1235 = vmatpush1.msra.mxu0 0.0
        %1236 = vmatprep.subr.mxu0 0.0
        %1237 = vmatpush1.msra.mxu0 0.0
        %1238 = vmatprep.subr.mxu0 0.0
        %1239 = vmatpush1.msra.mxu0 0.0
        %1240 = vmatprep.subr.mxu0 0.0
        %1241 = vmatpush1.msra.mxu0 0.0
        %1242 = vmatprep.subr.mxu0 0.0
        %1243 = vmatpush1.msra.mxu0 0.0
        %1244 = vmatprep.subr.mxu0 0.0
        %1245 = vmatpush1.msra.mxu0 0.0
        %1246 = vmatprep.subr.mxu0 0.0
        %1247 = vmatpush1.msra.mxu0 0.0
        %1248 = vmatprep.subr.mxu0 0.0
        %1249 = vmatpush1.msra.mxu0 0.0
        %1250 = vmatprep.subr.mxu0 0.0
        %1251 = vmatpush1.msra.mxu0 0.0
        %1252 = vmatprep.subr.mxu0 0.0
        %1253 = vmatpush1.msra.mxu0 0.0
        %1254 = vmatprep.subr.mxu0 0.0
        %1255 = vmatpush1.msra.mxu0 0.0
        %1256 = vmatprep.subr.mxu0 0.0
        %1257 = vmatpush1.msra.mxu0 0.0
        %1258 = vmatprep.mubr.f32.mxu0 0.0
        %1259 = vmatmul.mubr.f32.gmra.mrb[0].mxu0 %v1067
        %v1260 = vpop.f32.mrb[0].mxu0
        %v1261 = vadd.f32 0.0, %v1260
        %v1262 = vpop.f32.mrb[0].mxu0
        %1263 = vmatprep.mubr.f32.mxu0 0.0
        %1264 = vmatmul.mubr.f32.gmra.mrb[0].mxu0 %v1069
        %v1265 = vpop.f32.mrb[0].mxu0
        %v1266 = vadd.f32 0.0, %v1265
        %v1267 = vpop.f32.mrb[0].mxu0
        %1268 = vmatprep.mubr.f32.mxu0 0.0
        %1269 = vmatmul.mubr.f32.gmra.mrb[0].mxu0 %v1072
        %v1270 = vpop.f32.mrb[0].mxu0
        %v1271 = vadd.f32 0.0, %v1270
        %v1272 = vpop.f32.mrb[0].mxu0
        %1273 = vmatprep.mubr.f32.mxu0 0.0
        %1274 = vmatmul.mubr.f32.gmra.mrb[0].mxu0 %v1074
        %v1275 = vpop.f32.mrb[0].mxu0
        %v1276 = vadd.f32 0.0, %v1275
        %v1277 = vpop.f32.mrb[0].mxu0
        %1278 = vmatprep.mubr.f32.mxu0 0.0
        %1279 = vmatmul.mubr.f32.gmra.mrb[0].mxu0 %v1077
        %v1280 = vpop.f32.mrb[0].mxu0
        %v1281 = vadd.f32 0.0, %v1280
        %v1282 = vpop.f32.mrb[0].mxu0
        %1283 = vmatprep.mubr.f32.mxu0 0.0
        %1284 = vmatmul.mubr.f32.gmra.mrb[0].mxu0 %v1079
        %v1285 = vpop.f32.mrb[0].mxu0
        %v1286 = vadd.f32 0.0, %v1285
        %v1287 = vpop.f32.mrb[0].mxu0
        %1288 = vmatprep.mubr.f32.mxu0 0.0
        %1289 = vmatmul.mubr.f32.gmra.mrb[0].mxu0 %v1082
        %v1290 = vpop.f32.mrb[0].mxu0
        %v1291 = vadd.f32 0.0, %v1290
        %v1292 = vpop.f32.mrb[0].mxu0
        %1293 = vmatprep.mubr.f32.mxu0 0.0
        %1294 = vmatmul.mubr.f32.gmra.mrb[0].mxu0 %v1084
        %v1295 = vpop.f32.mrb[0].mxu0
        %v1296 = vadd.f32 0.0, %v1295
        %v1297 = vpop.f32.mrb[0].mxu0
        %1298 = vmatprep.mubr.f32.mxu0 0.0
        %1299 = vmatmul.mubr.f32.gmra.mrb[0].mxu0 %v1087
        %v1300 = vpop.f32.mrb[0].mxu0
        %v1301 = vadd.f32 0.0, %v1300
        %v1302 = vpop.f32.mrb[0].mxu0
        %1303 = vmatprep.mubr.f32.mxu0 0.0
        %1304 = vmatmul.mubr.f32.gmra.mrb[0].mxu0 %v1089
        %v1305 = vpop.f32.mrb[0].mxu0
        %v1306 = vadd.f32 0.0, %v1305
        %v1307 = vpop.f32.mrb[0].mxu0
        %1308 = vmatprep.mubr.f32.mxu0 0.0
        %1309 = vmatmul.mubr.f32.gmra.mrb[0].mxu0 %v1092
        %v1310 = vpop.f32.mrb[0].mxu0
        %v1311 = vadd.f32 0.0, %v1310
        %v1312 = vpop.f32.mrb[0].mxu0
        %1313 = vmatprep.mubr.f32.mxu0 0.0
        %1314 = vmatmul.mubr.f32.gmra.mrb[0].mxu0 %v1094
        %v1315 = vpop.f32.mrb[0].mxu0
        %v1316 = vadd.f32 0.0, %v1315
        %v1317 = vpop.f32.mrb[0].mxu0
        %1318 = vmatprep.mubr.f32.mxu0 0.0
        %1319 = vmatmul.mubr.f32.gmra.mrb[0].mxu0 %v1097
        %v1320 = vpop.f32.mrb[0].mxu0
        %v1321 = vadd.f32 0.0, %v1320
        %v1322 = vpop.f32.mrb[0].mxu0
        %1323 = vmatprep.mubr.f32.mxu0 0.0
        %1324 = vmatmul.mubr.f32.gmra.mrb[0].mxu0 %v1099
        %v1325 = vpop.f32.mrb[0].mxu0
        %v1326 = vadd.f32 0.0, %v1325
        %v1327 = vpop.f32.mrb[0].mxu0
        %1328 = vmatprep.mubr.f32.mxu0 0.0
        %1329 = vmatmul.mubr.f32.gmra.mrb[0].mxu0 %v1102
        %v1330 = vpop.f32.mrb[0].mxu0
        %v1331 = vadd.f32 0.0, %v1330
        %v1332 = vpop.f32.mrb[0].mxu0
        %1333 = vmatprep.mubr.f32.mxu0 0.0
        %1334 = vmatmul.mubr.f32.gmra.mrb[0].mxu0 %v1104
        %v1335 = vpop.f32.mrb[0].mxu0
        %v1336 = vadd.f32 0.0, %v1335
        %v1337 = vpop.f32.mrb[0].mxu0
        %1338 = vmatprep.mubr.f32.mxu0 0.0
        %1339 = vmatmul.mubr.f32.gmra.mrb[0].mxu0 %v1107
        %v1340 = vpop.f32.mrb[0].mxu0
        %v1341 = vadd.f32 0.0, %v1340
        %v1342 = vpop.f32.mrb[0].mxu0
        %1343 = vmatprep.mubr.f32.mxu0 0.0
        %1344 = vmatmul.mubr.f32.gmra.mrb[0].mxu0 %v1109
        %v1345 = vpop.f32.mrb[0].mxu0
        %v1346 = vadd.f32 0.0, %v1345
        %v1347 = vpop.f32.mrb[0].mxu0
        %1348 = vmatprep.mubr.f32.mxu0 0.0
        %1349 = vmatmul.mubr.f32.gmra.mrb[0].mxu0 %v1112
        %v1350 = vpop.f32.mrb[0].mxu0
        %v1351 = vadd.f32 0.0, %v1350
        %v1352 = vpop.f32.mrb[0].mxu0
        %1353 = vmatprep.mubr.f32.mxu0 0.0
        %1354 = vmatmul.mubr.f32.gmra.mrb[0].mxu0 %v1114
        %v1355 = vpop.f32.mrb[0].mxu0
        %v1356 = vadd.f32 0.0, %v1355
        %v1357 = vpop.f32.mrb[0].mxu0
        %1358 = vmatprep.mubr.f32.mxu0 0.0
        %1359 = vmatmul.mubr.f32.gmra.mrb[0].mxu0 %v1117
        %v1360 = vpop.f32.mrb[0].mxu0
        %v1361 = vadd.f32 0.0, %v1360
        %v1362 = vpop.f32.mrb[0].mxu0
        %1363 = vmatprep.mubr.f32.mxu0 0.0
        %1364 = vmatmul.mubr.f32.gmra.mrb[0].mxu0 %v1119
        %v1365 = vpop.f32.mrb[0].mxu0
        %v1366 = vadd.f32 0.0, %v1365
        %v1367 = vpop.f32.mrb[0].mxu0
        %1368 = vmatprep.mubr.f32.mxu0 0.0
        %1369 = vmatmul.mubr.f32.gmra.mrb[0].mxu0 %v1122
        %v1370 = vpop.f32.mrb[0].mxu0
        %v1371 = vadd.f32 0.0, %v1370
        %v1372 = vpop.f32.mrb[0].mxu0
        %1373 = vmatprep.mubr.f32.mxu0 0.0
        %1374 = vmatmul.mubr.f32.gmra.mrb[0].mxu0 %v1124
        %v1375 = vpop.f32.mrb[0].mxu0
        %v1376 = vadd.f32 0.0, %v1375
        %v1377 = vpop.f32.mrb[0].mxu0
        %1378 = vmatprep.mubr.f32.mxu0 0.0
        %1379 = vmatmul.mubr.f32.gmra.mrb[0].mxu0 %v1127
        %v1380 = vpop.f32.mrb[0].mxu0
        %v1381 = vadd.f32 0.0, %v1380
        %v1382 = vpop.f32.mrb[0].mxu0
        %1383 = vmatprep.mubr.f32.mxu0 0.0
        %1384 = vmatmul.mubr.f32.gmra.mrb[0].mxu0 %v1129
        %v1385 = vpop.f32.mrb[0].mxu0
        %v1386 = vadd.f32 0.0, %v1385
        %v1387 = vpop.f32.mrb[0].mxu0
        %1388 = vmatprep.mubr.f32.mxu0 0.0
        %1389 = vmatmul.mubr.f32.gmra.mrb[0].mxu0 %v1132
        %v1390 = vpop.f32.mrb[0].mxu0
        %v1391 = vadd.f32 0.0, %v1390
        %v1392 = vpop.f32.mrb[0].mxu0
        %1393 = vmatprep.mubr.f32.mxu0 0.0
        %1394 = vmatmul.mubr.f32.gmra.mrb[0].mxu0 %v1134
        %v1395 = vpop.f32.mrb[0].mxu0
        %v1396 = vadd.f32 0.0, %v1395
        %v1397 = vpop.f32.mrb[0].mxu0
        %1398 = vmatprep.mubr.f32.mxu0 0.0
        %1399 = vmatmul.mubr.f32.gmra.mrb[0].mxu0 %v1137
        %v1400 = vpop.f32.mrb[0].mxu0
        %v1401 = vadd.f32 0.0, %v1400
        %v1402 = vpop.f32.mrb[0].mxu0
        %1403 = vmatprep.mubr.f32.mxu0 0.0
        %1404 = vmatmul.mubr.f32.gmra.mrb[0].mxu0 %v1139
        %v1405 = vpop.f32.mrb[0].mxu0
        %v1406 = vadd.f32 0.0, %v1405
        %v1407 = vpop.f32.mrb[0].mxu0
        %1408 = vmatprep.mubr.f32.mxu0 0.0
        %1409 = vmatmul.mubr.f32.gmra.mrb[0].mxu0 %v1142
        %v1410 = vpop.f32.mrb[0].mxu0
        %v1411 = vadd.f32 0.0, %v1410
        %v1412 = vpop.f32.mrb[0].mxu0
        %1413 = vmatprep.mubr.f32.mxu0 0.0
        %1414 = vmatmul.mubr.f32.gmra.mrb[0].mxu0 %v1144
        %v1415 = vpop.f32.mrb[0].mxu0
        %v1416 = vadd.f32 0.0, %v1415
        %v1417 = vpop.f32.mrb[0].mxu0
        %1418 = vdwg.mxu0
        %v1419 = vld [vmem:[#allocation2] sm:$0xff]
        %v1420 = vld [vmem:[#allocation2 + $0x8] sm:$0xff]
        %v1421 = vld [vmem:[#allocation2 + $0x10] sm:$0xff]
        %v1422 = vld [vmem:[#allocation2 + $0x18] sm:$0xff]
        %v1423 = vld [vmem:[#allocation2 + $0x20] sm:$0xff]
        %v1424 = vld [vmem:[#allocation2 + $0x28] sm:$0xff]
        %v1425 = vld [vmem:[#allocation2 + $0x30] sm:$0xff]
        %v1426 = vld [vmem:[#allocation2 + $0x38] sm:$0xff]
        %v1427 = vld [vmem:[#allocation2 + $0x40] sm:$0xff]
        %v1428 = vld [vmem:[#allocation2 + $0x48] sm:$0xff]
        %v1429 = vld [vmem:[#allocation2 + $0x50] sm:$0xff]
        %v1430 = vld [vmem:[#allocation2 + $0x58] sm:$0xff]
        %v1431 = vld [vmem:[#allocation2 + $0x60] sm:$0xff]
        %v1432 = vld [vmem:[#allocation2 + $0x68] sm:$0xff]
        %v1433 = vld [vmem:[#allocation2 + $0x70] sm:$0xff]
        %v1434 = vld [vmem:[#allocation2 + $0x78] sm:$0xff]
        %v1435 = vld [vmem:[#allocation2 + $0x80] sm:$0xff]
        %v1436 = vld [vmem:[#allocation2 + $0x88] sm:$0xff]
        %v1437 = vld [vmem:[#allocation2 + $0x90] sm:$0xff]
        %v1438 = vld [vmem:[#allocation2 + $0x98] sm:$0xff]
        %v1439 = vld [vmem:[#allocation2 + $0xa0] sm:$0xff]
        %v1440 = vld [vmem:[#allocation2 + $0xa8] sm:$0xff]
        %v1441 = vld [vmem:[#allocation2 + $0xb0] sm:$0xff]
        %v1442 = vld [vmem:[#allocation2 + $0xb8] sm:$0xff]
        %v1443 = vld [vmem:[#allocation2 + $0xc0] sm:$0xff]
        %v1444 = vld [vmem:[#allocation2 + $0xc8] sm:$0xff]
        %v1445 = vld [vmem:[#allocation2 + $0xd0] sm:$0xff]
        %v1446 = vld [vmem:[#allocation2 + $0xd8] sm:$0xff]
        %v1447 = vld [vmem:[#allocation2 + $0xe0] sm:$0xff]
        %v1448 = vld [vmem:[#allocation2 + $0xe8] sm:$0xff]
        %v1449 = vld [vmem:[#allocation2 + $0xf0] sm:$0xff]
        %v1450 = vld [vmem:[#allocation2 + $0xf8] sm:$0xff]
        %v1451 = vadd.f32 %v1419, %v1261
        %v1452 = vadd.f32 %v1420, %v1266
        %v1453 = vadd.f32 %v1421, %v1271
        %v1454 = vadd.f32 %v1422, %v1276
        %v1455 = vadd.f32 %v1423, %v1281
        %v1456 = vadd.f32 %v1424, %v1286
        %v1457 = vadd.f32 %v1425, %v1291
        %v1458 = vadd.f32 %v1426, %v1296
        %v1459 = vadd.f32 %v1427, %v1301
        %v1460 = vadd.f32 %v1428, %v1306
        %v1461 = vadd.f32 %v1429, %v1311
        %v1462 = vadd.f32 %v1430, %v1316
        %v1463 = vadd.f32 %v1431, %v1321
        %v1464 = vadd.f32 %v1432, %v1326
        %v1465 = vadd.f32 %v1433, %v1331
        %v1466 = vadd.f32 %v1434, %v1336
        %v1467 = vadd.f32 %v1435, %v1341
        %v1468 = vadd.f32 %v1436, %v1346
        %v1469 = vadd.f32 %v1437, %v1351
        %v1470 = vadd.f32 %v1438, %v1356
        %v1471 = vadd.f32 %v1439, %v1361
        %v1472 = vadd.f32 %v1440, %v1366
        %v1473 = vadd.f32 %v1441, %v1371
        %v1474 = vadd.f32 %v1442, %v1376
        %v1475 = vadd.f32 %v1443, %v1381
        %v1476 = vadd.f32 %v1444, %v1386
        %v1477 = vadd.f32 %v1445, %v1391
        %v1478 = vadd.f32 %v1446, %v1396
        %v1479 = vadd.f32 %v1447, %v1401
        %v1480 = vadd.f32 %v1448, %v1406
        %v1481 = vadd.f32 %v1449, %v1411
        %v1482 = vadd.f32 %v1450, %v1416
        %1483 = vst [vmem:[#allocation2] sm:$0xff] %v1451
        %1484 = vst [vmem:[#allocation2 + $0x8] sm:$0xff] %v1452
        %1485 = vst [vmem:[#allocation2 + $0x10] sm:$0xff] %v1453
        %1486 = vst [vmem:[#allocation2 + $0x18] sm:$0xff] %v1454
        %1487 = vst [vmem:[#allocation2 + $0x20] sm:$0xff] %v1455
        %1488 = vst [vmem:[#allocation2 + $0x28] sm:$0xff] %v1456
        %1489 = vst [vmem:[#allocation2 + $0x30] sm:$0xff] %v1457
        %1490 = vst [vmem:[#allocation2 + $0x38] sm:$0xff] %v1458
        %1491 = vst [vmem:[#allocation2 + $0x40] sm:$0xff] %v1459
        %1492 = vst [vmem:[#allocation2 + $0x48] sm:$0xff] %v1460
        %1493 = vst [vmem:[#allocation2 + $0x50] sm:$0xff] %v1461
        %1494 = vst [vmem:[#allocation2 + $0x58] sm:$0xff] %v1462
        %1495 = vst [vmem:[#allocation2 + $0x60] sm:$0xff] %v1463
        %1496 = vst [vmem:[#allocation2 + $0x68] sm:$0xff] %v1464
        %1497 = vst [vmem:[#allocation2 + $0x70] sm:$0xff] %v1465
        %1498 = vst [vmem:[#allocation2 + $0x78] sm:$0xff] %v1466
        %1499 = vst [vmem:[#allocation2 + $0x80] sm:$0xff] %v1467
        %1500 = vst [vmem:[#allocation2 + $0x88] sm:$0xff] %v1468
        %1501 = vst [vmem:[#allocation2 + $0x90] sm:$0xff] %v1469
        %1502 = vst [vmem:[#allocation2 + $0x98] sm:$0xff] %v1470
        %1503 = vst [vmem:[#allocation2 + $0xa0] sm:$0xff] %v1471
        %1504 = vst [vmem:[#allocation2 + $0xa8] sm:$0xff] %v1472
        %1505 = vst [vmem:[#allocation2 + $0xb0] sm:$0xff] %v1473
        %1506 = vst [vmem:[#allocation2 + $0xb8] sm:$0xff] %v1474
        %1507 = vst [vmem:[#allocation2 + $0xc0] sm:$0xff] %v1475
        %1508 = vst [vmem:[#allocation2 + $0xc8] sm:$0xff] %v1476
        %1509 = vst [vmem:[#allocation2 + $0xd0] sm:$0xff] %v1477
        %1510 = vst [vmem:[#allocation2 + $0xd8] sm:$0xff] %v1478
        %1511 = vst [vmem:[#allocation2 + $0xe0] sm:$0xff] %v1479
        %1512 = vst [vmem:[#allocation2 + $0xe8] sm:$0xff] %v1480
        %1513 = vst [vmem:[#allocation2 + $0xf0] sm:$0xff] %v1481
        %1514 = vst [vmem:[#allocation2 + $0xf8] sm:$0xff] %v1482
        %s1515 = scalar_lea.vmem %s1, 384
        %v1516 = vld [vmem:[%s1515] sm:$0xff]
        %v1517 = vld [vmem:[%s1515 + $0x8] sm:$0xff]
        %v1518 = vld [vmem:[%s1515 + $0x10] sm:$0xff]
        %v1519 = vld [vmem:[%s1515 + $0x18] sm:$0xff]
        %v1520 = vld [vmem:[%s1515 + $0x20] sm:$0xff]
        %v1521 = vld [vmem:[%s1515 + $0x28] sm:$0xff]
        %v1522 = vld [vmem:[%s1515 + $0x30] sm:$0xff]
        %v1523 = vld [vmem:[%s1515 + $0x38] sm:$0xff]
        %v1524 = vld [vmem:[%s1515 + $0x40] sm:$0xff]
        %v1525 = vld [vmem:[%s1515 + $0x48] sm:$0xff]
        %v1526 = vld [vmem:[%s1515 + $0x50] sm:$0xff]
        %v1527 = vld [vmem:[%s1515 + $0x58] sm:$0xff]
        %v1528 = vld [vmem:[%s1515 + $0x60] sm:$0xff]
        %v1529 = vld [vmem:[%s1515 + $0x68] sm:$0xff]
        %v1530 = vld [vmem:[%s1515 + $0x70] sm:$0xff]
        %v1531 = vld [vmem:[%s1515 + $0x78] sm:$0xff]
        %1532 = vmatprep.subr.mxu0 0.0
        %1533 = vmatpush1.msra.mxu0 %v1516
        %1534 = vmatprep.subr.mxu0 0.0
        %1535 = vmatpush1.msra.mxu0 %v1517
        %1536 = vmatprep.subr.mxu0 0.0
        %1537 = vmatpush1.msra.mxu0 %v1518
        %1538 = vmatprep.subr.mxu0 0.0
        %1539 = vmatpush1.msra.mxu0 %v1519
        %1540 = vmatprep.subr.mxu0 0.0
        %1541 = vmatpush1.msra.mxu0 %v1520
        %1542 = vmatprep.subr.mxu0 0.0
        %1543 = vmatpush1.msra.mxu0 %v1521
        %1544 = vmatprep.subr.mxu0 0.0
        %1545 = vmatpush1.msra.mxu0 %v1522
        %1546 = vmatprep.subr.mxu0 0.0
        %1547 = vmatpush1.msra.mxu0 %v1523
        %1548 = vmatprep.subr.mxu0 0.0
        %1549 = vmatpush1.msra.mxu0 %v1524
        %1550 = vmatprep.subr.mxu0 0.0
        %1551 = vmatpush1.msra.mxu0 %v1525
        %1552 = vmatprep.subr.mxu0 0.0
        %1553 = vmatpush1.msra.mxu0 %v1526
        %1554 = vmatprep.subr.mxu0 0.0
        %1555 = vmatpush1.msra.mxu0 %v1527
        %1556 = vmatprep.subr.mxu0 0.0
        %1557 = vmatpush1.msra.mxu0 %v1528
        %1558 = vmatprep.subr.mxu0 0.0
        %1559 = vmatpush1.msra.mxu0 %v1529
        %1560 = vmatprep.subr.mxu0 0.0
        %1561 = vmatpush1.msra.mxu0 %v1530
        %1562 = vmatprep.subr.mxu0 0.0
        %1563 = vmatpush1.msra.mxu0 %v1531
        %1564 = vmatprep.subr.mxu0 0.0
        %1565 = vmatpush1.msra.mxu0 0.0
        %1566 = vmatprep.subr.mxu0 0.0
        %1567 = vmatpush1.msra.mxu0 0.0
        %1568 = vmatprep.subr.mxu0 0.0
        %1569 = vmatpush1.msra.mxu0 0.0
        %1570 = vmatprep.subr.mxu0 0.0
        %1571 = vmatpush1.msra.mxu0 0.0
        %1572 = vmatprep.subr.mxu0 0.0
        %1573 = vmatpush1.msra.mxu0 0.0
        %1574 = vmatprep.subr.mxu0 0.0
        %1575 = vmatpush1.msra.mxu0 0.0
        %1576 = vmatprep.subr.mxu0 0.0
        %1577 = vmatpush1.msra.mxu0 0.0
        %1578 = vmatprep.subr.mxu0 0.0
        %1579 = vmatpush1.msra.mxu0 0.0
        %1580 = vmatprep.subr.mxu0 0.0
        %1581 = vmatpush1.msra.mxu0 0.0
        %1582 = vmatprep.subr.mxu0 0.0
        %1583 = vmatpush1.msra.mxu0 0.0
        %1584 = vmatprep.subr.mxu0 0.0
        %1585 = vmatpush1.msra.mxu0 0.0
        %1586 = vmatprep.subr.mxu0 0.0
        %1587 = vmatpush1.msra.mxu0 0.0
        %1588 = vmatprep.subr.mxu0 0.0
        %1589 = vmatpush1.msra.mxu0 0.0
        %1590 = vmatprep.subr.mxu0 0.0
        %1591 = vmatpush1.msra.mxu0 0.0
        %1592 = vmatprep.subr.mxu0 0.0
        %1593 = vmatpush1.msra.mxu0 0.0
        %1594 = vmatprep.subr.mxu0 0.0
        %1595 = vmatpush1.msra.mxu0 0.0
        %1596 = vmatprep.mubr.f32.mxu0 0.0
        %1597 = vmatmul.mubr.f32.gmra.mrb[0].mxu0 %v241
        %v1598 = vpop.f32.mrb[0].mxu0
        %v1599 = vadd.f32 0.0, %v1598
        %v1600 = vpop.f32.mrb[0].mxu0
        %1601 = vmatprep.mubr.f32.mxu0 0.0
        %1602 = vmatmul.mubr.f32.gmra.mrb[0].mxu0 %v242
        %v1603 = vpop.f32.mrb[0].mxu0
        %v1604 = vadd.f32 0.0, %v1603
        %v1605 = vpop.f32.mrb[0].mxu0
        %1606 = vmatprep.mubr.f32.mxu0 0.0
        %1607 = vmatmul.mubr.f32.gmra.mrb[0].mxu0 %v244
        %v1608 = vpop.f32.mrb[0].mxu0
        %v1609 = vadd.f32 0.0, %v1608
        %v1610 = vpop.f32.mrb[0].mxu0
        %1611 = vmatprep.mubr.f32.mxu0 0.0
        %1612 = vmatmul.mubr.f32.gmra.mrb[0].mxu0 %v245
        %v1613 = vpop.f32.mrb[0].mxu0
        %v1614 = vadd.f32 0.0, %v1613
        %v1615 = vpop.f32.mrb[0].mxu0
        %1616 = vmatprep.mubr.f32.mxu0 0.0
        %1617 = vmatmul.mubr.f32.gmra.mrb[0].mxu0 %v247
        %v1618 = vpop.f32.mrb[0].mxu0
        %v1619 = vadd.f32 0.0, %v1618
        %v1620 = vpop.f32.mrb[0].mxu0
        %1621 = vmatprep.mubr.f32.mxu0 0.0
        %1622 = vmatmul.mubr.f32.gmra.mrb[0].mxu0 %v248
        %v1623 = vpop.f32.mrb[0].mxu0
        %v1624 = vadd.f32 0.0, %v1623
        %v1625 = vpop.f32.mrb[0].mxu0
        %1626 = vmatprep.mubr.f32.mxu0 0.0
        %1627 = vmatmul.mubr.f32.gmra.mrb[0].mxu0 %v250
        %v1628 = vpop.f32.mrb[0].mxu0
        %v1629 = vadd.f32 0.0, %v1628
        %v1630 = vpop.f32.mrb[0].mxu0
        %1631 = vmatprep.mubr.f32.mxu0 0.0
        %1632 = vmatmul.mubr.f32.gmra.mrb[0].mxu0 %v251
        %v1633 = vpop.f32.mrb[0].mxu0
        %v1634 = vadd.f32 0.0, %v1633
        %v1635 = vpop.f32.mrb[0].mxu0
        %1636 = vmatprep.mubr.f32.mxu0 0.0
        %1637 = vmatmul.mubr.f32.gmra.mrb[0].mxu0 %v253
        %v1638 = vpop.f32.mrb[0].mxu0
        %v1639 = vadd.f32 0.0, %v1638
        %v1640 = vpop.f32.mrb[0].mxu0
        %1641 = vmatprep.mubr.f32.mxu0 0.0
        %1642 = vmatmul.mubr.f32.gmra.mrb[0].mxu0 %v254
        %v1643 = vpop.f32.mrb[0].mxu0
        %v1644 = vadd.f32 0.0, %v1643
        %v1645 = vpop.f32.mrb[0].mxu0
        %1646 = vmatprep.mubr.f32.mxu0 0.0
        %1647 = vmatmul.mubr.f32.gmra.mrb[0].mxu0 %v256
        %v1648 = vpop.f32.mrb[0].mxu0
        %v1649 = vadd.f32 0.0, %v1648
        %v1650 = vpop.f32.mrb[0].mxu0
        %1651 = vmatprep.mubr.f32.mxu0 0.0
        %1652 = vmatmul.mubr.f32.gmra.mrb[0].mxu0 %v257
        %v1653 = vpop.f32.mrb[0].mxu0
        %v1654 = vadd.f32 0.0, %v1653
        %v1655 = vpop.f32.mrb[0].mxu0
        %1656 = vmatprep.mubr.f32.mxu0 0.0
        %1657 = vmatmul.mubr.f32.gmra.mrb[0].mxu0 %v259
        %v1658 = vpop.f32.mrb[0].mxu0
        %v1659 = vadd.f32 0.0, %v1658
        %v1660 = vpop.f32.mrb[0].mxu0
        %1661 = vmatprep.mubr.f32.mxu0 0.0
        %1662 = vmatmul.mubr.f32.gmra.mrb[0].mxu0 %v260
        %v1663 = vpop.f32.mrb[0].mxu0
        %v1664 = vadd.f32 0.0, %v1663
        %v1665 = vpop.f32.mrb[0].mxu0
        %1666 = vmatprep.mubr.f32.mxu0 0.0
        %1667 = vmatmul.mubr.f32.gmra.mrb[0].mxu0 %v262
        %v1668 = vpop.f32.mrb[0].mxu0
        %v1669 = vadd.f32 0.0, %v1668
        %v1670 = vpop.f32.mrb[0].mxu0
        %1671 = vmatprep.mubr.f32.mxu0 0.0
        %1672 = vmatmul.mubr.f32.gmra.mrb[0].mxu0 %v263
        %v1673 = vpop.f32.mrb[0].mxu0
        %v1674 = vadd.f32 0.0, %v1673
        %v1675 = vpop.f32.mrb[0].mxu0
        %1676 = vmatprep.mubr.f32.mxu0 0.0
        %1677 = vmatmul.mubr.f32.gmra.mrb[0].mxu0 %v265
        %v1678 = vpop.f32.mrb[0].mxu0
        %v1679 = vadd.f32 0.0, %v1678
        %v1680 = vpop.f32.mrb[0].mxu0
        %1681 = vmatprep.mubr.f32.mxu0 0.0
        %1682 = vmatmul.mubr.f32.gmra.mrb[0].mxu0 %v266
        %v1683 = vpop.f32.mrb[0].mxu0
        %v1684 = vadd.f32 0.0, %v1683
        %v1685 = vpop.f32.mrb[0].mxu0
        %1686 = vmatprep.mubr.f32.mxu0 0.0
        %1687 = vmatmul.mubr.f32.gmra.mrb[0].mxu0 %v268
        %v1688 = vpop.f32.mrb[0].mxu0
        %v1689 = vadd.f32 0.0, %v1688
        %v1690 = vpop.f32.mrb[0].mxu0
        %1691 = vmatprep.mubr.f32.mxu0 0.0
        %1692 = vmatmul.mubr.f32.gmra.mrb[0].mxu0 %v269
        %v1693 = vpop.f32.mrb[0].mxu0
        %v1694 = vadd.f32 0.0, %v1693
        %v1695 = vpop.f32.mrb[0].mxu0
        %1696 = vmatprep.mubr.f32.mxu0 0.0
        %1697 = vmatmul.mubr.f32.gmra.mrb[0].mxu0 %v271
        %v1698 = vpop.f32.mrb[0].mxu0
        %v1699 = vadd.f32 0.0, %v1698
        %v1700 = vpop.f32.mrb[0].mxu0
        %1701 = vmatprep.mubr.f32.mxu0 0.0
        %1702 = vmatmul.mubr.f32.gmra.mrb[0].mxu0 %v272
        %v1703 = vpop.f32.mrb[0].mxu0
        %v1704 = vadd.f32 0.0, %v1703
        %v1705 = vpop.f32.mrb[0].mxu0
        %1706 = vmatprep.mubr.f32.mxu0 0.0
        %1707 = vmatmul.mubr.f32.gmra.mrb[0].mxu0 %v274
        %v1708 = vpop.f32.mrb[0].mxu0
        %v1709 = vadd.f32 0.0, %v1708
        %v1710 = vpop.f32.mrb[0].mxu0
        %1711 = vmatprep.mubr.f32.mxu0 0.0
        %1712 = vmatmul.mubr.f32.gmra.mrb[0].mxu0 %v275
        %v1713 = vpop.f32.mrb[0].mxu0
        %v1714 = vadd.f32 0.0, %v1713
        %v1715 = vpop.f32.mrb[0].mxu0
        %1716 = vmatprep.mubr.f32.mxu0 0.0
        %1717 = vmatmul.mubr.f32.gmra.mrb[0].mxu0 %v277
        %v1718 = vpop.f32.mrb[0].mxu0
        %v1719 = vadd.f32 0.0, %v1718
        %v1720 = vpop.f32.mrb[0].mxu0
        %1721 = vmatprep.mubr.f32.mxu0 0.0
        %1722 = vmatmul.mubr.f32.gmra.mrb[0].mxu0 %v278
        %v1723 = vpop.f32.mrb[0].mxu0
        %v1724 = vadd.f32 0.0, %v1723
        %v1725 = vpop.f32.mrb[0].mxu0
        %1726 = vmatprep.mubr.f32.mxu0 0.0
        %1727 = vmatmul.mubr.f32.gmra.mrb[0].mxu0 %v280
        %v1728 = vpop.f32.mrb[0].mxu0
        %v1729 = vadd.f32 0.0, %v1728
        %v1730 = vpop.f32.mrb[0].mxu0
        %1731 = vmatprep.mubr.f32.mxu0 0.0
        %1732 = vmatmul.mubr.f32.gmra.mrb[0].mxu0 %v281
        %v1733 = vpop.f32.mrb[0].mxu0
        %v1734 = vadd.f32 0.0, %v1733
        %v1735 = vpop.f32.mrb[0].mxu0
        %1736 = vmatprep.mubr.f32.mxu0 0.0
        %1737 = vmatmul.mubr.f32.gmra.mrb[0].mxu0 %v283
        %v1738 = vpop.f32.mrb[0].mxu0
        %v1739 = vadd.f32 0.0, %v1738
        %v1740 = vpop.f32.mrb[0].mxu0
        %1741 = vmatprep.mubr.f32.mxu0 0.0
        %1742 = vmatmul.mubr.f32.gmra.mrb[0].mxu0 %v284
        %v1743 = vpop.f32.mrb[0].mxu0
        %v1744 = vadd.f32 0.0, %v1743
        %v1745 = vpop.f32.mrb[0].mxu0
        %1746 = vmatprep.mubr.f32.mxu0 0.0
        %1747 = vmatmul.mubr.f32.gmra.mrb[0].mxu0 %v286
        %v1748 = vpop.f32.mrb[0].mxu0
        %v1749 = vadd.f32 0.0, %v1748
        %v1750 = vpop.f32.mrb[0].mxu0
        %1751 = vmatprep.mubr.f32.mxu0 0.0
        %1752 = vmatmul.mubr.f32.gmra.mrb[0].mxu0 %v287
        %v1753 = vpop.f32.mrb[0].mxu0
        %v1754 = vadd.f32 0.0, %v1753
        %v1755 = vpop.f32.mrb[0].mxu0
        %1756 = vdwg.mxu0
        %v1757 = vld [vmem:[#allocation2] sm:$0xff]
        %v1758 = vld [vmem:[#allocation2 + $0x8] sm:$0xff]
        %v1759 = vld [vmem:[#allocation2 + $0x10] sm:$0xff]
        %v1760 = vld [vmem:[#allocation2 + $0x18] sm:$0xff]
        %v1761 = vld [vmem:[#allocation2 + $0x20] sm:$0xff]
        %v1762 = vld [vmem:[#allocation2 + $0x28] sm:$0xff]
        %v1763 = vld [vmem:[#allocation2 + $0x30] sm:$0xff]
        %v1764 = vld [vmem:[#allocation2 + $0x38] sm:$0xff]
        %v1765 = vld [vmem:[#allocation2 + $0x40] sm:$0xff]
        %v1766 = vld [vmem:[#allocation2 + $0x48] sm:$0xff]
        %v1767 = vld [vmem:[#allocation2 + $0x50] sm:$0xff]
        %v1768 = vld [vmem:[#allocation2 + $0x58] sm:$0xff]
        %v1769 = vld [vmem:[#allocation2 + $0x60] sm:$0xff]
        %v1770 = vld [vmem:[#allocation2 + $0x68] sm:$0xff]
        %v1771 = vld [vmem:[#allocation2 + $0x70] sm:$0xff]
        %v1772 = vld [vmem:[#allocation2 + $0x78] sm:$0xff]
        %v1773 = vld [vmem:[#allocation2 + $0x80] sm:$0xff]
        %v1774 = vld [vmem:[#allocation2 + $0x88] sm:$0xff]
        %v1775 = vld [vmem:[#allocation2 + $0x90] sm:$0xff]
        %v1776 = vld [vmem:[#allocation2 + $0x98] sm:$0xff]
        %v1777 = vld [vmem:[#allocation2 + $0xa0] sm:$0xff]
        %v1778 = vld [vmem:[#allocation2 + $0xa8] sm:$0xff]
        %v1779 = vld [vmem:[#allocation2 + $0xb0] sm:$0xff]
        %v1780 = vld [vmem:[#allocation2 + $0xb8] sm:$0xff]
        %v1781 = vld [vmem:[#allocation2 + $0xc0] sm:$0xff]
        %v1782 = vld [vmem:[#allocation2 + $0xc8] sm:$0xff]
        %v1783 = vld [vmem:[#allocation2 + $0xd0] sm:$0xff]
        %v1784 = vld [vmem:[#allocation2 + $0xd8] sm:$0xff]
        %v1785 = vld [vmem:[#allocation2 + $0xe0] sm:$0xff]
        %v1786 = vld [vmem:[#allocation2 + $0xe8] sm:$0xff]
        %v1787 = vld [vmem:[#allocation2 + $0xf0] sm:$0xff]
        %v1788 = vld [vmem:[#allocation2 + $0xf8] sm:$0xff]
        %v1789 = vadd.f32 %v1757, %v1599
        %v1790 = vadd.f32 %v1758, %v1604
        %v1791 = vadd.f32 %v1759, %v1609
        %v1792 = vadd.f32 %v1760, %v1614
        %v1793 = vadd.f32 %v1761, %v1619
        %v1794 = vadd.f32 %v1762, %v1624
        %v1795 = vadd.f32 %v1763, %v1629
        %v1796 = vadd.f32 %v1764, %v1634
        %v1797 = vadd.f32 %v1765, %v1639
        %v1798 = vadd.f32 %v1766, %v1644
        %v1799 = vadd.f32 %v1767, %v1649
        %v1800 = vadd.f32 %v1768, %v1654
        %v1801 = vadd.f32 %v1769, %v1659
        %v1802 = vadd.f32 %v1770, %v1664
        %v1803 = vadd.f32 %v1771, %v1669
        %v1804 = vadd.f32 %v1772, %v1674
        %v1805 = vadd.f32 %v1773, %v1679
        %v1806 = vadd.f32 %v1774, %v1684
        %v1807 = vadd.f32 %v1775, %v1689
        %v1808 = vadd.f32 %v1776, %v1694
        %v1809 = vadd.f32 %v1777, %v1699
        %v1810 = vadd.f32 %v1778, %v1704
        %v1811 = vadd.f32 %v1779, %v1709
        %v1812 = vadd.f32 %v1780, %v1714
        %v1813 = vadd.f32 %v1781, %v1719
        %v1814 = vadd.f32 %v1782, %v1724
        %v1815 = vadd.f32 %v1783, %v1729
        %v1816 = vadd.f32 %v1784, %v1734
        %v1817 = vadd.f32 %v1785, %v1739
        %v1818 = vadd.f32 %v1786, %v1744
        %v1819 = vadd.f32 %v1787, %v1749
        %v1820 = vadd.f32 %v1788, %v1754
        %1821 = vst [vmem:[#allocation2] sm:$0xff] %v1789
        %1822 = vst [vmem:[#allocation2 + $0x8] sm:$0xff] %v1790
        %1823 = vst [vmem:[#allocation2 + $0x10] sm:$0xff] %v1791
        %1824 = vst [vmem:[#allocation2 + $0x18] sm:$0xff] %v1792
        %1825 = vst [vmem:[#allocation2 + $0x20] sm:$0xff] %v1793
        %1826 = vst [vmem:[#allocation2 + $0x28] sm:$0xff] %v1794
        %1827 = vst [vmem:[#allocation2 + $0x30] sm:$0xff] %v1795
        %1828 = vst [vmem:[#allocation2 + $0x38] sm:$0xff] %v1796
        %1829 = vst [vmem:[#allocation2 + $0x40] sm:$0xff] %v1797
        %1830 = vst [vmem:[#allocation2 + $0x48] sm:$0xff] %v1798
        %1831 = vst [vmem:[#allocation2 + $0x50] sm:$0xff] %v1799
        %1832 = vst [vmem:[#allocation2 + $0x58] sm:$0xff] %v1800
        %1833 = vst [vmem:[#allocation2 + $0x60] sm:$0xff] %v1801
        %1834 = vst [vmem:[#allocation2 + $0x68] sm:$0xff] %v1802
        %1835 = vst [vmem:[#allocation2 + $0x70] sm:$0xff] %v1803
        %1836 = vst [vmem:[#allocation2 + $0x78] sm:$0xff] %v1804
        %1837 = vst [vmem:[#allocation2 + $0x80] sm:$0xff] %v1805
        %1838 = vst [vmem:[#allocation2 + $0x88] sm:$0xff] %v1806
        %1839 = vst [vmem:[#allocation2 + $0x90] sm:$0xff] %v1807
        %1840 = vst [vmem:[#allocation2 + $0x98] sm:$0xff] %v1808
        %1841 = vst [vmem:[#allocation2 + $0xa0] sm:$0xff] %v1809
        %1842 = vst [vmem:[#allocation2 + $0xa8] sm:$0xff] %v1810
        %1843 = vst [vmem:[#allocation2 + $0xb0] sm:$0xff] %v1811
        %1844 = vst [vmem:[#allocation2 + $0xb8] sm:$0xff] %v1812
        %1845 = vst [vmem:[#allocation2 + $0xc0] sm:$0xff] %v1813
        %1846 = vst [vmem:[#allocation2 + $0xc8] sm:$0xff] %v1814
        %1847 = vst [vmem:[#allocation2 + $0xd0] sm:$0xff] %v1815
        %1848 = vst [vmem:[#allocation2 + $0xd8] sm:$0xff] %v1816
        %1849 = vst [vmem:[#allocation2 + $0xe0] sm:$0xff] %v1817
        %1850 = vst [vmem:[#allocation2 + $0xe8] sm:$0xff] %v1818
        %1851 = vst [vmem:[#allocation2 + $0xf0] sm:$0xff] %v1819
        %1852 = vst [vmem:[#allocation2 + $0xf8] sm:$0xff] %v1820
        %v1856 = vrot.slane %v286, 1
        %v1857 = vrot.slane %v287, 1
        %v1858 = vsel %vm613, %v1856, %v1857
        %v1859 = vrot.slane %v288, 1
        %v1860 = vsel %vm613, %v1857, %v1859
        %s1863 = scalar_lea.vmem %s1, 512
        %v1864 = vld [vmem:[%s1863] sm:$0xff]
        %v1865 = vld [vmem:[%s1863 + $0x8] sm:$0xff]
        %v1866 = vld [vmem:[%s1863 + $0x10] sm:$0xff]
        %v1867 = vld [vmem:[%s1863 + $0x18] sm:$0xff]
        %v1868 = vld [vmem:[%s1863 + $0x20] sm:$0xff]
        %v1869 = vld [vmem:[%s1863 + $0x28] sm:$0xff]
        %v1870 = vld [vmem:[%s1863 + $0x30] sm:$0xff]
        %v1871 = vld [vmem:[%s1863 + $0x38] sm:$0xff]
        %v1872 = vld [vmem:[%s1863 + $0x40] sm:$0xff]
        %v1873 = vld [vmem:[%s1863 + $0x48] sm:$0xff]
        %v1874 = vld [vmem:[%s1863 + $0x50] sm:$0xff]
        %v1875 = vld [vmem:[%s1863 + $0x58] sm:$0xff]
        %v1876 = vld [vmem:[%s1863 + $0x60] sm:$0xff]
        %v1877 = vld [vmem:[%s1863 + $0x68] sm:$0xff]
        %v1878 = vld [vmem:[%s1863 + $0x70] sm:$0xff]
        %v1879 = vld [vmem:[%s1863 + $0x78] sm:$0xff]
        %1880 = vmatprep.subr.mxu0 0.0
        %1881 = vmatpush1.msra.mxu0 %v1864
        %1882 = vmatprep.subr.mxu0 0.0
        %1883 = vmatpush1.msra.mxu0 %v1865
        %1884 = vmatprep.subr.mxu0 0.0
        %1885 = vmatpush1.msra.mxu0 %v1866
        %1886 = vmatprep.subr.mxu0 0.0
        %1887 = vmatpush1.msra.mxu0 %v1867
        %1888 = vmatprep.subr.mxu0 0.0
        %1889 = vmatpush1.msra.mxu0 %v1868
        %1890 = vmatprep.subr.mxu0 0.0
        %1891 = vmatpush1.msra.mxu0 %v1869
        %1892 = vmatprep.subr.mxu0 0.0
        %1893 = vmatpush1.msra.mxu0 %v1870
        %1894 = vmatprep.subr.mxu0 0.0
        %1895 = vmatpush1.msra.mxu0 %v1871
        %1896 = vmatprep.subr.mxu0 0.0
        %1897 = vmatpush1.msra.mxu0 %v1872
        %1898 = vmatprep.subr.mxu0 0.0
        %1899 = vmatpush1.msra.mxu0 %v1873
        %1900 = vmatprep.subr.mxu0 0.0
        %1901 = vmatpush1.msra.mxu0 %v1874
        %1902 = vmatprep.subr.mxu0 0.0
        %1903 = vmatpush1.msra.mxu0 %v1875
        %1904 = vmatprep.subr.mxu0 0.0
        %1905 = vmatpush1.msra.mxu0 %v1876
        %1906 = vmatprep.subr.mxu0 0.0
        %1907 = vmatpush1.msra.mxu0 %v1877
        %1908 = vmatprep.subr.mxu0 0.0
        %1909 = vmatpush1.msra.mxu0 %v1878
        %1910 = vmatprep.subr.mxu0 0.0
        %1911 = vmatpush1.msra.mxu0 %v1879
        %1912 = vmatprep.subr.mxu0 0.0
        %1913 = vmatpush1.msra.mxu0 0.0
        %1914 = vmatprep.subr.mxu0 0.0
        %1915 = vmatpush1.msra.mxu0 0.0
        %1916 = vmatprep.subr.mxu0 0.0
        %1917 = vmatpush1.msra.mxu0 0.0
        %1918 = vmatprep.subr.mxu0 0.0
        %1919 = vmatpush1.msra.mxu0 0.0
        %1920 = vmatprep.subr.mxu0 0.0
        %1921 = vmatpush1.msra.mxu0 0.0
        %1922 = vmatprep.subr.mxu0 0.0
        %1923 = vmatpush1.msra.mxu0 0.0
        %1924 = vmatprep.subr.mxu0 0.0
        %1925 = vmatpush1.msra.mxu0 0.0
        %1926 = vmatprep.subr.mxu0 0.0
        %1927 = vmatpush1.msra.mxu0 0.0
        %1928 = vmatprep.subr.mxu0 0.0
        %1929 = vmatpush1.msra.mxu0 0.0
        %1930 = vmatprep.subr.mxu0 0.0
        %1931 = vmatpush1.msra.mxu0 0.0
        %1932 = vmatprep.subr.mxu0 0.0
        %1933 = vmatpush1.msra.mxu0 0.0
        %1934 = vmatprep.subr.mxu0 0.0
        %1935 = vmatpush1.msra.mxu0 0.0
        %1936 = vmatprep.subr.mxu0 0.0
        %1937 = vmatpush1.msra.mxu0 0.0
        %1938 = vmatprep.subr.mxu0 0.0
        %1939 = vmatpush1.msra.mxu0 0.0
        %1940 = vmatprep.subr.mxu0 0.0
        %1941 = vmatpush1.msra.mxu0 0.0
        %1942 = vmatprep.subr.mxu0 0.0
        %1943 = vmatpush1.msra.mxu0 0.0
        %1944 = vmatprep.mubr.f32.mxu0 0.0
        %1945 = vmatmul.mubr.f32.gmra.mrb[0].mxu0 %v621
        %v1946 = vpop.f32.mrb[0].mxu0
        %v1947 = vadd.f32 0.0, %v1946
        %v1948 = vpop.f32.mrb[0].mxu0
        %1949 = vmatprep.mubr.f32.mxu0 0.0
        %1950 = vmatmul.mubr.f32.gmra.mrb[0].mxu0 %v623
        %v1951 = vpop.f32.mrb[0].mxu0
        %v1952 = vadd.f32 0.0, %v1951
        %v1953 = vpop.f32.mrb[0].mxu0
        %1954 = vmatprep.mubr.f32.mxu0 0.0
        %1955 = vmatmul.mubr.f32.gmra.mrb[0].mxu0 %v626
        %v1956 = vpop.f32.mrb[0].mxu0
        %v1957 = vadd.f32 0.0, %v1956
        %v1958 = vpop.f32.mrb[0].mxu0
        %1959 = vmatprep.mubr.f32.mxu0 0.0
        %1960 = vmatmul.mubr.f32.gmra.mrb[0].mxu0 %v628
        %v1961 = vpop.f32.mrb[0].mxu0
        %v1962 = vadd.f32 0.0, %v1961
        %v1963 = vpop.f32.mrb[0].mxu0
        %1964 = vmatprep.mubr.f32.mxu0 0.0
        %1965 = vmatmul.mubr.f32.gmra.mrb[0].mxu0 %v631
        %v1966 = vpop.f32.mrb[0].mxu0
        %v1967 = vadd.f32 0.0, %v1966
        %v1968 = vpop.f32.mrb[0].mxu0
        %1969 = vmatprep.mubr.f32.mxu0 0.0
        %1970 = vmatmul.mubr.f32.gmra.mrb[0].mxu0 %v633
        %v1971 = vpop.f32.mrb[0].mxu0
        %v1972 = vadd.f32 0.0, %v1971
        %v1973 = vpop.f32.mrb[0].mxu0
        %1974 = vmatprep.mubr.f32.mxu0 0.0
        %1975 = vmatmul.mubr.f32.gmra.mrb[0].mxu0 %v636
        %v1976 = vpop.f32.mrb[0].mxu0
        %v1977 = vadd.f32 0.0, %v1976
        %v1978 = vpop.f32.mrb[0].mxu0
        %1979 = vmatprep.mubr.f32.mxu0 0.0
        %1980 = vmatmul.mubr.f32.gmra.mrb[0].mxu0 %v638
        %v1981 = vpop.f32.mrb[0].mxu0
        %v1982 = vadd.f32 0.0, %v1981
        %v1983 = vpop.f32.mrb[0].mxu0
        %1984 = vmatprep.mubr.f32.mxu0 0.0
        %1985 = vmatmul.mubr.f32.gmra.mrb[0].mxu0 %v641
        %v1986 = vpop.f32.mrb[0].mxu0
        %v1987 = vadd.f32 0.0, %v1986
        %v1988 = vpop.f32.mrb[0].mxu0
        %1989 = vmatprep.mubr.f32.mxu0 0.0
        %1990 = vmatmul.mubr.f32.gmra.mrb[0].mxu0 %v643
        %v1991 = vpop.f32.mrb[0].mxu0
        %v1992 = vadd.f32 0.0, %v1991
        %v1993 = vpop.f32.mrb[0].mxu0
        %1994 = vmatprep.mubr.f32.mxu0 0.0
        %1995 = vmatmul.mubr.f32.gmra.mrb[0].mxu0 %v646
        %v1996 = vpop.f32.mrb[0].mxu0
        %v1997 = vadd.f32 0.0, %v1996
        %v1998 = vpop.f32.mrb[0].mxu0
        %1999 = vmatprep.mubr.f32.mxu0 0.0
        %2000 = vmatmul.mubr.f32.gmra.mrb[0].mxu0 %v648
        %v2001 = vpop.f32.mrb[0].mxu0
        %v2002 = vadd.f32 0.0, %v2001
        %v2003 = vpop.f32.mrb[0].mxu0
        %2004 = vmatprep.mubr.f32.mxu0 0.0
        %2005 = vmatmul.mubr.f32.gmra.mrb[0].mxu0 %v651
        %v2006 = vpop.f32.mrb[0].mxu0
        %v2007 = vadd.f32 0.0, %v2006
        %v2008 = vpop.f32.mrb[0].mxu0
        %2009 = vmatprep.mubr.f32.mxu0 0.0
        %2010 = vmatmul.mubr.f32.gmra.mrb[0].mxu0 %v653
        %v2011 = vpop.f32.mrb[0].mxu0
        %v2012 = vadd.f32 0.0, %v2011
        %v2013 = vpop.f32.mrb[0].mxu0
        %2014 = vmatprep.mubr.f32.mxu0 0.0
        %2015 = vmatmul.mubr.f32.gmra.mrb[0].mxu0 %v656
        %v2016 = vpop.f32.mrb[0].mxu0
        %v2017 = vadd.f32 0.0, %v2016
        %v2018 = vpop.f32.mrb[0].mxu0
        %2019 = vmatprep.mubr.f32.mxu0 0.0
        %2020 = vmatmul.mubr.f32.gmra.mrb[0].mxu0 %v658
        %v2021 = vpop.f32.mrb[0].mxu0
        %v2022 = vadd.f32 0.0, %v2021
        %v2023 = vpop.f32.mrb[0].mxu0
        %2024 = vmatprep.mubr.f32.mxu0 0.0
        %2025 = vmatmul.mubr.f32.gmra.mrb[0].mxu0 %v661
        %v2026 = vpop.f32.mrb[0].mxu0
        %v2027 = vadd.f32 0.0, %v2026
        %v2028 = vpop.f32.mrb[0].mxu0
        %2029 = vmatprep.mubr.f32.mxu0 0.0
        %2030 = vmatmul.mubr.f32.gmra.mrb[0].mxu0 %v663
        %v2031 = vpop.f32.mrb[0].mxu0
        %v2032 = vadd.f32 0.0, %v2031
        %v2033 = vpop.f32.mrb[0].mxu0
        %2034 = vmatprep.mubr.f32.mxu0 0.0
        %2035 = vmatmul.mubr.f32.gmra.mrb[0].mxu0 %v666
        %v2036 = vpop.f32.mrb[0].mxu0
        %v2037 = vadd.f32 0.0, %v2036
        %v2038 = vpop.f32.mrb[0].mxu0
        %2039 = vmatprep.mubr.f32.mxu0 0.0
        %2040 = vmatmul.mubr.f32.gmra.mrb[0].mxu0 %v668
        %v2041 = vpop.f32.mrb[0].mxu0
        %v2042 = vadd.f32 0.0, %v2041
        %v2043 = vpop.f32.mrb[0].mxu0
        %2044 = vmatprep.mubr.f32.mxu0 0.0
        %2045 = vmatmul.mubr.f32.gmra.mrb[0].mxu0 %v671
        %v2046 = vpop.f32.mrb[0].mxu0
        %v2047 = vadd.f32 0.0, %v2046
        %v2048 = vpop.f32.mrb[0].mxu0
        %2049 = vmatprep.mubr.f32.mxu0 0.0
        %2050 = vmatmul.mubr.f32.gmra.mrb[0].mxu0 %v673
        %v2051 = vpop.f32.mrb[0].mxu0
        %v2052 = vadd.f32 0.0, %v2051
        %v2053 = vpop.f32.mrb[0].mxu0
        %2054 = vmatprep.mubr.f32.mxu0 0.0
        %2055 = vmatmul.mubr.f32.gmra.mrb[0].mxu0 %v676
        %v2056 = vpop.f32.mrb[0].mxu0
        %v2057 = vadd.f32 0.0, %v2056
        %v2058 = vpop.f32.mrb[0].mxu0
        %2059 = vmatprep.mubr.f32.mxu0 0.0
        %2060 = vmatmul.mubr.f32.gmra.mrb[0].mxu0 %v678
        %v2061 = vpop.f32.mrb[0].mxu0
        %v2062 = vadd.f32 0.0, %v2061
        %v2063 = vpop.f32.mrb[0].mxu0
        %2064 = vmatprep.mubr.f32.mxu0 0.0
        %2065 = vmatmul.mubr.f32.gmra.mrb[0].mxu0 %v681
        %v2066 = vpop.f32.mrb[0].mxu0
        %v2067 = vadd.f32 0.0, %v2066
        %v2068 = vpop.f32.mrb[0].mxu0
        %2069 = vmatprep.mubr.f32.mxu0 0.0
        %2070 = vmatmul.mubr.f32.gmra.mrb[0].mxu0 %v683
        %v2071 = vpop.f32.mrb[0].mxu0
        %v2072 = vadd.f32 0.0, %v2071
        %v2073 = vpop.f32.mrb[0].mxu0
        %2074 = vmatprep.mubr.f32.mxu0 0.0
        %2075 = vmatmul.mubr.f32.gmra.mrb[0].mxu0 %v686
        %v2076 = vpop.f32.mrb[0].mxu0
        %v2077 = vadd.f32 0.0, %v2076
        %v2078 = vpop.f32.mrb[0].mxu0
        %2079 = vmatprep.mubr.f32.mxu0 0.0
        %2080 = vmatmul.mubr.f32.gmra.mrb[0].mxu0 %v688
        %v2081 = vpop.f32.mrb[0].mxu0
        %v2082 = vadd.f32 0.0, %v2081
        %v2083 = vpop.f32.mrb[0].mxu0
        %2084 = vmatprep.mubr.f32.mxu0 0.0
        %2085 = vmatmul.mubr.f32.gmra.mrb[0].mxu0 %v691
        %v2086 = vpop.f32.mrb[0].mxu0
        %v2087 = vadd.f32 0.0, %v2086
        %v2088 = vpop.f32.mrb[0].mxu0
        %2089 = vmatprep.mubr.f32.mxu0 0.0
        %2090 = vmatmul.mubr.f32.gmra.mrb[0].mxu0 %v693
        %v2091 = vpop.f32.mrb[0].mxu0
        %v2092 = vadd.f32 0.0, %v2091
        %v2093 = vpop.f32.mrb[0].mxu0
        %2094 = vmatprep.mubr.f32.mxu0 0.0
        %2095 = vmatmul.mubr.f32.gmra.mrb[0].mxu0 %v1858
        %v2096 = vpop.f32.mrb[0].mxu0
        %v2097 = vadd.f32 0.0, %v2096
        %v2098 = vpop.f32.mrb[0].mxu0
        %2099 = vmatprep.mubr.f32.mxu0 0.0
        %2100 = vmatmul.mubr.f32.gmra.mrb[0].mxu0 %v1860
        %v2101 = vpop.f32.mrb[0].mxu0
        %v2102 = vadd.f32 0.0, %v2101
        %v2103 = vpop.f32.mrb[0].mxu0
        %2104 = vdwg.mxu0
        %v2105 = vld [vmem:[#allocation2] sm:$0xff]
        %v2106 = vld [vmem:[#allocation2 + $0x8] sm:$0xff]
        %v2107 = vld [vmem:[#allocation2 + $0x10] sm:$0xff]
        %v2108 = vld [vmem:[#allocation2 + $0x18] sm:$0xff]
        %v2109 = vld [vmem:[#allocation2 + $0x20] sm:$0xff]
        %v2110 = vld [vmem:[#allocation2 + $0x28] sm:$0xff]
        %v2111 = vld [vmem:[#allocation2 + $0x30] sm:$0xff]
        %v2112 = vld [vmem:[#allocation2 + $0x38] sm:$0xff]
        %v2113 = vld [vmem:[#allocation2 + $0x40] sm:$0xff]
        %v2114 = vld [vmem:[#allocation2 + $0x48] sm:$0xff]
        %v2115 = vld [vmem:[#allocation2 + $0x50] sm:$0xff]
        %v2116 = vld [vmem:[#allocation2 + $0x58] sm:$0xff]
        %v2117 = vld [vmem:[#allocation2 + $0x60] sm:$0xff]
        %v2118 = vld [vmem:[#allocation2 + $0x68] sm:$0xff]
        %v2119 = vld [vmem:[#allocation2 + $0x70] sm:$0xff]
        %v2120 = vld [vmem:[#allocation2 + $0x78] sm:$0xff]
        %v2121 = vld [vmem:[#allocation2 + $0x80] sm:$0xff]
        %v2122 = vld [vmem:[#allocation2 + $0x88] sm:$0xff]
        %v2123 = vld [vmem:[#allocation2 + $0x90] sm:$0xff]
        %v2124 = vld [vmem:[#allocation2 + $0x98] sm:$0xff]
        %v2125 = vld [vmem:[#allocation2 + $0xa0] sm:$0xff]
        %v2126 = vld [vmem:[#allocation2 + $0xa8] sm:$0xff]
        %v2127 = vld [vmem:[#allocation2 + $0xb0] sm:$0xff]
        %v2128 = vld [vmem:[#allocation2 + $0xb8] sm:$0xff]
        %v2129 = vld [vmem:[#allocation2 + $0xc0] sm:$0xff]
        %v2130 = vld [vmem:[#allocation2 + $0xc8] sm:$0xff]
        %v2131 = vld [vmem:[#allocation2 + $0xd0] sm:$0xff]
        %v2132 = vld [vmem:[#allocation2 + $0xd8] sm:$0xff]
        %v2133 = vld [vmem:[#allocation2 + $0xe0] sm:$0xff]
        %v2134 = vld [vmem:[#allocation2 + $0xe8] sm:$0xff]
        %v2135 = vld [vmem:[#allocation2 + $0xf0] sm:$0xff]
        %v2136 = vld [vmem:[#allocation2 + $0xf8] sm:$0xff]
        %v2137 = vadd.f32 %v2105, %v1947
        %v2138 = vadd.f32 %v2106, %v1952
        %v2139 = vadd.f32 %v2107, %v1957
        %v2140 = vadd.f32 %v2108, %v1962
        %v2141 = vadd.f32 %v2109, %v1967
        %v2142 = vadd.f32 %v2110, %v1972
        %v2143 = vadd.f32 %v2111, %v1977
        %v2144 = vadd.f32 %v2112, %v1982
        %v2145 = vadd.f32 %v2113, %v1987
        %v2146 = vadd.f32 %v2114, %v1992
        %v2147 = vadd.f32 %v2115, %v1997
        %v2148 = vadd.f32 %v2116, %v2002
        %v2149 = vadd.f32 %v2117, %v2007
        %v2150 = vadd.f32 %v2118, %v2012
        %v2151 = vadd.f32 %v2119, %v2017
        %v2152 = vadd.f32 %v2120, %v2022
        %v2153 = vadd.f32 %v2121, %v2027
        %v2154 = vadd.f32 %v2122, %v2032
        %v2155 = vadd.f32 %v2123, %v2037
        %v2156 = vadd.f32 %v2124, %v2042
        %v2157 = vadd.f32 %v2125, %v2047
        %v2158 = vadd.f32 %v2126, %v2052
        %v2159 = vadd.f32 %v2127, %v2057
        %v2160 = vadd.f32 %v2128, %v2062
        %v2161 = vadd.f32 %v2129, %v2067
        %v2162 = vadd.f32 %v2130, %v2072
        %v2163 = vadd.f32 %v2131, %v2077
        %v2164 = vadd.f32 %v2132, %v2082
        %v2165 = vadd.f32 %v2133, %v2087
        %v2166 = vadd.f32 %v2134, %v2092
        %v2167 = vadd.f32 %v2135, %v2097
        %v2168 = vadd.f32 %v2136, %v2102
        %2169 = vst [vmem:[#allocation2] sm:$0xff] %v2137
        %2170 = vst [vmem:[#allocation2 + $0x8] sm:$0xff] %v2138
        %2171 = vst [vmem:[#allocation2 + $0x10] sm:$0xff] %v2139
        %2172 = vst [vmem:[#allocation2 + $0x18] sm:$0xff] %v2140
        %2173 = vst [vmem:[#allocation2 + $0x20] sm:$0xff] %v2141
        %2174 = vst [vmem:[#allocation2 + $0x28] sm:$0xff] %v2142
        %2175 = vst [vmem:[#allocation2 + $0x30] sm:$0xff] %v2143
        %2176 = vst [vmem:[#allocation2 + $0x38] sm:$0xff] %v2144
        %2177 = vst [vmem:[#allocation2 + $0x40] sm:$0xff] %v2145
        %2178 = vst [vmem:[#allocation2 + $0x48] sm:$0xff] %v2146
        %2179 = vst [vmem:[#allocation2 + $0x50] sm:$0xff] %v2147
        %2180 = vst [vmem:[#allocation2 + $0x58] sm:$0xff] %v2148
        %2181 = vst [vmem:[#allocation2 + $0x60] sm:$0xff] %v2149
        %2182 = vst [vmem:[#allocation2 + $0x68] sm:$0xff] %v2150
        %2183 = vst [vmem:[#allocation2 + $0x70] sm:$0xff] %v2151
        %2184 = vst [vmem:[#allocation2 + $0x78] sm:$0xff] %v2152
        %2185 = vst [vmem:[#allocation2 + $0x80] sm:$0xff] %v2153
        %2186 = vst [vmem:[#allocation2 + $0x88] sm:$0xff] %v2154
        %2187 = vst [vmem:[#allocation2 + $0x90] sm:$0xff] %v2155
        %2188 = vst [vmem:[#allocation2 + $0x98] sm:$0xff] %v2156
        %2189 = vst [vmem:[#allocation2 + $0xa0] sm:$0xff] %v2157
        %2190 = vst [vmem:[#allocation2 + $0xa8] sm:$0xff] %v2158
        %2191 = vst [vmem:[#allocation2 + $0xb0] sm:$0xff] %v2159
        %2192 = vst [vmem:[#allocation2 + $0xb8] sm:$0xff] %v2160
        %2193 = vst [vmem:[#allocation2 + $0xc0] sm:$0xff] %v2161
        %2194 = vst [vmem:[#allocation2 + $0xc8] sm:$0xff] %v2162
        %2195 = vst [vmem:[#allocation2 + $0xd0] sm:$0xff] %v2163
        %2196 = vst [vmem:[#allocation2 + $0xd8] sm:$0xff] %v2164
        %2197 = vst [vmem:[#allocation2 + $0xe0] sm:$0xff] %v2165
        %2198 = vst [vmem:[#allocation2 + $0xe8] sm:$0xff] %v2166
        %2199 = vst [vmem:[#allocation2 + $0xf0] sm:$0xff] %v2167
        %2200 = vst [vmem:[#allocation2 + $0xf8] sm:$0xff] %v2168
        %v2201 = vrot.slane %v286, 2
        %v2202 = vrot.slane %v287, 2
        %v2203 = vsel %vm1064, %v2201, %v2202
        %v2204 = vrot.slane %v288, 2
        %v2205 = vsel %vm1064, %v2202, %v2204
        %s2208 = scalar_lea.vmem %s1, 640
        %v2209 = vld [vmem:[%s2208] sm:$0xff]
        %v2210 = vld [vmem:[%s2208 + $0x8] sm:$0xff]
        %v2211 = vld [vmem:[%s2208 + $0x10] sm:$0xff]
        %v2212 = vld [vmem:[%s2208 + $0x18] sm:$0xff]
        %v2213 = vld [vmem:[%s2208 + $0x20] sm:$0xff]
        %v2214 = vld [vmem:[%s2208 + $0x28] sm:$0xff]
        %v2215 = vld [vmem:[%s2208 + $0x30] sm:$0xff]
        %v2216 = vld [vmem:[%s2208 + $0x38] sm:$0xff]
        %v2217 = vld [vmem:[%s2208 + $0x40] sm:$0xff]
        %v2218 = vld [vmem:[%s2208 + $0x48] sm:$0xff]
        %v2219 = vld [vmem:[%s2208 + $0x50] sm:$0xff]
        %v2220 = vld [vmem:[%s2208 + $0x58] sm:$0xff]
        %v2221 = vld [vmem:[%s2208 + $0x60] sm:$0xff]
        %v2222 = vld [vmem:[%s2208 + $0x68] sm:$0xff]
        %v2223 = vld [vmem:[%s2208 + $0x70] sm:$0xff]
        %v2224 = vld [vmem:[%s2208 + $0x78] sm:$0xff]
        %2225 = vmatprep.subr.mxu0 0.0
        %2226 = vmatpush1.msra.mxu0 %v2209
        %2227 = vmatprep.subr.mxu0 0.0
        %2228 = vmatpush1.msra.mxu0 %v2210
        %2229 = vmatprep.subr.mxu0 0.0
        %2230 = vmatpush1.msra.mxu0 %v2211
        %2231 = vmatprep.subr.mxu0 0.0
        %2232 = vmatpush1.msra.mxu0 %v2212
        %2233 = vmatprep.subr.mxu0 0.0
        %2234 = vmatpush1.msra.mxu0 %v2213
        %2235 = vmatprep.subr.mxu0 0.0
        %2236 = vmatpush1.msra.mxu0 %v2214
        %2237 = vmatprep.subr.mxu0 0.0
        %2238 = vmatpush1.msra.mxu0 %v2215
        %2239 = vmatprep.subr.mxu0 0.0
        %2240 = vmatpush1.msra.mxu0 %v2216
        %2241 = vmatprep.subr.mxu0 0.0
        %2242 = vmatpush1.msra.mxu0 %v2217
        %2243 = vmatprep.subr.mxu0 0.0
        %2244 = vmatpush1.msra.mxu0 %v2218
        %2245 = vmatprep.subr.mxu0 0.0
        %2246 = vmatpush1.msra.mxu0 %v2219
        %2247 = vmatprep.subr.mxu0 0.0
        %2248 = vmatpush1.msra.mxu0 %v2220
        %2249 = vmatprep.subr.mxu0 0.0
        %2250 = vmatpush1.msra.mxu0 %v2221
        %2251 = vmatprep.subr.mxu0 0.0
        %2252 = vmatpush1.msra.mxu0 %v2222
        %2253 = vmatprep.subr.mxu0 0.0
        %2254 = vmatpush1.msra.mxu0 %v2223
        %2255 = vmatprep.subr.mxu0 0.0
        %2256 = vmatpush1.msra.mxu0 %v2224
        %2257 = vmatprep.subr.mxu0 0.0
        %2258 = vmatpush1.msra.mxu0 0.0
        %2259 = vmatprep.subr.mxu0 0.0
        %2260 = vmatpush1.msra.mxu0 0.0
        %2261 = vmatprep.subr.mxu0 0.0
        %2262 = vmatpush1.msra.mxu0 0.0
        %2263 = vmatprep.subr.mxu0 0.0
        %2264 = vmatpush1.msra.mxu0 0.0
        %2265 = vmatprep.subr.mxu0 0.0
        %2266 = vmatpush1.msra.mxu0 0.0
        %2267 = vmatprep.subr.mxu0 0.0
        %2268 = vmatpush1.msra.mxu0 0.0
        %2269 = vmatprep.subr.mxu0 0.0
        %2270 = vmatpush1.msra.mxu0 0.0
        %2271 = vmatprep.subr.mxu0 0.0
        %2272 = vmatpush1.msra.mxu0 0.0
        %2273 = vmatprep.subr.mxu0 0.0
        %2274 = vmatpush1.msra.mxu0 0.0
        %2275 = vmatprep.subr.mxu0 0.0
        %2276 = vmatpush1.msra.mxu0 0.0
        %2277 = vmatprep.subr.mxu0 0.0
        %2278 = vmatpush1.msra.mxu0 0.0
        %2279 = vmatprep.subr.mxu0 0.0
        %2280 = vmatpush1.msra.mxu0 0.0
        %2281 = vmatprep.subr.mxu0 0.0
        %2282 = vmatpush1.msra.mxu0 0.0
        %2283 = vmatprep.subr.mxu0 0.0
        %2284 = vmatpush1.msra.mxu0 0.0
        %2285 = vmatprep.subr.mxu0 0.0
        %2286 = vmatpush1.msra.mxu0 0.0
        %2287 = vmatprep.subr.mxu0 0.0
        %2288 = vmatpush1.msra.mxu0 0.0
        %2289 = vmatprep.mubr.f32.mxu0 0.0
        %2290 = vmatmul.mubr.f32.gmra.mrb[0].mxu0 %v1072
        %v2291 = vpop.f32.mrb[0].mxu0
        %v2292 = vadd.f32 0.0, %v2291
        %v2293 = vpop.f32.mrb[0].mxu0
        %2294 = vmatprep.mubr.f32.mxu0 0.0
        %2295 = vmatmul.mubr.f32.gmra.mrb[0].mxu0 %v1074
        %v2296 = vpop.f32.mrb[0].mxu0
        %v2297 = vadd.f32 0.0, %v2296
        %v2298 = vpop.f32.mrb[0].mxu0
        %2299 = vmatprep.mubr.f32.mxu0 0.0
        %2300 = vmatmul.mubr.f32.gmra.mrb[0].mxu0 %v1077
        %v2301 = vpop.f32.mrb[0].mxu0
        %v2302 = vadd.f32 0.0, %v2301
        %v2303 = vpop.f32.mrb[0].mxu0
        %2304 = vmatprep.mubr.f32.mxu0 0.0
        %2305 = vmatmul.mubr.f32.gmra.mrb[0].mxu0 %v1079
        %v2306 = vpop.f32.mrb[0].mxu0
        %v2307 = vadd.f32 0.0, %v2306
        %v2308 = vpop.f32.mrb[0].mxu0
        %2309 = vmatprep.mubr.f32.mxu0 0.0
        %2310 = vmatmul.mubr.f32.gmra.mrb[0].mxu0 %v1082
        %v2311 = vpop.f32.mrb[0].mxu0
        %v2312 = vadd.f32 0.0, %v2311
        %v2313 = vpop.f32.mrb[0].mxu0
        %2314 = vmatprep.mubr.f32.mxu0 0.0
        %2315 = vmatmul.mubr.f32.gmra.mrb[0].mxu0 %v1084
        %v2316 = vpop.f32.mrb[0].mxu0
        %v2317 = vadd.f32 0.0, %v2316
        %v2318 = vpop.f32.mrb[0].mxu0
        %2319 = vmatprep.mubr.f32.mxu0 0.0
        %2320 = vmatmul.mubr.f32.gmra.mrb[0].mxu0 %v1087
        %v2321 = vpop.f32.mrb[0].mxu0
        %v2322 = vadd.f32 0.0, %v2321
        %v2323 = vpop.f32.mrb[0].mxu0
        %2324 = vmatprep.mubr.f32.mxu0 0.0
        %2325 = vmatmul.mubr.f32.gmra.mrb[0].mxu0 %v1089
        %v2326 = vpop.f32.mrb[0].mxu0
        %v2327 = vadd.f32 0.0, %v2326
        %v2328 = vpop.f32.mrb[0].mxu0
        %2329 = vmatprep.mubr.f32.mxu0 0.0
        %2330 = vmatmul.mubr.f32.gmra.mrb[0].mxu0 %v1092
        %v2331 = vpop.f32.mrb[0].mxu0
        %v2332 = vadd.f32 0.0, %v2331
        %v2333 = vpop.f32.mrb[0].mxu0
        %2334 = vmatprep.mubr.f32.mxu0 0.0
        %2335 = vmatmul.mubr.f32.gmra.mrb[0].mxu0 %v1094
        %v2336 = vpop.f32.mrb[0].mxu0
        %v2337 = vadd.f32 0.0, %v2336
        %v2338 = vpop.f32.mrb[0].mxu0
        %2339 = vmatprep.mubr.f32.mxu0 0.0
        %2340 = vmatmul.mubr.f32.gmra.mrb[0].mxu0 %v1097
        %v2341 = vpop.f32.mrb[0].mxu0
        %v2342 = vadd.f32 0.0, %v2341
        %v2343 = vpop.f32.mrb[0].mxu0
        %2344 = vmatprep.mubr.f32.mxu0 0.0
        %2345 = vmatmul.mubr.f32.gmra.mrb[0].mxu0 %v1099
        %v2346 = vpop.f32.mrb[0].mxu0
        %v2347 = vadd.f32 0.0, %v2346
        %v2348 = vpop.f32.mrb[0].mxu0
        %2349 = vmatprep.mubr.f32.mxu0 0.0
        %2350 = vmatmul.mubr.f32.gmra.mrb[0].mxu0 %v1102
        %v2351 = vpop.f32.mrb[0].mxu0
        %v2352 = vadd.f32 0.0, %v2351
        %v2353 = vpop.f32.mrb[0].mxu0
        %2354 = vmatprep.mubr.f32.mxu0 0.0
        %2355 = vmatmul.mubr.f32.gmra.mrb[0].mxu0 %v1104
        %v2356 = vpop.f32.mrb[0].mxu0
        %v2357 = vadd.f32 0.0, %v2356
        %v2358 = vpop.f32.mrb[0].mxu0
        %2359 = vmatprep.mubr.f32.mxu0 0.0
        %2360 = vmatmul.mubr.f32.gmra.mrb[0].mxu0 %v1107
        %v2361 = vpop.f32.mrb[0].mxu0
        %v2362 = vadd.f32 0.0, %v2361
        %v2363 = vpop.f32.mrb[0].mxu0
        %2364 = vmatprep.mubr.f32.mxu0 0.0
        %2365 = vmatmul.mubr.f32.gmra.mrb[0].mxu0 %v1109
        %v2366 = vpop.f32.mrb[0].mxu0
        %v2367 = vadd.f32 0.0, %v2366
        %v2368 = vpop.f32.mrb[0].mxu0
        %2369 = vmatprep.mubr.f32.mxu0 0.0
        %2370 = vmatmul.mubr.f32.gmra.mrb[0].mxu0 %v1112
        %v2371 = vpop.f32.mrb[0].mxu0
        %v2372 = vadd.f32 0.0, %v2371
        %v2373 = vpop.f32.mrb[0].mxu0
        %2374 = vmatprep.mubr.f32.mxu0 0.0
        %2375 = vmatmul.mubr.f32.gmra.mrb[0].mxu0 %v1114
        %v2376 = vpop.f32.mrb[0].mxu0
        %v2377 = vadd.f32 0.0, %v2376
        %v2378 = vpop.f32.mrb[0].mxu0
        %2379 = vmatprep.mubr.f32.mxu0 0.0
        %2380 = vmatmul.mubr.f32.gmra.mrb[0].mxu0 %v1117
        %v2381 = vpop.f32.mrb[0].mxu0
        %v2382 = vadd.f32 0.0, %v2381
        %v2383 = vpop.f32.mrb[0].mxu0
        %2384 = vmatprep.mubr.f32.mxu0 0.0
        %2385 = vmatmul.mubr.f32.gmra.mrb[0].mxu0 %v1119
        %v2386 = vpop.f32.mrb[0].mxu0
        %v2387 = vadd.f32 0.0, %v2386
        %v2388 = vpop.f32.mrb[0].mxu0
        %2389 = vmatprep.mubr.f32.mxu0 0.0
        %2390 = vmatmul.mubr.f32.gmra.mrb[0].mxu0 %v1122
        %v2391 = vpop.f32.mrb[0].mxu0
        %v2392 = vadd.f32 0.0, %v2391
        %v2393 = vpop.f32.mrb[0].mxu0
        %2394 = vmatprep.mubr.f32.mxu0 0.0
        %2395 = vmatmul.mubr.f32.gmra.mrb[0].mxu0 %v1124
        %v2396 = vpop.f32.mrb[0].mxu0
        %v2397 = vadd.f32 0.0, %v2396
        %v2398 = vpop.f32.mrb[0].mxu0
        %2399 = vmatprep.mubr.f32.mxu0 0.0
        %2400 = vmatmul.mubr.f32.gmra.mrb[0].mxu0 %v1127
        %v2401 = vpop.f32.mrb[0].mxu0
        %v2402 = vadd.f32 0.0, %v2401
        %v2403 = vpop.f32.mrb[0].mxu0
        %2404 = vmatprep.mubr.f32.mxu0 0.0
        %2405 = vmatmul.mubr.f32.gmra.mrb[0].mxu0 %v1129
        %v2406 = vpop.f32.mrb[0].mxu0
        %v2407 = vadd.f32 0.0, %v2406
        %v2408 = vpop.f32.mrb[0].mxu0
        %2409 = vmatprep.mubr.f32.mxu0 0.0
        %2410 = vmatmul.mubr.f32.gmra.mrb[0].mxu0 %v1132
        %v2411 = vpop.f32.mrb[0].mxu0
        %v2412 = vadd.f32 0.0, %v2411
        %v2413 = vpop.f32.mrb[0].mxu0
        %2414 = vmatprep.mubr.f32.mxu0 0.0
        %2415 = vmatmul.mubr.f32.gmra.mrb[0].mxu0 %v1134
        %v2416 = vpop.f32.mrb[0].mxu0
        %v2417 = vadd.f32 0.0, %v2416
        %v2418 = vpop.f32.mrb[0].mxu0
        %2419 = vmatprep.mubr.f32.mxu0 0.0
        %2420 = vmatmul.mubr.f32.gmra.mrb[0].mxu0 %v1137
        %v2421 = vpop.f32.mrb[0].mxu0
        %v2422 = vadd.f32 0.0, %v2421
        %v2423 = vpop.f32.mrb[0].mxu0
        %2424 = vmatprep.mubr.f32.mxu0 0.0
        %2425 = vmatmul.mubr.f32.gmra.mrb[0].mxu0 %v1139
        %v2426 = vpop.f32.mrb[0].mxu0
        %v2427 = vadd.f32 0.0, %v2426
        %v2428 = vpop.f32.mrb[0].mxu0
        %2429 = vmatprep.mubr.f32.mxu0 0.0
        %2430 = vmatmul.mubr.f32.gmra.mrb[0].mxu0 %v1142
        %v2431 = vpop.f32.mrb[0].mxu0
        %v2432 = vadd.f32 0.0, %v2431
        %v2433 = vpop.f32.mrb[0].mxu0
        %2434 = vmatprep.mubr.f32.mxu0 0.0
        %2435 = vmatmul.mubr.f32.gmra.mrb[0].mxu0 %v1144
        %v2436 = vpop.f32.mrb[0].mxu0
        %v2437 = vadd.f32 0.0, %v2436
        %v2438 = vpop.f32.mrb[0].mxu0
        %2439 = vmatprep.mubr.f32.mxu0 0.0
        %2440 = vmatmul.mubr.f32.gmra.mrb[0].mxu0 %v2203
        %v2441 = vpop.f32.mrb[0].mxu0
        %v2442 = vadd.f32 0.0, %v2441
        %v2443 = vpop.f32.mrb[0].mxu0
        %2444 = vmatprep.mubr.f32.mxu0 0.0
        %2445 = vmatmul.mubr.f32.gmra.mrb[0].mxu0 %v2205
        %v2446 = vpop.f32.mrb[0].mxu0
        %v2447 = vadd.f32 0.0, %v2446
        %v2448 = vpop.f32.mrb[0].mxu0
        %2449 = vdwg.mxu0
        %v2450 = vld [vmem:[#allocation2] sm:$0xff]
        %v2451 = vld [vmem:[#allocation2 + $0x8] sm:$0xff]
        %v2452 = vld [vmem:[#allocation2 + $0x10] sm:$0xff]
        %v2453 = vld [vmem:[#allocation2 + $0x18] sm:$0xff]
        %v2454 = vld [vmem:[#allocation2 + $0x20] sm:$0xff]
        %v2455 = vld [vmem:[#allocation2 + $0x28] sm:$0xff]
        %v2456 = vld [vmem:[#allocation2 + $0x30] sm:$0xff]
        %v2457 = vld [vmem:[#allocation2 + $0x38] sm:$0xff]
        %v2458 = vld [vmem:[#allocation2 + $0x40] sm:$0xff]
        %v2459 = vld [vmem:[#allocation2 + $0x48] sm:$0xff]
        %v2460 = vld [vmem:[#allocation2 + $0x50] sm:$0xff]
        %v2461 = vld [vmem:[#allocation2 + $0x58] sm:$0xff]
        %v2462 = vld [vmem:[#allocation2 + $0x60] sm:$0xff]
        %v2463 = vld [vmem:[#allocation2 + $0x68] sm:$0xff]
        %v2464 = vld [vmem:[#allocation2 + $0x70] sm:$0xff]
        %v2465 = vld [vmem:[#allocation2 + $0x78] sm:$0xff]
        %v2466 = vld [vmem:[#allocation2 + $0x80] sm:$0xff]
        %v2467 = vld [vmem:[#allocation2 + $0x88] sm:$0xff]
        %v2468 = vld [vmem:[#allocation2 + $0x90] sm:$0xff]
        %v2469 = vld [vmem:[#allocation2 + $0x98] sm:$0xff]
        %v2470 = vld [vmem:[#allocation2 + $0xa0] sm:$0xff]
        %v2471 = vld [vmem:[#allocation2 + $0xa8] sm:$0xff]
        %v2472 = vld [vmem:[#allocation2 + $0xb0] sm:$0xff]
        %v2473 = vld [vmem:[#allocation2 + $0xb8] sm:$0xff]
        %v2474 = vld [vmem:[#allocation2 + $0xc0] sm:$0xff]
        %v2475 = vld [vmem:[#allocation2 + $0xc8] sm:$0xff]
        %v2476 = vld [vmem:[#allocation2 + $0xd0] sm:$0xff]
        %v2477 = vld [vmem:[#allocation2 + $0xd8] sm:$0xff]
        %v2478 = vld [vmem:[#allocation2 + $0xe0] sm:$0xff]
        %v2479 = vld [vmem:[#allocation2 + $0xe8] sm:$0xff]
        %v2480 = vld [vmem:[#allocation2 + $0xf0] sm:$0xff]
        %v2481 = vld [vmem:[#allocation2 + $0xf8] sm:$0xff]
        %v2482 = vadd.f32 %v2450, %v2292
        %v2483 = vadd.f32 %v2451, %v2297
        %v2484 = vadd.f32 %v2452, %v2302
        %v2485 = vadd.f32 %v2453, %v2307
        %v2486 = vadd.f32 %v2454, %v2312
        %v2487 = vadd.f32 %v2455, %v2317
        %v2488 = vadd.f32 %v2456, %v2322
        %v2489 = vadd.f32 %v2457, %v2327
        %v2490 = vadd.f32 %v2458, %v2332
        %v2491 = vadd.f32 %v2459, %v2337
        %v2492 = vadd.f32 %v2460, %v2342
        %v2493 = vadd.f32 %v2461, %v2347
        %v2494 = vadd.f32 %v2462, %v2352
        %v2495 = vadd.f32 %v2463, %v2357
        %v2496 = vadd.f32 %v2464, %v2362
        %v2497 = vadd.f32 %v2465, %v2367
        %v2498 = vadd.f32 %v2466, %v2372
        %v2499 = vadd.f32 %v2467, %v2377
        %v2500 = vadd.f32 %v2468, %v2382
        %v2501 = vadd.f32 %v2469, %v2387
        %v2502 = vadd.f32 %v2470, %v2392
        %v2503 = vadd.f32 %v2471, %v2397
        %v2504 = vadd.f32 %v2472, %v2402
        %v2505 = vadd.f32 %v2473, %v2407
        %v2506 = vadd.f32 %v2474, %v2412
        %v2507 = vadd.f32 %v2475, %v2417
        %v2508 = vadd.f32 %v2476, %v2422
        %v2509 = vadd.f32 %v2477, %v2427
        %v2510 = vadd.f32 %v2478, %v2432
        %v2511 = vadd.f32 %v2479, %v2437
        %v2512 = vadd.f32 %v2480, %v2442
        %v2513 = vadd.f32 %v2481, %v2447
        %2514 = vst [vmem:[#allocation2] sm:$0xff] %v2482
        %2515 = vst [vmem:[#allocation2 + $0x8] sm:$0xff] %v2483
        %2516 = vst [vmem:[#allocation2 + $0x10] sm:$0xff] %v2484
        %2517 = vst [vmem:[#allocation2 + $0x18] sm:$0xff] %v2485
        %2518 = vst [vmem:[#allocation2 + $0x20] sm:$0xff] %v2486
        %2519 = vst [vmem:[#allocation2 + $0x28] sm:$0xff] %v2487
        %2520 = vst [vmem:[#allocation2 + $0x30] sm:$0xff] %v2488
        %2521 = vst [vmem:[#allocation2 + $0x38] sm:$0xff] %v2489
        %2522 = vst [vmem:[#allocation2 + $0x40] sm:$0xff] %v2490
        %2523 = vst [vmem:[#allocation2 + $0x48] sm:$0xff] %v2491
        %2524 = vst [vmem:[#allocation2 + $0x50] sm:$0xff] %v2492
        %2525 = vst [vmem:[#allocation2 + $0x58] sm:$0xff] %v2493
        %2526 = vst [vmem:[#allocation2 + $0x60] sm:$0xff] %v2494
        %2527 = vst [vmem:[#allocation2 + $0x68] sm:$0xff] %v2495
        %2528 = vst [vmem:[#allocation2 + $0x70] sm:$0xff] %v2496
        %2529 = vst [vmem:[#allocation2 + $0x78] sm:$0xff] %v2497
        %2530 = vst [vmem:[#allocation2 + $0x80] sm:$0xff] %v2498
        %2531 = vst [vmem:[#allocation2 + $0x88] sm:$0xff] %v2499
        %2532 = vst [vmem:[#allocation2 + $0x90] sm:$0xff] %v2500
        %2533 = vst [vmem:[#allocation2 + $0x98] sm:$0xff] %v2501
        %2534 = vst [vmem:[#allocation2 + $0xa0] sm:$0xff] %v2502
        %2535 = vst [vmem:[#allocation2 + $0xa8] sm:$0xff] %v2503
        %2536 = vst [vmem:[#allocation2 + $0xb0] sm:$0xff] %v2504
        %2537 = vst [vmem:[#allocation2 + $0xb8] sm:$0xff] %v2505
        %2538 = vst [vmem:[#allocation2 + $0xc0] sm:$0xff] %v2506
        %2539 = vst [vmem:[#allocation2 + $0xc8] sm:$0xff] %v2507
        %2540 = vst [vmem:[#allocation2 + $0xd0] sm:$0xff] %v2508
        %2541 = vst [vmem:[#allocation2 + $0xd8] sm:$0xff] %v2509
        %2542 = vst [vmem:[#allocation2 + $0xe0] sm:$0xff] %v2510
        %2543 = vst [vmem:[#allocation2 + $0xe8] sm:$0xff] %v2511
        %2544 = vst [vmem:[#allocation2 + $0xf0] sm:$0xff] %v2512
        %2545 = vst [vmem:[#allocation2 + $0xf8] sm:$0xff] %v2513
        %s2546 = scalar_lea.vmem %s1, 768
        %v2547 = vld [vmem:[%s2546] sm:$0xff]
        %v2548 = vld [vmem:[%s2546 + $0x8] sm:$0xff]
        %v2549 = vld [vmem:[%s2546 + $0x10] sm:$0xff]
        %v2550 = vld [vmem:[%s2546 + $0x18] sm:$0xff]
        %v2551 = vld [vmem:[%s2546 + $0x20] sm:$0xff]
        %v2552 = vld [vmem:[%s2546 + $0x28] sm:$0xff]
        %v2553 = vld [vmem:[%s2546 + $0x30] sm:$0xff]
        %v2554 = vld [vmem:[%s2546 + $0x38] sm:$0xff]
        %v2555 = vld [vmem:[%s2546 + $0x40] sm:$0xff]
        %v2556 = vld [vmem:[%s2546 + $0x48] sm:$0xff]
        %v2557 = vld [vmem:[%s2546 + $0x50] sm:$0xff]
        %v2558 = vld [vmem:[%s2546 + $0x58] sm:$0xff]
        %v2559 = vld [vmem:[%s2546 + $0x60] sm:$0xff]
        %v2560 = vld [vmem:[%s2546 + $0x68] sm:$0xff]
        %v2561 = vld [vmem:[%s2546 + $0x70] sm:$0xff]
        %v2562 = vld [vmem:[%s2546 + $0x78] sm:$0xff]
        %2563 = vmatprep.subr.mxu0 0.0
        %2564 = vmatpush1.msra.mxu0 %v2547
        %2565 = vmatprep.subr.mxu0 0.0
        %2566 = vmatpush1.msra.mxu0 %v2548
        %2567 = vmatprep.subr.mxu0 0.0
        %2568 = vmatpush1.msra.mxu0 %v2549
        %2569 = vmatprep.subr.mxu0 0.0
        %2570 = vmatpush1.msra.mxu0 %v2550
        %2571 = vmatprep.subr.mxu0 0.0
        %2572 = vmatpush1.msra.mxu0 %v2551
        %2573 = vmatprep.subr.mxu0 0.0
        %2574 = vmatpush1.msra.mxu0 %v2552
        %2575 = vmatprep.subr.mxu0 0.0
        %2576 = vmatpush1.msra.mxu0 %v2553
        %2577 = vmatprep.subr.mxu0 0.0
        %2578 = vmatpush1.msra.mxu0 %v2554
        %2579 = vmatprep.subr.mxu0 0.0
        %2580 = vmatpush1.msra.mxu0 %v2555
        %2581 = vmatprep.subr.mxu0 0.0
        %2582 = vmatpush1.msra.mxu0 %v2556
        %2583 = vmatprep.subr.mxu0 0.0
        %2584 = vmatpush1.msra.mxu0 %v2557
        %2585 = vmatprep.subr.mxu0 0.0
        %2586 = vmatpush1.msra.mxu0 %v2558
        %2587 = vmatprep.subr.mxu0 0.0
        %2588 = vmatpush1.msra.mxu0 %v2559
        %2589 = vmatprep.subr.mxu0 0.0
        %2590 = vmatpush1.msra.mxu0 %v2560
        %2591 = vmatprep.subr.mxu0 0.0
        %2592 = vmatpush1.msra.mxu0 %v2561
        %2593 = vmatprep.subr.mxu0 0.0
        %2594 = vmatpush1.msra.mxu0 %v2562
        %2595 = vmatprep.subr.mxu0 0.0
        %2596 = vmatpush1.msra.mxu0 0.0
        %2597 = vmatprep.subr.mxu0 0.0
        %2598 = vmatpush1.msra.mxu0 0.0
        %2599 = vmatprep.subr.mxu0 0.0
        %2600 = vmatpush1.msra.mxu0 0.0
        %2601 = vmatprep.subr.mxu0 0.0
        %2602 = vmatpush1.msra.mxu0 0.0
        %2603 = vmatprep.subr.mxu0 0.0
        %2604 = vmatpush1.msra.mxu0 0.0
        %2605 = vmatprep.subr.mxu0 0.0
        %2606 = vmatpush1.msra.mxu0 0.0
        %2607 = vmatprep.subr.mxu0 0.0
        %2608 = vmatpush1.msra.mxu0 0.0
        %2609 = vmatprep.subr.mxu0 0.0
        %2610 = vmatpush1.msra.mxu0 0.0
        %2611 = vmatprep.subr.mxu0 0.0
        %2612 = vmatpush1.msra.mxu0 0.0
        %2613 = vmatprep.subr.mxu0 0.0
        %2614 = vmatpush1.msra.mxu0 0.0
        %2615 = vmatprep.subr.mxu0 0.0
        %2616 = vmatpush1.msra.mxu0 0.0
        %2617 = vmatprep.subr.mxu0 0.0
        %2618 = vmatpush1.msra.mxu0 0.0
        %2619 = vmatprep.subr.mxu0 0.0
        %2620 = vmatpush1.msra.mxu0 0.0
        %2621 = vmatprep.subr.mxu0 0.0
        %2622 = vmatpush1.msra.mxu0 0.0
        %2623 = vmatprep.subr.mxu0 0.0
        %2624 = vmatpush1.msra.mxu0 0.0
        %2625 = vmatprep.subr.mxu0 0.0
        %2626 = vmatpush1.msra.mxu0 0.0
        %2627 = vmatprep.mubr.f32.mxu0 0.0
        %2628 = vmatmul.mubr.f32.gmra.mrb[0].mxu0 %v244
        %v2629 = vpop.f32.mrb[0].mxu0
        %v2630 = vadd.f32 0.0, %v2629
        %v2631 = vpop.f32.mrb[0].mxu0
        %2632 = vmatprep.mubr.f32.mxu0 0.0
        %2633 = vmatmul.mubr.f32.gmra.mrb[0].mxu0 %v245
        %v2634 = vpop.f32.mrb[0].mxu0
        %v2635 = vadd.f32 0.0, %v2634
        %v2636 = vpop.f32.mrb[0].mxu0
        %2637 = vmatprep.mubr.f32.mxu0 0.0
        %2638 = vmatmul.mubr.f32.gmra.mrb[0].mxu0 %v247
        %v2639 = vpop.f32.mrb[0].mxu0
        %v2640 = vadd.f32 0.0, %v2639
        %v2641 = vpop.f32.mrb[0].mxu0
        %2642 = vmatprep.mubr.f32.mxu0 0.0
        %2643 = vmatmul.mubr.f32.gmra.mrb[0].mxu0 %v248
        %v2644 = vpop.f32.mrb[0].mxu0
        %v2645 = vadd.f32 0.0, %v2644
        %v2646 = vpop.f32.mrb[0].mxu0
        %2647 = vmatprep.mubr.f32.mxu0 0.0
        %2648 = vmatmul.mubr.f32.gmra.mrb[0].mxu0 %v250
        %v2649 = vpop.f32.mrb[0].mxu0
        %v2650 = vadd.f32 0.0, %v2649
        %v2651 = vpop.f32.mrb[0].mxu0
        %2652 = vmatprep.mubr.f32.mxu0 0.0
        %2653 = vmatmul.mubr.f32.gmra.mrb[0].mxu0 %v251
        %v2654 = vpop.f32.mrb[0].mxu0
        %v2655 = vadd.f32 0.0, %v2654
        %v2656 = vpop.f32.mrb[0].mxu0
        %2657 = vmatprep.mubr.f32.mxu0 0.0
        %2658 = vmatmul.mubr.f32.gmra.mrb[0].mxu0 %v253
        %v2659 = vpop.f32.mrb[0].mxu0
        %v2660 = vadd.f32 0.0, %v2659
        %v2661 = vpop.f32.mrb[0].mxu0
        %2662 = vmatprep.mubr.f32.mxu0 0.0
        %2663 = vmatmul.mubr.f32.gmra.mrb[0].mxu0 %v254
        %v2664 = vpop.f32.mrb[0].mxu0
        %v2665 = vadd.f32 0.0, %v2664
        %v2666 = vpop.f32.mrb[0].mxu0
        %2667 = vmatprep.mubr.f32.mxu0 0.0
        %2668 = vmatmul.mubr.f32.gmra.mrb[0].mxu0 %v256
        %v2669 = vpop.f32.mrb[0].mxu0
        %v2670 = vadd.f32 0.0, %v2669
        %v2671 = vpop.f32.mrb[0].mxu0
        %2672 = vmatprep.mubr.f32.mxu0 0.0
        %2673 = vmatmul.mubr.f32.gmra.mrb[0].mxu0 %v257
        %v2674 = vpop.f32.mrb[0].mxu0
        %v2675 = vadd.f32 0.0, %v2674
        %v2676 = vpop.f32.mrb[0].mxu0
        %2677 = vmatprep.mubr.f32.mxu0 0.0
        %2678 = vmatmul.mubr.f32.gmra.mrb[0].mxu0 %v259
        %v2679 = vpop.f32.mrb[0].mxu0
        %v2680 = vadd.f32 0.0, %v2679
        %v2681 = vpop.f32.mrb[0].mxu0
        %2682 = vmatprep.mubr.f32.mxu0 0.0
        %2683 = vmatmul.mubr.f32.gmra.mrb[0].mxu0 %v260
        %v2684 = vpop.f32.mrb[0].mxu0
        %v2685 = vadd.f32 0.0, %v2684
        %v2686 = vpop.f32.mrb[0].mxu0
        %2687 = vmatprep.mubr.f32.mxu0 0.0
        %2688 = vmatmul.mubr.f32.gmra.mrb[0].mxu0 %v262
        %v2689 = vpop.f32.mrb[0].mxu0
        %v2690 = vadd.f32 0.0, %v2689
        %v2691 = vpop.f32.mrb[0].mxu0
        %2692 = vmatprep.mubr.f32.mxu0 0.0
        %2693 = vmatmul.mubr.f32.gmra.mrb[0].mxu0 %v263
        %v2694 = vpop.f32.mrb[0].mxu0
        %v2695 = vadd.f32 0.0, %v2694
        %v2696 = vpop.f32.mrb[0].mxu0
        %2697 = vmatprep.mubr.f32.mxu0 0.0
        %2698 = vmatmul.mubr.f32.gmra.mrb[0].mxu0 %v265
        %v2699 = vpop.f32.mrb[0].mxu0
        %v2700 = vadd.f32 0.0, %v2699
        %v2701 = vpop.f32.mrb[0].mxu0
        %2702 = vmatprep.mubr.f32.mxu0 0.0
        %2703 = vmatmul.mubr.f32.gmra.mrb[0].mxu0 %v266
        %v2704 = vpop.f32.mrb[0].mxu0
        %v2705 = vadd.f32 0.0, %v2704
        %v2706 = vpop.f32.mrb[0].mxu0
        %2707 = vmatprep.mubr.f32.mxu0 0.0
        %2708 = vmatmul.mubr.f32.gmra.mrb[0].mxu0 %v268
        %v2709 = vpop.f32.mrb[0].mxu0
        %v2710 = vadd.f32 0.0, %v2709
        %v2711 = vpop.f32.mrb[0].mxu0
        %2712 = vmatprep.mubr.f32.mxu0 0.0
        %2713 = vmatmul.mubr.f32.gmra.mrb[0].mxu0 %v269
        %v2714 = vpop.f32.mrb[0].mxu0
        %v2715 = vadd.f32 0.0, %v2714
        %v2716 = vpop.f32.mrb[0].mxu0
        %2717 = vmatprep.mubr.f32.mxu0 0.0
        %2718 = vmatmul.mubr.f32.gmra.mrb[0].mxu0 %v271
        %v2719 = vpop.f32.mrb[0].mxu0
        %v2720 = vadd.f32 0.0, %v2719
        %v2721 = vpop.f32.mrb[0].mxu0
        %2722 = vmatprep.mubr.f32.mxu0 0.0
        %2723 = vmatmul.mubr.f32.gmra.mrb[0].mxu0 %v272
        %v2724 = vpop.f32.mrb[0].mxu0
        %v2725 = vadd.f32 0.0, %v2724
        %v2726 = vpop.f32.mrb[0].mxu0
        %2727 = vmatprep.mubr.f32.mxu0 0.0
        %2728 = vmatmul.mubr.f32.gmra.mrb[0].mxu0 %v274
        %v2729 = vpop.f32.mrb[0].mxu0
        %v2730 = vadd.f32 0.0, %v2729
        %v2731 = vpop.f32.mrb[0].mxu0
        %2732 = vmatprep.mubr.f32.mxu0 0.0
        %2733 = vmatmul.mubr.f32.gmra.mrb[0].mxu0 %v275
        %v2734 = vpop.f32.mrb[0].mxu0
        %v2735 = vadd.f32 0.0, %v2734
        %v2736 = vpop.f32.mrb[0].mxu0
        %2737 = vmatprep.mubr.f32.mxu0 0.0
        %2738 = vmatmul.mubr.f32.gmra.mrb[0].mxu0 %v277
        %v2739 = vpop.f32.mrb[0].mxu0
        %v2740 = vadd.f32 0.0, %v2739
        %v2741 = vpop.f32.mrb[0].mxu0
        %2742 = vmatprep.mubr.f32.mxu0 0.0
        %2743 = vmatmul.mubr.f32.gmra.mrb[0].mxu0 %v278
        %v2744 = vpop.f32.mrb[0].mxu0
        %v2745 = vadd.f32 0.0, %v2744
        %v2746 = vpop.f32.mrb[0].mxu0
        %2747 = vmatprep.mubr.f32.mxu0 0.0
        %2748 = vmatmul.mubr.f32.gmra.mrb[0].mxu0 %v280
        %v2749 = vpop.f32.mrb[0].mxu0
        %v2750 = vadd.f32 0.0, %v2749
        %v2751 = vpop.f32.mrb[0].mxu0
        %2752 = vmatprep.mubr.f32.mxu0 0.0
        %2753 = vmatmul.mubr.f32.gmra.mrb[0].mxu0 %v281
        %v2754 = vpop.f32.mrb[0].mxu0
        %v2755 = vadd.f32 0.0, %v2754
        %v2756 = vpop.f32.mrb[0].mxu0
        %2757 = vmatprep.mubr.f32.mxu0 0.0
        %2758 = vmatmul.mubr.f32.gmra.mrb[0].mxu0 %v283
        %v2759 = vpop.f32.mrb[0].mxu0
        %v2760 = vadd.f32 0.0, %v2759
        %v2761 = vpop.f32.mrb[0].mxu0
        %2762 = vmatprep.mubr.f32.mxu0 0.0
        %2763 = vmatmul.mubr.f32.gmra.mrb[0].mxu0 %v284
        %v2764 = vpop.f32.mrb[0].mxu0
        %v2765 = vadd.f32 0.0, %v2764
        %v2766 = vpop.f32.mrb[0].mxu0
        %2767 = vmatprep.mubr.f32.mxu0 0.0
        %2768 = vmatmul.mubr.f32.gmra.mrb[0].mxu0 %v286
        %v2769 = vpop.f32.mrb[0].mxu0
        %v2770 = vadd.f32 0.0, %v2769
        %v2771 = vpop.f32.mrb[0].mxu0
        %2772 = vmatprep.mubr.f32.mxu0 0.0
        %2773 = vmatmul.mubr.f32.gmra.mrb[0].mxu0 %v287
        %v2774 = vpop.f32.mrb[0].mxu0
        %v2775 = vadd.f32 0.0, %v2774
        %v2776 = vpop.f32.mrb[0].mxu0
        %2777 = vmatprep.mubr.f32.mxu0 0.0
        %2778 = vmatmul.mubr.f32.gmra.mrb[0].mxu0 %v289
        %v2779 = vpop.f32.mrb[0].mxu0
        %v2780 = vadd.f32 0.0, %v2779
        %v2781 = vpop.f32.mrb[0].mxu0
        %2782 = vmatprep.mubr.f32.mxu0 0.0
        %2783 = vmatmul.mubr.f32.gmra.mrb[0].mxu0 %v290
        %v2784 = vpop.f32.mrb[0].mxu0
        %v2785 = vadd.f32 0.0, %v2784
        %v2786 = vpop.f32.mrb[0].mxu0
        %2787 = vdwg.mxu0
        %v2788 = vld [vmem:[#allocation2] sm:$0xff]
        %v2789 = vld [vmem:[#allocation2 + $0x8] sm:$0xff]
        %v2790 = vld [vmem:[#allocation2 + $0x10] sm:$0xff]
        %v2791 = vld [vmem:[#allocation2 + $0x18] sm:$0xff]
        %v2792 = vld [vmem:[#allocation2 + $0x20] sm:$0xff]
        %v2793 = vld [vmem:[#allocation2 + $0x28] sm:$0xff]
        %v2794 = vld [vmem:[#allocation2 + $0x30] sm:$0xff]
        %v2795 = vld [vmem:[#allocation2 + $0x38] sm:$0xff]
        %v2796 = vld [vmem:[#allocation2 + $0x40] sm:$0xff]
        %v2797 = vld [vmem:[#allocation2 + $0x48] sm:$0xff]
        %v2798 = vld [vmem:[#allocation2 + $0x50] sm:$0xff]
        %v2799 = vld [vmem:[#allocation2 + $0x58] sm:$0xff]
        %v2800 = vld [vmem:[#allocation2 + $0x60] sm:$0xff]
        %v2801 = vld [vmem:[#allocation2 + $0x68] sm:$0xff]
        %v2802 = vld [vmem:[#allocation2 + $0x70] sm:$0xff]
        %v2803 = vld [vmem:[#allocation2 + $0x78] sm:$0xff]
        %v2804 = vld [vmem:[#allocation2 + $0x80] sm:$0xff]
        %v2805 = vld [vmem:[#allocation2 + $0x88] sm:$0xff]
        %v2806 = vld [vmem:[#allocation2 + $0x90] sm:$0xff]
        %v2807 = vld [vmem:[#allocation2 + $0x98] sm:$0xff]
        %v2808 = vld [vmem:[#allocation2 + $0xa0] sm:$0xff]
        %v2809 = vld [vmem:[#allocation2 + $0xa8] sm:$0xff]
        %v2810 = vld [vmem:[#allocation2 + $0xb0] sm:$0xff]
        %v2811 = vld [vmem:[#allocation2 + $0xb8] sm:$0xff]
        %v2812 = vld [vmem:[#allocation2 + $0xc0] sm:$0xff]
        %v2813 = vld [vmem:[#allocation2 + $0xc8] sm:$0xff]
        %v2814 = vld [vmem:[#allocation2 + $0xd0] sm:$0xff]
        %v2815 = vld [vmem:[#allocation2 + $0xd8] sm:$0xff]
        %v2816 = vld [vmem:[#allocation2 + $0xe0] sm:$0xff]
        %v2817 = vld [vmem:[#allocation2 + $0xe8] sm:$0xff]
        %v2818 = vld [vmem:[#allocation2 + $0xf0] sm:$0xff]
        %v2819 = vld [vmem:[#allocation2 + $0xf8] sm:$0xff]
        %v2820 = vadd.f32 %v2788, %v2630
        %v2821 = vadd.f32 %v2789, %v2635
        %v2822 = vadd.f32 %v2790, %v2640
        %v2823 = vadd.f32 %v2791, %v2645
        %v2824 = vadd.f32 %v2792, %v2650
        %v2825 = vadd.f32 %v2793, %v2655
        %v2826 = vadd.f32 %v2794, %v2660
        %v2827 = vadd.f32 %v2795, %v2665
        %v2828 = vadd.f32 %v2796, %v2670
        %v2829 = vadd.f32 %v2797, %v2675
        %v2830 = vadd.f32 %v2798, %v2680
        %v2831 = vadd.f32 %v2799, %v2685
        %v2832 = vadd.f32 %v2800, %v2690
        %v2833 = vadd.f32 %v2801, %v2695
        %v2834 = vadd.f32 %v2802, %v2700
        %v2835 = vadd.f32 %v2803, %v2705
        %v2836 = vadd.f32 %v2804, %v2710
        %v2837 = vadd.f32 %v2805, %v2715
        %v2838 = vadd.f32 %v2806, %v2720
        %v2839 = vadd.f32 %v2807, %v2725
        %v2840 = vadd.f32 %v2808, %v2730
        %v2841 = vadd.f32 %v2809, %v2735
        %v2842 = vadd.f32 %v2810, %v2740
        %v2843 = vadd.f32 %v2811, %v2745
        %v2844 = vadd.f32 %v2812, %v2750
        %v2845 = vadd.f32 %v2813, %v2755
        %v2846 = vadd.f32 %v2814, %v2760
        %v2847 = vadd.f32 %v2815, %v2765
        %v2848 = vadd.f32 %v2816, %v2770
        %v2849 = vadd.f32 %v2817, %v2775
        %v2850 = vadd.f32 %v2818, %v2780
        %v2851 = vadd.f32 %v2819, %v2785
        %2852 = vst [vmem:[#allocation2] sm:$0xff] %v2820
        %2853 = vst [vmem:[#allocation2 + $0x8] sm:$0xff] %v2821
        %2854 = vst [vmem:[#allocation2 + $0x10] sm:$0xff] %v2822
        %2855 = vst [vmem:[#allocation2 + $0x18] sm:$0xff] %v2823
        %2856 = vst [vmem:[#allocation2 + $0x20] sm:$0xff] %v2824
        %2857 = vst [vmem:[#allocation2 + $0x28] sm:$0xff] %v2825
        %2858 = vst [vmem:[#allocation2 + $0x30] sm:$0xff] %v2826
        %2859 = vst [vmem:[#allocation2 + $0x38] sm:$0xff] %v2827
        %2860 = vst [vmem:[#allocation2 + $0x40] sm:$0xff] %v2828
        %2861 = vst [vmem:[#allocation2 + $0x48] sm:$0xff] %v2829
        %2862 = vst [vmem:[#allocation2 + $0x50] sm:$0xff] %v2830
        %2863 = vst [vmem:[#allocation2 + $0x58] sm:$0xff] %v2831
        %2864 = vst [vmem:[#allocation2 + $0x60] sm:$0xff] %v2832
        %2865 = vst [vmem:[#allocation2 + $0x68] sm:$0xff] %v2833
        %2866 = vst [vmem:[#allocation2 + $0x70] sm:$0xff] %v2834
        %2867 = vst [vmem:[#allocation2 + $0x78] sm:$0xff] %v2835
        %2868 = vst [vmem:[#allocation2 + $0x80] sm:$0xff] %v2836
        %2869 = vst [vmem:[#allocation2 + $0x88] sm:$0xff] %v2837
        %2870 = vst [vmem:[#allocation2 + $0x90] sm:$0xff] %v2838
        %2871 = vst [vmem:[#allocation2 + $0x98] sm:$0xff] %v2839
        %2872 = vst [vmem:[#allocation2 + $0xa0] sm:$0xff] %v2840
        %2873 = vst [vmem:[#allocation2 + $0xa8] sm:$0xff] %v2841
        %2874 = vst [vmem:[#allocation2 + $0xb0] sm:$0xff] %v2842
        %2875 = vst [vmem:[#allocation2 + $0xb8] sm:$0xff] %v2843
        %2876 = vst [vmem:[#allocation2 + $0xc0] sm:$0xff] %v2844
        %2877 = vst [vmem:[#allocation2 + $0xc8] sm:$0xff] %v2845
        %2878 = vst [vmem:[#allocation2 + $0xd0] sm:$0xff] %v2846
        %2879 = vst [vmem:[#allocation2 + $0xd8] sm:$0xff] %v2847
        %2880 = vst [vmem:[#allocation2 + $0xe0] sm:$0xff] %v2848
        %2881 = vst [vmem:[#allocation2 + $0xe8] sm:$0xff] %v2849
        %2882 = vst [vmem:[#allocation2 + $0xf0] sm:$0xff] %v2850
        %2883 = vst [vmem:[#allocation2 + $0xf8] sm:$0xff] %v2851
        %v2887 = vrot.slane %v289, 1
        %v2888 = vrot.slane %v290, 1
        %v2889 = vsel %vm613, %v2887, %v2888
        %v2890 = vrot.slane %v291, 1
        %v2891 = vsel %vm613, %v2888, %v2890
        %s2894 = scalar_lea.vmem %s1, 896
        %v2895 = vld [vmem:[%s2894] sm:$0xff]
        %v2896 = vld [vmem:[%s2894 + $0x8] sm:$0xff]
        %v2897 = vld [vmem:[%s2894 + $0x10] sm:$0xff]
        %v2898 = vld [vmem:[%s2894 + $0x18] sm:$0xff]
        %v2899 = vld [vmem:[%s2894 + $0x20] sm:$0xff]
        %v2900 = vld [vmem:[%s2894 + $0x28] sm:$0xff]
        %v2901 = vld [vmem:[%s2894 + $0x30] sm:$0xff]
        %v2902 = vld [vmem:[%s2894 + $0x38] sm:$0xff]
        %v2903 = vld [vmem:[%s2894 + $0x40] sm:$0xff]
        %v2904 = vld [vmem:[%s2894 + $0x48] sm:$0xff]
        %v2905 = vld [vmem:[%s2894 + $0x50] sm:$0xff]
        %v2906 = vld [vmem:[%s2894 + $0x58] sm:$0xff]
        %v2907 = vld [vmem:[%s2894 + $0x60] sm:$0xff]
        %v2908 = vld [vmem:[%s2894 + $0x68] sm:$0xff]
        %v2909 = vld [vmem:[%s2894 + $0x70] sm:$0xff]
        %v2910 = vld [vmem:[%s2894 + $0x78] sm:$0xff]
        %2911 = vmatprep.subr.mxu0 0.0
        %2912 = vmatpush1.msra.mxu0 %v2895
        %2913 = vmatprep.subr.mxu0 0.0
        %2914 = vmatpush1.msra.mxu0 %v2896
        %2915 = vmatprep.subr.mxu0 0.0
        %2916 = vmatpush1.msra.mxu0 %v2897
        %2917 = vmatprep.subr.mxu0 0.0
        %2918 = vmatpush1.msra.mxu0 %v2898
        %2919 = vmatprep.subr.mxu0 0.0
        %2920 = vmatpush1.msra.mxu0 %v2899
        %2921 = vmatprep.subr.mxu0 0.0
        %2922 = vmatpush1.msra.mxu0 %v2900
        %2923 = vmatprep.subr.mxu0 0.0
        %2924 = vmatpush1.msra.mxu0 %v2901
        %2925 = vmatprep.subr.mxu0 0.0
        %2926 = vmatpush1.msra.mxu0 %v2902
        %2927 = vmatprep.subr.mxu0 0.0
        %2928 = vmatpush1.msra.mxu0 %v2903
        %2929 = vmatprep.subr.mxu0 0.0
        %2930 = vmatpush1.msra.mxu0 %v2904
        %2931 = vmatprep.subr.mxu0 0.0
        %2932 = vmatpush1.msra.mxu0 %v2905
        %2933 = vmatprep.subr.mxu0 0.0
        %2934 = vmatpush1.msra.mxu0 %v2906
        %2935 = vmatprep.subr.mxu0 0.0
        %2936 = vmatpush1.msra.mxu0 %v2907
        %2937 = vmatprep.subr.mxu0 0.0
        %2938 = vmatpush1.msra.mxu0 %v2908
        %2939 = vmatprep.subr.mxu0 0.0
        %2940 = vmatpush1.msra.mxu0 %v2909
        %2941 = vmatprep.subr.mxu0 0.0
        %2942 = vmatpush1.msra.mxu0 %v2910
        %2943 = vmatprep.subr.mxu0 0.0
        %2944 = vmatpush1.msra.mxu0 0.0
        %2945 = vmatprep.subr.mxu0 0.0
        %2946 = vmatpush1.msra.mxu0 0.0
        %2947 = vmatprep.subr.mxu0 0.0
        %2948 = vmatpush1.msra.mxu0 0.0
        %2949 = vmatprep.subr.mxu0 0.0
        %2950 = vmatpush1.msra.mxu0 0.0
        %2951 = vmatprep.subr.mxu0 0.0
        %2952 = vmatpush1.msra.mxu0 0.0
        %2953 = vmatprep.subr.mxu0 0.0
        %2954 = vmatpush1.msra.mxu0 0.0
        %2955 = vmatprep.subr.mxu0 0.0
        %2956 = vmatpush1.msra.mxu0 0.0
        %2957 = vmatprep.subr.mxu0 0.0
        %2958 = vmatpush1.msra.mxu0 0.0
        %2959 = vmatprep.subr.mxu0 0.0
        %2960 = vmatpush1.msra.mxu0 0.0
        %2961 = vmatprep.subr.mxu0 0.0
        %2962 = vmatpush1.msra.mxu0 0.0
        %2963 = vmatprep.subr.mxu0 0.0
        %2964 = vmatpush1.msra.mxu0 0.0
        %2965 = vmatprep.subr.mxu0 0.0
        %2966 = vmatpush1.msra.mxu0 0.0
        %2967 = vmatprep.subr.mxu0 0.0
        %2968 = vmatpush1.msra.mxu0 0.0
        %2969 = vmatprep.subr.mxu0 0.0
        %2970 = vmatpush1.msra.mxu0 0.0
        %2971 = vmatprep.subr.mxu0 0.0
        %2972 = vmatpush1.msra.mxu0 0.0
        %2973 = vmatprep.subr.mxu0 0.0
        %2974 = vmatpush1.msra.mxu0 0.0
        %2975 = vmatprep.mubr.f32.mxu0 0.0
        %2976 = vmatmul.mubr.f32.gmra.mrb[0].mxu0 %v626
        %v2977 = vpop.f32.mrb[0].mxu0
        %v2978 = vadd.f32 0.0, %v2977
        %v2979 = vpop.f32.mrb[0].mxu0
        %2980 = vmatprep.mubr.f32.mxu0 0.0
        %2981 = vmatmul.mubr.f32.gmra.mrb[0].mxu0 %v628
        %v2982 = vpop.f32.mrb[0].mxu0
        %v2983 = vadd.f32 0.0, %v2982
        %v2984 = vpop.f32.mrb[0].mxu0
        %2985 = vmatprep.mubr.f32.mxu0 0.0
        %2986 = vmatmul.mubr.f32.gmra.mrb[0].mxu0 %v631
        %v2987 = vpop.f32.mrb[0].mxu0
        %v2988 = vadd.f32 0.0, %v2987
        %v2989 = vpop.f32.mrb[0].mxu0
        %2990 = vmatprep.mubr.f32.mxu0 0.0
        %2991 = vmatmul.mubr.f32.gmra.mrb[0].mxu0 %v633
        %v2992 = vpop.f32.mrb[0].mxu0
        %v2993 = vadd.f32 0.0, %v2992
        %v2994 = vpop.f32.mrb[0].mxu0
        %2995 = vmatprep.mubr.f32.mxu0 0.0
        %2996 = vmatmul.mubr.f32.gmra.mrb[0].mxu0 %v636
        %v2997 = vpop.f32.mrb[0].mxu0
        %v2998 = vadd.f32 0.0, %v2997
        %v2999 = vpop.f32.mrb[0].mxu0
        %3000 = vmatprep.mubr.f32.mxu0 0.0
        %3001 = vmatmul.mubr.f32.gmra.mrb[0].mxu0 %v638
        %v3002 = vpop.f32.mrb[0].mxu0
        %v3003 = vadd.f32 0.0, %v3002
        %v3004 = vpop.f32.mrb[0].mxu0
        %3005 = vmatprep.mubr.f32.mxu0 0.0
        %3006 = vmatmul.mubr.f32.gmra.mrb[0].mxu0 %v641
        %v3007 = vpop.f32.mrb[0].mxu0
        %v3008 = vadd.f32 0.0, %v3007
        %v3009 = vpop.f32.mrb[0].mxu0
        %3010 = vmatprep.mubr.f32.mxu0 0.0
        %3011 = vmatmul.mubr.f32.gmra.mrb[0].mxu0 %v643
        %v3012 = vpop.f32.mrb[0].mxu0
        %v3013 = vadd.f32 0.0, %v3012
        %v3014 = vpop.f32.mrb[0].mxu0
        %3015 = vmatprep.mubr.f32.mxu0 0.0
        %3016 = vmatmul.mubr.f32.gmra.mrb[0].mxu0 %v646
        %v3017 = vpop.f32.mrb[0].mxu0
        %v3018 = vadd.f32 0.0, %v3017
        %v3019 = vpop.f32.mrb[0].mxu0
        %3020 = vmatprep.mubr.f32.mxu0 0.0
        %3021 = vmatmul.mubr.f32.gmra.mrb[0].mxu0 %v648
        %v3022 = vpop.f32.mrb[0].mxu0
        %v3023 = vadd.f32 0.0, %v3022
        %v3024 = vpop.f32.mrb[0].mxu0
        %3025 = vmatprep.mubr.f32.mxu0 0.0
        %3026 = vmatmul.mubr.f32.gmra.mrb[0].mxu0 %v651
        %v3027 = vpop.f32.mrb[0].mxu0
        %v3028 = vadd.f32 0.0, %v3027
        %v3029 = vpop.f32.mrb[0].mxu0
        %3030 = vmatprep.mubr.f32.mxu0 0.0
        %3031 = vmatmul.mubr.f32.gmra.mrb[0].mxu0 %v653
        %v3032 = vpop.f32.mrb[0].mxu0
        %v3033 = vadd.f32 0.0, %v3032
        %v3034 = vpop.f32.mrb[0].mxu0
        %3035 = vmatprep.mubr.f32.mxu0 0.0
        %3036 = vmatmul.mubr.f32.gmra.mrb[0].mxu0 %v656
        %v3037 = vpop.f32.mrb[0].mxu0
        %v3038 = vadd.f32 0.0, %v3037
        %v3039 = vpop.f32.mrb[0].mxu0
        %3040 = vmatprep.mubr.f32.mxu0 0.0
        %3041 = vmatmul.mubr.f32.gmra.mrb[0].mxu0 %v658
        %v3042 = vpop.f32.mrb[0].mxu0
        %v3043 = vadd.f32 0.0, %v3042
        %v3044 = vpop.f32.mrb[0].mxu0
        %3045 = vmatprep.mubr.f32.mxu0 0.0
        %3046 = vmatmul.mubr.f32.gmra.mrb[0].mxu0 %v661
        %v3047 = vpop.f32.mrb[0].mxu0
        %v3048 = vadd.f32 0.0, %v3047
        %v3049 = vpop.f32.mrb[0].mxu0
        %3050 = vmatprep.mubr.f32.mxu0 0.0
        %3051 = vmatmul.mubr.f32.gmra.mrb[0].mxu0 %v663
        %v3052 = vpop.f32.mrb[0].mxu0
        %v3053 = vadd.f32 0.0, %v3052
        %v3054 = vpop.f32.mrb[0].mxu0
        %3055 = vmatprep.mubr.f32.mxu0 0.0
        %3056 = vmatmul.mubr.f32.gmra.mrb[0].mxu0 %v666
        %v3057 = vpop.f32.mrb[0].mxu0
        %v3058 = vadd.f32 0.0, %v3057
        %v3059 = vpop.f32.mrb[0].mxu0
        %3060 = vmatprep.mubr.f32.mxu0 0.0
        %3061 = vmatmul.mubr.f32.gmra.mrb[0].mxu0 %v668
        %v3062 = vpop.f32.mrb[0].mxu0
        %v3063 = vadd.f32 0.0, %v3062
        %v3064 = vpop.f32.mrb[0].mxu0
        %3065 = vmatprep.mubr.f32.mxu0 0.0
        %3066 = vmatmul.mubr.f32.gmra.mrb[0].mxu0 %v671
        %v3067 = vpop.f32.mrb[0].mxu0
        %v3068 = vadd.f32 0.0, %v3067
        %v3069 = vpop.f32.mrb[0].mxu0
        %3070 = vmatprep.mubr.f32.mxu0 0.0
        %3071 = vmatmul.mubr.f32.gmra.mrb[0].mxu0 %v673
        %v3072 = vpop.f32.mrb[0].mxu0
        %v3073 = vadd.f32 0.0, %v3072
        %v3074 = vpop.f32.mrb[0].mxu0
        %3075 = vmatprep.mubr.f32.mxu0 0.0
        %3076 = vmatmul.mubr.f32.gmra.mrb[0].mxu0 %v676
        %v3077 = vpop.f32.mrb[0].mxu0
        %v3078 = vadd.f32 0.0, %v3077
        %v3079 = vpop.f32.mrb[0].mxu0
        %3080 = vmatprep.mubr.f32.mxu0 0.0
        %3081 = vmatmul.mubr.f32.gmra.mrb[0].mxu0 %v678
        %v3082 = vpop.f32.mrb[0].mxu0
        %v3083 = vadd.f32 0.0, %v3082
        %v3084 = vpop.f32.mrb[0].mxu0
        %3085 = vmatprep.mubr.f32.mxu0 0.0
        %3086 = vmatmul.mubr.f32.gmra.mrb[0].mxu0 %v681
        %v3087 = vpop.f32.mrb[0].mxu0
        %v3088 = vadd.f32 0.0, %v3087
        %v3089 = vpop.f32.mrb[0].mxu0
        %3090 = vmatprep.mubr.f32.mxu0 0.0
        %3091 = vmatmul.mubr.f32.gmra.mrb[0].mxu0 %v683
        %v3092 = vpop.f32.mrb[0].mxu0
        %v3093 = vadd.f32 0.0, %v3092
        %v3094 = vpop.f32.mrb[0].mxu0
        %3095 = vmatprep.mubr.f32.mxu0 0.0
        %3096 = vmatmul.mubr.f32.gmra.mrb[0].mxu0 %v686
        %v3097 = vpop.f32.mrb[0].mxu0
        %v3098 = vadd.f32 0.0, %v3097
        %v3099 = vpop.f32.mrb[0].mxu0
        %3100 = vmatprep.mubr.f32.mxu0 0.0
        %3101 = vmatmul.mubr.f32.gmra.mrb[0].mxu0 %v688
        %v3102 = vpop.f32.mrb[0].mxu0
        %v3103 = vadd.f32 0.0, %v3102
        %v3104 = vpop.f32.mrb[0].mxu0
        %3105 = vmatprep.mubr.f32.mxu0 0.0
        %3106 = vmatmul.mubr.f32.gmra.mrb[0].mxu0 %v691
        %v3107 = vpop.f32.mrb[0].mxu0
        %v3108 = vadd.f32 0.0, %v3107
        %v3109 = vpop.f32.mrb[0].mxu0
        %3110 = vmatprep.mubr.f32.mxu0 0.0
        %3111 = vmatmul.mubr.f32.gmra.mrb[0].mxu0 %v693
        %v3112 = vpop.f32.mrb[0].mxu0
        %v3113 = vadd.f32 0.0, %v3112
        %v3114 = vpop.f32.mrb[0].mxu0
        %3115 = vmatprep.mubr.f32.mxu0 0.0
        %3116 = vmatmul.mubr.f32.gmra.mrb[0].mxu0 %v1858
        %v3117 = vpop.f32.mrb[0].mxu0
        %v3118 = vadd.f32 0.0, %v3117
        %v3119 = vpop.f32.mrb[0].mxu0
        %3120 = vmatprep.mubr.f32.mxu0 0.0
        %3121 = vmatmul.mubr.f32.gmra.mrb[0].mxu0 %v1860
        %v3122 = vpop.f32.mrb[0].mxu0
        %v3123 = vadd.f32 0.0, %v3122
        %v3124 = vpop.f32.mrb[0].mxu0
        %3125 = vmatprep.mubr.f32.mxu0 0.0
        %3126 = vmatmul.mubr.f32.gmra.mrb[0].mxu0 %v2889
        %v3127 = vpop.f32.mrb[0].mxu0
        %v3128 = vadd.f32 0.0, %v3127
        %v3129 = vpop.f32.mrb[0].mxu0
        %3130 = vmatprep.mubr.f32.mxu0 0.0
        %3131 = vmatmul.mubr.f32.gmra.mrb[0].mxu0 %v2891
        %v3132 = vpop.f32.mrb[0].mxu0
        %v3133 = vadd.f32 0.0, %v3132
        %v3134 = vpop.f32.mrb[0].mxu0
        %3135 = vdwg.mxu0
        %v3136 = vld [vmem:[#allocation2] sm:$0xff]
        %v3137 = vld [vmem:[#allocation2 + $0x8] sm:$0xff]
        %v3138 = vld [vmem:[#allocation2 + $0x10] sm:$0xff]
        %v3139 = vld [vmem:[#allocation2 + $0x18] sm:$0xff]
        %v3140 = vld [vmem:[#allocation2 + $0x20] sm:$0xff]
        %v3141 = vld [vmem:[#allocation2 + $0x28] sm:$0xff]
        %v3142 = vld [vmem:[#allocation2 + $0x30] sm:$0xff]
        %v3143 = vld [vmem:[#allocation2 + $0x38] sm:$0xff]
        %v3144 = vld [vmem:[#allocation2 + $0x40] sm:$0xff]
        %v3145 = vld [vmem:[#allocation2 + $0x48] sm:$0xff]
        %v3146 = vld [vmem:[#allocation2 + $0x50] sm:$0xff]
        %v3147 = vld [vmem:[#allocation2 + $0x58] sm:$0xff]
        %v3148 = vld [vmem:[#allocation2 + $0x60] sm:$0xff]
        %v3149 = vld [vmem:[#allocation2 + $0x68] sm:$0xff]
        %v3150 = vld [vmem:[#allocation2 + $0x70] sm:$0xff]
        %v3151 = vld [vmem:[#allocation2 + $0x78] sm:$0xff]
        %v3152 = vld [vmem:[#allocation2 + $0x80] sm:$0xff]
        %v3153 = vld [vmem:[#allocation2 + $0x88] sm:$0xff]
        %v3154 = vld [vmem:[#allocation2 + $0x90] sm:$0xff]
        %v3155 = vld [vmem:[#allocation2 + $0x98] sm:$0xff]
        %v3156 = vld [vmem:[#allocation2 + $0xa0] sm:$0xff]
        %v3157 = vld [vmem:[#allocation2 + $0xa8] sm:$0xff]
        %v3158 = vld [vmem:[#allocation2 + $0xb0] sm:$0xff]
        %v3159 = vld [vmem:[#allocation2 + $0xb8] sm:$0xff]
        %v3160 = vld [vmem:[#allocation2 + $0xc0] sm:$0xff]
        %v3161 = vld [vmem:[#allocation2 + $0xc8] sm:$0xff]
        %v3162 = vld [vmem:[#allocation2 + $0xd0] sm:$0xff]
        %v3163 = vld [vmem:[#allocation2 + $0xd8] sm:$0xff]
        %v3164 = vld [vmem:[#allocation2 + $0xe0] sm:$0xff]
        %v3165 = vld [vmem:[#allocation2 + $0xe8] sm:$0xff]
        %v3166 = vld [vmem:[#allocation2 + $0xf0] sm:$0xff]
        %v3167 = vld [vmem:[#allocation2 + $0xf8] sm:$0xff]
        %v3168 = vadd.f32 %v3136, %v2978
        %v3169 = vadd.f32 %v3137, %v2983
        %v3170 = vadd.f32 %v3138, %v2988
        %v3171 = vadd.f32 %v3139, %v2993
        %v3172 = vadd.f32 %v3140, %v2998
        %v3173 = vadd.f32 %v3141, %v3003
        %v3174 = vadd.f32 %v3142, %v3008
        %v3175 = vadd.f32 %v3143, %v3013
        %v3176 = vadd.f32 %v3144, %v3018
        %v3177 = vadd.f32 %v3145, %v3023
        %v3178 = vadd.f32 %v3146, %v3028
        %v3179 = vadd.f32 %v3147, %v3033
        %v3180 = vadd.f32 %v3148, %v3038
        %v3181 = vadd.f32 %v3149, %v3043
        %v3182 = vadd.f32 %v3150, %v3048
        %v3183 = vadd.f32 %v3151, %v3053
        %v3184 = vadd.f32 %v3152, %v3058
        %v3185 = vadd.f32 %v3153, %v3063
        %v3186 = vadd.f32 %v3154, %v3068
        %v3187 = vadd.f32 %v3155, %v3073
        %v3188 = vadd.f32 %v3156, %v3078
        %v3189 = vadd.f32 %v3157, %v3083
        %v3190 = vadd.f32 %v3158, %v3088
        %v3191 = vadd.f32 %v3159, %v3093
        %v3192 = vadd.f32 %v3160, %v3098
        %v3193 = vadd.f32 %v3161, %v3103
        %v3194 = vadd.f32 %v3162, %v3108
        %v3195 = vadd.f32 %v3163, %v3113
        %v3196 = vadd.f32 %v3164, %v3118
        %v3197 = vadd.f32 %v3165, %v3123
        %v3198 = vadd.f32 %v3166, %v3128
        %v3199 = vadd.f32 %v3167, %v3133
        %3200 = vst [vmem:[#allocation2] sm:$0xff] %v3168
        %3201 = vst [vmem:[#allocation2 + $0x8] sm:$0xff] %v3169
        %3202 = vst [vmem:[#allocation2 + $0x10] sm:$0xff] %v3170
        %3203 = vst [vmem:[#allocation2 + $0x18] sm:$0xff] %v3171
        %3204 = vst [vmem:[#allocation2 + $0x20] sm:$0xff] %v3172
        %3205 = vst [vmem:[#allocation2 + $0x28] sm:$0xff] %v3173
        %3206 = vst [vmem:[#allocation2 + $0x30] sm:$0xff] %v3174
        %3207 = vst [vmem:[#allocation2 + $0x38] sm:$0xff] %v3175
        %3208 = vst [vmem:[#allocation2 + $0x40] sm:$0xff] %v3176
        %3209 = vst [vmem:[#allocation2 + $0x48] sm:$0xff] %v3177
        %3210 = vst [vmem:[#allocation2 + $0x50] sm:$0xff] %v3178
        %3211 = vst [vmem:[#allocation2 + $0x58] sm:$0xff] %v3179
        %3212 = vst [vmem:[#allocation2 + $0x60] sm:$0xff] %v3180
        %3213 = vst [vmem:[#allocation2 + $0x68] sm:$0xff] %v3181
        %3214 = vst [vmem:[#allocation2 + $0x70] sm:$0xff] %v3182
        %3215 = vst [vmem:[#allocation2 + $0x78] sm:$0xff] %v3183
        %3216 = vst [vmem:[#allocation2 + $0x80] sm:$0xff] %v3184
        %3217 = vst [vmem:[#allocation2 + $0x88] sm:$0xff] %v3185
        %3218 = vst [vmem:[#allocation2 + $0x90] sm:$0xff] %v3186
        %3219 = vst [vmem:[#allocation2 + $0x98] sm:$0xff] %v3187
        %3220 = vst [vmem:[#allocation2 + $0xa0] sm:$0xff] %v3188
        %3221 = vst [vmem:[#allocation2 + $0xa8] sm:$0xff] %v3189
        %3222 = vst [vmem:[#allocation2 + $0xb0] sm:$0xff] %v3190
        %3223 = vst [vmem:[#allocation2 + $0xb8] sm:$0xff] %v3191
        %3224 = vst [vmem:[#allocation2 + $0xc0] sm:$0xff] %v3192
        %3225 = vst [vmem:[#allocation2 + $0xc8] sm:$0xff] %v3193
        %3226 = vst [vmem:[#allocation2 + $0xd0] sm:$0xff] %v3194
        %3227 = vst [vmem:[#allocation2 + $0xd8] sm:$0xff] %v3195
        %3228 = vst [vmem:[#allocation2 + $0xe0] sm:$0xff] %v3196
        %3229 = vst [vmem:[#allocation2 + $0xe8] sm:$0xff] %v3197
        %3230 = vst [vmem:[#allocation2 + $0xf0] sm:$0xff] %v3198
        %3231 = vst [vmem:[#allocation2 + $0xf8] sm:$0xff] %v3199
        %v3232 = vrot.slane %v289, 2
        %v3233 = vrot.slane %v290, 2
        %v3234 = vsel %vm1064, %v3232, %v3233
        %v3235 = vrot.slane %v291, 2
        %v3236 = vsel %vm1064, %v3233, %v3235
        %s3239 = scalar_lea.vmem %s1, 1024
        %v3240 = vld [vmem:[%s3239] sm:$0xff]
        %v3241 = vld [vmem:[%s3239 + $0x8] sm:$0xff]
        %v3242 = vld [vmem:[%s3239 + $0x10] sm:$0xff]
        %v3243 = vld [vmem:[%s3239 + $0x18] sm:$0xff]
        %v3244 = vld [vmem:[%s3239 + $0x20] sm:$0xff]
        %v3245 = vld [vmem:[%s3239 + $0x28] sm:$0xff]
        %v3246 = vld [vmem:[%s3239 + $0x30] sm:$0xff]
        %v3247 = vld [vmem:[%s3239 + $0x38] sm:$0xff]
        %v3248 = vld [vmem:[%s3239 + $0x40] sm:$0xff]
        %v3249 = vld [vmem:[%s3239 + $0x48] sm:$0xff]
        %v3250 = vld [vmem:[%s3239 + $0x50] sm:$0xff]
        %v3251 = vld [vmem:[%s3239 + $0x58] sm:$0xff]
        %v3252 = vld [vmem:[%s3239 + $0x60] sm:$0xff]
        %v3253 = vld [vmem:[%s3239 + $0x68] sm:$0xff]
        %v3254 = vld [vmem:[%s3239 + $0x70] sm:$0xff]
        %v3255 = vld [vmem:[%s3239 + $0x78] sm:$0xff]
        %3256 = vmatprep.subr.mxu0 0.0
        %3257 = vmatpush1.msra.mxu0 %v3240
        %3258 = vmatprep.subr.mxu0 0.0
        %3259 = vmatpush1.msra.mxu0 %v3241
        %3260 = vmatprep.subr.mxu0 0.0
        %3261 = vmatpush1.msra.mxu0 %v3242
        %3262 = vmatprep.subr.mxu0 0.0
        %3263 = vmatpush1.msra.mxu0 %v3243
        %3264 = vmatprep.subr.mxu0 0.0
        %3265 = vmatpush1.msra.mxu0 %v3244
        %3266 = vmatprep.subr.mxu0 0.0
        %3267 = vmatpush1.msra.mxu0 %v3245
        %3268 = vmatprep.subr.mxu0 0.0
        %3269 = vmatpush1.msra.mxu0 %v3246
        %3270 = vmatprep.subr.mxu0 0.0
        %3271 = vmatpush1.msra.mxu0 %v3247
        %3272 = vmatprep.subr.mxu0 0.0
        %3273 = vmatpush1.msra.mxu0 %v3248
        %3274 = vmatprep.subr.mxu0 0.0
        %3275 = vmatpush1.msra.mxu0 %v3249
        %3276 = vmatprep.subr.mxu0 0.0
        %3277 = vmatpush1.msra.mxu0 %v3250
        %3278 = vmatprep.subr.mxu0 0.0
        %3279 = vmatpush1.msra.mxu0 %v3251
        %3280 = vmatprep.subr.mxu0 0.0
        %3281 = vmatpush1.msra.mxu0 %v3252
        %3282 = vmatprep.subr.mxu0 0.0
        %3283 = vmatpush1.msra.mxu0 %v3253
        %3284 = vmatprep.subr.mxu0 0.0
        %3285 = vmatpush1.msra.mxu0 %v3254
        %3286 = vmatprep.subr.mxu0 0.0
        %3287 = vmatpush1.msra.mxu0 %v3255
        %3288 = vmatprep.subr.mxu0 0.0
        %3289 = vmatpush1.msra.mxu0 0.0
        %3290 = vmatprep.subr.mxu0 0.0
        %3291 = vmatpush1.msra.mxu0 0.0
        %3292 = vmatprep.subr.mxu0 0.0
        %3293 = vmatpush1.msra.mxu0 0.0
        %3294 = vmatprep.subr.mxu0 0.0
        %3295 = vmatpush1.msra.mxu0 0.0
        %3296 = vmatprep.subr.mxu0 0.0
        %3297 = vmatpush1.msra.mxu0 0.0
        %3298 = vmatprep.subr.mxu0 0.0
        %3299 = vmatpush1.msra.mxu0 0.0
        %3300 = vmatprep.subr.mxu0 0.0
        %3301 = vmatpush1.msra.mxu0 0.0
        %3302 = vmatprep.subr.mxu0 0.0
        %3303 = vmatpush1.msra.mxu0 0.0
        %3304 = vmatprep.subr.mxu0 0.0
        %3305 = vmatpush1.msra.mxu0 0.0
        %3306 = vmatprep.subr.mxu0 0.0
        %3307 = vmatpush1.msra.mxu0 0.0
        %3308 = vmatprep.subr.mxu0 0.0
        %3309 = vmatpush1.msra.mxu0 0.0
        %3310 = vmatprep.subr.mxu0 0.0
        %3311 = vmatpush1.msra.mxu0 0.0
        %3312 = vmatprep.subr.mxu0 0.0
        %3313 = vmatpush1.msra.mxu0 0.0
        %3314 = vmatprep.subr.mxu0 0.0
        %3315 = vmatpush1.msra.mxu0 0.0
        %3316 = vmatprep.subr.mxu0 0.0
        %3317 = vmatpush1.msra.mxu0 0.0
        %3318 = vmatprep.subr.mxu0 0.0
        %3319 = vmatpush1.msra.mxu0 0.0
        %3320 = vmatprep.mubr.f32.mxu0 0.0
        %3321 = vmatmul.mubr.f32.gmra.mrb[0].mxu0 %v1077
        %v3322 = vpop.f32.mrb[0].mxu0
        %v3323 = vadd.f32 0.0, %v3322
        %v3324 = vpop.f32.mrb[0].mxu0
        %3325 = vmatprep.mubr.f32.mxu0 0.0
        %3326 = vmatmul.mubr.f32.gmra.mrb[0].mxu0 %v1079
        %v3327 = vpop.f32.mrb[0].mxu0
        %v3328 = vadd.f32 0.0, %v3327
        %v3329 = vpop.f32.mrb[0].mxu0
        %3330 = vmatprep.mubr.f32.mxu0 0.0
        %3331 = vmatmul.mubr.f32.gmra.mrb[0].mxu0 %v1082
        %v3332 = vpop.f32.mrb[0].mxu0
        %v3333 = vadd.f32 0.0, %v3332
        %v3334 = vpop.f32.mrb[0].mxu0
        %3335 = vmatprep.mubr.f32.mxu0 0.0
        %3336 = vmatmul.mubr.f32.gmra.mrb[0].mxu0 %v1084
        %v3337 = vpop.f32.mrb[0].mxu0
        %v3338 = vadd.f32 0.0, %v3337
        %v3339 = vpop.f32.mrb[0].mxu0
        %3340 = vmatprep.mubr.f32.mxu0 0.0
        %3341 = vmatmul.mubr.f32.gmra.mrb[0].mxu0 %v1087
        %v3342 = vpop.f32.mrb[0].mxu0
        %v3343 = vadd.f32 0.0, %v3342
        %v3344 = vpop.f32.mrb[0].mxu0
        %3345 = vmatprep.mubr.f32.mxu0 0.0
        %3346 = vmatmul.mubr.f32.gmra.mrb[0].mxu0 %v1089
        %v3347 = vpop.f32.mrb[0].mxu0
        %v3348 = vadd.f32 0.0, %v3347
        %v3349 = vpop.f32.mrb[0].mxu0
        %3350 = vmatprep.mubr.f32.mxu0 0.0
        %3351 = vmatmul.mubr.f32.gmra.mrb[0].mxu0 %v1092
        %v3352 = vpop.f32.mrb[0].mxu0
        %v3353 = vadd.f32 0.0, %v3352
        %v3354 = vpop.f32.mrb[0].mxu0
        %3355 = vmatprep.mubr.f32.mxu0 0.0
        %3356 = vmatmul.mubr.f32.gmra.mrb[0].mxu0 %v1094
        %v3357 = vpop.f32.mrb[0].mxu0
        %v3358 = vadd.f32 0.0, %v3357
        %v3359 = vpop.f32.mrb[0].mxu0
        %3360 = vmatprep.mubr.f32.mxu0 0.0
        %3361 = vmatmul.mubr.f32.gmra.mrb[0].mxu0 %v1097
        %v3362 = vpop.f32.mrb[0].mxu0
        %v3363 = vadd.f32 0.0, %v3362
        %v3364 = vpop.f32.mrb[0].mxu0
        %3365 = vmatprep.mubr.f32.mxu0 0.0
        %3366 = vmatmul.mubr.f32.gmra.mrb[0].mxu0 %v1099
        %v3367 = vpop.f32.mrb[0].mxu0
        %v3368 = vadd.f32 0.0, %v3367
        %v3369 = vpop.f32.mrb[0].mxu0
        %3370 = vmatprep.mubr.f32.mxu0 0.0
        %3371 = vmatmul.mubr.f32.gmra.mrb[0].mxu0 %v1102
        %v3372 = vpop.f32.mrb[0].mxu0
        %v3373 = vadd.f32 0.0, %v3372
        %v3374 = vpop.f32.mrb[0].mxu0
        %3375 = vmatprep.mubr.f32.mxu0 0.0
        %3376 = vmatmul.mubr.f32.gmra.mrb[0].mxu0 %v1104
        %v3377 = vpop.f32.mrb[0].mxu0
        %v3378 = vadd.f32 0.0, %v3377
        %v3379 = vpop.f32.mrb[0].mxu0
        %3380 = vmatprep.mubr.f32.mxu0 0.0
        %3381 = vmatmul.mubr.f32.gmra.mrb[0].mxu0 %v1107
        %v3382 = vpop.f32.mrb[0].mxu0
        %v3383 = vadd.f32 0.0, %v3382
        %v3384 = vpop.f32.mrb[0].mxu0
        %3385 = vmatprep.mubr.f32.mxu0 0.0
        %3386 = vmatmul.mubr.f32.gmra.mrb[0].mxu0 %v1109
        %v3387 = vpop.f32.mrb[0].mxu0
        %v3388 = vadd.f32 0.0, %v3387
        %v3389 = vpop.f32.mrb[0].mxu0
        %3390 = vmatprep.mubr.f32.mxu0 0.0
        %3391 = vmatmul.mubr.f32.gmra.mrb[0].mxu0 %v1112
        %v3392 = vpop.f32.mrb[0].mxu0
        %v3393 = vadd.f32 0.0, %v3392
        %v3394 = vpop.f32.mrb[0].mxu0
        %3395 = vmatprep.mubr.f32.mxu0 0.0
        %3396 = vmatmul.mubr.f32.gmra.mrb[0].mxu0 %v1114
        %v3397 = vpop.f32.mrb[0].mxu0
        %v3398 = vadd.f32 0.0, %v3397
        %v3399 = vpop.f32.mrb[0].mxu0
        %3400 = vmatprep.mubr.f32.mxu0 0.0
        %3401 = vmatmul.mubr.f32.gmra.mrb[0].mxu0 %v1117
        %v3402 = vpop.f32.mrb[0].mxu0
        %v3403 = vadd.f32 0.0, %v3402
        %v3404 = vpop.f32.mrb[0].mxu0
        %3405 = vmatprep.mubr.f32.mxu0 0.0
        %3406 = vmatmul.mubr.f32.gmra.mrb[0].mxu0 %v1119
        %v3407 = vpop.f32.mrb[0].mxu0
        %v3408 = vadd.f32 0.0, %v3407
        %v3409 = vpop.f32.mrb[0].mxu0
        %3410 = vmatprep.mubr.f32.mxu0 0.0
        %3411 = vmatmul.mubr.f32.gmra.mrb[0].mxu0 %v1122
        %v3412 = vpop.f32.mrb[0].mxu0
        %v3413 = vadd.f32 0.0, %v3412
        %v3414 = vpop.f32.mrb[0].mxu0
        %3415 = vmatprep.mubr.f32.mxu0 0.0
        %3416 = vmatmul.mubr.f32.gmra.mrb[0].mxu0 %v1124
        %v3417 = vpop.f32.mrb[0].mxu0
        %v3418 = vadd.f32 0.0, %v3417
        %v3419 = vpop.f32.mrb[0].mxu0
        %3420 = vmatprep.mubr.f32.mxu0 0.0
        %3421 = vmatmul.mubr.f32.gmra.mrb[0].mxu0 %v1127
        %v3422 = vpop.f32.mrb[0].mxu0
        %v3423 = vadd.f32 0.0, %v3422
        %v3424 = vpop.f32.mrb[0].mxu0
        %3425 = vmatprep.mubr.f32.mxu0 0.0
        %3426 = vmatmul.mubr.f32.gmra.mrb[0].mxu0 %v1129
        %v3427 = vpop.f32.mrb[0].mxu0
        %v3428 = vadd.f32 0.0, %v3427
        %v3429 = vpop.f32.mrb[0].mxu0
        %3430 = vmatprep.mubr.f32.mxu0 0.0
        %3431 = vmatmul.mubr.f32.gmra.mrb[0].mxu0 %v1132
        %v3432 = vpop.f32.mrb[0].mxu0
        %v3433 = vadd.f32 0.0, %v3432
        %v3434 = vpop.f32.mrb[0].mxu0
        %3435 = vmatprep.mubr.f32.mxu0 0.0
        %3436 = vmatmul.mubr.f32.gmra.mrb[0].mxu0 %v1134
        %v3437 = vpop.f32.mrb[0].mxu0
        %v3438 = vadd.f32 0.0, %v3437
        %v3439 = vpop.f32.mrb[0].mxu0
        %3440 = vmatprep.mubr.f32.mxu0 0.0
        %3441 = vmatmul.mubr.f32.gmra.mrb[0].mxu0 %v1137
        %v3442 = vpop.f32.mrb[0].mxu0
        %v3443 = vadd.f32 0.0, %v3442
        %v3444 = vpop.f32.mrb[0].mxu0
        %3445 = vmatprep.mubr.f32.mxu0 0.0
        %3446 = vmatmul.mubr.f32.gmra.mrb[0].mxu0 %v1139
        %v3447 = vpop.f32.mrb[0].mxu0
        %v3448 = vadd.f32 0.0, %v3447
        %v3449 = vpop.f32.mrb[0].mxu0
        %3450 = vmatprep.mubr.f32.mxu0 0.0
        %3451 = vmatmul.mubr.f32.gmra.mrb[0].mxu0 %v1142
        %v3452 = vpop.f32.mrb[0].mxu0
        %v3453 = vadd.f32 0.0, %v3452
        %v3454 = vpop.f32.mrb[0].mxu0
        %3455 = vmatprep.mubr.f32.mxu0 0.0
        %3456 = vmatmul.mubr.f32.gmra.mrb[0].mxu0 %v1144
        %v3457 = vpop.f32.mrb[0].mxu0
        %v3458 = vadd.f32 0.0, %v3457
        %v3459 = vpop.f32.mrb[0].mxu0
        %3460 = vmatprep.mubr.f32.mxu0 0.0
        %3461 = vmatmul.mubr.f32.gmra.mrb[0].mxu0 %v2203
        %v3462 = vpop.f32.mrb[0].mxu0
        %v3463 = vadd.f32 0.0, %v3462
        %v3464 = vpop.f32.mrb[0].mxu0
        %3465 = vmatprep.mubr.f32.mxu0 0.0
        %3466 = vmatmul.mubr.f32.gmra.mrb[0].mxu0 %v2205
        %v3467 = vpop.f32.mrb[0].mxu0
        %v3468 = vadd.f32 0.0, %v3467
        %v3469 = vpop.f32.mrb[0].mxu0
        %3470 = vmatprep.mubr.f32.mxu0 0.0
        %3471 = vmatmul.mubr.f32.gmra.mrb[0].mxu0 %v3234
        %v3472 = vpop.f32.mrb[0].mxu0
        %v3473 = vadd.f32 0.0, %v3472
        %v3474 = vpop.f32.mrb[0].mxu0
        %3475 = vmatprep.mubr.f32.mxu0 0.0
        %3476 = vmatmul.mubr.f32.gmra.mrb[0].mxu0 %v3236
        %v3477 = vpop.f32.mrb[0].mxu0
        %v3478 = vadd.f32 0.0, %v3477
        %v3479 = vpop.f32.mrb[0].mxu0
        %3480 = vdwg.mxu0
        %v3481 = vld [vmem:[#allocation2] sm:$0xff]
        %v3482 = vld [vmem:[#allocation2 + $0x8] sm:$0xff]
        %v3483 = vld [vmem:[#allocation2 + $0x10] sm:$0xff]
        %v3484 = vld [vmem:[#allocation2 + $0x18] sm:$0xff]
        %v3485 = vld [vmem:[#allocation2 + $0x20] sm:$0xff]
        %v3486 = vld [vmem:[#allocation2 + $0x28] sm:$0xff]
        %v3487 = vld [vmem:[#allocation2 + $0x30] sm:$0xff]
        %v3488 = vld [vmem:[#allocation2 + $0x38] sm:$0xff]
        %v3489 = vld [vmem:[#allocation2 + $0x40] sm:$0xff]
        %v3490 = vld [vmem:[#allocation2 + $0x48] sm:$0xff]
        %v3491 = vld [vmem:[#allocation2 + $0x50] sm:$0xff]
        %v3492 = vld [vmem:[#allocation2 + $0x58] sm:$0xff]
        %v3493 = vld [vmem:[#allocation2 + $0x60] sm:$0xff]
        %v3494 = vld [vmem:[#allocation2 + $0x68] sm:$0xff]
        %v3495 = vld [vmem:[#allocation2 + $0x70] sm:$0xff]
        %v3496 = vld [vmem:[#allocation2 + $0x78] sm:$0xff]
        %v3497 = vld [vmem:[#allocation2 + $0x80] sm:$0xff]
        %v3498 = vld [vmem:[#allocation2 + $0x88] sm:$0xff]
        %v3499 = vld [vmem:[#allocation2 + $0x90] sm:$0xff]
        %v3500 = vld [vmem:[#allocation2 + $0x98] sm:$0xff]
        %v3501 = vld [vmem:[#allocation2 + $0xa0] sm:$0xff]
        %v3502 = vld [vmem:[#allocation2 + $0xa8] sm:$0xff]
        %v3503 = vld [vmem:[#allocation2 + $0xb0] sm:$0xff]
        %v3504 = vld [vmem:[#allocation2 + $0xb8] sm:$0xff]
        %v3505 = vld [vmem:[#allocation2 + $0xc0] sm:$0xff]
        %v3506 = vld [vmem:[#allocation2 + $0xc8] sm:$0xff]
        %v3507 = vld [vmem:[#allocation2 + $0xd0] sm:$0xff]
        %v3508 = vld [vmem:[#allocation2 + $0xd8] sm:$0xff]
        %v3509 = vld [vmem:[#allocation2 + $0xe0] sm:$0xff]
        %v3510 = vld [vmem:[#allocation2 + $0xe8] sm:$0xff]
        %v3511 = vld [vmem:[#allocation2 + $0xf0] sm:$0xff]
        %v3512 = vld [vmem:[#allocation2 + $0xf8] sm:$0xff]
        %v3513 = vadd.f32 %v3481, %v3323
        %v3514 = vadd.f32 %v3482, %v3328
        %v3515 = vadd.f32 %v3483, %v3333
        %v3516 = vadd.f32 %v3484, %v3338
        %v3517 = vadd.f32 %v3485, %v3343
        %v3518 = vadd.f32 %v3486, %v3348
        %v3519 = vadd.f32 %v3487, %v3353
        %v3520 = vadd.f32 %v3488, %v3358
        %v3521 = vadd.f32 %v3489, %v3363
        %v3522 = vadd.f32 %v3490, %v3368
        %v3523 = vadd.f32 %v3491, %v3373
        %v3524 = vadd.f32 %v3492, %v3378
        %v3525 = vadd.f32 %v3493, %v3383
        %v3526 = vadd.f32 %v3494, %v3388
        %v3527 = vadd.f32 %v3495, %v3393
        %v3528 = vadd.f32 %v3496, %v3398
        %v3529 = vadd.f32 %v3497, %v3403
        %v3530 = vadd.f32 %v3498, %v3408
        %v3531 = vadd.f32 %v3499, %v3413
        %v3532 = vadd.f32 %v3500, %v3418
        %v3533 = vadd.f32 %v3501, %v3423
        %v3534 = vadd.f32 %v3502, %v3428
        %v3535 = vadd.f32 %v3503, %v3433
        %v3536 = vadd.f32 %v3504, %v3438
        %v3537 = vadd.f32 %v3505, %v3443
        %v3538 = vadd.f32 %v3506, %v3448
        %v3539 = vadd.f32 %v3507, %v3453
        %v3540 = vadd.f32 %v3508, %v3458
        %v3541 = vadd.f32 %v3509, %v3463
        %v3542 = vadd.f32 %v3510, %v3468
        %v3543 = vadd.f32 %v3511, %v3473
        %v3544 = vadd.f32 %v3512, %v3478
        %3545 = vst [vmem:[#allocation2] sm:$0xff] %v3513
        %3546 = vst [vmem:[#allocation2 + $0x8] sm:$0xff] %v3514
        %3547 = vst [vmem:[#allocation2 + $0x10] sm:$0xff] %v3515
        %3548 = vst [vmem:[#allocation2 + $0x18] sm:$0xff] %v3516
        %3549 = vst [vmem:[#allocation2 + $0x20] sm:$0xff] %v3517
        %3550 = vst [vmem:[#allocation2 + $0x28] sm:$0xff] %v3518
        %3551 = vst [vmem:[#allocation2 + $0x30] sm:$0xff] %v3519
        %3552 = vst [vmem:[#allocation2 + $0x38] sm:$0xff] %v3520
        %3553 = vst [vmem:[#allocation2 + $0x40] sm:$0xff] %v3521
        %3554 = vst [vmem:[#allocation2 + $0x48] sm:$0xff] %v3522
        %3555 = vst [vmem:[#allocation2 + $0x50] sm:$0xff] %v3523
        %3556 = vst [vmem:[#allocation2 + $0x58] sm:$0xff] %v3524
        %3557 = vst [vmem:[#allocation2 + $0x60] sm:$0xff] %v3525
        %3558 = vst [vmem:[#allocation2 + $0x68] sm:$0xff] %v3526
        %3559 = vst [vmem:[#allocation2 + $0x70] sm:$0xff] %v3527
        %3560 = vst [vmem:[#allocation2 + $0x78] sm:$0xff] %v3528
        %3561 = vst [vmem:[#allocation2 + $0x80] sm:$0xff] %v3529
        %3562 = vst [vmem:[#allocation2 + $0x88] sm:$0xff] %v3530
        %3563 = vst [vmem:[#allocation2 + $0x90] sm:$0xff] %v3531
        %3564 = vst [vmem:[#allocation2 + $0x98] sm:$0xff] %v3532
        %3565 = vst [vmem:[#allocation2 + $0xa0] sm:$0xff] %v3533
        %3566 = vst [vmem:[#allocation2 + $0xa8] sm:$0xff] %v3534
        %3567 = vst [vmem:[#allocation2 + $0xb0] sm:$0xff] %v3535
        %3568 = vst [vmem:[#allocation2 + $0xb8] sm:$0xff] %v3536
        %3569 = vst [vmem:[#allocation2 + $0xc0] sm:$0xff] %v3537
        %3570 = vst [vmem:[#allocation2 + $0xc8] sm:$0xff] %v3538
        %3571 = vst [vmem:[#allocation2 + $0xd0] sm:$0xff] %v3539
        %3572 = vst [vmem:[#allocation2 + $0xd8] sm:$0xff] %v3540
        %3573 = vst [vmem:[#allocation2 + $0xe0] sm:$0xff] %v3541
        %3574 = vst [vmem:[#allocation2 + $0xe8] sm:$0xff] %v3542
        %3575 = vst [vmem:[#allocation2 + $0xf0] sm:$0xff] %v3543
        %3576 = vst [vmem:[#allocation2 + $0xf8] sm:$0xff] %v3544
        %v3577 = vld [vmem:[#allocation2] sm:$0xff]
        %v3578 = vld [vmem:[#allocation2 + $0x8] sm:$0xff]
        %v3579 = vld [vmem:[#allocation2 + $0x10] sm:$0xff]
        %v3580 = vld [vmem:[#allocation2 + $0x18] sm:$0xff]
        %v3581 = vld [vmem:[#allocation2 + $0x20] sm:$0xff]
        %v3582 = vld [vmem:[#allocation2 + $0x28] sm:$0xff]
        %v3583 = vld [vmem:[#allocation2 + $0x30] sm:$0xff]
        %v3584 = vld [vmem:[#allocation2 + $0x38] sm:$0xff]
        %v3585 = vld [vmem:[#allocation2 + $0x40] sm:$0xff]
        %v3586 = vld [vmem:[#allocation2 + $0x48] sm:$0xff]
        %v3587 = vld [vmem:[#allocation2 + $0x50] sm:$0xff]
        %v3588 = vld [vmem:[#allocation2 + $0x58] sm:$0xff]
        %v3589 = vld [vmem:[#allocation2 + $0x60] sm:$0xff]
        %v3590 = vld [vmem:[#allocation2 + $0x68] sm:$0xff]
        %v3591 = vld [vmem:[#allocation2 + $0x70] sm:$0xff]
        %v3592 = vld [vmem:[#allocation2 + $0x78] sm:$0xff]
        %v3593 = vld [vmem:[#allocation2 + $0x80] sm:$0xff]
        %v3594 = vld [vmem:[#allocation2 + $0x88] sm:$0xff]
        %v3595 = vld [vmem:[#allocation2 + $0x90] sm:$0xff]
        %v3596 = vld [vmem:[#allocation2 + $0x98] sm:$0xff]
        %v3597 = vld [vmem:[#allocation2 + $0xa0] sm:$0xff]
        %v3598 = vld [vmem:[#allocation2 + $0xa8] sm:$0xff]
        %v3599 = vld [vmem:[#allocation2 + $0xb0] sm:$0xff]
        %v3600 = vld [vmem:[#allocation2 + $0xb8] sm:$0xff]
        %v3601 = vld [vmem:[#allocation2 + $0xc0] sm:$0xff]
        %v3602 = vld [vmem:[#allocation2 + $0xc8] sm:$0xff]
        %v3603 = vld [vmem:[#allocation2 + $0xd0] sm:$0xff]
        %v3604 = vld [vmem:[#allocation2 + $0xd8] sm:$0xff]
        %v3605 = vld [vmem:[#allocation2 + $0xe0] sm:$0xff]
        %v3606 = vld [vmem:[#allocation2 + $0xe8] sm:$0xff]
        %v3607 = vld [vmem:[#allocation2 + $0xf0] sm:$0xff]
        %v3608 = vld [vmem:[#allocation2 + $0xf8] sm:$0xff]
        %v3609 = vld [vmem:[%s2] sm:$0x1]
        %v3611 = vlaneseq
        %v3612 = vshrl.u32 %v3611, 7
        %v3613 = vsub.s32 0, %v3612
        %v3614 = vrot.slane %v3609, %v3613
        %v3616 = vadd.f32 %v3577, %v3614
        %v3617 = vadd.f32 %v3578, %v3614
        %v3618 = vadd.f32 %v3579, %v3614
        %v3619 = vadd.f32 %v3580, %v3614
        %v3620 = vadd.f32 %v3581, %v3614
        %v3621 = vadd.f32 %v3582, %v3614
        %v3622 = vadd.f32 %v3583, %v3614
        %v3623 = vadd.f32 %v3584, %v3614
        %v3624 = vadd.f32 %v3585, %v3614
        %v3625 = vadd.f32 %v3586, %v3614
        %v3626 = vadd.f32 %v3587, %v3614
        %v3627 = vadd.f32 %v3588, %v3614
        %v3628 = vadd.f32 %v3589, %v3614
        %v3629 = vadd.f32 %v3590, %v3614
        %v3630 = vadd.f32 %v3591, %v3614
        %v3631 = vadd.f32 %v3592, %v3614
        %v3632 = vadd.f32 %v3593, %v3614
        %v3633 = vadd.f32 %v3594, %v3614
        %v3634 = vadd.f32 %v3595, %v3614
        %v3635 = vadd.f32 %v3596, %v3614
        %v3636 = vadd.f32 %v3597, %v3614
        %v3637 = vadd.f32 %v3598, %v3614
        %v3638 = vadd.f32 %v3599, %v3614
        %v3639 = vadd.f32 %v3600, %v3614
        %v3640 = vadd.f32 %v3601, %v3614
        %v3641 = vadd.f32 %v3602, %v3614
        %v3642 = vadd.f32 %v3603, %v3614
        %v3643 = vadd.f32 %v3604, %v3614
        %v3644 = vadd.f32 %v3605, %v3614
        %v3645 = vadd.f32 %v3606, %v3614
        %v3646 = vadd.f32 %v3607, %v3614
        %v3647 = vadd.f32 %v3608, %v3614
        %v3648 = vmax.f32 %v3616, 0.0
        %v3649 = vmax.f32 %v3617, 0.0
        %v3650 = vmax.f32 %v3618, 0.0
        %v3651 = vmax.f32 %v3619, 0.0
        %v3652 = vmax.f32 %v3620, 0.0
        %v3653 = vmax.f32 %v3621, 0.0
        %v3654 = vmax.f32 %v3622, 0.0
        %v3655 = vmax.f32 %v3623, 0.0
        %v3656 = vmax.f32 %v3624, 0.0
        %v3657 = vmax.f32 %v3625, 0.0
        %v3658 = vmax.f32 %v3626, 0.0
        %v3659 = vmax.f32 %v3627, 0.0
        %v3660 = vmax.f32 %v3628, 0.0
        %v3661 = vmax.f32 %v3629, 0.0
        %v3662 = vmax.f32 %v3630, 0.0
        %v3663 = vmax.f32 %v3631, 0.0
        %v3664 = vmax.f32 %v3632, 0.0
        %v3665 = vmax.f32 %v3633, 0.0
        %v3666 = vmax.f32 %v3634, 0.0
        %v3667 = vmax.f32 %v3635, 0.0
        %v3668 = vmax.f32 %v3636, 0.0
        %v3669 = vmax.f32 %v3637, 0.0
        %v3670 = vmax.f32 %v3638, 0.0
        %v3671 = vmax.f32 %v3639, 0.0
        %v3672 = vmax.f32 %v3640, 0.0
        %v3673 = vmax.f32 %v3641, 0.0
        %v3674 = vmax.f32 %v3642, 0.0
        %v3675 = vmax.f32 %v3643, 0.0
        %v3676 = vmax.f32 %v3644, 0.0
        %v3677 = vmax.f32 %v3645, 0.0
        %v3678 = vmax.f32 %v3646, 0.0
        %v3679 = vmax.f32 %v3647, 0.0
        %3680 = vst [vmem:[#allocation3] sm:$0xff] 0.0
        %3681 = vst [vmem:[#allocation3 + $0x8] sm:$0xff] 0.0
        %3682 = vst [vmem:[#allocation3 + $0x10] sm:$0x3] 0.0
        %3683 = vst [vmem:[#allocation3 + $0x18] sm:$0xff] 0.0
        %3684 = vst [vmem:[#allocation3 + $0x20] sm:$0xff] 0.0
        %3685 = vst [vmem:[#allocation3 + $0x28] sm:$0x3] 0.0
        %3686 = vst [vmem:[#allocation3 + $0x30] sm:$0xff] 0.0
        %3687 = vst [vmem:[#allocation3 + $0x38] sm:$0xff] 0.0
        %3688 = vst [vmem:[#allocation3 + $0x40] sm:$0x3] 0.0
        %3689 = vst [vmem:[#allocation3 + $0x48] sm:$0xff] 0.0
        %3690 = vst [vmem:[#allocation3 + $0x50] sm:$0xff] 0.0
        %3691 = vst [vmem:[#allocation3 + $0x58] sm:$0x3] 0.0
        %3692 = vst [vmem:[#allocation3 + $0x60] sm:$0xff] 0.0
        %3693 = vst [vmem:[#allocation3 + $0x68] sm:$0xff] 0.0
        %3694 = vst [vmem:[#allocation3 + $0x70] sm:$0x3] 0.0
        %3695 = vst [vmem:[#allocation3 + $0x78] sm:$0xff] 0.0
        %3696 = vst [vmem:[#allocation3 + $0x80] sm:$0xff] 0.0
        %3697 = vst [vmem:[#allocation3 + $0x88] sm:$0x3] 0.0
        %3698 = vst [vmem:[#allocation3 + $0x90] sm:$0xff] 0.0
        %3699 = vst [vmem:[#allocation3 + $0x98] sm:$0xff] 0.0
        %3700 = vst [vmem:[#allocation3 + $0xa0] sm:$0x3] 0.0
        %3701 = vst [vmem:[#allocation3 + $0xa8] sm:$0xff] 0.0
        %3702 = vst [vmem:[#allocation3 + $0xb0] sm:$0xff] 0.0
        %3703 = vst [vmem:[#allocation3 + $0xb8] sm:$0x3] 0.0
        %3704 = vst [vmem:[#allocation3 + $0xc0] sm:$0xff] 0.0
        %3705 = vst [vmem:[#allocation3 + $0xc8] sm:$0xff] 0.0
        %3706 = vst [vmem:[#allocation3 + $0xd0] sm:$0x3] 0.0
        %3707 = vst [vmem:[#allocation3 + $0xd8] sm:$0xff] 0.0
        %3708 = vst [vmem:[#allocation3 + $0xe0] sm:$0xff] 0.0
        %3709 = vst [vmem:[#allocation3 + $0xe8] sm:$0x3] 0.0
        %3710 = vst [vmem:[#allocation3 + $0xf0] sm:$0xff] 0.0
        %3711 = vst [vmem:[#allocation3 + $0xf8] sm:$0xff] 0.0
        %3712 = vst [vmem:[#allocation3 + $0x100] sm:$0x3] 0.0
        %3713 = vst [vmem:[#allocation3 + $0x108] sm:$0xff] 0.0
        %3714 = vst [vmem:[#allocation3 + $0x110] sm:$0xff] 0.0
        %3715 = vst [vmem:[#allocation3 + $0x118] sm:$0x3] 0.0
        %3716 = vst [vmem:[#allocation3 + $0x120] sm:$0xff] 0.0
        %3717 = vst [vmem:[#allocation3 + $0x128] sm:$0xff] 0.0
        %3718 = vst [vmem:[#allocation3 + $0x130] sm:$0x3] 0.0
        %3719 = vst [vmem:[#allocation3 + $0x138] sm:$0xff] 0.0
        %3720 = vst [vmem:[#allocation3 + $0x140] sm:$0xff] 0.0
        %3721 = vst [vmem:[#allocation3 + $0x148] sm:$0x3] 0.0
        %3722 = vst [vmem:[#allocation3 + $0x150] sm:$0xff] 0.0
        %3723 = vst [vmem:[#allocation3 + $0x158] sm:$0xff] 0.0
        %3724 = vst [vmem:[#allocation3 + $0x160] sm:$0x3] 0.0
        %3725 = vst [vmem:[#allocation3 + $0x168] sm:$0xff] 0.0
        %3726 = vst [vmem:[#allocation3 + $0x170] sm:$0xff] 0.0
        %3727 = vst [vmem:[#allocation3 + $0x178] sm:$0x3] 0.0
        %3728 = vst [vmem:[#allocation3 + $0x180] sm:$0xff] 0.0
        %3729 = vst [vmem:[#allocation3 + $0x188] sm:$0xff] 0.0
        %3730 = vst [vmem:[#allocation3 + $0x190] sm:$0x3] 0.0
        %3731 = vst [vmem:[#allocation3 + $0x198] sm:$0xff] 0.0
        %3732 = vst [vmem:[#allocation3 + $0x1a0] sm:$0xff] 0.0
        %3733 = vst [vmem:[#allocation3 + $0x1a8] sm:$0x3] 0.0
        %s3734 = scalar_lea.vmem [#allocation3], 24
        %3735 = vst [vmem:[%s3734 + $0x1] sm:$0xff] %v3648
        %3736 = vst [vmem:[%s3734 + $0x9] sm:$0xff] %v3649
        %3737 = vst [vmem:[%s3734 + $0x19] sm:$0xff] %v3650
        %3738 = vst [vmem:[%s3734 + $0x21] sm:$0xff] %v3651
        %3739 = vst [vmem:[%s3734 + $0x31] sm:$0xff] %v3652
        %3740 = vst [vmem:[%s3734 + $0x39] sm:$0xff] %v3653
        %3741 = vst [vmem:[%s3734 + $0x49] sm:$0xff] %v3654
        %3742 = vst [vmem:[%s3734 + $0x51] sm:$0xff] %v3655
        %3743 = vst [vmem:[%s3734 + $0x61] sm:$0xff] %v3656
        %3744 = vst [vmem:[%s3734 + $0x69] sm:$0xff] %v3657
        %3745 = vst [vmem:[%s3734 + $0x79] sm:$0xff] %v3658
        %3746 = vst [vmem:[%s3734 + $0x81] sm:$0xff] %v3659
        %3747 = vst [vmem:[%s3734 + $0x91] sm:$0xff] %v3660
        %3748 = vst [vmem:[%s3734 + $0x99] sm:$0xff] %v3661
        %3749 = vst [vmem:[%s3734 + $0xa9] sm:$0xff] %v3662
        %3750 = vst [vmem:[%s3734 + $0xb1] sm:$0xff] %v3663
        %3751 = vst [vmem:[%s3734 + $0xc1] sm:$0xff] %v3664
        %3752 = vst [vmem:[%s3734 + $0xc9] sm:$0xff] %v3665
        %3753 = vst [vmem:[%s3734 + $0xd9] sm:$0xff] %v3666
        %3754 = vst [vmem:[%s3734 + $0xe1] sm:$0xff] %v3667
        %3755 = vst [vmem:[%s3734 + $0xf1] sm:$0xff] %v3668
        %3756 = vst [vmem:[%s3734 + $0xf9] sm:$0xff] %v3669
        %3757 = vst [vmem:[%s3734 + $0x109] sm:$0xff] %v3670
        %3758 = vst [vmem:[%s3734 + $0x111] sm:$0xff] %v3671
        %3759 = vst [vmem:[%s3734 + $0x121] sm:$0xff] %v3672
        %3760 = vst [vmem:[%s3734 + $0x129] sm:$0xff] %v3673
        %3761 = vst [vmem:[%s3734 + $0x139] sm:$0xff] %v3674
        %3762 = vst [vmem:[%s3734 + $0x141] sm:$0xff] %v3675
        %3763 = vst [vmem:[%s3734 + $0x151] sm:$0xff] %v3676
        %3764 = vst [vmem:[%s3734 + $0x159] sm:$0xff] %v3677
        %3765 = vst [vmem:[%s3734 + $0x169] sm:$0xff] %v3678
        %3766 = vst [vmem:[%s3734 + $0x171] sm:$0xff] %v3679
        %v3767 = vld [vmem:[#allocation3] sm:$0xff]
        %v3768 = vld [vmem:[#allocation3 + $0x8] sm:$0xff]
        %v3769 = vld [vmem:[#allocation3 + $0x10] sm:$0x3]
        %v3770 = vld [vmem:[#allocation3 + $0x18] sm:$0xff]
        %v3771 = vld [vmem:[#allocation3 + $0x20] sm:$0xff]
        %v3772 = vld [vmem:[#allocation3 + $0x28] sm:$0x3]
        %v3773 = vld [vmem:[#allocation3 + $0x30] sm:$0xff]
        %v3774 = vld [vmem:[#allocation3 + $0x38] sm:$0xff]
        %v3775 = vld [vmem:[#allocation3 + $0x40] sm:$0x3]
        %v3776 = vld [vmem:[#allocation3 + $0x48] sm:$0xff]
        %v3777 = vld [vmem:[#allocation3 + $0x50] sm:$0xff]
        %v3778 = vld [vmem:[#allocation3 + $0x58] sm:$0x3]
        %v3779 = vld [vmem:[#allocation3 + $0x60] sm:$0xff]
        %v3780 = vld [vmem:[#allocation3 + $0x68] sm:$0xff]
        %v3781 = vld [vmem:[#allocation3 + $0x70] sm:$0x3]
        %v3782 = vld [vmem:[#allocation3 + $0x78] sm:$0xff]
        %v3783 = vld [vmem:[#allocation3 + $0x80] sm:$0xff]
        %v3784 = vld [vmem:[#allocation3 + $0x88] sm:$0x3]
        %v3785 = vld [vmem:[#allocation3 + $0x90] sm:$0xff]
        %v3786 = vld [vmem:[#allocation3 + $0x98] sm:$0xff]
        %v3787 = vld [vmem:[#allocation3 + $0xa0] sm:$0x3]
        %v3788 = vld [vmem:[#allocation3 + $0xa8] sm:$0xff]
        %v3789 = vld [vmem:[#allocation3 + $0xb0] sm:$0xff]
        %v3790 = vld [vmem:[#allocation3 + $0xb8] sm:$0x3]
        %v3791 = vld [vmem:[#allocation3 + $0xc0] sm:$0xff]
        %v3792 = vld [vmem:[#allocation3 + $0xc8] sm:$0xff]
        %v3793 = vld [vmem:[#allocation3 + $0xd0] sm:$0x3]
        %v3794 = vld [vmem:[#allocation3 + $0xd8] sm:$0xff]
        %v3795 = vld [vmem:[#allocation3 + $0xe0] sm:$0xff]
        %v3796 = vld [vmem:[#allocation3 + $0xe8] sm:$0x3]
        %v3797 = vld [vmem:[#allocation3 + $0xf0] sm:$0xff]
        %v3798 = vld [vmem:[#allocation3 + $0xf8] sm:$0xff]
        %v3799 = vld [vmem:[#allocation3 + $0x100] sm:$0x3]
        %v3800 = vld [vmem:[#allocation3 + $0x108] sm:$0xff]
        %v3801 = vld [vmem:[#allocation3 + $0x110] sm:$0xff]
        %v3802 = vld [vmem:[#allocation3 + $0x118] sm:$0x3]
        %v3803 = vld [vmem:[#allocation3 + $0x120] sm:$0xff]
        %v3804 = vld [vmem:[#allocation3 + $0x128] sm:$0xff]
        %v3805 = vld [vmem:[#allocation3 + $0x130] sm:$0x3]
        %v3806 = vld [vmem:[#allocation3 + $0x138] sm:$0xff]
        %v3807 = vld [vmem:[#allocation3 + $0x140] sm:$0xff]
        %v3808 = vld [vmem:[#allocation3 + $0x148] sm:$0x3]
        %v3809 = vld [vmem:[#allocation3 + $0x150] sm:$0xff]
        %v3810 = vld [vmem:[#allocation3 + $0x158] sm:$0xff]
        %v3811 = vld [vmem:[#allocation3 + $0x160] sm:$0x3]
        %v3812 = vld [vmem:[#allocation3 + $0x168] sm:$0xff]
        %v3813 = vld [vmem:[#allocation3 + $0x170] sm:$0xff]
        %v3814 = vld [vmem:[#allocation3 + $0x178] sm:$0x3]
        %v3815 = vld [vmem:[#allocation3 + $0x180] sm:$0xff]
        %v3816 = vld [vmem:[#allocation3 + $0x188] sm:$0xff]
        %v3817 = vld [vmem:[#allocation3 + $0x190] sm:$0x3]
        %v3818 = vld [vmem:[#allocation3 + $0x198] sm:$0xff]
        %v3819 = vld [vmem:[#allocation3 + $0x1a0] sm:$0xff]
        %v3820 = vld [vmem:[#allocation3 + $0x1a8] sm:$0x3]
        %v3821 = vld [vmem:[#allocation4] sm:$0xff]
        %v3822 = vld [vmem:[#allocation4 + $0x8] sm:$0xff]
        %v3823 = vld [vmem:[#allocation4 + $0x10] sm:$0xff]
        %v3824 = vld [vmem:[#allocation4 + $0x18] sm:$0xff]
        %v3825 = vld [vmem:[#allocation4 + $0x20] sm:$0xff]
        %v3826 = vld [vmem:[#allocation4 + $0x28] sm:$0xff]
        %v3827 = vld [vmem:[#allocation4 + $0x30] sm:$0xff]
        %v3828 = vld [vmem:[#allocation4 + $0x38] sm:$0xff]
        %v3829 = vld [vmem:[#allocation4 + $0x40] sm:$0xff]
        %v3830 = vld [vmem:[#allocation4 + $0x48] sm:$0xff]
        %v3831 = vld [vmem:[#allocation4 + $0x50] sm:$0xff]
        %v3832 = vld [vmem:[#allocation4 + $0x58] sm:$0xff]
        %v3833 = vld [vmem:[#allocation4 + $0x60] sm:$0xff]
        %v3834 = vld [vmem:[#allocation4 + $0x68] sm:$0xff]
        %v3835 = vld [vmem:[#allocation4 + $0x70] sm:$0xff]
        %v3836 = vld [vmem:[#allocation4 + $0x78] sm:$0xff]
        %3837 = vmatprep.subr.mxu0 0.0
        %3838 = vmatpush1.msra.mxu0 %v3821
        %3839 = vmatprep.subr.mxu0 0.0
        %3840 = vmatpush1.msra.mxu0 %v3822
        %3841 = vmatprep.subr.mxu0 0.0
        %3842 = vmatpush1.msra.mxu0 %v3823
        %3843 = vmatprep.subr.mxu0 0.0
        %3844 = vmatpush1.msra.mxu0 %v3824
        %3845 = vmatprep.subr.mxu0 0.0
        %3846 = vmatpush1.msra.mxu0 %v3825
        %3847 = vmatprep.subr.mxu0 0.0
        %3848 = vmatpush1.msra.mxu0 %v3826
        %3849 = vmatprep.subr.mxu0 0.0
        %3850 = vmatpush1.msra.mxu0 %v3827
        %3851 = vmatprep.subr.mxu0 0.0
        %3852 = vmatpush1.msra.mxu0 %v3828
        %3853 = vmatprep.subr.mxu0 0.0
        %3854 = vmatpush1.msra.mxu0 %v3829
        %3855 = vmatprep.subr.mxu0 0.0
        %3856 = vmatpush1.msra.mxu0 %v3830
        %3857 = vmatprep.subr.mxu0 0.0
        %3858 = vmatpush1.msra.mxu0 %v3831
        %3859 = vmatprep.subr.mxu0 0.0
        %3860 = vmatpush1.msra.mxu0 %v3832
        %3861 = vmatprep.subr.mxu0 0.0
        %3862 = vmatpush1.msra.mxu0 %v3833
        %3863 = vmatprep.subr.mxu0 0.0
        %3864 = vmatpush1.msra.mxu0 %v3834
        %3865 = vmatprep.subr.mxu0 0.0
        %3866 = vmatpush1.msra.mxu0 %v3835
        %3867 = vmatprep.subr.mxu0 0.0
        %3868 = vmatpush1.msra.mxu0 %v3836
        %3869 = vmatprep.subr.mxu0 0.0
        %3870 = vmatpush1.msra.mxu0 0.0
        %3871 = vmatprep.subr.mxu0 0.0
        %3872 = vmatpush1.msra.mxu0 0.0
        %3873 = vmatprep.subr.mxu0 0.0
        %3874 = vmatpush1.msra.mxu0 0.0
        %3875 = vmatprep.subr.mxu0 0.0
        %3876 = vmatpush1.msra.mxu0 0.0
        %3877 = vmatprep.subr.mxu0 0.0
        %3878 = vmatpush1.msra.mxu0 0.0
        %3879 = vmatprep.subr.mxu0 0.0
        %3880 = vmatpush1.msra.mxu0 0.0
        %3881 = vmatprep.subr.mxu0 0.0
        %3882 = vmatpush1.msra.mxu0 0.0
        %3883 = vmatprep.subr.mxu0 0.0
        %3884 = vmatpush1.msra.mxu0 0.0
        %3885 = vmatprep.subr.mxu0 0.0
        %3886 = vmatpush1.msra.mxu0 0.0
        %3887 = vmatprep.subr.mxu0 0.0
        %3888 = vmatpush1.msra.mxu0 0.0
        %3889 = vmatprep.subr.mxu0 0.0
        %3890 = vmatpush1.msra.mxu0 0.0
        %3891 = vmatprep.subr.mxu0 0.0
        %3892 = vmatpush1.msra.mxu0 0.0
        %3893 = vmatprep.subr.mxu0 0.0
        %3894 = vmatpush1.msra.mxu0 0.0
        %3895 = vmatprep.subr.mxu0 0.0
        %3896 = vmatpush1.msra.mxu0 0.0
        %3897 = vmatprep.subr.mxu0 0.0
        %3898 = vmatpush1.msra.mxu0 0.0
        %3899 = vmatprep.subr.mxu0 0.0
        %3900 = vmatpush1.msra.mxu0 0.0
        %3901 = vmatprep.mubr.f32.mxu0 0.0
        %3902 = vmatmul.mubr.f32.gmra.mrb[0].mxu0 %v3767
        %v3903 = vpop.f32.mrb[0].mxu0
        %v3904 = vadd.f32 0.0, %v3903
        %v3905 = vpop.f32.mrb[0].mxu0
        %3906 = vmatprep.mubr.f32.mxu0 0.0
        %3907 = vmatmul.mubr.f32.gmra.mrb[0].mxu0 %v3768
        %v3908 = vpop.f32.mrb[0].mxu0
        %v3909 = vadd.f32 0.0, %v3908
        %v3910 = vpop.f32.mrb[0].mxu0
        %3911 = vmatprep.mubr.f32.mxu0 0.0
        %3912 = vmatmul.mubr.f32.gmra.mrb[0].mxu0 %v3770
        %v3913 = vpop.f32.mrb[0].mxu0
        %v3914 = vadd.f32 0.0, %v3913
        %v3915 = vpop.f32.mrb[0].mxu0
        %3916 = vmatprep.mubr.f32.mxu0 0.0
        %3917 = vmatmul.mubr.f32.gmra.mrb[0].mxu0 %v3771
        %v3918 = vpop.f32.mrb[0].mxu0
        %v3919 = vadd.f32 0.0, %v3918
        %v3920 = vpop.f32.mrb[0].mxu0
        %3921 = vmatprep.mubr.f32.mxu0 0.0
        %3922 = vmatmul.mubr.f32.gmra.mrb[0].mxu0 %v3773
        %v3923 = vpop.f32.mrb[0].mxu0
        %v3924 = vadd.f32 0.0, %v3923
        %v3925 = vpop.f32.mrb[0].mxu0
        %3926 = vmatprep.mubr.f32.mxu0 0.0
        %3927 = vmatmul.mubr.f32.gmra.mrb[0].mxu0 %v3774
        %v3928 = vpop.f32.mrb[0].mxu0
        %v3929 = vadd.f32 0.0, %v3928
        %v3930 = vpop.f32.mrb[0].mxu0
        %3931 = vmatprep.mubr.f32.mxu0 0.0
        %3932 = vmatmul.mubr.f32.gmra.mrb[0].mxu0 %v3776
        %v3933 = vpop.f32.mrb[0].mxu0
        %v3934 = vadd.f32 0.0, %v3933
        %v3935 = vpop.f32.mrb[0].mxu0
        %3936 = vmatprep.mubr.f32.mxu0 0.0
        %3937 = vmatmul.mubr.f32.gmra.mrb[0].mxu0 %v3777
        %v3938 = vpop.f32.mrb[0].mxu0
        %v3939 = vadd.f32 0.0, %v3938
        %v3940 = vpop.f32.mrb[0].mxu0
        %3941 = vmatprep.mubr.f32.mxu0 0.0
        %3942 = vmatmul.mubr.f32.gmra.mrb[0].mxu0 %v3779
        %v3943 = vpop.f32.mrb[0].mxu0
        %v3944 = vadd.f32 0.0, %v3943
        %v3945 = vpop.f32.mrb[0].mxu0
        %3946 = vmatprep.mubr.f32.mxu0 0.0
        %3947 = vmatmul.mubr.f32.gmra.mrb[0].mxu0 %v3780
        %v3948 = vpop.f32.mrb[0].mxu0
        %v3949 = vadd.f32 0.0, %v3948
        %v3950 = vpop.f32.mrb[0].mxu0
        %3951 = vmatprep.mubr.f32.mxu0 0.0
        %3952 = vmatmul.mubr.f32.gmra.mrb[0].mxu0 %v3782
        %v3953 = vpop.f32.mrb[0].mxu0
        %v3954 = vadd.f32 0.0, %v3953
        %v3955 = vpop.f32.mrb[0].mxu0
        %3956 = vmatprep.mubr.f32.mxu0 0.0
        %3957 = vmatmul.mubr.f32.gmra.mrb[0].mxu0 %v3783
        %v3958 = vpop.f32.mrb[0].mxu0
        %v3959 = vadd.f32 0.0, %v3958
        %v3960 = vpop.f32.mrb[0].mxu0
        %3961 = vmatprep.mubr.f32.mxu0 0.0
        %3962 = vmatmul.mubr.f32.gmra.mrb[0].mxu0 %v3785
        %v3963 = vpop.f32.mrb[0].mxu0
        %v3964 = vadd.f32 0.0, %v3963
        %v3965 = vpop.f32.mrb[0].mxu0
        %3966 = vmatprep.mubr.f32.mxu0 0.0
        %3967 = vmatmul.mubr.f32.gmra.mrb[0].mxu0 %v3786
        %v3968 = vpop.f32.mrb[0].mxu0
        %v3969 = vadd.f32 0.0, %v3968
        %v3970 = vpop.f32.mrb[0].mxu0
        %3971 = vmatprep.mubr.f32.mxu0 0.0
        %3972 = vmatmul.mubr.f32.gmra.mrb[0].mxu0 %v3788
        %v3973 = vpop.f32.mrb[0].mxu0
        %v3974 = vadd.f32 0.0, %v3973
        %v3975 = vpop.f32.mrb[0].mxu0
        %3976 = vmatprep.mubr.f32.mxu0 0.0
        %3977 = vmatmul.mubr.f32.gmra.mrb[0].mxu0 %v3789
        %v3978 = vpop.f32.mrb[0].mxu0
        %v3979 = vadd.f32 0.0, %v3978
        %v3980 = vpop.f32.mrb[0].mxu0
        %3981 = vmatprep.mubr.f32.mxu0 0.0
        %3982 = vmatmul.mubr.f32.gmra.mrb[0].mxu0 %v3791
        %v3983 = vpop.f32.mrb[0].mxu0
        %v3984 = vadd.f32 0.0, %v3983
        %v3985 = vpop.f32.mrb[0].mxu0
        %3986 = vmatprep.mubr.f32.mxu0 0.0
        %3987 = vmatmul.mubr.f32.gmra.mrb[0].mxu0 %v3792
        %v3988 = vpop.f32.mrb[0].mxu0
        %v3989 = vadd.f32 0.0, %v3988
        %v3990 = vpop.f32.mrb[0].mxu0
        %3991 = vmatprep.mubr.f32.mxu0 0.0
        %3992 = vmatmul.mubr.f32.gmra.mrb[0].mxu0 %v3794
        %v3993 = vpop.f32.mrb[0].mxu0
        %v3994 = vadd.f32 0.0, %v3993
        %v3995 = vpop.f32.mrb[0].mxu0
        %3996 = vmatprep.mubr.f32.mxu0 0.0
        %3997 = vmatmul.mubr.f32.gmra.mrb[0].mxu0 %v3795
        %v3998 = vpop.f32.mrb[0].mxu0
        %v3999 = vadd.f32 0.0, %v3998
        %v4000 = vpop.f32.mrb[0].mxu0
        %4001 = vmatprep.mubr.f32.mxu0 0.0
        %4002 = vmatmul.mubr.f32.gmra.mrb[0].mxu0 %v3797
        %v4003 = vpop.f32.mrb[0].mxu0
        %v4004 = vadd.f32 0.0, %v4003
        %v4005 = vpop.f32.mrb[0].mxu0
        %4006 = vmatprep.mubr.f32.mxu0 0.0
        %4007 = vmatmul.mubr.f32.gmra.mrb[0].mxu0 %v3798
        %v4008 = vpop.f32.mrb[0].mxu0
        %v4009 = vadd.f32 0.0, %v4008
        %v4010 = vpop.f32.mrb[0].mxu0
        %4011 = vmatprep.mubr.f32.mxu0 0.0
        %4012 = vmatmul.mubr.f32.gmra.mrb[0].mxu0 %v3800
        %v4013 = vpop.f32.mrb[0].mxu0
        %v4014 = vadd.f32 0.0, %v4013
        %v4015 = vpop.f32.mrb[0].mxu0
        %4016 = vmatprep.mubr.f32.mxu0 0.0
        %4017 = vmatmul.mubr.f32.gmra.mrb[0].mxu0 %v3801
        %v4018 = vpop.f32.mrb[0].mxu0
        %v4019 = vadd.f32 0.0, %v4018
        %v4020 = vpop.f32.mrb[0].mxu0
        %4021 = vmatprep.mubr.f32.mxu0 0.0
        %4022 = vmatmul.mubr.f32.gmra.mrb[0].mxu0 %v3803
        %v4023 = vpop.f32.mrb[0].mxu0
        %v4024 = vadd.f32 0.0, %v4023
        %v4025 = vpop.f32.mrb[0].mxu0
        %4026 = vmatprep.mubr.f32.mxu0 0.0
        %4027 = vmatmul.mubr.f32.gmra.mrb[0].mxu0 %v3804
        %v4028 = vpop.f32.mrb[0].mxu0
        %v4029 = vadd.f32 0.0, %v4028
        %v4030 = vpop.f32.mrb[0].mxu0
        %4031 = vmatprep.mubr.f32.mxu0 0.0
        %4032 = vmatmul.mubr.f32.gmra.mrb[0].mxu0 %v3806
        %v4033 = vpop.f32.mrb[0].mxu0
        %v4034 = vadd.f32 0.0, %v4033
        %v4035 = vpop.f32.mrb[0].mxu0
        %4036 = vmatprep.mubr.f32.mxu0 0.0
        %4037 = vmatmul.mubr.f32.gmra.mrb[0].mxu0 %v3807
        %v4038 = vpop.f32.mrb[0].mxu0
        %v4039 = vadd.f32 0.0, %v4038
        %v4040 = vpop.f32.mrb[0].mxu0
        %4041 = vmatprep.mubr.f32.mxu0 0.0
        %4042 = vmatmul.mubr.f32.gmra.mrb[0].mxu0 %v3809
        %v4043 = vpop.f32.mrb[0].mxu0
        %v4044 = vadd.f32 0.0, %v4043
        %v4045 = vpop.f32.mrb[0].mxu0
        %4046 = vmatprep.mubr.f32.mxu0 0.0
        %4047 = vmatmul.mubr.f32.gmra.mrb[0].mxu0 %v3810
        %v4048 = vpop.f32.mrb[0].mxu0
        %v4049 = vadd.f32 0.0, %v4048
        %v4050 = vpop.f32.mrb[0].mxu0
        %4051 = vmatprep.mubr.f32.mxu0 0.0
        %4052 = vmatmul.mubr.f32.gmra.mrb[0].mxu0 %v3812
        %v4053 = vpop.f32.mrb[0].mxu0
        %v4054 = vadd.f32 0.0, %v4053
        %v4055 = vpop.f32.mrb[0].mxu0
        %4056 = vmatprep.mubr.f32.mxu0 0.0
        %4057 = vmatmul.mubr.f32.gmra.mrb[0].mxu0 %v3813
        %v4058 = vpop.f32.mrb[0].mxu0
        %v4059 = vadd.f32 0.0, %v4058
        %v4060 = vpop.f32.mrb[0].mxu0
        %4061 = vdwg.mxu0
        %4062 = vst [vmem:[#allocation2] sm:$0xff] %v3904
        %4063 = vst [vmem:[#allocation2 + $0x8] sm:$0xff] %v3909
        %4064 = vst [vmem:[#allocation2 + $0x10] sm:$0xff] %v3914
        %4065 = vst [vmem:[#allocation2 + $0x18] sm:$0xff] %v3919
        %4066 = vst [vmem:[#allocation2 + $0x20] sm:$0xff] %v3924
        %4067 = vst [vmem:[#allocation2 + $0x28] sm:$0xff] %v3929
        %4068 = vst [vmem:[#allocation2 + $0x30] sm:$0xff] %v3934
        %4069 = vst [vmem:[#allocation2 + $0x38] sm:$0xff] %v3939
        %4070 = vst [vmem:[#allocation2 + $0x40] sm:$0xff] %v3944
        %4071 = vst [vmem:[#allocation2 + $0x48] sm:$0xff] %v3949
        %4072 = vst [vmem:[#allocation2 + $0x50] sm:$0xff] %v3954
        %4073 = vst [vmem:[#allocation2 + $0x58] sm:$0xff] %v3959
        %4074 = vst [vmem:[#allocation2 + $0x60] sm:$0xff] %v3964
        %4075 = vst [vmem:[#allocation2 + $0x68] sm:$0xff] %v3969
        %4076 = vst [vmem:[#allocation2 + $0x70] sm:$0xff] %v3974
        %4077 = vst [vmem:[#allocation2 + $0x78] sm:$0xff] %v3979
        %4078 = vst [vmem:[#allocation2 + $0x80] sm:$0xff] %v3984
        %4079 = vst [vmem:[#allocation2 + $0x88] sm:$0xff] %v3989
        %4080 = vst [vmem:[#allocation2 + $0x90] sm:$0xff] %v3994
        %4081 = vst [vmem:[#allocation2 + $0x98] sm:$0xff] %v3999
        %4082 = vst [vmem:[#allocation2 + $0xa0] sm:$0xff] %v4004
        %4083 = vst [vmem:[#allocation2 + $0xa8] sm:$0xff] %v4009
        %4084 = vst [vmem:[#allocation2 + $0xb0] sm:$0xff] %v4014
        %4085 = vst [vmem:[#allocation2 + $0xb8] sm:$0xff] %v4019
        %4086 = vst [vmem:[#allocation2 + $0xc0] sm:$0xff] %v4024
        %4087 = vst [vmem:[#allocation2 + $0xc8] sm:$0xff] %v4029
        %4088 = vst [vmem:[#allocation2 + $0xd0] sm:$0xff] %v4034
        %4089 = vst [vmem:[#allocation2 + $0xd8] sm:$0xff] %v4039
        %4090 = vst [vmem:[#allocation2 + $0xe0] sm:$0xff] %v4044
        %4091 = vst [vmem:[#allocation2 + $0xe8] sm:$0xff] %v4049
        %4092 = vst [vmem:[#allocation2 + $0xf0] sm:$0xff] %v4054
        %4093 = vst [vmem:[#allocation2 + $0xf8] sm:$0xff] %v4059
        %v4142 = vrot.slane %v3767, 1
        %v4143 = vrot.slane %v3768, 1
        %v4144 = vsel %vm613, %v4142, %v4143
        %v4145 = vrot.slane %v3769, 1
        %v4146 = vsel %vm613, %v4143, %v4145
        %v4147 = vrot.slane %v3770, 1
        %v4148 = vrot.slane %v3771, 1
        %v4149 = vsel %vm613, %v4147, %v4148
        %v4150 = vrot.slane %v3772, 1
        %v4151 = vsel %vm613, %v4148, %v4150
        %v4152 = vrot.slane %v3773, 1
        %v4153 = vrot.slane %v3774, 1
        %v4154 = vsel %vm613, %v4152, %v4153
        %v4155 = vrot.slane %v3775, 1
        %v4156 = vsel %vm613, %v4153, %v4155
        %v4157 = vrot.slane %v3776, 1
        %v4158 = vrot.slane %v3777, 1
        %v4159 = vsel %vm613, %v4157, %v4158
        %v4160 = vrot.slane %v3778, 1
        %v4161 = vsel %vm613, %v4158, %v4160
        %v4162 = vrot.slane %v3779, 1
        %v4163 = vrot.slane %v3780, 1
        %v4164 = vsel %vm613, %v4162, %v4163
        %v4165 = vrot.slane %v3781, 1
        %v4166 = vsel %vm613, %v4163, %v4165
        %v4167 = vrot.slane %v3782, 1
        %v4168 = vrot.slane %v3783, 1
        %v4169 = vsel %vm613, %v4167, %v4168
        %v4170 = vrot.slane %v3784, 1
        %v4171 = vsel %vm613, %v4168, %v4170
        %v4172 = vrot.slane %v3785, 1
        %v4173 = vrot.slane %v3786, 1
        %v4174 = vsel %vm613, %v4172, %v4173
        %v4175 = vrot.slane %v3787, 1
        %v4176 = vsel %vm613, %v4173, %v4175
        %v4177 = vrot.slane %v3788, 1
        %v4178 = vrot.slane %v3789, 1
        %v4179 = vsel %vm613, %v4177, %v4178
        %v4180 = vrot.slane %v3790, 1
        %v4181 = vsel %vm613, %v4178, %v4180
        %v4182 = vrot.slane %v3791, 1
        %v4183 = vrot.slane %v3792, 1
        %v4184 = vsel %vm613, %v4182, %v4183
        %v4185 = vrot.slane %v3793, 1
        %v4186 = vsel %vm613, %v4183, %v4185
        %v4187 = vrot.slane %v3794, 1
        %v4188 = vrot.slane %v3795, 1
        %v4189 = vsel %vm613, %v4187, %v4188
        %v4190 = vrot.slane %v3796, 1
        %v4191 = vsel %vm613, %v4188, %v4190
        %v4192 = vrot.slane %v3797, 1
        %v4193 = vrot.slane %v3798, 1
        %v4194 = vsel %vm613, %v4192, %v4193
        %v4195 = vrot.slane %v3799, 1
        %v4196 = vsel %vm613, %v4193, %v4195
        %v4197 = vrot.slane %v3800, 1
        %v4198 = vrot.slane %v3801, 1
        %v4199 = vsel %vm613, %v4197, %v4198
        %v4200 = vrot.slane %v3802, 1
        %v4201 = vsel %vm613, %v4198, %v4200
        %v4202 = vrot.slane %v3803, 1
        %v4203 = vrot.slane %v3804, 1
        %v4204 = vsel %vm613, %v4202, %v4203
        %v4205 = vrot.slane %v3805, 1
        %v4206 = vsel %vm613, %v4203, %v4205
        %v4207 = vrot.slane %v3806, 1
        %v4208 = vrot.slane %v3807, 1
        %v4209 = vsel %vm613, %v4207, %v4208
        %v4210 = vrot.slane %v3808, 1
        %v4211 = vsel %vm613, %v4208, %v4210
        %v4212 = vrot.slane %v3809, 1
        %v4213 = vrot.slane %v3810, 1
        %v4214 = vsel %vm613, %v4212, %v4213
        %v4215 = vrot.slane %v3811, 1
        %v4216 = vsel %vm613, %v4213, %v4215
        %v4217 = vrot.slane %v3812, 1
        %v4218 = vrot.slane %v3813, 1
        %v4219 = vsel %vm613, %v4217, %v4218
        %v4220 = vrot.slane %v3814, 1
        %v4221 = vsel %vm613, %v4218, %v4220
        %s4254 = scalar_lea.vmem [#allocation4], 128
        %v4255 = vld [vmem:[%s4254] sm:$0xff]
        %v4256 = vld [vmem:[%s4254 + $0x8] sm:$0xff]
        %v4257 = vld [vmem:[%s4254 + $0x10] sm:$0xff]
        %v4258 = vld [vmem:[%s4254 + $0x18] sm:$0xff]
        %v4259 = vld [vmem:[%s4254 + $0x20] sm:$0xff]
        %v4260 = vld [vmem:[%s4254 + $0x28] sm:$0xff]
        %v4261 = vld [vmem:[%s4254 + $0x30] sm:$0xff]
        %v4262 = vld [vmem:[%s4254 + $0x38] sm:$0xff]
        %v4263 = vld [vmem:[%s4254 + $0x40] sm:$0xff]
        %v4264 = vld [vmem:[%s4254 + $0x48] sm:$0xff]
        %v4265 = vld [vmem:[%s4254 + $0x50] sm:$0xff]
        %v4266 = vld [vmem:[%s4254 + $0x58] sm:$0xff]
        %v4267 = vld [vmem:[%s4254 + $0x60] sm:$0xff]
        %v4268 = vld [vmem:[%s4254 + $0x68] sm:$0xff]
        %v4269 = vld [vmem:[%s4254 + $0x70] sm:$0xff]
        %v4270 = vld [vmem:[%s4254 + $0x78] sm:$0xff]
        %4271 = vmatprep.subr.mxu0 0.0
        %4272 = vmatpush1.msra.mxu0 %v4255
        %4273 = vmatprep.subr.mxu0 0.0
        %4274 = vmatpush1.msra.mxu0 %v4256
        %4275 = vmatprep.subr.mxu0 0.0
        %4276 = vmatpush1.msra.mxu0 %v4257
        %4277 = vmatprep.subr.mxu0 0.0
        %4278 = vmatpush1.msra.mxu0 %v4258
        %4279 = vmatprep.subr.mxu0 0.0
        %4280 = vmatpush1.msra.mxu0 %v4259
        %4281 = vmatprep.subr.mxu0 0.0
        %4282 = vmatpush1.msra.mxu0 %v4260
        %4283 = vmatprep.subr.mxu0 0.0
        %4284 = vmatpush1.msra.mxu0 %v4261
        %4285 = vmatprep.subr.mxu0 0.0
        %4286 = vmatpush1.msra.mxu0 %v4262
        %4287 = vmatprep.subr.mxu0 0.0
        %4288 = vmatpush1.msra.mxu0 %v4263
        %4289 = vmatprep.subr.mxu0 0.0
        %4290 = vmatpush1.msra.mxu0 %v4264
        %4291 = vmatprep.subr.mxu0 0.0
        %4292 = vmatpush1.msra.mxu0 %v4265
        %4293 = vmatprep.subr.mxu0 0.0
        %4294 = vmatpush1.msra.mxu0 %v4266
        %4295 = vmatprep.subr.mxu0 0.0
        %4296 = vmatpush1.msra.mxu0 %v4267
        %4297 = vmatprep.subr.mxu0 0.0
        %4298 = vmatpush1.msra.mxu0 %v4268
        %4299 = vmatprep.subr.mxu0 0.0
        %4300 = vmatpush1.msra.mxu0 %v4269
        %4301 = vmatprep.subr.mxu0 0.0
        %4302 = vmatpush1.msra.mxu0 %v4270
        %4303 = vmatprep.subr.mxu0 0.0
        %4304 = vmatpush1.msra.mxu0 0.0
        %4305 = vmatprep.subr.mxu0 0.0
        %4306 = vmatpush1.msra.mxu0 0.0
        %4307 = vmatprep.subr.mxu0 0.0
        %4308 = vmatpush1.msra.mxu0 0.0
        %4309 = vmatprep.subr.mxu0 0.0
        %4310 = vmatpush1.msra.mxu0 0.0
        %4311 = vmatprep.subr.mxu0 0.0
        %4312 = vmatpush1.msra.mxu0 0.0
        %4313 = vmatprep.subr.mxu0 0.0
        %4314 = vmatpush1.msra.mxu0 0.0
        %4315 = vmatprep.subr.mxu0 0.0
        %4316 = vmatpush1.msra.mxu0 0.0
        %4317 = vmatprep.subr.mxu0 0.0
        %4318 = vmatpush1.msra.mxu0 0.0
        %4319 = vmatprep.subr.mxu0 0.0
        %4320 = vmatpush1.msra.mxu0 0.0
        %4321 = vmatprep.subr.mxu0 0.0
        %4322 = vmatpush1.msra.mxu0 0.0
        %4323 = vmatprep.subr.mxu0 0.0
        %4324 = vmatpush1.msra.mxu0 0.0
        %4325 = vmatprep.subr.mxu0 0.0
        %4326 = vmatpush1.msra.mxu0 0.0
        %4327 = vmatprep.subr.mxu0 0.0
        %4328 = vmatpush1.msra.mxu0 0.0
        %4329 = vmatprep.subr.mxu0 0.0
        %4330 = vmatpush1.msra.mxu0 0.0
        %4331 = vmatprep.subr.mxu0 0.0
        %4332 = vmatpush1.msra.mxu0 0.0
        %4333 = vmatprep.subr.mxu0 0.0
        %4334 = vmatpush1.msra.mxu0 0.0
        %4335 = vmatprep.mubr.f32.mxu0 0.0
        %4336 = vmatmul.mubr.f32.gmra.mrb[0].mxu0 %v4144
        %v4337 = vpop.f32.mrb[0].mxu0
        %v4338 = vadd.f32 0.0, %v4337
        %v4339 = vpop.f32.mrb[0].mxu0
        %4340 = vmatprep.mubr.f32.mxu0 0.0
        %4341 = vmatmul.mubr.f32.gmra.mrb[0].mxu0 %v4146
        %v4342 = vpop.f32.mrb[0].mxu0
        %v4343 = vadd.f32 0.0, %v4342
        %v4344 = vpop.f32.mrb[0].mxu0
        %4345 = vmatprep.mubr.f32.mxu0 0.0
        %4346 = vmatmul.mubr.f32.gmra.mrb[0].mxu0 %v4149
        %v4347 = vpop.f32.mrb[0].mxu0
        %v4348 = vadd.f32 0.0, %v4347
        %v4349 = vpop.f32.mrb[0].mxu0
        %4350 = vmatprep.mubr.f32.mxu0 0.0
        %4351 = vmatmul.mubr.f32.gmra.mrb[0].mxu0 %v4151
        %v4352 = vpop.f32.mrb[0].mxu0
        %v4353 = vadd.f32 0.0, %v4352
        %v4354 = vpop.f32.mrb[0].mxu0
        %4355 = vmatprep.mubr.f32.mxu0 0.0
        %4356 = vmatmul.mubr.f32.gmra.mrb[0].mxu0 %v4154
        %v4357 = vpop.f32.mrb[0].mxu0
        %v4358 = vadd.f32 0.0, %v4357
        %v4359 = vpop.f32.mrb[0].mxu0
        %4360 = vmatprep.mubr.f32.mxu0 0.0
        %4361 = vmatmul.mubr.f32.gmra.mrb[0].mxu0 %v4156
        %v4362 = vpop.f32.mrb[0].mxu0
        %v4363 = vadd.f32 0.0, %v4362
        %v4364 = vpop.f32.mrb[0].mxu0
        %4365 = vmatprep.mubr.f32.mxu0 0.0
        %4366 = vmatmul.mubr.f32.gmra.mrb[0].mxu0 %v4159
        %v4367 = vpop.f32.mrb[0].mxu0
        %v4368 = vadd.f32 0.0, %v4367
        %v4369 = vpop.f32.mrb[0].mxu0
        %4370 = vmatprep.mubr.f32.mxu0 0.0
        %4371 = vmatmul.mubr.f32.gmra.mrb[0].mxu0 %v4161
        %v4372 = vpop.f32.mrb[0].mxu0
        %v4373 = vadd.f32 0.0, %v4372
        %v4374 = vpop.f32.mrb[0].mxu0
        %4375 = vmatprep.mubr.f32.mxu0 0.0
        %4376 = vmatmul.mubr.f32.gmra.mrb[0].mxu0 %v4164
        %v4377 = vpop.f32.mrb[0].mxu0
        %v4378 = vadd.f32 0.0, %v4377
        %v4379 = vpop.f32.mrb[0].mxu0
        %4380 = vmatprep.mubr.f32.mxu0 0.0
        %4381 = vmatmul.mubr.f32.gmra.mrb[0].mxu0 %v4166
        %v4382 = vpop.f32.mrb[0].mxu0
        %v4383 = vadd.f32 0.0, %v4382
        %v4384 = vpop.f32.mrb[0].mxu0
        %4385 = vmatprep.mubr.f32.mxu0 0.0
        %4386 = vmatmul.mubr.f32.gmra.mrb[0].mxu0 %v4169
        %v4387 = vpop.f32.mrb[0].mxu0
        %v4388 = vadd.f32 0.0, %v4387
        %v4389 = vpop.f32.mrb[0].mxu0
        %4390 = vmatprep.mubr.f32.mxu0 0.0
        %4391 = vmatmul.mubr.f32.gmra.mrb[0].mxu0 %v4171
        %v4392 = vpop.f32.mrb[0].mxu0
        %v4393 = vadd.f32 0.0, %v4392
        %v4394 = vpop.f32.mrb[0].mxu0
        %4395 = vmatprep.mubr.f32.mxu0 0.0
        %4396 = vmatmul.mubr.f32.gmra.mrb[0].mxu0 %v4174
        %v4397 = vpop.f32.mrb[0].mxu0
        %v4398 = vadd.f32 0.0, %v4397
        %v4399 = vpop.f32.mrb[0].mxu0
        %4400 = vmatprep.mubr.f32.mxu0 0.0
        %4401 = vmatmul.mubr.f32.gmra.mrb[0].mxu0 %v4176
        %v4402 = vpop.f32.mrb[0].mxu0
        %v4403 = vadd.f32 0.0, %v4402
        %v4404 = vpop.f32.mrb[0].mxu0
        %4405 = vmatprep.mubr.f32.mxu0 0.0
        %4406 = vmatmul.mubr.f32.gmra.mrb[0].mxu0 %v4179
        %v4407 = vpop.f32.mrb[0].mxu0
        %v4408 = vadd.f32 0.0, %v4407
        %v4409 = vpop.f32.mrb[0].mxu0
        %4410 = vmatprep.mubr.f32.mxu0 0.0
        %4411 = vmatmul.mubr.f32.gmra.mrb[0].mxu0 %v4181
        %v4412 = vpop.f32.mrb[0].mxu0
        %v4413 = vadd.f32 0.0, %v4412
        %v4414 = vpop.f32.mrb[0].mxu0
        %4415 = vmatprep.mubr.f32.mxu0 0.0
        %4416 = vmatmul.mubr.f32.gmra.mrb[0].mxu0 %v4184
        %v4417 = vpop.f32.mrb[0].mxu0
        %v4418 = vadd.f32 0.0, %v4417
        %v4419 = vpop.f32.mrb[0].mxu0
        %4420 = vmatprep.mubr.f32.mxu0 0.0
        %4421 = vmatmul.mubr.f32.gmra.mrb[0].mxu0 %v4186
        %v4422 = vpop.f32.mrb[0].mxu0
        %v4423 = vadd.f32 0.0, %v4422
        %v4424 = vpop.f32.mrb[0].mxu0
        %4425 = vmatprep.mubr.f32.mxu0 0.0
        %4426 = vmatmul.mubr.f32.gmra.mrb[0].mxu0 %v4189
        %v4427 = vpop.f32.mrb[0].mxu0
        %v4428 = vadd.f32 0.0, %v4427
        %v4429 = vpop.f32.mrb[0].mxu0
        %4430 = vmatprep.mubr.f32.mxu0 0.0
        %4431 = vmatmul.mubr.f32.gmra.mrb[0].mxu0 %v4191
        %v4432 = vpop.f32.mrb[0].mxu0
        %v4433 = vadd.f32 0.0, %v4432
        %v4434 = vpop.f32.mrb[0].mxu0
        %4435 = vmatprep.mubr.f32.mxu0 0.0
        %4436 = vmatmul.mubr.f32.gmra.mrb[0].mxu0 %v4194
        %v4437 = vpop.f32.mrb[0].mxu0
        %v4438 = vadd.f32 0.0, %v4437
        %v4439 = vpop.f32.mrb[0].mxu0
        %4440 = vmatprep.mubr.f32.mxu0 0.0
        %4441 = vmatmul.mubr.f32.gmra.mrb[0].mxu0 %v4196
        %v4442 = vpop.f32.mrb[0].mxu0
        %v4443 = vadd.f32 0.0, %v4442
        %v4444 = vpop.f32.mrb[0].mxu0
        %4445 = vmatprep.mubr.f32.mxu0 0.0
        %4446 = vmatmul.mubr.f32.gmra.mrb[0].mxu0 %v4199
        %v4447 = vpop.f32.mrb[0].mxu0
        %v4448 = vadd.f32 0.0, %v4447
        %v4449 = vpop.f32.mrb[0].mxu0
        %4450 = vmatprep.mubr.f32.mxu0 0.0
        %4451 = vmatmul.mubr.f32.gmra.mrb[0].mxu0 %v4201
        %v4452 = vpop.f32.mrb[0].mxu0
        %v4453 = vadd.f32 0.0, %v4452
        %v4454 = vpop.f32.mrb[0].mxu0
        %4455 = vmatprep.mubr.f32.mxu0 0.0
        %4456 = vmatmul.mubr.f32.gmra.mrb[0].mxu0 %v4204
        %v4457 = vpop.f32.mrb[0].mxu0
        %v4458 = vadd.f32 0.0, %v4457
        %v4459 = vpop.f32.mrb[0].mxu0
        %4460 = vmatprep.mubr.f32.mxu0 0.0
        %4461 = vmatmul.mubr.f32.gmra.mrb[0].mxu0 %v4206
        %v4462 = vpop.f32.mrb[0].mxu0
        %v4463 = vadd.f32 0.0, %v4462
        %v4464 = vpop.f32.mrb[0].mxu0
        %4465 = vmatprep.mubr.f32.mxu0 0.0
        %4466 = vmatmul.mubr.f32.gmra.mrb[0].mxu0 %v4209
        %v4467 = vpop.f32.mrb[0].mxu0
        %v4468 = vadd.f32 0.0, %v4467
        %v4469 = vpop.f32.mrb[0].mxu0
        %4470 = vmatprep.mubr.f32.mxu0 0.0
        %4471 = vmatmul.mubr.f32.gmra.mrb[0].mxu0 %v4211
        %v4472 = vpop.f32.mrb[0].mxu0
        %v4473 = vadd.f32 0.0, %v4472
        %v4474 = vpop.f32.mrb[0].mxu0
        %4475 = vmatprep.mubr.f32.mxu0 0.0
        %4476 = vmatmul.mubr.f32.gmra.mrb[0].mxu0 %v4214
        %v4477 = vpop.f32.mrb[0].mxu0
        %v4478 = vadd.f32 0.0, %v4477
        %v4479 = vpop.f32.mrb[0].mxu0
        %4480 = vmatprep.mubr.f32.mxu0 0.0
        %4481 = vmatmul.mubr.f32.gmra.mrb[0].mxu0 %v4216
        %v4482 = vpop.f32.mrb[0].mxu0
        %v4483 = vadd.f32 0.0, %v4482
        %v4484 = vpop.f32.mrb[0].mxu0
        %4485 = vmatprep.mubr.f32.mxu0 0.0
        %4486 = vmatmul.mubr.f32.gmra.mrb[0].mxu0 %v4219
        %v4487 = vpop.f32.mrb[0].mxu0
        %v4488 = vadd.f32 0.0, %v4487
        %v4489 = vpop.f32.mrb[0].mxu0
        %4490 = vmatprep.mubr.f32.mxu0 0.0
        %4491 = vmatmul.mubr.f32.gmra.mrb[0].mxu0 %v4221
        %v4492 = vpop.f32.mrb[0].mxu0
        %v4493 = vadd.f32 0.0, %v4492
        %v4494 = vpop.f32.mrb[0].mxu0
        %4495 = vdwg.mxu0
        %v4496 = vld [vmem:[#allocation2] sm:$0xff]
        %v4497 = vld [vmem:[#allocation2 + $0x8] sm:$0xff]
        %v4498 = vld [vmem:[#allocation2 + $0x10] sm:$0xff]
        %v4499 = vld [vmem:[#allocation2 + $0x18] sm:$0xff]
        %v4500 = vld [vmem:[#allocation2 + $0x20] sm:$0xff]
        %v4501 = vld [vmem:[#allocation2 + $0x28] sm:$0xff]
        %v4502 = vld [vmem:[#allocation2 + $0x30] sm:$0xff]
        %v4503 = vld [vmem:[#allocation2 + $0x38] sm:$0xff]
        %v4504 = vld [vmem:[#allocation2 + $0x40] sm:$0xff]
        %v4505 = vld [vmem:[#allocation2 + $0x48] sm:$0xff]
        %v4506 = vld [vmem:[#allocation2 + $0x50] sm:$0xff]
        %v4507 = vld [vmem:[#allocation2 + $0x58] sm:$0xff]
        %v4508 = vld [vmem:[#allocation2 + $0x60] sm:$0xff]
        %v4509 = vld [vmem:[#allocation2 + $0x68] sm:$0xff]
        %v4510 = vld [vmem:[#allocation2 + $0x70] sm:$0xff]
        %v4511 = vld [vmem:[#allocation2 + $0x78] sm:$0xff]
        %v4512 = vld [vmem:[#allocation2 + $0x80] sm:$0xff]
        %v4513 = vld [vmem:[#allocation2 + $0x88] sm:$0xff]
        %v4514 = vld [vmem:[#allocation2 + $0x90] sm:$0xff]
        %v4515 = vld [vmem:[#allocation2 + $0x98] sm:$0xff]
        %v4516 = vld [vmem:[#allocation2 + $0xa0] sm:$0xff]
        %v4517 = vld [vmem:[#allocation2 + $0xa8] sm:$0xff]
        %v4518 = vld [vmem:[#allocation2 + $0xb0] sm:$0xff]
        %v4519 = vld [vmem:[#allocation2 + $0xb8] sm:$0xff]
        %v4520 = vld [vmem:[#allocation2 + $0xc0] sm:$0xff]
        %v4521 = vld [vmem:[#allocation2 + $0xc8] sm:$0xff]
        %v4522 = vld [vmem:[#allocation2 + $0xd0] sm:$0xff]
        %v4523 = vld [vmem:[#allocation2 + $0xd8] sm:$0xff]
        %v4524 = vld [vmem:[#allocation2 + $0xe0] sm:$0xff]
        %v4525 = vld [vmem:[#allocation2 + $0xe8] sm:$0xff]
        %v4526 = vld [vmem:[#allocation2 + $0xf0] sm:$0xff]
        %v4527 = vld [vmem:[#allocation2 + $0xf8] sm:$0xff]
        %v4528 = vadd.f32 %v4496, %v4338
        %v4529 = vadd.f32 %v4497, %v4343
        %v4530 = vadd.f32 %v4498, %v4348
        %v4531 = vadd.f32 %v4499, %v4353
        %v4532 = vadd.f32 %v4500, %v4358
        %v4533 = vadd.f32 %v4501, %v4363
        %v4534 = vadd.f32 %v4502, %v4368
        %v4535 = vadd.f32 %v4503, %v4373
        %v4536 = vadd.f32 %v4504, %v4378
        %v4537 = vadd.f32 %v4505, %v4383
        %v4538 = vadd.f32 %v4506, %v4388
        %v4539 = vadd.f32 %v4507, %v4393
        %v4540 = vadd.f32 %v4508, %v4398
        %v4541 = vadd.f32 %v4509, %v4403
        %v4542 = vadd.f32 %v4510, %v4408
        %v4543 = vadd.f32 %v4511, %v4413
        %v4544 = vadd.f32 %v4512, %v4418
        %v4545 = vadd.f32 %v4513, %v4423
        %v4546 = vadd.f32 %v4514, %v4428
        %v4547 = vadd.f32 %v4515, %v4433
        %v4548 = vadd.f32 %v4516, %v4438
        %v4549 = vadd.f32 %v4517, %v4443
        %v4550 = vadd.f32 %v4518, %v4448
        %v4551 = vadd.f32 %v4519, %v4453
        %v4552 = vadd.f32 %v4520, %v4458
        %v4553 = vadd.f32 %v4521, %v4463
        %v4554 = vadd.f32 %v4522, %v4468
        %v4555 = vadd.f32 %v4523, %v4473
        %v4556 = vadd.f32 %v4524, %v4478
        %v4557 = vadd.f32 %v4525, %v4483
        %v4558 = vadd.f32 %v4526, %v4488
        %v4559 = vadd.f32 %v4527, %v4493
        %4560 = vst [vmem:[#allocation2] sm:$0xff] %v4528
        %4561 = vst [vmem:[#allocation2 + $0x8] sm:$0xff] %v4529
        %4562 = vst [vmem:[#allocation2 + $0x10] sm:$0xff] %v4530
        %4563 = vst [vmem:[#allocation2 + $0x18] sm:$0xff] %v4531
        %4564 = vst [vmem:[#allocation2 + $0x20] sm:$0xff] %v4532
        %4565 = vst [vmem:[#allocation2 + $0x28] sm:$0xff] %v4533
        %4566 = vst [vmem:[#allocation2 + $0x30] sm:$0xff] %v4534
        %4567 = vst [vmem:[#allocation2 + $0x38] sm:$0xff] %v4535
        %4568 = vst [vmem:[#allocation2 + $0x40] sm:$0xff] %v4536
        %4569 = vst [vmem:[#allocation2 + $0x48] sm:$0xff] %v4537
        %4570 = vst [vmem:[#allocation2 + $0x50] sm:$0xff] %v4538
        %4571 = vst [vmem:[#allocation2 + $0x58] sm:$0xff] %v4539
        %4572 = vst [vmem:[#allocation2 + $0x60] sm:$0xff] %v4540
        %4573 = vst [vmem:[#allocation2 + $0x68] sm:$0xff] %v4541
        %4574 = vst [vmem:[#allocation2 + $0x70] sm:$0xff] %v4542
        %4575 = vst [vmem:[#allocation2 + $0x78] sm:$0xff] %v4543
        %4576 = vst [vmem:[#allocation2 + $0x80] sm:$0xff] %v4544
        %4577 = vst [vmem:[#allocation2 + $0x88] sm:$0xff] %v4545
        %4578 = vst [vmem:[#allocation2 + $0x90] sm:$0xff] %v4546
        %4579 = vst [vmem:[#allocation2 + $0x98] sm:$0xff] %v4547
        %4580 = vst [vmem:[#allocation2 + $0xa0] sm:$0xff] %v4548
        %4581 = vst [vmem:[#allocation2 + $0xa8] sm:$0xff] %v4549
        %4582 = vst [vmem:[#allocation2 + $0xb0] sm:$0xff] %v4550
        %4583 = vst [vmem:[#allocation2 + $0xb8] sm:$0xff] %v4551
        %4584 = vst [vmem:[#allocation2 + $0xc0] sm:$0xff] %v4552
        %4585 = vst [vmem:[#allocation2 + $0xc8] sm:$0xff] %v4553
        %4586 = vst [vmem:[#allocation2 + $0xd0] sm:$0xff] %v4554
        %4587 = vst [vmem:[#allocation2 + $0xd8] sm:$0xff] %v4555
        %4588 = vst [vmem:[#allocation2 + $0xe0] sm:$0xff] %v4556
        %4589 = vst [vmem:[#allocation2 + $0xe8] sm:$0xff] %v4557
        %4590 = vst [vmem:[#allocation2 + $0xf0] sm:$0xff] %v4558
        %4591 = vst [vmem:[#allocation2 + $0xf8] sm:$0xff] %v4559
        %v4592 = vrot.slane %v3767, 2
        %v4593 = vrot.slane %v3768, 2
        %v4594 = vsel %vm1064, %v4592, %v4593
        %v4595 = vrot.slane %v3769, 2
        %v4596 = vsel %vm1064, %v4593, %v4595
        %v4597 = vrot.slane %v3770, 2
        %v4598 = vrot.slane %v3771, 2
        %v4599 = vsel %vm1064, %v4597, %v4598
        %v4600 = vrot.slane %v3772, 2
        %v4601 = vsel %vm1064, %v4598, %v4600
        %v4602 = vrot.slane %v3773, 2
        %v4603 = vrot.slane %v3774, 2
        %v4604 = vsel %vm1064, %v4602, %v4603
        %v4605 = vrot.slane %v3775, 2
        %v4606 = vsel %vm1064, %v4603, %v4605
        %v4607 = vrot.slane %v3776, 2
        %v4608 = vrot.slane %v3777, 2
        %v4609 = vsel %vm1064, %v4607, %v4608
        %v4610 = vrot.slane %v3778, 2
        %v4611 = vsel %vm1064, %v4608, %v4610
        %v4612 = vrot.slane %v3779, 2
        %v4613 = vrot.slane %v3780, 2
        %v4614 = vsel %vm1064, %v4612, %v4613
        %v4615 = vrot.slane %v3781, 2
        %v4616 = vsel %vm1064, %v4613, %v4615
        %v4617 = vrot.slane %v3782, 2
        %v4618 = vrot.slane %v3783, 2
        %v4619 = vsel %vm1064, %v4617, %v4618
        %v4620 = vrot.slane %v3784, 2
        %v4621 = vsel %vm1064, %v4618, %v4620
        %v4622 = vrot.slane %v3785, 2
        %v4623 = vrot.slane %v3786, 2
        %v4624 = vsel %vm1064, %v4622, %v4623
        %v4625 = vrot.slane %v3787, 2
        %v4626 = vsel %vm1064, %v4623, %v4625
        %v4627 = vrot.slane %v3788, 2
        %v4628 = vrot.slane %v3789, 2
        %v4629 = vsel %vm1064, %v4627, %v4628
        %v4630 = vrot.slane %v3790, 2
        %v4631 = vsel %vm1064, %v4628, %v4630
        %v4632 = vrot.slane %v3791, 2
        %v4633 = vrot.slane %v3792, 2
        %v4634 = vsel %vm1064, %v4632, %v4633
        %v4635 = vrot.slane %v3793, 2
        %v4636 = vsel %vm1064, %v4633, %v4635
        %v4637 = vrot.slane %v3794, 2
        %v4638 = vrot.slane %v3795, 2
        %v4639 = vsel %vm1064, %v4637, %v4638
        %v4640 = vrot.slane %v3796, 2
        %v4641 = vsel %vm1064, %v4638, %v4640
        %v4642 = vrot.slane %v3797, 2
        %v4643 = vrot.slane %v3798, 2
        %v4644 = vsel %vm1064, %v4642, %v4643
        %v4645 = vrot.slane %v3799, 2
        %v4646 = vsel %vm1064, %v4643, %v4645
        %v4647 = vrot.slane %v3800, 2
        %v4648 = vrot.slane %v3801, 2
        %v4649 = vsel %vm1064, %v4647, %v4648
        %v4650 = vrot.slane %v3802, 2
        %v4651 = vsel %vm1064, %v4648, %v4650
        %v4652 = vrot.slane %v3803, 2
        %v4653 = vrot.slane %v3804, 2
        %v4654 = vsel %vm1064, %v4652, %v4653
        %v4655 = vrot.slane %v3805, 2
        %v4656 = vsel %vm1064, %v4653, %v4655
        %v4657 = vrot.slane %v3806, 2
        %v4658 = vrot.slane %v3807, 2
        %v4659 = vsel %vm1064, %v4657, %v4658
        %v4660 = vrot.slane %v3808, 2
        %v4661 = vsel %vm1064, %v4658, %v4660
        %v4662 = vrot.slane %v3809, 2
        %v4663 = vrot.slane %v3810, 2
        %v4664 = vsel %vm1064, %v4662, %v4663
        %v4665 = vrot.slane %v3811, 2
        %v4666 = vsel %vm1064, %v4663, %v4665
        %v4667 = vrot.slane %v3812, 2
        %v4668 = vrot.slane %v3813, 2
        %v4669 = vsel %vm1064, %v4667, %v4668
        %v4670 = vrot.slane %v3814, 2
        %v4671 = vsel %vm1064, %v4668, %v4670
        %s4704 = scalar_lea.vmem [#allocation4], 256
        %v4705 = vld [vmem:[%s4704] sm:$0xff]
        %v4706 = vld [vmem:[%s4704 + $0x8] sm:$0xff]
        %v4707 = vld [vmem:[%s4704 + $0x10] sm:$0xff]
        %v4708 = vld [vmem:[%s4704 + $0x18] sm:$0xff]
        %v4709 = vld [vmem:[%s4704 + $0x20] sm:$0xff]
        %v4710 = vld [vmem:[%s4704 + $0x28] sm:$0xff]
        %v4711 = vld [vmem:[%s4704 + $0x30] sm:$0xff]
        %v4712 = vld [vmem:[%s4704 + $0x38] sm:$0xff]
        %v4713 = vld [vmem:[%s4704 + $0x40] sm:$0xff]
        %v4714 = vld [vmem:[%s4704 + $0x48] sm:$0xff]
        %v4715 = vld [vmem:[%s4704 + $0x50] sm:$0xff]
        %v4716 = vld [vmem:[%s4704 + $0x58] sm:$0xff]
        %v4717 = vld [vmem:[%s4704 + $0x60] sm:$0xff]
        %v4718 = vld [vmem:[%s4704 + $0x68] sm:$0xff]
        %v4719 = vld [vmem:[%s4704 + $0x70] sm:$0xff]
        %v4720 = vld [vmem:[%s4704 + $0x78] sm:$0xff]
        %4721 = vmatprep.subr.mxu0 0.0
        %4722 = vmatpush1.msra.mxu0 %v4705
        %4723 = vmatprep.subr.mxu0 0.0
        %4724 = vmatpush1.msra.mxu0 %v4706
        %4725 = vmatprep.subr.mxu0 0.0
        %4726 = vmatpush1.msra.mxu0 %v4707
        %4727 = vmatprep.subr.mxu0 0.0
        %4728 = vmatpush1.msra.mxu0 %v4708
        %4729 = vmatprep.subr.mxu0 0.0
        %4730 = vmatpush1.msra.mxu0 %v4709
        %4731 = vmatprep.subr.mxu0 0.0
        %4732 = vmatpush1.msra.mxu0 %v4710
        %4733 = vmatprep.subr.mxu0 0.0
        %4734 = vmatpush1.msra.mxu0 %v4711
        %4735 = vmatprep.subr.mxu0 0.0
        %4736 = vmatpush1.msra.mxu0 %v4712
        %4737 = vmatprep.subr.mxu0 0.0
        %4738 = vmatpush1.msra.mxu0 %v4713
        %4739 = vmatprep.subr.mxu0 0.0
        %4740 = vmatpush1.msra.mxu0 %v4714
        %4741 = vmatprep.subr.mxu0 0.0
        %4742 = vmatpush1.msra.mxu0 %v4715
        %4743 = vmatprep.subr.mxu0 0.0
        %4744 = vmatpush1.msra.mxu0 %v4716
        %4745 = vmatprep.subr.mxu0 0.0
        %4746 = vmatpush1.msra.mxu0 %v4717
        %4747 = vmatprep.subr.mxu0 0.0
        %4748 = vmatpush1.msra.mxu0 %v4718
        %4749 = vmatprep.subr.mxu0 0.0
        %4750 = vmatpush1.msra.mxu0 %v4719
        %4751 = vmatprep.subr.mxu0 0.0
        %4752 = vmatpush1.msra.mxu0 %v4720
        %4753 = vmatprep.subr.mxu0 0.0
        %4754 = vmatpush1.msra.mxu0 0.0
        %4755 = vmatprep.subr.mxu0 0.0
        %4756 = vmatpush1.msra.mxu0 0.0
        %4757 = vmatprep.subr.mxu0 0.0
        %4758 = vmatpush1.msra.mxu0 0.0
        %4759 = vmatprep.subr.mxu0 0.0
        %4760 = vmatpush1.msra.mxu0 0.0
        %4761 = vmatprep.subr.mxu0 0.0
        %4762 = vmatpush1.msra.mxu0 0.0
        %4763 = vmatprep.subr.mxu0 0.0
        %4764 = vmatpush1.msra.mxu0 0.0
        %4765 = vmatprep.subr.mxu0 0.0
        %4766 = vmatpush1.msra.mxu0 0.0
        %4767 = vmatprep.subr.mxu0 0.0
        %4768 = vmatpush1.msra.mxu0 0.0
        %4769 = vmatprep.subr.mxu0 0.0
        %4770 = vmatpush1.msra.mxu0 0.0
        %4771 = vmatprep.subr.mxu0 0.0
        %4772 = vmatpush1.msra.mxu0 0.0
        %4773 = vmatprep.subr.mxu0 0.0
        %4774 = vmatpush1.msra.mxu0 0.0
        %4775 = vmatprep.subr.mxu0 0.0
        %4776 = vmatpush1.msra.mxu0 0.0
        %4777 = vmatprep.subr.mxu0 0.0
        %4778 = vmatpush1.msra.mxu0 0.0
        %4779 = vmatprep.subr.mxu0 0.0
        %4780 = vmatpush1.msra.mxu0 0.0
        %4781 = vmatprep.subr.mxu0 0.0
        %4782 = vmatpush1.msra.mxu0 0.0
        %4783 = vmatprep.subr.mxu0 0.0
        %4784 = vmatpush1.msra.mxu0 0.0
        %4785 = vmatprep.mubr.f32.mxu0 0.0
        %4786 = vmatmul.mubr.f32.gmra.mrb[0].mxu0 %v4594
        %v4787 = vpop.f32.mrb[0].mxu0
        %v4788 = vadd.f32 0.0, %v4787
        %v4789 = vpop.f32.mrb[0].mxu0
        %4790 = vmatprep.mubr.f32.mxu0 0.0
        %4791 = vmatmul.mubr.f32.gmra.mrb[0].mxu0 %v4596
        %v4792 = vpop.f32.mrb[0].mxu0
        %v4793 = vadd.f32 0.0, %v4792
        %v4794 = vpop.f32.mrb[0].mxu0
        %4795 = vmatprep.mubr.f32.mxu0 0.0
        %4796 = vmatmul.mubr.f32.gmra.mrb[0].mxu0 %v4599
        %v4797 = vpop.f32.mrb[0].mxu0
        %v4798 = vadd.f32 0.0, %v4797
        %v4799 = vpop.f32.mrb[0].mxu0
        %4800 = vmatprep.mubr.f32.mxu0 0.0
        %4801 = vmatmul.mubr.f32.gmra.mrb[0].mxu0 %v4601
        %v4802 = vpop.f32.mrb[0].mxu0
        %v4803 = vadd.f32 0.0, %v4802
        %v4804 = vpop.f32.mrb[0].mxu0
        %4805 = vmatprep.mubr.f32.mxu0 0.0
        %4806 = vmatmul.mubr.f32.gmra.mrb[0].mxu0 %v4604
        %v4807 = vpop.f32.mrb[0].mxu0
        %v4808 = vadd.f32 0.0, %v4807
        %v4809 = vpop.f32.mrb[0].mxu0
        %4810 = vmatprep.mubr.f32.mxu0 0.0
        %4811 = vmatmul.mubr.f32.gmra.mrb[0].mxu0 %v4606
        %v4812 = vpop.f32.mrb[0].mxu0
        %v4813 = vadd.f32 0.0, %v4812
        %v4814 = vpop.f32.mrb[0].mxu0
        %4815 = vmatprep.mubr.f32.mxu0 0.0
        %4816 = vmatmul.mubr.f32.gmra.mrb[0].mxu0 %v4609
        %v4817 = vpop.f32.mrb[0].mxu0
        %v4818 = vadd.f32 0.0, %v4817
        %v4819 = vpop.f32.mrb[0].mxu0
        %4820 = vmatprep.mubr.f32.mxu0 0.0
        %4821 = vmatmul.mubr.f32.gmra.mrb[0].mxu0 %v4611
        %v4822 = vpop.f32.mrb[0].mxu0
        %v4823 = vadd.f32 0.0, %v4822
        %v4824 = vpop.f32.mrb[0].mxu0
        %4825 = vmatprep.mubr.f32.mxu0 0.0
        %4826 = vmatmul.mubr.f32.gmra.mrb[0].mxu0 %v4614
        %v4827 = vpop.f32.mrb[0].mxu0
        %v4828 = vadd.f32 0.0, %v4827
        %v4829 = vpop.f32.mrb[0].mxu0
        %4830 = vmatprep.mubr.f32.mxu0 0.0
        %4831 = vmatmul.mubr.f32.gmra.mrb[0].mxu0 %v4616
        %v4832 = vpop.f32.mrb[0].mxu0
        %v4833 = vadd.f32 0.0, %v4832
        %v4834 = vpop.f32.mrb[0].mxu0
        %4835 = vmatprep.mubr.f32.mxu0 0.0
        %4836 = vmatmul.mubr.f32.gmra.mrb[0].mxu0 %v4619
        %v4837 = vpop.f32.mrb[0].mxu0
        %v4838 = vadd.f32 0.0, %v4837
        %v4839 = vpop.f32.mrb[0].mxu0
        %4840 = vmatprep.mubr.f32.mxu0 0.0
        %4841 = vmatmul.mubr.f32.gmra.mrb[0].mxu0 %v4621
        %v4842 = vpop.f32.mrb[0].mxu0
        %v4843 = vadd.f32 0.0, %v4842
        %v4844 = vpop.f32.mrb[0].mxu0
        %4845 = vmatprep.mubr.f32.mxu0 0.0
        %4846 = vmatmul.mubr.f32.gmra.mrb[0].mxu0 %v4624
        %v4847 = vpop.f32.mrb[0].mxu0
        %v4848 = vadd.f32 0.0, %v4847
        %v4849 = vpop.f32.mrb[0].mxu0
        %4850 = vmatprep.mubr.f32.mxu0 0.0
        %4851 = vmatmul.mubr.f32.gmra.mrb[0].mxu0 %v4626
        %v4852 = vpop.f32.mrb[0].mxu0
        %v4853 = vadd.f32 0.0, %v4852
        %v4854 = vpop.f32.mrb[0].mxu0
        %4855 = vmatprep.mubr.f32.mxu0 0.0
        %4856 = vmatmul.mubr.f32.gmra.mrb[0].mxu0 %v4629
        %v4857 = vpop.f32.mrb[0].mxu0
        %v4858 = vadd.f32 0.0, %v4857
        %v4859 = vpop.f32.mrb[0].mxu0
        %4860 = vmatprep.mubr.f32.mxu0 0.0
        %4861 = vmatmul.mubr.f32.gmra.mrb[0].mxu0 %v4631
        %v4862 = vpop.f32.mrb[0].mxu0
        %v4863 = vadd.f32 0.0, %v4862
        %v4864 = vpop.f32.mrb[0].mxu0
        %4865 = vmatprep.mubr.f32.mxu0 0.0
        %4866 = vmatmul.mubr.f32.gmra.mrb[0].mxu0 %v4634
        %v4867 = vpop.f32.mrb[0].mxu0
        %v4868 = vadd.f32 0.0, %v4867
        %v4869 = vpop.f32.mrb[0].mxu0
        %4870 = vmatprep.mubr.f32.mxu0 0.0
        %4871 = vmatmul.mubr.f32.gmra.mrb[0].mxu0 %v4636
        %v4872 = vpop.f32.mrb[0].mxu0
        %v4873 = vadd.f32 0.0, %v4872
        %v4874 = vpop.f32.mrb[0].mxu0
        %4875 = vmatprep.mubr.f32.mxu0 0.0
        %4876 = vmatmul.mubr.f32.gmra.mrb[0].mxu0 %v4639
        %v4877 = vpop.f32.mrb[0].mxu0
        %v4878 = vadd.f32 0.0, %v4877
        %v4879 = vpop.f32.mrb[0].mxu0
        %4880 = vmatprep.mubr.f32.mxu0 0.0
        %4881 = vmatmul.mubr.f32.gmra.mrb[0].mxu0 %v4641
        %v4882 = vpop.f32.mrb[0].mxu0
        %v4883 = vadd.f32 0.0, %v4882
        %v4884 = vpop.f32.mrb[0].mxu0
        %4885 = vmatprep.mubr.f32.mxu0 0.0
        %4886 = vmatmul.mubr.f32.gmra.mrb[0].mxu0 %v4644
        %v4887 = vpop.f32.mrb[0].mxu0
        %v4888 = vadd.f32 0.0, %v4887
        %v4889 = vpop.f32.mrb[0].mxu0
        %4890 = vmatprep.mubr.f32.mxu0 0.0
        %4891 = vmatmul.mubr.f32.gmra.mrb[0].mxu0 %v4646
        %v4892 = vpop.f32.mrb[0].mxu0
        %v4893 = vadd.f32 0.0, %v4892
        %v4894 = vpop.f32.mrb[0].mxu0
        %4895 = vmatprep.mubr.f32.mxu0 0.0
        %4896 = vmatmul.mubr.f32.gmra.mrb[0].mxu0 %v4649
        %v4897 = vpop.f32.mrb[0].mxu0
        %v4898 = vadd.f32 0.0, %v4897
        %v4899 = vpop.f32.mrb[0].mxu0
        %4900 = vmatprep.mubr.f32.mxu0 0.0
        %4901 = vmatmul.mubr.f32.gmra.mrb[0].mxu0 %v4651
        %v4902 = vpop.f32.mrb[0].mxu0
        %v4903 = vadd.f32 0.0, %v4902
        %v4904 = vpop.f32.mrb[0].mxu0
        %4905 = vmatprep.mubr.f32.mxu0 0.0
        %4906 = vmatmul.mubr.f32.gmra.mrb[0].mxu0 %v4654
        %v4907 = vpop.f32.mrb[0].mxu0
        %v4908 = vadd.f32 0.0, %v4907
        %v4909 = vpop.f32.mrb[0].mxu0
        %4910 = vmatprep.mubr.f32.mxu0 0.0
        %4911 = vmatmul.mubr.f32.gmra.mrb[0].mxu0 %v4656
        %v4912 = vpop.f32.mrb[0].mxu0
        %v4913 = vadd.f32 0.0, %v4912
        %v4914 = vpop.f32.mrb[0].mxu0
        %4915 = vmatprep.mubr.f32.mxu0 0.0
        %4916 = vmatmul.mubr.f32.gmra.mrb[0].mxu0 %v4659
        %v4917 = vpop.f32.mrb[0].mxu0
        %v4918 = vadd.f32 0.0, %v4917
        %v4919 = vpop.f32.mrb[0].mxu0
        %4920 = vmatprep.mubr.f32.mxu0 0.0
        %4921 = vmatmul.mubr.f32.gmra.mrb[0].mxu0 %v4661
        %v4922 = vpop.f32.mrb[0].mxu0
        %v4923 = vadd.f32 0.0, %v4922
        %v4924 = vpop.f32.mrb[0].mxu0
        %4925 = vmatprep.mubr.f32.mxu0 0.0
        %4926 = vmatmul.mubr.f32.gmra.mrb[0].mxu0 %v4664
        %v4927 = vpop.f32.mrb[0].mxu0
        %v4928 = vadd.f32 0.0, %v4927
        %v4929 = vpop.f32.mrb[0].mxu0
        %4930 = vmatprep.mubr.f32.mxu0 0.0
        %4931 = vmatmul.mubr.f32.gmra.mrb[0].mxu0 %v4666
        %v4932 = vpop.f32.mrb[0].mxu0
        %v4933 = vadd.f32 0.0, %v4932
        %v4934 = vpop.f32.mrb[0].mxu0
        %4935 = vmatprep.mubr.f32.mxu0 0.0
        %4936 = vmatmul.mubr.f32.gmra.mrb[0].mxu0 %v4669
        %v4937 = vpop.f32.mrb[0].mxu0
        %v4938 = vadd.f32 0.0, %v4937
        %v4939 = vpop.f32.mrb[0].mxu0
        %4940 = vmatprep.mubr.f32.mxu0 0.0
        %4941 = vmatmul.mubr.f32.gmra.mrb[0].mxu0 %v4671
        %v4942 = vpop.f32.mrb[0].mxu0
        %v4943 = vadd.f32 0.0, %v4942
        %v4944 = vpop.f32.mrb[0].mxu0
        %4945 = vdwg.mxu0
        %v4946 = vld [vmem:[#allocation2] sm:$0xff]
        %v4947 = vld [vmem:[#allocation2 + $0x8] sm:$0xff]
        %v4948 = vld [vmem:[#allocation2 + $0x10] sm:$0xff]
        %v4949 = vld [vmem:[#allocation2 + $0x18] sm:$0xff]
        %v4950 = vld [vmem:[#allocation2 + $0x20] sm:$0xff]
        %v4951 = vld [vmem:[#allocation2 + $0x28] sm:$0xff]
        %v4952 = vld [vmem:[#allocation2 + $0x30] sm:$0xff]
        %v4953 = vld [vmem:[#allocation2 + $0x38] sm:$0xff]
        %v4954 = vld [vmem:[#allocation2 + $0x40] sm:$0xff]
        %v4955 = vld [vmem:[#allocation2 + $0x48] sm:$0xff]
        %v4956 = vld [vmem:[#allocation2 + $0x50] sm:$0xff]
        %v4957 = vld [vmem:[#allocation2 + $0x58] sm:$0xff]
        %v4958 = vld [vmem:[#allocation2 + $0x60] sm:$0xff]
        %v4959 = vld [vmem:[#allocation2 + $0x68] sm:$0xff]
        %v4960 = vld [vmem:[#allocation2 + $0x70] sm:$0xff]
        %v4961 = vld [vmem:[#allocation2 + $0x78] sm:$0xff]
        %v4962 = vld [vmem:[#allocation2 + $0x80] sm:$0xff]
        %v4963 = vld [vmem:[#allocation2 + $0x88] sm:$0xff]
        %v4964 = vld [vmem:[#allocation2 + $0x90] sm:$0xff]
        %v4965 = vld [vmem:[#allocation2 + $0x98] sm:$0xff]
        %v4966 = vld [vmem:[#allocation2 + $0xa0] sm:$0xff]
        %v4967 = vld [vmem:[#allocation2 + $0xa8] sm:$0xff]
        %v4968 = vld [vmem:[#allocation2 + $0xb0] sm:$0xff]
        %v4969 = vld [vmem:[#allocation2 + $0xb8] sm:$0xff]
        %v4970 = vld [vmem:[#allocation2 + $0xc0] sm:$0xff]
        %v4971 = vld [vmem:[#allocation2 + $0xc8] sm:$0xff]
        %v4972 = vld [vmem:[#allocation2 + $0xd0] sm:$0xff]
        %v4973 = vld [vmem:[#allocation2 + $0xd8] sm:$0xff]
        %v4974 = vld [vmem:[#allocation2 + $0xe0] sm:$0xff]
        %v4975 = vld [vmem:[#allocation2 + $0xe8] sm:$0xff]
        %v4976 = vld [vmem:[#allocation2 + $0xf0] sm:$0xff]
        %v4977 = vld [vmem:[#allocation2 + $0xf8] sm:$0xff]
        %v4978 = vadd.f32 %v4946, %v4788
        %v4979 = vadd.f32 %v4947, %v4793
        %v4980 = vadd.f32 %v4948, %v4798
        %v4981 = vadd.f32 %v4949, %v4803
        %v4982 = vadd.f32 %v4950, %v4808
        %v4983 = vadd.f32 %v4951, %v4813
        %v4984 = vadd.f32 %v4952, %v4818
        %v4985 = vadd.f32 %v4953, %v4823
        %v4986 = vadd.f32 %v4954, %v4828
        %v4987 = vadd.f32 %v4955, %v4833
        %v4988 = vadd.f32 %v4956, %v4838
        %v4989 = vadd.f32 %v4957, %v4843
        %v4990 = vadd.f32 %v4958, %v4848
        %v4991 = vadd.f32 %v4959, %v4853
        %v4992 = vadd.f32 %v4960, %v4858
        %v4993 = vadd.f32 %v4961, %v4863
        %v4994 = vadd.f32 %v4962, %v4868
        %v4995 = vadd.f32 %v4963, %v4873
        %v4996 = vadd.f32 %v4964, %v4878
        %v4997 = vadd.f32 %v4965, %v4883
        %v4998 = vadd.f32 %v4966, %v4888
        %v4999 = vadd.f32 %v4967, %v4893
        %v5000 = vadd.f32 %v4968, %v4898
        %v5001 = vadd.f32 %v4969, %v4903
        %v5002 = vadd.f32 %v4970, %v4908
        %v5003 = vadd.f32 %v4971, %v4913
        %v5004 = vadd.f32 %v4972, %v4918
        %v5005 = vadd.f32 %v4973, %v4923
        %v5006 = vadd.f32 %v4974, %v4928
        %v5007 = vadd.f32 %v4975, %v4933
        %v5008 = vadd.f32 %v4976, %v4938
        %v5009 = vadd.f32 %v4977, %v4943
        %5010 = vst [vmem:[#allocation2] sm:$0xff] %v4978
        %5011 = vst [vmem:[#allocation2 + $0x8] sm:$0xff] %v4979
        %5012 = vst [vmem:[#allocation2 + $0x10] sm:$0xff] %v4980
        %5013 = vst [vmem:[#allocation2 + $0x18] sm:$0xff] %v4981
        %5014 = vst [vmem:[#allocation2 + $0x20] sm:$0xff] %v4982
        %5015 = vst [vmem:[#allocation2 + $0x28] sm:$0xff] %v4983
        %5016 = vst [vmem:[#allocation2 + $0x30] sm:$0xff] %v4984
        %5017 = vst [vmem:[#allocation2 + $0x38] sm:$0xff] %v4985
        %5018 = vst [vmem:[#allocation2 + $0x40] sm:$0xff] %v4986
        %5019 = vst [vmem:[#allocation2 + $0x48] sm:$0xff] %v4987
        %5020 = vst [vmem:[#allocation2 + $0x50] sm:$0xff] %v4988
        %5021 = vst [vmem:[#allocation2 + $0x58] sm:$0xff] %v4989
        %5022 = vst [vmem:[#allocation2 + $0x60] sm:$0xff] %v4990
        %5023 = vst [vmem:[#allocation2 + $0x68] sm:$0xff] %v4991
        %5024 = vst [vmem:[#allocation2 + $0x70] sm:$0xff] %v4992
        %5025 = vst [vmem:[#allocation2 + $0x78] sm:$0xff] %v4993
        %5026 = vst [vmem:[#allocation2 + $0x80] sm:$0xff] %v4994
        %5027 = vst [vmem:[#allocation2 + $0x88] sm:$0xff] %v4995
        %5028 = vst [vmem:[#allocation2 + $0x90] sm:$0xff] %v4996
        %5029 = vst [vmem:[#allocation2 + $0x98] sm:$0xff] %v4997
        %5030 = vst [vmem:[#allocation2 + $0xa0] sm:$0xff] %v4998
        %5031 = vst [vmem:[#allocation2 + $0xa8] sm:$0xff] %v4999
        %5032 = vst [vmem:[#allocation2 + $0xb0] sm:$0xff] %v5000
        %5033 = vst [vmem:[#allocation2 + $0xb8] sm:$0xff] %v5001
        %5034 = vst [vmem:[#allocation2 + $0xc0] sm:$0xff] %v5002
        %5035 = vst [vmem:[#allocation2 + $0xc8] sm:$0xff] %v5003
        %5036 = vst [vmem:[#allocation2 + $0xd0] sm:$0xff] %v5004
        %5037 = vst [vmem:[#allocation2 + $0xd8] sm:$0xff] %v5005
        %5038 = vst [vmem:[#allocation2 + $0xe0] sm:$0xff] %v5006
        %5039 = vst [vmem:[#allocation2 + $0xe8] sm:$0xff] %v5007
        %5040 = vst [vmem:[#allocation2 + $0xf0] sm:$0xff] %v5008
        %5041 = vst [vmem:[#allocation2 + $0xf8] sm:$0xff] %v5009
        %s5042 = scalar_lea.vmem [#allocation4], 384
        %v5043 = vld [vmem:[%s5042] sm:$0xff]
        %v5044 = vld [vmem:[%s5042 + $0x8] sm:$0xff]
        %v5045 = vld [vmem:[%s5042 + $0x10] sm:$0xff]
        %v5046 = vld [vmem:[%s5042 + $0x18] sm:$0xff]
        %v5047 = vld [vmem:[%s5042 + $0x20] sm:$0xff]
        %v5048 = vld [vmem:[%s5042 + $0x28] sm:$0xff]
        %v5049 = vld [vmem:[%s5042 + $0x30] sm:$0xff]
        %v5050 = vld [vmem:[%s5042 + $0x38] sm:$0xff]
        %v5051 = vld [vmem:[%s5042 + $0x40] sm:$0xff]
        %v5052 = vld [vmem:[%s5042 + $0x48] sm:$0xff]
        %v5053 = vld [vmem:[%s5042 + $0x50] sm:$0xff]
        %v5054 = vld [vmem:[%s5042 + $0x58] sm:$0xff]
        %v5055 = vld [vmem:[%s5042 + $0x60] sm:$0xff]
        %v5056 = vld [vmem:[%s5042 + $0x68] sm:$0xff]
        %v5057 = vld [vmem:[%s5042 + $0x70] sm:$0xff]
        %v5058 = vld [vmem:[%s5042 + $0x78] sm:$0xff]
        %5059 = vmatprep.subr.mxu0 0.0
        %5060 = vmatpush1.msra.mxu0 %v5043
        %5061 = vmatprep.subr.mxu0 0.0
        %5062 = vmatpush1.msra.mxu0 %v5044
        %5063 = vmatprep.subr.mxu0 0.0
        %5064 = vmatpush1.msra.mxu0 %v5045
        %5065 = vmatprep.subr.mxu0 0.0
        %5066 = vmatpush1.msra.mxu0 %v5046
        %5067 = vmatprep.subr.mxu0 0.0
        %5068 = vmatpush1.msra.mxu0 %v5047
        %5069 = vmatprep.subr.mxu0 0.0
        %5070 = vmatpush1.msra.mxu0 %v5048
        %5071 = vmatprep.subr.mxu0 0.0
        %5072 = vmatpush1.msra.mxu0 %v5049
        %5073 = vmatprep.subr.mxu0 0.0
        %5074 = vmatpush1.msra.mxu0 %v5050
        %5075 = vmatprep.subr.mxu0 0.0
        %5076 = vmatpush1.msra.mxu0 %v5051
        %5077 = vmatprep.subr.mxu0 0.0
        %5078 = vmatpush1.msra.mxu0 %v5052
        %5079 = vmatprep.subr.mxu0 0.0
        %5080 = vmatpush1.msra.mxu0 %v5053
        %5081 = vmatprep.subr.mxu0 0.0
        %5082 = vmatpush1.msra.mxu0 %v5054
        %5083 = vmatprep.subr.mxu0 0.0
        %5084 = vmatpush1.msra.mxu0 %v5055
        %5085 = vmatprep.subr.mxu0 0.0
        %5086 = vmatpush1.msra.mxu0 %v5056
        %5087 = vmatprep.subr.mxu0 0.0
        %5088 = vmatpush1.msra.mxu0 %v5057
        %5089 = vmatprep.subr.mxu0 0.0
        %5090 = vmatpush1.msra.mxu0 %v5058
        %5091 = vmatprep.subr.mxu0 0.0
        %5092 = vmatpush1.msra.mxu0 0.0
        %5093 = vmatprep.subr.mxu0 0.0
        %5094 = vmatpush1.msra.mxu0 0.0
        %5095 = vmatprep.subr.mxu0 0.0
        %5096 = vmatpush1.msra.mxu0 0.0
        %5097 = vmatprep.subr.mxu0 0.0
        %5098 = vmatpush1.msra.mxu0 0.0
        %5099 = vmatprep.subr.mxu0 0.0
        %5100 = vmatpush1.msra.mxu0 0.0
        %5101 = vmatprep.subr.mxu0 0.0
        %5102 = vmatpush1.msra.mxu0 0.0
        %5103 = vmatprep.subr.mxu0 0.0
        %5104 = vmatpush1.msra.mxu0 0.0
        %5105 = vmatprep.subr.mxu0 0.0
        %5106 = vmatpush1.msra.mxu0 0.0
        %5107 = vmatprep.subr.mxu0 0.0
        %5108 = vmatpush1.msra.mxu0 0.0
        %5109 = vmatprep.subr.mxu0 0.0
        %5110 = vmatpush1.msra.mxu0 0.0
        %5111 = vmatprep.subr.mxu0 0.0
        %5112 = vmatpush1.msra.mxu0 0.0
        %5113 = vmatprep.subr.mxu0 0.0
        %5114 = vmatpush1.msra.mxu0 0.0
        %5115 = vmatprep.subr.mxu0 0.0
        %5116 = vmatpush1.msra.mxu0 0.0
        %5117 = vmatprep.subr.mxu0 0.0
        %5118 = vmatpush1.msra.mxu0 0.0
        %5119 = vmatprep.subr.mxu0 0.0
        %5120 = vmatpush1.msra.mxu0 0.0
        %5121 = vmatprep.subr.mxu0 0.0
        %5122 = vmatpush1.msra.mxu0 0.0
        %5123 = vmatprep.mubr.f32.mxu0 0.0
        %5124 = vmatmul.mubr.f32.gmra.mrb[0].mxu0 %v3770
        %v5125 = vpop.f32.mrb[0].mxu0
        %v5126 = vadd.f32 0.0, %v5125
        %v5127 = vpop.f32.mrb[0].mxu0
        %5128 = vmatprep.mubr.f32.mxu0 0.0
        %5129 = vmatmul.mubr.f32.gmra.mrb[0].mxu0 %v3771
        %v5130 = vpop.f32.mrb[0].mxu0
        %v5131 = vadd.f32 0.0, %v5130
        %v5132 = vpop.f32.mrb[0].mxu0
        %5133 = vmatprep.mubr.f32.mxu0 0.0
        %5134 = vmatmul.mubr.f32.gmra.mrb[0].mxu0 %v3773
        %v5135 = vpop.f32.mrb[0].mxu0
        %v5136 = vadd.f32 0.0, %v5135
        %v5137 = vpop.f32.mrb[0].mxu0
        %5138 = vmatprep.mubr.f32.mxu0 0.0
        %5139 = vmatmul.mubr.f32.gmra.mrb[0].mxu0 %v3774
        %v5140 = vpop.f32.mrb[0].mxu0
        %v5141 = vadd.f32 0.0, %v5140
        %v5142 = vpop.f32.mrb[0].mxu0
        %5143 = vmatprep.mubr.f32.mxu0 0.0
        %5144 = vmatmul.mubr.f32.gmra.mrb[0].mxu0 %v3776
        %v5145 = vpop.f32.mrb[0].mxu0
        %v5146 = vadd.f32 0.0, %v5145
        %v5147 = vpop.f32.mrb[0].mxu0
        %5148 = vmatprep.mubr.f32.mxu0 0.0
        %5149 = vmatmul.mubr.f32.gmra.mrb[0].mxu0 %v3777
        %v5150 = vpop.f32.mrb[0].mxu0
        %v5151 = vadd.f32 0.0, %v5150
        %v5152 = vpop.f32.mrb[0].mxu0
        %5153 = vmatprep.mubr.f32.mxu0 0.0
        %5154 = vmatmul.mubr.f32.gmra.mrb[0].mxu0 %v3779
        %v5155 = vpop.f32.mrb[0].mxu0
        %v5156 = vadd.f32 0.0, %v5155
        %v5157 = vpop.f32.mrb[0].mxu0
        %5158 = vmatprep.mubr.f32.mxu0 0.0
        %5159 = vmatmul.mubr.f32.gmra.mrb[0].mxu0 %v3780
        %v5160 = vpop.f32.mrb[0].mxu0
        %v5161 = vadd.f32 0.0, %v5160
        %v5162 = vpop.f32.mrb[0].mxu0
        %5163 = vmatprep.mubr.f32.mxu0 0.0
        %5164 = vmatmul.mubr.f32.gmra.mrb[0].mxu0 %v3782
        %v5165 = vpop.f32.mrb[0].mxu0
        %v5166 = vadd.f32 0.0, %v5165
        %v5167 = vpop.f32.mrb[0].mxu0
        %5168 = vmatprep.mubr.f32.mxu0 0.0
        %5169 = vmatmul.mubr.f32.gmra.mrb[0].mxu0 %v3783
        %v5170 = vpop.f32.mrb[0].mxu0
        %v5171 = vadd.f32 0.0, %v5170
        %v5172 = vpop.f32.mrb[0].mxu0
        %5173 = vmatprep.mubr.f32.mxu0 0.0
        %5174 = vmatmul.mubr.f32.gmra.mrb[0].mxu0 %v3785
        %v5175 = vpop.f32.mrb[0].mxu0
        %v5176 = vadd.f32 0.0, %v5175
        %v5177 = vpop.f32.mrb[0].mxu0
        %5178 = vmatprep.mubr.f32.mxu0 0.0
        %5179 = vmatmul.mubr.f32.gmra.mrb[0].mxu0 %v3786
        %v5180 = vpop.f32.mrb[0].mxu0
        %v5181 = vadd.f32 0.0, %v5180
        %v5182 = vpop.f32.mrb[0].mxu0
        %5183 = vmatprep.mubr.f32.mxu0 0.0
        %5184 = vmatmul.mubr.f32.gmra.mrb[0].mxu0 %v3788
        %v5185 = vpop.f32.mrb[0].mxu0
        %v5186 = vadd.f32 0.0, %v5185
        %v5187 = vpop.f32.mrb[0].mxu0
        %5188 = vmatprep.mubr.f32.mxu0 0.0
        %5189 = vmatmul.mubr.f32.gmra.mrb[0].mxu0 %v3789
        %v5190 = vpop.f32.mrb[0].mxu0
        %v5191 = vadd.f32 0.0, %v5190
        %v5192 = vpop.f32.mrb[0].mxu0
        %5193 = vmatprep.mubr.f32.mxu0 0.0
        %5194 = vmatmul.mubr.f32.gmra.mrb[0].mxu0 %v3791
        %v5195 = vpop.f32.mrb[0].mxu0
        %v5196 = vadd.f32 0.0, %v5195
        %v5197 = vpop.f32.mrb[0].mxu0
        %5198 = vmatprep.mubr.f32.mxu0 0.0
        %5199 = vmatmul.mubr.f32.gmra.mrb[0].mxu0 %v3792
        %v5200 = vpop.f32.mrb[0].mxu0
        %v5201 = vadd.f32 0.0, %v5200
        %v5202 = vpop.f32.mrb[0].mxu0
        %5203 = vmatprep.mubr.f32.mxu0 0.0
        %5204 = vmatmul.mubr.f32.gmra.mrb[0].mxu0 %v3794
        %v5205 = vpop.f32.mrb[0].mxu0
        %v5206 = vadd.f32 0.0, %v5205
        %v5207 = vpop.f32.mrb[0].mxu0
        %5208 = vmatprep.mubr.f32.mxu0 0.0
        %5209 = vmatmul.mubr.f32.gmra.mrb[0].mxu0 %v3795
        %v5210 = vpop.f32.mrb[0].mxu0
        %v5211 = vadd.f32 0.0, %v5210
        %v5212 = vpop.f32.mrb[0].mxu0
        %5213 = vmatprep.mubr.f32.mxu0 0.0
        %5214 = vmatmul.mubr.f32.gmra.mrb[0].mxu0 %v3797
        %v5215 = vpop.f32.mrb[0].mxu0
        %v5216 = vadd.f32 0.0, %v5215
        %v5217 = vpop.f32.mrb[0].mxu0
        %5218 = vmatprep.mubr.f32.mxu0 0.0
        %5219 = vmatmul.mubr.f32.gmra.mrb[0].mxu0 %v3798
        %v5220 = vpop.f32.mrb[0].mxu0
        %v5221 = vadd.f32 0.0, %v5220
        %v5222 = vpop.f32.mrb[0].mxu0
        %5223 = vmatprep.mubr.f32.mxu0 0.0
        %5224 = vmatmul.mubr.f32.gmra.mrb[0].mxu0 %v3800
        %v5225 = vpop.f32.mrb[0].mxu0
        %v5226 = vadd.f32 0.0, %v5225
        %v5227 = vpop.f32.mrb[0].mxu0
        %5228 = vmatprep.mubr.f32.mxu0 0.0
        %5229 = vmatmul.mubr.f32.gmra.mrb[0].mxu0 %v3801
        %v5230 = vpop.f32.mrb[0].mxu0
        %v5231 = vadd.f32 0.0, %v5230
        %v5232 = vpop.f32.mrb[0].mxu0
        %5233 = vmatprep.mubr.f32.mxu0 0.0
        %5234 = vmatmul.mubr.f32.gmra.mrb[0].mxu0 %v3803
        %v5235 = vpop.f32.mrb[0].mxu0
        %v5236 = vadd.f32 0.0, %v5235
        %v5237 = vpop.f32.mrb[0].mxu0
        %5238 = vmatprep.mubr.f32.mxu0 0.0
        %5239 = vmatmul.mubr.f32.gmra.mrb[0].mxu0 %v3804
        %v5240 = vpop.f32.mrb[0].mxu0
        %v5241 = vadd.f32 0.0, %v5240
        %v5242 = vpop.f32.mrb[0].mxu0
        %5243 = vmatprep.mubr.f32.mxu0 0.0
        %5244 = vmatmul.mubr.f32.gmra.mrb[0].mxu0 %v3806
        %v5245 = vpop.f32.mrb[0].mxu0
        %v5246 = vadd.f32 0.0, %v5245
        %v5247 = vpop.f32.mrb[0].mxu0
        %5248 = vmatprep.mubr.f32.mxu0 0.0
        %5249 = vmatmul.mubr.f32.gmra.mrb[0].mxu0 %v3807
        %v5250 = vpop.f32.mrb[0].mxu0
        %v5251 = vadd.f32 0.0, %v5250
        %v5252 = vpop.f32.mrb[0].mxu0
        %5253 = vmatprep.mubr.f32.mxu0 0.0
        %5254 = vmatmul.mubr.f32.gmra.mrb[0].mxu0 %v3809
        %v5255 = vpop.f32.mrb[0].mxu0
        %v5256 = vadd.f32 0.0, %v5255
        %v5257 = vpop.f32.mrb[0].mxu0
        %5258 = vmatprep.mubr.f32.mxu0 0.0
        %5259 = vmatmul.mubr.f32.gmra.mrb[0].mxu0 %v3810
        %v5260 = vpop.f32.mrb[0].mxu0
        %v5261 = vadd.f32 0.0, %v5260
        %v5262 = vpop.f32.mrb[0].mxu0
        %5263 = vmatprep.mubr.f32.mxu0 0.0
        %5264 = vmatmul.mubr.f32.gmra.mrb[0].mxu0 %v3812
        %v5265 = vpop.f32.mrb[0].mxu0
        %v5266 = vadd.f32 0.0, %v5265
        %v5267 = vpop.f32.mrb[0].mxu0
        %5268 = vmatprep.mubr.f32.mxu0 0.0
        %5269 = vmatmul.mubr.f32.gmra.mrb[0].mxu0 %v3813
        %v5270 = vpop.f32.mrb[0].mxu0
        %v5271 = vadd.f32 0.0, %v5270
        %v5272 = vpop.f32.mrb[0].mxu0
        %5273 = vmatprep.mubr.f32.mxu0 0.0
        %5274 = vmatmul.mubr.f32.gmra.mrb[0].mxu0 %v3815
        %v5275 = vpop.f32.mrb[0].mxu0
        %v5276 = vadd.f32 0.0, %v5275
        %v5277 = vpop.f32.mrb[0].mxu0
        %5278 = vmatprep.mubr.f32.mxu0 0.0
        %5279 = vmatmul.mubr.f32.gmra.mrb[0].mxu0 %v3816
        %v5280 = vpop.f32.mrb[0].mxu0
        %v5281 = vadd.f32 0.0, %v5280
        %v5282 = vpop.f32.mrb[0].mxu0
        %5283 = vdwg.mxu0
        %v5284 = vld [vmem:[#allocation2] sm:$0xff]
        %v5285 = vld [vmem:[#allocation2 + $0x8] sm:$0xff]
        %v5286 = vld [vmem:[#allocation2 + $0x10] sm:$0xff]
        %v5287 = vld [vmem:[#allocation2 + $0x18] sm:$0xff]
        %v5288 = vld [vmem:[#allocation2 + $0x20] sm:$0xff]
        %v5289 = vld [vmem:[#allocation2 + $0x28] sm:$0xff]
        %v5290 = vld [vmem:[#allocation2 + $0x30] sm:$0xff]
        %v5291 = vld [vmem:[#allocation2 + $0x38] sm:$0xff]
        %v5292 = vld [vmem:[#allocation2 + $0x40] sm:$0xff]
        %v5293 = vld [vmem:[#allocation2 + $0x48] sm:$0xff]
        %v5294 = vld [vmem:[#allocation2 + $0x50] sm:$0xff]
        %v5295 = vld [vmem:[#allocation2 + $0x58] sm:$0xff]
        %v5296 = vld [vmem:[#allocation2 + $0x60] sm:$0xff]
        %v5297 = vld [vmem:[#allocation2 + $0x68] sm:$0xff]
        %v5298 = vld [vmem:[#allocation2 + $0x70] sm:$0xff]
        %v5299 = vld [vmem:[#allocation2 + $0x78] sm:$0xff]
        %v5300 = vld [vmem:[#allocation2 + $0x80] sm:$0xff]
        %v5301 = vld [vmem:[#allocation2 + $0x88] sm:$0xff]
        %v5302 = vld [vmem:[#allocation2 + $0x90] sm:$0xff]
        %v5303 = vld [vmem:[#allocation2 + $0x98] sm:$0xff]
        %v5304 = vld [vmem:[#allocation2 + $0xa0] sm:$0xff]
        %v5305 = vld [vmem:[#allocation2 + $0xa8] sm:$0xff]
        %v5306 = vld [vmem:[#allocation2 + $0xb0] sm:$0xff]
        %v5307 = vld [vmem:[#allocation2 + $0xb8] sm:$0xff]
        %v5308 = vld [vmem:[#allocation2 + $0xc0] sm:$0xff]
        %v5309 = vld [vmem:[#allocation2 + $0xc8] sm:$0xff]
        %v5310 = vld [vmem:[#allocation2 + $0xd0] sm:$0xff]
        %v5311 = vld [vmem:[#allocation2 + $0xd8] sm:$0xff]
        %v5312 = vld [vmem:[#allocation2 + $0xe0] sm:$0xff]
        %v5313 = vld [vmem:[#allocation2 + $0xe8] sm:$0xff]
        %v5314 = vld [vmem:[#allocation2 + $0xf0] sm:$0xff]
        %v5315 = vld [vmem:[#allocation2 + $0xf8] sm:$0xff]
        %v5316 = vadd.f32 %v5284, %v5126
        %v5317 = vadd.f32 %v5285, %v5131
        %v5318 = vadd.f32 %v5286, %v5136
        %v5319 = vadd.f32 %v5287, %v5141
        %v5320 = vadd.f32 %v5288, %v5146
        %v5321 = vadd.f32 %v5289, %v5151
        %v5322 = vadd.f32 %v5290, %v5156
        %v5323 = vadd.f32 %v5291, %v5161
        %v5324 = vadd.f32 %v5292, %v5166
        %v5325 = vadd.f32 %v5293, %v5171
        %v5326 = vadd.f32 %v5294, %v5176
        %v5327 = vadd.f32 %v5295, %v5181
        %v5328 = vadd.f32 %v5296, %v5186
        %v5329 = vadd.f32 %v5297, %v5191
        %v5330 = vadd.f32 %v5298, %v5196
        %v5331 = vadd.f32 %v5299, %v5201
        %v5332 = vadd.f32 %v5300, %v5206
        %v5333 = vadd.f32 %v5301, %v5211
        %v5334 = vadd.f32 %v5302, %v5216
        %v5335 = vadd.f32 %v5303, %v5221
        %v5336 = vadd.f32 %v5304, %v5226
        %v5337 = vadd.f32 %v5305, %v5231
        %v5338 = vadd.f32 %v5306, %v5236
        %v5339 = vadd.f32 %v5307, %v5241
        %v5340 = vadd.f32 %v5308, %v5246
        %v5341 = vadd.f32 %v5309, %v5251
        %v5342 = vadd.f32 %v5310, %v5256
        %v5343 = vadd.f32 %v5311, %v5261
        %v5344 = vadd.f32 %v5312, %v5266
        %v5345 = vadd.f32 %v5313, %v5271
        %v5346 = vadd.f32 %v5314, %v5276
        %v5347 = vadd.f32 %v5315, %v5281
        %5348 = vst [vmem:[#allocation2] sm:$0xff] %v5316
        %5349 = vst [vmem:[#allocation2 + $0x8] sm:$0xff] %v5317
        %5350 = vst [vmem:[#allocation2 + $0x10] sm:$0xff] %v5318
        %5351 = vst [vmem:[#allocation2 + $0x18] sm:$0xff] %v5319
        %5352 = vst [vmem:[#allocation2 + $0x20] sm:$0xff] %v5320
        %5353 = vst [vmem:[#allocation2 + $0x28] sm:$0xff] %v5321
        %5354 = vst [vmem:[#allocation2 + $0x30] sm:$0xff] %v5322
        %5355 = vst [vmem:[#allocation2 + $0x38] sm:$0xff] %v5323
        %5356 = vst [vmem:[#allocation2 + $0x40] sm:$0xff] %v5324
        %5357 = vst [vmem:[#allocation2 + $0x48] sm:$0xff] %v5325
        %5358 = vst [vmem:[#allocation2 + $0x50] sm:$0xff] %v5326
        %5359 = vst [vmem:[#allocation2 + $0x58] sm:$0xff] %v5327
        %5360 = vst [vmem:[#allocation2 + $0x60] sm:$0xff] %v5328
        %5361 = vst [vmem:[#allocation2 + $0x68] sm:$0xff] %v5329
        %5362 = vst [vmem:[#allocation2 + $0x70] sm:$0xff] %v5330
        %5363 = vst [vmem:[#allocation2 + $0x78] sm:$0xff] %v5331
        %5364 = vst [vmem:[#allocation2 + $0x80] sm:$0xff] %v5332
        %5365 = vst [vmem:[#allocation2 + $0x88] sm:$0xff] %v5333
        %5366 = vst [vmem:[#allocation2 + $0x90] sm:$0xff] %v5334
        %5367 = vst [vmem:[#allocation2 + $0x98] sm:$0xff] %v5335
        %5368 = vst [vmem:[#allocation2 + $0xa0] sm:$0xff] %v5336
        %5369 = vst [vmem:[#allocation2 + $0xa8] sm:$0xff] %v5337
        %5370 = vst [vmem:[#allocation2 + $0xb0] sm:$0xff] %v5338
        %5371 = vst [vmem:[#allocation2 + $0xb8] sm:$0xff] %v5339
        %5372 = vst [vmem:[#allocation2 + $0xc0] sm:$0xff] %v5340
        %5373 = vst [vmem:[#allocation2 + $0xc8] sm:$0xff] %v5341
        %5374 = vst [vmem:[#allocation2 + $0xd0] sm:$0xff] %v5342
        %5375 = vst [vmem:[#allocation2 + $0xd8] sm:$0xff] %v5343
        %5376 = vst [vmem:[#allocation2 + $0xe0] sm:$0xff] %v5344
        %5377 = vst [vmem:[#allocation2 + $0xe8] sm:$0xff] %v5345
        %5378 = vst [vmem:[#allocation2 + $0xf0] sm:$0xff] %v5346
        %5379 = vst [vmem:[#allocation2 + $0xf8] sm:$0xff] %v5347
        %v5383 = vrot.slane %v3815, 1
        %v5384 = vrot.slane %v3816, 1
        %v5385 = vsel %vm613, %v5383, %v5384
        %v5386 = vrot.slane %v3817, 1
        %v5387 = vsel %vm613, %v5384, %v5386
        %s5390 = scalar_lea.vmem [#allocation4], 512
        %v5391 = vld [vmem:[%s5390] sm:$0xff]
        %v5392 = vld [vmem:[%s5390 + $0x8] sm:$0xff]
        %v5393 = vld [vmem:[%s5390 + $0x10] sm:$0xff]
        %v5394 = vld [vmem:[%s5390 + $0x18] sm:$0xff]
        %v5395 = vld [vmem:[%s5390 + $0x20] sm:$0xff]
        %v5396 = vld [vmem:[%s5390 + $0x28] sm:$0xff]
        %v5397 = vld [vmem:[%s5390 + $0x30] sm:$0xff]
        %v5398 = vld [vmem:[%s5390 + $0x38] sm:$0xff]
        %v5399 = vld [vmem:[%s5390 + $0x40] sm:$0xff]
        %v5400 = vld [vmem:[%s5390 + $0x48] sm:$0xff]
        %v5401 = vld [vmem:[%s5390 + $0x50] sm:$0xff]
        %v5402 = vld [vmem:[%s5390 + $0x58] sm:$0xff]
        %v5403 = vld [vmem:[%s5390 + $0x60] sm:$0xff]
        %v5404 = vld [vmem:[%s5390 + $0x68] sm:$0xff]
        %v5405 = vld [vmem:[%s5390 + $0x70] sm:$0xff]
        %v5406 = vld [vmem:[%s5390 + $0x78] sm:$0xff]
        %5407 = vmatprep.subr.mxu0 0.0
        %5408 = vmatpush1.msra.mxu0 %v5391
        %5409 = vmatprep.subr.mxu0 0.0
        %5410 = vmatpush1.msra.mxu0 %v5392
        %5411 = vmatprep.subr.mxu0 0.0
        %5412 = vmatpush1.msra.mxu0 %v5393
        %5413 = vmatprep.subr.mxu0 0.0
        %5414 = vmatpush1.msra.mxu0 %v5394
        %5415 = vmatprep.subr.mxu0 0.0
        %5416 = vmatpush1.msra.mxu0 %v5395
        %5417 = vmatprep.subr.mxu0 0.0
        %5418 = vmatpush1.msra.mxu0 %v5396
        %5419 = vmatprep.subr.mxu0 0.0
        %5420 = vmatpush1.msra.mxu0 %v5397
        %5421 = vmatprep.subr.mxu0 0.0
        %5422 = vmatpush1.msra.mxu0 %v5398
        %5423 = vmatprep.subr.mxu0 0.0
        %5424 = vmatpush1.msra.mxu0 %v5399
        %5425 = vmatprep.subr.mxu0 0.0
        %5426 = vmatpush1.msra.mxu0 %v5400
        %5427 = vmatprep.subr.mxu0 0.0
        %5428 = vmatpush1.msra.mxu0 %v5401
        %5429 = vmatprep.subr.mxu0 0.0
        %5430 = vmatpush1.msra.mxu0 %v5402
        %5431 = vmatprep.subr.mxu0 0.0
        %5432 = vmatpush1.msra.mxu0 %v5403
        %5433 = vmatprep.subr.mxu0 0.0
        %5434 = vmatpush1.msra.mxu0 %v5404
        %5435 = vmatprep.subr.mxu0 0.0
        %5436 = vmatpush1.msra.mxu0 %v5405
        %5437 = vmatprep.subr.mxu0 0.0
        %5438 = vmatpush1.msra.mxu0 %v5406
        %5439 = vmatprep.subr.mxu0 0.0
        %5440 = vmatpush1.msra.mxu0 0.0
        %5441 = vmatprep.subr.mxu0 0.0
        %5442 = vmatpush1.msra.mxu0 0.0
        %5443 = vmatprep.subr.mxu0 0.0
        %5444 = vmatpush1.msra.mxu0 0.0
        %5445 = vmatprep.subr.mxu0 0.0
        %5446 = vmatpush1.msra.mxu0 0.0
        %5447 = vmatprep.subr.mxu0 0.0
        %5448 = vmatpush1.msra.mxu0 0.0
        %5449 = vmatprep.subr.mxu0 0.0
        %5450 = vmatpush1.msra.mxu0 0.0
        %5451 = vmatprep.subr.mxu0 0.0
        %5452 = vmatpush1.msra.mxu0 0.0
        %5453 = vmatprep.subr.mxu0 0.0
        %5454 = vmatpush1.msra.mxu0 0.0
        %5455 = vmatprep.subr.mxu0 0.0
        %5456 = vmatpush1.msra.mxu0 0.0
        %5457 = vmatprep.subr.mxu0 0.0
        %5458 = vmatpush1.msra.mxu0 0.0
        %5459 = vmatprep.subr.mxu0 0.0
        %5460 = vmatpush1.msra.mxu0 0.0
        %5461 = vmatprep.subr.mxu0 0.0
        %5462 = vmatpush1.msra.mxu0 0.0
        %5463 = vmatprep.subr.mxu0 0.0
        %5464 = vmatpush1.msra.mxu0 0.0
        %5465 = vmatprep.subr.mxu0 0.0
        %5466 = vmatpush1.msra.mxu0 0.0
        %5467 = vmatprep.subr.mxu0 0.0
        %5468 = vmatpush1.msra.mxu0 0.0
        %5469 = vmatprep.subr.mxu0 0.0
        %5470 = vmatpush1.msra.mxu0 0.0
        %5471 = vmatprep.mubr.f32.mxu0 0.0
        %5472 = vmatmul.mubr.f32.gmra.mrb[0].mxu0 %v4149
        %v5473 = vpop.f32.mrb[0].mxu0
        %v5474 = vadd.f32 0.0, %v5473
        %v5475 = vpop.f32.mrb[0].mxu0
        %5476 = vmatprep.mubr.f32.mxu0 0.0
        %5477 = vmatmul.mubr.f32.gmra.mrb[0].mxu0 %v4151
        %v5478 = vpop.f32.mrb[0].mxu0
        %v5479 = vadd.f32 0.0, %v5478
        %v5480 = vpop.f32.mrb[0].mxu0
        %5481 = vmatprep.mubr.f32.mxu0 0.0
        %5482 = vmatmul.mubr.f32.gmra.mrb[0].mxu0 %v4154
        %v5483 = vpop.f32.mrb[0].mxu0
        %v5484 = vadd.f32 0.0, %v5483
        %v5485 = vpop.f32.mrb[0].mxu0
        %5486 = vmatprep.mubr.f32.mxu0 0.0
        %5487 = vmatmul.mubr.f32.gmra.mrb[0].mxu0 %v4156
        %v5488 = vpop.f32.mrb[0].mxu0
        %v5489 = vadd.f32 0.0, %v5488
        %v5490 = vpop.f32.mrb[0].mxu0
        %5491 = vmatprep.mubr.f32.mxu0 0.0
        %5492 = vmatmul.mubr.f32.gmra.mrb[0].mxu0 %v4159
        %v5493 = vpop.f32.mrb[0].mxu0
        %v5494 = vadd.f32 0.0, %v5493
        %v5495 = vpop.f32.mrb[0].mxu0
        %5496 = vmatprep.mubr.f32.mxu0 0.0
        %5497 = vmatmul.mubr.f32.gmra.mrb[0].mxu0 %v4161
        %v5498 = vpop.f32.mrb[0].mxu0
        %v5499 = vadd.f32 0.0, %v5498
        %v5500 = vpop.f32.mrb[0].mxu0
        %5501 = vmatprep.mubr.f32.mxu0 0.0
        %5502 = vmatmul.mubr.f32.gmra.mrb[0].mxu0 %v4164
        %v5503 = vpop.f32.mrb[0].mxu0
        %v5504 = vadd.f32 0.0, %v5503
        %v5505 = vpop.f32.mrb[0].mxu0
        %5506 = vmatprep.mubr.f32.mxu0 0.0
        %5507 = vmatmul.mubr.f32.gmra.mrb[0].mxu0 %v4166
        %v5508 = vpop.f32.mrb[0].mxu0
        %v5509 = vadd.f32 0.0, %v5508
        %v5510 = vpop.f32.mrb[0].mxu0
        %5511 = vmatprep.mubr.f32.mxu0 0.0
        %5512 = vmatmul.mubr.f32.gmra.mrb[0].mxu0 %v4169
        %v5513 = vpop.f32.mrb[0].mxu0
        %v5514 = vadd.f32 0.0, %v5513
        %v5515 = vpop.f32.mrb[0].mxu0
        %5516 = vmatprep.mubr.f32.mxu0 0.0
        %5517 = vmatmul.mubr.f32.gmra.mrb[0].mxu0 %v4171
        %v5518 = vpop.f32.mrb[0].mxu0
        %v5519 = vadd.f32 0.0, %v5518
        %v5520 = vpop.f32.mrb[0].mxu0
        %5521 = vmatprep.mubr.f32.mxu0 0.0
        %5522 = vmatmul.mubr.f32.gmra.mrb[0].mxu0 %v4174
        %v5523 = vpop.f32.mrb[0].mxu0
        %v5524 = vadd.f32 0.0, %v5523
        %v5525 = vpop.f32.mrb[0].mxu0
        %5526 = vmatprep.mubr.f32.mxu0 0.0
        %5527 = vmatmul.mubr.f32.gmra.mrb[0].mxu0 %v4176
        %v5528 = vpop.f32.mrb[0].mxu0
        %v5529 = vadd.f32 0.0, %v5528
        %v5530 = vpop.f32.mrb[0].mxu0
        %5531 = vmatprep.mubr.f32.mxu0 0.0
        %5532 = vmatmul.mubr.f32.gmra.mrb[0].mxu0 %v4179
        %v5533 = vpop.f32.mrb[0].mxu0
        %v5534 = vadd.f32 0.0, %v5533
        %v5535 = vpop.f32.mrb[0].mxu0
        %5536 = vmatprep.mubr.f32.mxu0 0.0
        %5537 = vmatmul.mubr.f32.gmra.mrb[0].mxu0 %v4181
        %v5538 = vpop.f32.mrb[0].mxu0
        %v5539 = vadd.f32 0.0, %v5538
        %v5540 = vpop.f32.mrb[0].mxu0
        %5541 = vmatprep.mubr.f32.mxu0 0.0
        %5542 = vmatmul.mubr.f32.gmra.mrb[0].mxu0 %v4184
        %v5543 = vpop.f32.mrb[0].mxu0
        %v5544 = vadd.f32 0.0, %v5543
        %v5545 = vpop.f32.mrb[0].mxu0
        %5546 = vmatprep.mubr.f32.mxu0 0.0
        %5547 = vmatmul.mubr.f32.gmra.mrb[0].mxu0 %v4186
        %v5548 = vpop.f32.mrb[0].mxu0
        %v5549 = vadd.f32 0.0, %v5548
        %v5550 = vpop.f32.mrb[0].mxu0
        %5551 = vmatprep.mubr.f32.mxu0 0.0
        %5552 = vmatmul.mubr.f32.gmra.mrb[0].mxu0 %v4189
        %v5553 = vpop.f32.mrb[0].mxu0
        %v5554 = vadd.f32 0.0, %v5553
        %v5555 = vpop.f32.mrb[0].mxu0
        %5556 = vmatprep.mubr.f32.mxu0 0.0
        %5557 = vmatmul.mubr.f32.gmra.mrb[0].mxu0 %v4191
        %v5558 = vpop.f32.mrb[0].mxu0
        %v5559 = vadd.f32 0.0, %v5558
        %v5560 = vpop.f32.mrb[0].mxu0
        %5561 = vmatprep.mubr.f32.mxu0 0.0
        %5562 = vmatmul.mubr.f32.gmra.mrb[0].mxu0 %v4194
        %v5563 = vpop.f32.mrb[0].mxu0
        %v5564 = vadd.f32 0.0, %v5563
        %v5565 = vpop.f32.mrb[0].mxu0
        %5566 = vmatprep.mubr.f32.mxu0 0.0
        %5567 = vmatmul.mubr.f32.gmra.mrb[0].mxu0 %v4196
        %v5568 = vpop.f32.mrb[0].mxu0
        %v5569 = vadd.f32 0.0, %v5568
        %v5570 = vpop.f32.mrb[0].mxu0
        %5571 = vmatprep.mubr.f32.mxu0 0.0
        %5572 = vmatmul.mubr.f32.gmra.mrb[0].mxu0 %v4199
        %v5573 = vpop.f32.mrb[0].mxu0
        %v5574 = vadd.f32 0.0, %v5573
        %v5575 = vpop.f32.mrb[0].mxu0
        %5576 = vmatprep.mubr.f32.mxu0 0.0
        %5577 = vmatmul.mubr.f32.gmra.mrb[0].mxu0 %v4201
        %v5578 = vpop.f32.mrb[0].mxu0
        %v5579 = vadd.f32 0.0, %v5578
        %v5580 = vpop.f32.mrb[0].mxu0
        %5581 = vmatprep.mubr.f32.mxu0 0.0
        %5582 = vmatmul.mubr.f32.gmra.mrb[0].mxu0 %v4204
        %v5583 = vpop.f32.mrb[0].mxu0
        %v5584 = vadd.f32 0.0, %v5583
        %v5585 = vpop.f32.mrb[0].mxu0
        %5586 = vmatprep.mubr.f32.mxu0 0.0
        %5587 = vmatmul.mubr.f32.gmra.mrb[0].mxu0 %v4206
        %v5588 = vpop.f32.mrb[0].mxu0
        %v5589 = vadd.f32 0.0, %v5588
        %v5590 = vpop.f32.mrb[0].mxu0
        %5591 = vmatprep.mubr.f32.mxu0 0.0
        %5592 = vmatmul.mubr.f32.gmra.mrb[0].mxu0 %v4209
        %v5593 = vpop.f32.mrb[0].mxu0
        %v5594 = vadd.f32 0.0, %v5593
        %v5595 = vpop.f32.mrb[0].mxu0
        %5596 = vmatprep.mubr.f32.mxu0 0.0
        %5597 = vmatmul.mubr.f32.gmra.mrb[0].mxu0 %v4211
        %v5598 = vpop.f32.mrb[0].mxu0
        %v5599 = vadd.f32 0.0, %v5598
        %v5600 = vpop.f32.mrb[0].mxu0
        %5601 = vmatprep.mubr.f32.mxu0 0.0
        %5602 = vmatmul.mubr.f32.gmra.mrb[0].mxu0 %v4214
        %v5603 = vpop.f32.mrb[0].mxu0
        %v5604 = vadd.f32 0.0, %v5603
        %v5605 = vpop.f32.mrb[0].mxu0
        %5606 = vmatprep.mubr.f32.mxu0 0.0
        %5607 = vmatmul.mubr.f32.gmra.mrb[0].mxu0 %v4216
        %v5608 = vpop.f32.mrb[0].mxu0
        %v5609 = vadd.f32 0.0, %v5608
        %v5610 = vpop.f32.mrb[0].mxu0
        %5611 = vmatprep.mubr.f32.mxu0 0.0
        %5612 = vmatmul.mubr.f32.gmra.mrb[0].mxu0 %v4219
        %v5613 = vpop.f32.mrb[0].mxu0
        %v5614 = vadd.f32 0.0, %v5613
        %v5615 = vpop.f32.mrb[0].mxu0
        %5616 = vmatprep.mubr.f32.mxu0 0.0
        %5617 = vmatmul.mubr.f32.gmra.mrb[0].mxu0 %v4221
        %v5618 = vpop.f32.mrb[0].mxu0
        %v5619 = vadd.f32 0.0, %v5618
        %v5620 = vpop.f32.mrb[0].mxu0
        %5621 = vmatprep.mubr.f32.mxu0 0.0
        %5622 = vmatmul.mubr.f32.gmra.mrb[0].mxu0 %v5385
        %v5623 = vpop.f32.mrb[0].mxu0
        %v5624 = vadd.f32 0.0, %v5623
        %v5625 = vpop.f32.mrb[0].mxu0
        %5626 = vmatprep.mubr.f32.mxu0 0.0
        %5627 = vmatmul.mubr.f32.gmra.mrb[0].mxu0 %v5387
        %v5628 = vpop.f32.mrb[0].mxu0
        %v5629 = vadd.f32 0.0, %v5628
        %v5630 = vpop.f32.mrb[0].mxu0
        %5631 = vdwg.mxu0
        %v5632 = vld [vmem:[#allocation2] sm:$0xff]
        %v5633 = vld [vmem:[#allocation2 + $0x8] sm:$0xff]
        %v5634 = vld [vmem:[#allocation2 + $0x10] sm:$0xff]
        %v5635 = vld [vmem:[#allocation2 + $0x18] sm:$0xff]
        %v5636 = vld [vmem:[#allocation2 + $0x20] sm:$0xff]
        %v5637 = vld [vmem:[#allocation2 + $0x28] sm:$0xff]
        %v5638 = vld [vmem:[#allocation2 + $0x30] sm:$0xff]
        %v5639 = vld [vmem:[#allocation2 + $0x38] sm:$0xff]
        %v5640 = vld [vmem:[#allocation2 + $0x40] sm:$0xff]
        %v5641 = vld [vmem:[#allocation2 + $0x48] sm:$0xff]
        %v5642 = vld [vmem:[#allocation2 + $0x50] sm:$0xff]
        %v5643 = vld [vmem:[#allocation2 + $0x58] sm:$0xff]
        %v5644 = vld [vmem:[#allocation2 + $0x60] sm:$0xff]
        %v5645 = vld [vmem:[#allocation2 + $0x68] sm:$0xff]
        %v5646 = vld [vmem:[#allocation2 + $0x70] sm:$0xff]
        %v5647 = vld [vmem:[#allocation2 + $0x78] sm:$0xff]
        %v5648 = vld [vmem:[#allocation2 + $0x80] sm:$0xff]
        %v5649 = vld [vmem:[#allocation2 + $0x88] sm:$0xff]
        %v5650 = vld [vmem:[#allocation2 + $0x90] sm:$0xff]
        %v5651 = vld [vmem:[#allocation2 + $0x98] sm:$0xff]
        %v5652 = vld [vmem:[#allocation2 + $0xa0] sm:$0xff]
        %v5653 = vld [vmem:[#allocation2 + $0xa8] sm:$0xff]
        %v5654 = vld [vmem:[#allocation2 + $0xb0] sm:$0xff]
        %v5655 = vld [vmem:[#allocation2 + $0xb8] sm:$0xff]
        %v5656 = vld [vmem:[#allocation2 + $0xc0] sm:$0xff]
        %v5657 = vld [vmem:[#allocation2 + $0xc8] sm:$0xff]
        %v5658 = vld [vmem:[#allocation2 + $0xd0] sm:$0xff]
        %v5659 = vld [vmem:[#allocation2 + $0xd8] sm:$0xff]
        %v5660 = vld [vmem:[#allocation2 + $0xe0] sm:$0xff]
        %v5661 = vld [vmem:[#allocation2 + $0xe8] sm:$0xff]
        %v5662 = vld [vmem:[#allocation2 + $0xf0] sm:$0xff]
        %v5663 = vld [vmem:[#allocation2 + $0xf8] sm:$0xff]
        %v5664 = vadd.f32 %v5632, %v5474
        %v5665 = vadd.f32 %v5633, %v5479
        %v5666 = vadd.f32 %v5634, %v5484
        %v5667 = vadd.f32 %v5635, %v5489
        %v5668 = vadd.f32 %v5636, %v5494
        %v5669 = vadd.f32 %v5637, %v5499
        %v5670 = vadd.f32 %v5638, %v5504
        %v5671 = vadd.f32 %v5639, %v5509
        %v5672 = vadd.f32 %v5640, %v5514
        %v5673 = vadd.f32 %v5641, %v5519
        %v5674 = vadd.f32 %v5642, %v5524
        %v5675 = vadd.f32 %v5643, %v5529
        %v5676 = vadd.f32 %v5644, %v5534
        %v5677 = vadd.f32 %v5645, %v5539
        %v5678 = vadd.f32 %v5646, %v5544
        %v5679 = vadd.f32 %v5647, %v5549
        %v5680 = vadd.f32 %v5648, %v5554
        %v5681 = vadd.f32 %v5649, %v5559
        %v5682 = vadd.f32 %v5650, %v5564
        %v5683 = vadd.f32 %v5651, %v5569
        %v5684 = vadd.f32 %v5652, %v5574
        %v5685 = vadd.f32 %v5653, %v5579
        %v5686 = vadd.f32 %v5654, %v5584
        %v5687 = vadd.f32 %v5655, %v5589
        %v5688 = vadd.f32 %v5656, %v5594
        %v5689 = vadd.f32 %v5657, %v5599
        %v5690 = vadd.f32 %v5658, %v5604
        %v5691 = vadd.f32 %v5659, %v5609
        %v5692 = vadd.f32 %v5660, %v5614
        %v5693 = vadd.f32 %v5661, %v5619
        %v5694 = vadd.f32 %v5662, %v5624
        %v5695 = vadd.f32 %v5663, %v5629
        %5696 = vst [vmem:[#allocation2] sm:$0xff] %v5664
        %5697 = vst [vmem:[#allocation2 + $0x8] sm:$0xff] %v5665
        %5698 = vst [vmem:[#allocation2 + $0x10] sm:$0xff] %v5666
        %5699 = vst [vmem:[#allocation2 + $0x18] sm:$0xff] %v5667
        %5700 = vst [vmem:[#allocation2 + $0x20] sm:$0xff] %v5668
        %5701 = vst [vmem:[#allocation2 + $0x28] sm:$0xff] %v5669
        %5702 = vst [vmem:[#allocation2 + $0x30] sm:$0xff] %v5670
        %5703 = vst [vmem:[#allocation2 + $0x38] sm:$0xff] %v5671
        %5704 = vst [vmem:[#allocation2 + $0x40] sm:$0xff] %v5672
        %5705 = vst [vmem:[#allocation2 + $0x48] sm:$0xff] %v5673
        %5706 = vst [vmem:[#allocation2 + $0x50] sm:$0xff] %v5674
        %5707 = vst [vmem:[#allocation2 + $0x58] sm:$0xff] %v5675
        %5708 = vst [vmem:[#allocation2 + $0x60] sm:$0xff] %v5676
        %5709 = vst [vmem:[#allocation2 + $0x68] sm:$0xff] %v5677
        %5710 = vst [vmem:[#allocation2 + $0x70] sm:$0xff] %v5678
        %5711 = vst [vmem:[#allocation2 + $0x78] sm:$0xff] %v5679
        %5712 = vst [vmem:[#allocation2 + $0x80] sm:$0xff] %v5680
        %5713 = vst [vmem:[#allocation2 + $0x88] sm:$0xff] %v5681
        %5714 = vst [vmem:[#allocation2 + $0x90] sm:$0xff] %v5682
        %5715 = vst [vmem:[#allocation2 + $0x98] sm:$0xff] %v5683
        %5716 = vst [vmem:[#allocation2 + $0xa0] sm:$0xff] %v5684
        %5717 = vst [vmem:[#allocation2 + $0xa8] sm:$0xff] %v5685
        %5718 = vst [vmem:[#allocation2 + $0xb0] sm:$0xff] %v5686
        %5719 = vst [vmem:[#allocation2 + $0xb8] sm:$0xff] %v5687
        %5720 = vst [vmem:[#allocation2 + $0xc0] sm:$0xff] %v5688
        %5721 = vst [vmem:[#allocation2 + $0xc8] sm:$0xff] %v5689
        %5722 = vst [vmem:[#allocation2 + $0xd0] sm:$0xff] %v5690
        %5723 = vst [vmem:[#allocation2 + $0xd8] sm:$0xff] %v5691
        %5724 = vst [vmem:[#allocation2 + $0xe0] sm:$0xff] %v5692
        %5725 = vst [vmem:[#allocation2 + $0xe8] sm:$0xff] %v5693
        %5726 = vst [vmem:[#allocation2 + $0xf0] sm:$0xff] %v5694
        %5727 = vst [vmem:[#allocation2 + $0xf8] sm:$0xff] %v5695
        %v5728 = vrot.slane %v3815, 2
        %v5729 = vrot.slane %v3816, 2
        %v5730 = vsel %vm1064, %v5728, %v5729
        %v5731 = vrot.slane %v3817, 2
        %v5732 = vsel %vm1064, %v5729, %v5731
        %s5735 = scalar_lea.vmem [#allocation4], 640
        %v5736 = vld [vmem:[%s5735] sm:$0xff]
        %v5737 = vld [vmem:[%s5735 + $0x8] sm:$0xff]
        %v5738 = vld [vmem:[%s5735 + $0x10] sm:$0xff]
        %v5739 = vld [vmem:[%s5735 + $0x18] sm:$0xff]
        %v5740 = vld [vmem:[%s5735 + $0x20] sm:$0xff]
        %v5741 = vld [vmem:[%s5735 + $0x28] sm:$0xff]
        %v5742 = vld [vmem:[%s5735 + $0x30] sm:$0xff]
        %v5743 = vld [vmem:[%s5735 + $0x38] sm:$0xff]
        %v5744 = vld [vmem:[%s5735 + $0x40] sm:$0xff]
        %v5745 = vld [vmem:[%s5735 + $0x48] sm:$0xff]
        %v5746 = vld [vmem:[%s5735 + $0x50] sm:$0xff]
        %v5747 = vld [vmem:[%s5735 + $0x58] sm:$0xff]
        %v5748 = vld [vmem:[%s5735 + $0x60] sm:$0xff]
        %v5749 = vld [vmem:[%s5735 + $0x68] sm:$0xff]
        %v5750 = vld [vmem:[%s5735 + $0x70] sm:$0xff]
        %v5751 = vld [vmem:[%s5735 + $0x78] sm:$0xff]
        %5752 = vmatprep.subr.mxu0 0.0
        %5753 = vmatpush1.msra.mxu0 %v5736
        %5754 = vmatprep.subr.mxu0 0.0
        %5755 = vmatpush1.msra.mxu0 %v5737
        %5756 = vmatprep.subr.mxu0 0.0
        %5757 = vmatpush1.msra.mxu0 %v5738
        %5758 = vmatprep.subr.mxu0 0.0
        %5759 = vmatpush1.msra.mxu0 %v5739
        %5760 = vmatprep.subr.mxu0 0.0
        %5761 = vmatpush1.msra.mxu0 %v5740
        %5762 = vmatprep.subr.mxu0 0.0
        %5763 = vmatpush1.msra.mxu0 %v5741
        %5764 = vmatprep.subr.mxu0 0.0
        %5765 = vmatpush1.msra.mxu0 %v5742
        %5766 = vmatprep.subr.mxu0 0.0
        %5767 = vmatpush1.msra.mxu0 %v5743
        %5768 = vmatprep.subr.mxu0 0.0
        %5769 = vmatpush1.msra.mxu0 %v5744
        %5770 = vmatprep.subr.mxu0 0.0
        %5771 = vmatpush1.msra.mxu0 %v5745
        %5772 = vmatprep.subr.mxu0 0.0
        %5773 = vmatpush1.msra.mxu0 %v5746
        %5774 = vmatprep.subr.mxu0 0.0
        %5775 = vmatpush1.msra.mxu0 %v5747
        %5776 = vmatprep.subr.mxu0 0.0
        %5777 = vmatpush1.msra.mxu0 %v5748
        %5778 = vmatprep.subr.mxu0 0.0
        %5779 = vmatpush1.msra.mxu0 %v5749
        %5780 = vmatprep.subr.mxu0 0.0
        %5781 = vmatpush1.msra.mxu0 %v5750
        %5782 = vmatprep.subr.mxu0 0.0
        %5783 = vmatpush1.msra.mxu0 %v5751
        %5784 = vmatprep.subr.mxu0 0.0
        %5785 = vmatpush1.msra.mxu0 0.0
        %5786 = vmatprep.subr.mxu0 0.0
        %5787 = vmatpush1.msra.mxu0 0.0
        %5788 = vmatprep.subr.mxu0 0.0
        %5789 = vmatpush1.msra.mxu0 0.0
        %5790 = vmatprep.subr.mxu0 0.0
        %5791 = vmatpush1.msra.mxu0 0.0
        %5792 = vmatprep.subr.mxu0 0.0
        %5793 = vmatpush1.msra.mxu0 0.0
        %5794 = vmatprep.subr.mxu0 0.0
        %5795 = vmatpush1.msra.mxu0 0.0
        %5796 = vmatprep.subr.mxu0 0.0
        %5797 = vmatpush1.msra.mxu0 0.0
        %5798 = vmatprep.subr.mxu0 0.0
        %5799 = vmatpush1.msra.mxu0 0.0
        %5800 = vmatprep.subr.mxu0 0.0
        %5801 = vmatpush1.msra.mxu0 0.0
        %5802 = vmatprep.subr.mxu0 0.0
        %5803 = vmatpush1.msra.mxu0 0.0
        %5804 = vmatprep.subr.mxu0 0.0
        %5805 = vmatpush1.msra.mxu0 0.0
        %5806 = vmatprep.subr.mxu0 0.0
        %5807 = vmatpush1.msra.mxu0 0.0
        %5808 = vmatprep.subr.mxu0 0.0
        %5809 = vmatpush1.msra.mxu0 0.0
        %5810 = vmatprep.subr.mxu0 0.0
        %5811 = vmatpush1.msra.mxu0 0.0
        %5812 = vmatprep.subr.mxu0 0.0
        %5813 = vmatpush1.msra.mxu0 0.0
        %5814 = vmatprep.subr.mxu0 0.0
        %5815 = vmatpush1.msra.mxu0 0.0
        %5816 = vmatprep.mubr.f32.mxu0 0.0
        %5817 = vmatmul.mubr.f32.gmra.mrb[0].mxu0 %v4599
        %v5818 = vpop.f32.mrb[0].mxu0
        %v5819 = vadd.f32 0.0, %v5818
        %v5820 = vpop.f32.mrb[0].mxu0
        %5821 = vmatprep.mubr.f32.mxu0 0.0
        %5822 = vmatmul.mubr.f32.gmra.mrb[0].mxu0 %v4601
        %v5823 = vpop.f32.mrb[0].mxu0
        %v5824 = vadd.f32 0.0, %v5823
        %v5825 = vpop.f32.mrb[0].mxu0
        %5826 = vmatprep.mubr.f32.mxu0 0.0
        %5827 = vmatmul.mubr.f32.gmra.mrb[0].mxu0 %v4604
        %v5828 = vpop.f32.mrb[0].mxu0
        %v5829 = vadd.f32 0.0, %v5828
        %v5830 = vpop.f32.mrb[0].mxu0
        %5831 = vmatprep.mubr.f32.mxu0 0.0
        %5832 = vmatmul.mubr.f32.gmra.mrb[0].mxu0 %v4606
        %v5833 = vpop.f32.mrb[0].mxu0
        %v5834 = vadd.f32 0.0, %v5833
        %v5835 = vpop.f32.mrb[0].mxu0
        %5836 = vmatprep.mubr.f32.mxu0 0.0
        %5837 = vmatmul.mubr.f32.gmra.mrb[0].mxu0 %v4609
        %v5838 = vpop.f32.mrb[0].mxu0
        %v5839 = vadd.f32 0.0, %v5838
        %v5840 = vpop.f32.mrb[0].mxu0
        %5841 = vmatprep.mubr.f32.mxu0 0.0
        %5842 = vmatmul.mubr.f32.gmra.mrb[0].mxu0 %v4611
        %v5843 = vpop.f32.mrb[0].mxu0
        %v5844 = vadd.f32 0.0, %v5843
        %v5845 = vpop.f32.mrb[0].mxu0
        %5846 = vmatprep.mubr.f32.mxu0 0.0
        %5847 = vmatmul.mubr.f32.gmra.mrb[0].mxu0 %v4614
        %v5848 = vpop.f32.mrb[0].mxu0
        %v5849 = vadd.f32 0.0, %v5848
        %v5850 = vpop.f32.mrb[0].mxu0
        %5851 = vmatprep.mubr.f32.mxu0 0.0
        %5852 = vmatmul.mubr.f32.gmra.mrb[0].mxu0 %v4616
        %v5853 = vpop.f32.mrb[0].mxu0
        %v5854 = vadd.f32 0.0, %v5853
        %v5855 = vpop.f32.mrb[0].mxu0
        %5856 = vmatprep.mubr.f32.mxu0 0.0
        %5857 = vmatmul.mubr.f32.gmra.mrb[0].mxu0 %v4619
        %v5858 = vpop.f32.mrb[0].mxu0
        %v5859 = vadd.f32 0.0, %v5858
        %v5860 = vpop.f32.mrb[0].mxu0
        %5861 = vmatprep.mubr.f32.mxu0 0.0
        %5862 = vmatmul.mubr.f32.gmra.mrb[0].mxu0 %v4621
        %v5863 = vpop.f32.mrb[0].mxu0
        %v5864 = vadd.f32 0.0, %v5863
        %v5865 = vpop.f32.mrb[0].mxu0
        %5866 = vmatprep.mubr.f32.mxu0 0.0
        %5867 = vmatmul.mubr.f32.gmra.mrb[0].mxu0 %v4624
        %v5868 = vpop.f32.mrb[0].mxu0
        %v5869 = vadd.f32 0.0, %v5868
        %v5870 = vpop.f32.mrb[0].mxu0
        %5871 = vmatprep.mubr.f32.mxu0 0.0
        %5872 = vmatmul.mubr.f32.gmra.mrb[0].mxu0 %v4626
        %v5873 = vpop.f32.mrb[0].mxu0
        %v5874 = vadd.f32 0.0, %v5873
        %v5875 = vpop.f32.mrb[0].mxu0
        %5876 = vmatprep.mubr.f32.mxu0 0.0
        %5877 = vmatmul.mubr.f32.gmra.mrb[0].mxu0 %v4629
        %v5878 = vpop.f32.mrb[0].mxu0
        %v5879 = vadd.f32 0.0, %v5878
        %v5880 = vpop.f32.mrb[0].mxu0
        %5881 = vmatprep.mubr.f32.mxu0 0.0
        %5882 = vmatmul.mubr.f32.gmra.mrb[0].mxu0 %v4631
        %v5883 = vpop.f32.mrb[0].mxu0
        %v5884 = vadd.f32 0.0, %v5883
        %v5885 = vpop.f32.mrb[0].mxu0
        %5886 = vmatprep.mubr.f32.mxu0 0.0
        %5887 = vmatmul.mubr.f32.gmra.mrb[0].mxu0 %v4634
        %v5888 = vpop.f32.mrb[0].mxu0
        %v5889 = vadd.f32 0.0, %v5888
        %v5890 = vpop.f32.mrb[0].mxu0
        %5891 = vmatprep.mubr.f32.mxu0 0.0
        %5892 = vmatmul.mubr.f32.gmra.mrb[0].mxu0 %v4636
        %v5893 = vpop.f32.mrb[0].mxu0
        %v5894 = vadd.f32 0.0, %v5893
        %v5895 = vpop.f32.mrb[0].mxu0
        %5896 = vmatprep.mubr.f32.mxu0 0.0
        %5897 = vmatmul.mubr.f32.gmra.mrb[0].mxu0 %v4639
        %v5898 = vpop.f32.mrb[0].mxu0
        %v5899 = vadd.f32 0.0, %v5898
        %v5900 = vpop.f32.mrb[0].mxu0
        %5901 = vmatprep.mubr.f32.mxu0 0.0
        %5902 = vmatmul.mubr.f32.gmra.mrb[0].mxu0 %v4641
        %v5903 = vpop.f32.mrb[0].mxu0
        %v5904 = vadd.f32 0.0, %v5903
        %v5905 = vpop.f32.mrb[0].mxu0
        %5906 = vmatprep.mubr.f32.mxu0 0.0
        %5907 = vmatmul.mubr.f32.gmra.mrb[0].mxu0 %v4644
        %v5908 = vpop.f32.mrb[0].mxu0
        %v5909 = vadd.f32 0.0, %v5908
        %v5910 = vpop.f32.mrb[0].mxu0
        %5911 = vmatprep.mubr.f32.mxu0 0.0
        %5912 = vmatmul.mubr.f32.gmra.mrb[0].mxu0 %v4646
        %v5913 = vpop.f32.mrb[0].mxu0
        %v5914 = vadd.f32 0.0, %v5913
        %v5915 = vpop.f32.mrb[0].mxu0
        %5916 = vmatprep.mubr.f32.mxu0 0.0
        %5917 = vmatmul.mubr.f32.gmra.mrb[0].mxu0 %v4649
        %v5918 = vpop.f32.mrb[0].mxu0
        %v5919 = vadd.f32 0.0, %v5918
        %v5920 = vpop.f32.mrb[0].mxu0
        %5921 = vmatprep.mubr.f32.mxu0 0.0
        %5922 = vmatmul.mubr.f32.gmra.mrb[0].mxu0 %v4651
        %v5923 = vpop.f32.mrb[0].mxu0
        %v5924 = vadd.f32 0.0, %v5923
        %v5925 = vpop.f32.mrb[0].mxu0
        %5926 = vmatprep.mubr.f32.mxu0 0.0
        %5927 = vmatmul.mubr.f32.gmra.mrb[0].mxu0 %v4654
        %v5928 = vpop.f32.mrb[0].mxu0
        %v5929 = vadd.f32 0.0, %v5928
        %v5930 = vpop.f32.mrb[0].mxu0
        %5931 = vmatprep.mubr.f32.mxu0 0.0
        %5932 = vmatmul.mubr.f32.gmra.mrb[0].mxu0 %v4656
        %v5933 = vpop.f32.mrb[0].mxu0
        %v5934 = vadd.f32 0.0, %v5933
        %v5935 = vpop.f32.mrb[0].mxu0
        %5936 = vmatprep.mubr.f32.mxu0 0.0
        %5937 = vmatmul.mubr.f32.gmra.mrb[0].mxu0 %v4659
        %v5938 = vpop.f32.mrb[0].mxu0
        %v5939 = vadd.f32 0.0, %v5938
        %v5940 = vpop.f32.mrb[0].mxu0
        %5941 = vmatprep.mubr.f32.mxu0 0.0
        %5942 = vmatmul.mubr.f32.gmra.mrb[0].mxu0 %v4661
        %v5943 = vpop.f32.mrb[0].mxu0
        %v5944 = vadd.f32 0.0, %v5943
        %v5945 = vpop.f32.mrb[0].mxu0
        %5946 = vmatprep.mubr.f32.mxu0 0.0
        %5947 = vmatmul.mubr.f32.gmra.mrb[0].mxu0 %v4664
        %v5948 = vpop.f32.mrb[0].mxu0
        %v5949 = vadd.f32 0.0, %v5948
        %v5950 = vpop.f32.mrb[0].mxu0
        %5951 = vmatprep.mubr.f32.mxu0 0.0
        %5952 = vmatmul.mubr.f32.gmra.mrb[0].mxu0 %v4666
        %v5953 = vpop.f32.mrb[0].mxu0
        %v5954 = vadd.f32 0.0, %v5953
        %v5955 = vpop.f32.mrb[0].mxu0
        %5956 = vmatprep.mubr.f32.mxu0 0.0
        %5957 = vmatmul.mubr.f32.gmra.mrb[0].mxu0 %v4669
        %v5958 = vpop.f32.mrb[0].mxu0
        %v5959 = vadd.f32 0.0, %v5958
        %v5960 = vpop.f32.mrb[0].mxu0
        %5961 = vmatprep.mubr.f32.mxu0 0.0
        %5962 = vmatmul.mubr.f32.gmra.mrb[0].mxu0 %v4671
        %v5963 = vpop.f32.mrb[0].mxu0
        %v5964 = vadd.f32 0.0, %v5963
        %v5965 = vpop.f32.mrb[0].mxu0
        %5966 = vmatprep.mubr.f32.mxu0 0.0
        %5967 = vmatmul.mubr.f32.gmra.mrb[0].mxu0 %v5730
        %v5968 = vpop.f32.mrb[0].mxu0
        %v5969 = vadd.f32 0.0, %v5968
        %v5970 = vpop.f32.mrb[0].mxu0
        %5971 = vmatprep.mubr.f32.mxu0 0.0
        %5972 = vmatmul.mubr.f32.gmra.mrb[0].mxu0 %v5732
        %v5973 = vpop.f32.mrb[0].mxu0
        %v5974 = vadd.f32 0.0, %v5973
        %v5975 = vpop.f32.mrb[0].mxu0
        %5976 = vdwg.mxu0
        %v5977 = vld [vmem:[#allocation2] sm:$0xff]
        %v5978 = vld [vmem:[#allocation2 + $0x8] sm:$0xff]
        %v5979 = vld [vmem:[#allocation2 + $0x10] sm:$0xff]
        %v5980 = vld [vmem:[#allocation2 + $0x18] sm:$0xff]
        %v5981 = vld [vmem:[#allocation2 + $0x20] sm:$0xff]
        %v5982 = vld [vmem:[#allocation2 + $0x28] sm:$0xff]
        %v5983 = vld [vmem:[#allocation2 + $0x30] sm:$0xff]
        %v5984 = vld [vmem:[#allocation2 + $0x38] sm:$0xff]
        %v5985 = vld [vmem:[#allocation2 + $0x40] sm:$0xff]
        %v5986 = vld [vmem:[#allocation2 + $0x48] sm:$0xff]
        %v5987 = vld [vmem:[#allocation2 + $0x50] sm:$0xff]
        %v5988 = vld [vmem:[#allocation2 + $0x58] sm:$0xff]
        %v5989 = vld [vmem:[#allocation2 + $0x60] sm:$0xff]
        %v5990 = vld [vmem:[#allocation2 + $0x68] sm:$0xff]
        %v5991 = vld [vmem:[#allocation2 + $0x70] sm:$0xff]
        %v5992 = vld [vmem:[#allocation2 + $0x78] sm:$0xff]
        %v5993 = vld [vmem:[#allocation2 + $0x80] sm:$0xff]
        %v5994 = vld [vmem:[#allocation2 + $0x88] sm:$0xff]
        %v5995 = vld [vmem:[#allocation2 + $0x90] sm:$0xff]
        %v5996 = vld [vmem:[#allocation2 + $0x98] sm:$0xff]
        %v5997 = vld [vmem:[#allocation2 + $0xa0] sm:$0xff]
        %v5998 = vld [vmem:[#allocation2 + $0xa8] sm:$0xff]
        %v5999 = vld [vmem:[#allocation2 + $0xb0] sm:$0xff]
        %v6000 = vld [vmem:[#allocation2 + $0xb8] sm:$0xff]
        %v6001 = vld [vmem:[#allocation2 + $0xc0] sm:$0xff]
        %v6002 = vld [vmem:[#allocation2 + $0xc8] sm:$0xff]
        %v6003 = vld [vmem:[#allocation2 + $0xd0] sm:$0xff]
        %v6004 = vld [vmem:[#allocation2 + $0xd8] sm:$0xff]
        %v6005 = vld [vmem:[#allocation2 + $0xe0] sm:$0xff]
        %v6006 = vld [vmem:[#allocation2 + $0xe8] sm:$0xff]
        %v6007 = vld [vmem:[#allocation2 + $0xf0] sm:$0xff]
        %v6008 = vld [vmem:[#allocation2 + $0xf8] sm:$0xff]
        %v6009 = vadd.f32 %v5977, %v5819
        %v6010 = vadd.f32 %v5978, %v5824
        %v6011 = vadd.f32 %v5979, %v5829
        %v6012 = vadd.f32 %v5980, %v5834
        %v6013 = vadd.f32 %v5981, %v5839
        %v6014 = vadd.f32 %v5982, %v5844
        %v6015 = vadd.f32 %v5983, %v5849
        %v6016 = vadd.f32 %v5984, %v5854
        %v6017 = vadd.f32 %v5985, %v5859
        %v6018 = vadd.f32 %v5986, %v5864
        %v6019 = vadd.f32 %v5987, %v5869
        %v6020 = vadd.f32 %v5988, %v5874
        %v6021 = vadd.f32 %v5989, %v5879
        %v6022 = vadd.f32 %v5990, %v5884
        %v6023 = vadd.f32 %v5991, %v5889
        %v6024 = vadd.f32 %v5992, %v5894
        %v6025 = vadd.f32 %v5993, %v5899
        %v6026 = vadd.f32 %v5994, %v5904
        %v6027 = vadd.f32 %v5995, %v5909
        %v6028 = vadd.f32 %v5996, %v5914
        %v6029 = vadd.f32 %v5997, %v5919
        %v6030 = vadd.f32 %v5998, %v5924
        %v6031 = vadd.f32 %v5999, %v5929
        %v6032 = vadd.f32 %v6000, %v5934
        %v6033 = vadd.f32 %v6001, %v5939
        %v6034 = vadd.f32 %v6002, %v5944
        %v6035 = vadd.f32 %v6003, %v5949
        %v6036 = vadd.f32 %v6004, %v5954
        %v6037 = vadd.f32 %v6005, %v5959
        %v6038 = vadd.f32 %v6006, %v5964
        %v6039 = vadd.f32 %v6007, %v5969
        %v6040 = vadd.f32 %v6008, %v5974
        %6041 = vst [vmem:[#allocation2] sm:$0xff] %v6009
        %6042 = vst [vmem:[#allocation2 + $0x8] sm:$0xff] %v6010
        %6043 = vst [vmem:[#allocation2 + $0x10] sm:$0xff] %v6011
        %6044 = vst [vmem:[#allocation2 + $0x18] sm:$0xff] %v6012
        %6045 = vst [vmem:[#allocation2 + $0x20] sm:$0xff] %v6013
        %6046 = vst [vmem:[#allocation2 + $0x28] sm:$0xff] %v6014
        %6047 = vst [vmem:[#allocation2 + $0x30] sm:$0xff] %v6015
        %6048 = vst [vmem:[#allocation2 + $0x38] sm:$0xff] %v6016
        %6049 = vst [vmem:[#allocation2 + $0x40] sm:$0xff] %v6017
        %6050 = vst [vmem:[#allocation2 + $0x48] sm:$0xff] %v6018
        %6051 = vst [vmem:[#allocation2 + $0x50] sm:$0xff] %v6019
        %6052 = vst [vmem:[#allocation2 + $0x58] sm:$0xff] %v6020
        %6053 = vst [vmem:[#allocation2 + $0x60] sm:$0xff] %v6021
        %6054 = vst [vmem:[#allocation2 + $0x68] sm:$0xff] %v6022
        %6055 = vst [vmem:[#allocation2 + $0x70] sm:$0xff] %v6023
        %6056 = vst [vmem:[#allocation2 + $0x78] sm:$0xff] %v6024
        %6057 = vst [vmem:[#allocation2 + $0x80] sm:$0xff] %v6025
        %6058 = vst [vmem:[#allocation2 + $0x88] sm:$0xff] %v6026
        %6059 = vst [vmem:[#allocation2 + $0x90] sm:$0xff] %v6027
        %6060 = vst [vmem:[#allocation2 + $0x98] sm:$0xff] %v6028
        %6061 = vst [vmem:[#allocation2 + $0xa0] sm:$0xff] %v6029
        %6062 = vst [vmem:[#allocation2 + $0xa8] sm:$0xff] %v6030
        %6063 = vst [vmem:[#allocation2 + $0xb0] sm:$0xff] %v6031
        %6064 = vst [vmem:[#allocation2 + $0xb8] sm:$0xff] %v6032
        %6065 = vst [vmem:[#allocation2 + $0xc0] sm:$0xff] %v6033
        %6066 = vst [vmem:[#allocation2 + $0xc8] sm:$0xff] %v6034
        %6067 = vst [vmem:[#allocation2 + $0xd0] sm:$0xff] %v6035
        %6068 = vst [vmem:[#allocation2 + $0xd8] sm:$0xff] %v6036
        %6069 = vst [vmem:[#allocation2 + $0xe0] sm:$0xff] %v6037
        %6070 = vst [vmem:[#allocation2 + $0xe8] sm:$0xff] %v6038
        %6071 = vst [vmem:[#allocation2 + $0xf0] sm:$0xff] %v6039
        %6072 = vst [vmem:[#allocation2 + $0xf8] sm:$0xff] %v6040
        %s6073 = scalar_lea.vmem [#allocation4], 768
        %v6074 = vld [vmem:[%s6073] sm:$0xff]
        %v6075 = vld [vmem:[%s6073 + $0x8] sm:$0xff]
        %v6076 = vld [vmem:[%s6073 + $0x10] sm:$0xff]
        %v6077 = vld [vmem:[%s6073 + $0x18] sm:$0xff]
        %v6078 = vld [vmem:[%s6073 + $0x20] sm:$0xff]
        %v6079 = vld [vmem:[%s6073 + $0x28] sm:$0xff]
        %v6080 = vld [vmem:[%s6073 + $0x30] sm:$0xff]
        %v6081 = vld [vmem:[%s6073 + $0x38] sm:$0xff]
        %v6082 = vld [vmem:[%s6073 + $0x40] sm:$0xff]
        %v6083 = vld [vmem:[%s6073 + $0x48] sm:$0xff]
        %v6084 = vld [vmem:[%s6073 + $0x50] sm:$0xff]
        %v6085 = vld [vmem:[%s6073 + $0x58] sm:$0xff]
        %v6086 = vld [vmem:[%s6073 + $0x60] sm:$0xff]
        %v6087 = vld [vmem:[%s6073 + $0x68] sm:$0xff]
        %v6088 = vld [vmem:[%s6073 + $0x70] sm:$0xff]
        %v6089 = vld [vmem:[%s6073 + $0x78] sm:$0xff]
        %6090 = vmatprep.subr.mxu0 0.0
        %6091 = vmatpush1.msra.mxu0 %v6074
        %6092 = vmatprep.subr.mxu0 0.0
        %6093 = vmatpush1.msra.mxu0 %v6075
        %6094 = vmatprep.subr.mxu0 0.0
        %6095 = vmatpush1.msra.mxu0 %v6076
        %6096 = vmatprep.subr.mxu0 0.0
        %6097 = vmatpush1.msra.mxu0 %v6077
        %6098 = vmatprep.subr.mxu0 0.0
        %6099 = vmatpush1.msra.mxu0 %v6078
        %6100 = vmatprep.subr.mxu0 0.0
        %6101 = vmatpush1.msra.mxu0 %v6079
        %6102 = vmatprep.subr.mxu0 0.0
        %6103 = vmatpush1.msra.mxu0 %v6080
        %6104 = vmatprep.subr.mxu0 0.0
        %6105 = vmatpush1.msra.mxu0 %v6081
        %6106 = vmatprep.subr.mxu0 0.0
        %6107 = vmatpush1.msra.mxu0 %v6082
        %6108 = vmatprep.subr.mxu0 0.0
        %6109 = vmatpush1.msra.mxu0 %v6083
        %6110 = vmatprep.subr.mxu0 0.0
        %6111 = vmatpush1.msra.mxu0 %v6084
        %6112 = vmatprep.subr.mxu0 0.0
        %6113 = vmatpush1.msra.mxu0 %v6085
        %6114 = vmatprep.subr.mxu0 0.0
        %6115 = vmatpush1.msra.mxu0 %v6086
        %6116 = vmatprep.subr.mxu0 0.0
        %6117 = vmatpush1.msra.mxu0 %v6087
        %6118 = vmatprep.subr.mxu0 0.0
        %6119 = vmatpush1.msra.mxu0 %v6088
        %6120 = vmatprep.subr.mxu0 0.0
        %6121 = vmatpush1.msra.mxu0 %v6089
        %6122 = vmatprep.subr.mxu0 0.0
        %6123 = vmatpush1.msra.mxu0 0.0
        %6124 = vmatprep.subr.mxu0 0.0
        %6125 = vmatpush1.msra.mxu0 0.0
        %6126 = vmatprep.subr.mxu0 0.0
        %6127 = vmatpush1.msra.mxu0 0.0
        %6128 = vmatprep.subr.mxu0 0.0
        %6129 = vmatpush1.msra.mxu0 0.0
        %6130 = vmatprep.subr.mxu0 0.0
        %6131 = vmatpush1.msra.mxu0 0.0
        %6132 = vmatprep.subr.mxu0 0.0
        %6133 = vmatpush1.msra.mxu0 0.0
        %6134 = vmatprep.subr.mxu0 0.0
        %6135 = vmatpush1.msra.mxu0 0.0
        %6136 = vmatprep.subr.mxu0 0.0
        %6137 = vmatpush1.msra.mxu0 0.0
        %6138 = vmatprep.subr.mxu0 0.0
        %6139 = vmatpush1.msra.mxu0 0.0
        %6140 = vmatprep.subr.mxu0 0.0
        %6141 = vmatpush1.msra.mxu0 0.0
        %6142 = vmatprep.subr.mxu0 0.0
        %6143 = vmatpush1.msra.mxu0 0.0
        %6144 = vmatprep.subr.mxu0 0.0
        %6145 = vmatpush1.msra.mxu0 0.0
        %6146 = vmatprep.subr.mxu0 0.0
        %6147 = vmatpush1.msra.mxu0 0.0
        %6148 = vmatprep.subr.mxu0 0.0
        %6149 = vmatpush1.msra.mxu0 0.0
        %6150 = vmatprep.subr.mxu0 0.0
        %6151 = vmatpush1.msra.mxu0 0.0
        %6152 = vmatprep.subr.mxu0 0.0
        %6153 = vmatpush1.msra.mxu0 0.0
        %6154 = vmatprep.mubr.f32.mxu0 0.0
        %6155 = vmatmul.mubr.f32.gmra.mrb[0].mxu0 %v3773
        %v6156 = vpop.f32.mrb[0].mxu0
        %v6157 = vadd.f32 0.0, %v6156
        %v6158 = vpop.f32.mrb[0].mxu0
        %6159 = vmatprep.mubr.f32.mxu0 0.0
        %6160 = vmatmul.mubr.f32.gmra.mrb[0].mxu0 %v3774
        %v6161 = vpop.f32.mrb[0].mxu0
        %v6162 = vadd.f32 0.0, %v6161
        %v6163 = vpop.f32.mrb[0].mxu0
        %6164 = vmatprep.mubr.f32.mxu0 0.0
        %6165 = vmatmul.mubr.f32.gmra.mrb[0].mxu0 %v3776
        %v6166 = vpop.f32.mrb[0].mxu0
        %v6167 = vadd.f32 0.0, %v6166
        %v6168 = vpop.f32.mrb[0].mxu0
        %6169 = vmatprep.mubr.f32.mxu0 0.0
        %6170 = vmatmul.mubr.f32.gmra.mrb[0].mxu0 %v3777
        %v6171 = vpop.f32.mrb[0].mxu0
        %v6172 = vadd.f32 0.0, %v6171
        %v6173 = vpop.f32.mrb[0].mxu0
        %6174 = vmatprep.mubr.f32.mxu0 0.0
        %6175 = vmatmul.mubr.f32.gmra.mrb[0].mxu0 %v3779
        %v6176 = vpop.f32.mrb[0].mxu0
        %v6177 = vadd.f32 0.0, %v6176
        %v6178 = vpop.f32.mrb[0].mxu0
        %6179 = vmatprep.mubr.f32.mxu0 0.0
        %6180 = vmatmul.mubr.f32.gmra.mrb[0].mxu0 %v3780
        %v6181 = vpop.f32.mrb[0].mxu0
        %v6182 = vadd.f32 0.0, %v6181
        %v6183 = vpop.f32.mrb[0].mxu0
        %6184 = vmatprep.mubr.f32.mxu0 0.0
        %6185 = vmatmul.mubr.f32.gmra.mrb[0].mxu0 %v3782
        %v6186 = vpop.f32.mrb[0].mxu0
        %v6187 = vadd.f32 0.0, %v6186
        %v6188 = vpop.f32.mrb[0].mxu0
        %6189 = vmatprep.mubr.f32.mxu0 0.0
        %6190 = vmatmul.mubr.f32.gmra.mrb[0].mxu0 %v3783
        %v6191 = vpop.f32.mrb[0].mxu0
        %v6192 = vadd.f32 0.0, %v6191
        %v6193 = vpop.f32.mrb[0].mxu0
        %6194 = vmatprep.mubr.f32.mxu0 0.0
        %6195 = vmatmul.mubr.f32.gmra.mrb[0].mxu0 %v3785
        %v6196 = vpop.f32.mrb[0].mxu0
        %v6197 = vadd.f32 0.0, %v6196
        %v6198 = vpop.f32.mrb[0].mxu0
        %6199 = vmatprep.mubr.f32.mxu0 0.0
        %6200 = vmatmul.mubr.f32.gmra.mrb[0].mxu0 %v3786
        %v6201 = vpop.f32.mrb[0].mxu0
        %v6202 = vadd.f32 0.0, %v6201
        %v6203 = vpop.f32.mrb[0].mxu0
        %6204 = vmatprep.mubr.f32.mxu0 0.0
        %6205 = vmatmul.mubr.f32.gmra.mrb[0].mxu0 %v3788
        %v6206 = vpop.f32.mrb[0].mxu0
        %v6207 = vadd.f32 0.0, %v6206
        %v6208 = vpop.f32.mrb[0].mxu0
        %6209 = vmatprep.mubr.f32.mxu0 0.0
        %6210 = vmatmul.mubr.f32.gmra.mrb[0].mxu0 %v3789
        %v6211 = vpop.f32.mrb[0].mxu0
        %v6212 = vadd.f32 0.0, %v6211
        %v6213 = vpop.f32.mrb[0].mxu0
        %6214 = vmatprep.mubr.f32.mxu0 0.0
        %6215 = vmatmul.mubr.f32.gmra.mrb[0].mxu0 %v3791
        %v6216 = vpop.f32.mrb[0].mxu0
        %v6217 = vadd.f32 0.0, %v6216
        %v6218 = vpop.f32.mrb[0].mxu0
        %6219 = vmatprep.mubr.f32.mxu0 0.0
        %6220 = vmatmul.mubr.f32.gmra.mrb[0].mxu0 %v3792
        %v6221 = vpop.f32.mrb[0].mxu0
        %v6222 = vadd.f32 0.0, %v6221
        %v6223 = vpop.f32.mrb[0].mxu0
        %6224 = vmatprep.mubr.f32.mxu0 0.0
        %6225 = vmatmul.mubr.f32.gmra.mrb[0].mxu0 %v3794
        %v6226 = vpop.f32.mrb[0].mxu0
        %v6227 = vadd.f32 0.0, %v6226
        %v6228 = vpop.f32.mrb[0].mxu0
        %6229 = vmatprep.mubr.f32.mxu0 0.0
        %6230 = vmatmul.mubr.f32.gmra.mrb[0].mxu0 %v3795
        %v6231 = vpop.f32.mrb[0].mxu0
        %v6232 = vadd.f32 0.0, %v6231
        %v6233 = vpop.f32.mrb[0].mxu0
        %6234 = vmatprep.mubr.f32.mxu0 0.0
        %6235 = vmatmul.mubr.f32.gmra.mrb[0].mxu0 %v3797
        %v6236 = vpop.f32.mrb[0].mxu0
        %v6237 = vadd.f32 0.0, %v6236
        %v6238 = vpop.f32.mrb[0].mxu0
        %6239 = vmatprep.mubr.f32.mxu0 0.0
        %6240 = vmatmul.mubr.f32.gmra.mrb[0].mxu0 %v3798
        %v6241 = vpop.f32.mrb[0].mxu0
        %v6242 = vadd.f32 0.0, %v6241
        %v6243 = vpop.f32.mrb[0].mxu0
        %6244 = vmatprep.mubr.f32.mxu0 0.0
        %6245 = vmatmul.mubr.f32.gmra.mrb[0].mxu0 %v3800
        %v6246 = vpop.f32.mrb[0].mxu0
        %v6247 = vadd.f32 0.0, %v6246
        %v6248 = vpop.f32.mrb[0].mxu0
        %6249 = vmatprep.mubr.f32.mxu0 0.0
        %6250 = vmatmul.mubr.f32.gmra.mrb[0].mxu0 %v3801
        %v6251 = vpop.f32.mrb[0].mxu0
        %v6252 = vadd.f32 0.0, %v6251
        %v6253 = vpop.f32.mrb[0].mxu0
        %6254 = vmatprep.mubr.f32.mxu0 0.0
        %6255 = vmatmul.mubr.f32.gmra.mrb[0].mxu0 %v3803
        %v6256 = vpop.f32.mrb[0].mxu0
        %v6257 = vadd.f32 0.0, %v6256
        %v6258 = vpop.f32.mrb[0].mxu0
        %6259 = vmatprep.mubr.f32.mxu0 0.0
        %6260 = vmatmul.mubr.f32.gmra.mrb[0].mxu0 %v3804
        %v6261 = vpop.f32.mrb[0].mxu0
        %v6262 = vadd.f32 0.0, %v6261
        %v6263 = vpop.f32.mrb[0].mxu0
        %6264 = vmatprep.mubr.f32.mxu0 0.0
        %6265 = vmatmul.mubr.f32.gmra.mrb[0].mxu0 %v3806
        %v6266 = vpop.f32.mrb[0].mxu0
        %v6267 = vadd.f32 0.0, %v6266
        %v6268 = vpop.f32.mrb[0].mxu0
        %6269 = vmatprep.mubr.f32.mxu0 0.0
        %6270 = vmatmul.mubr.f32.gmra.mrb[0].mxu0 %v3807
        %v6271 = vpop.f32.mrb[0].mxu0
        %v6272 = vadd.f32 0.0, %v6271
        %v6273 = vpop.f32.mrb[0].mxu0
        %6274 = vmatprep.mubr.f32.mxu0 0.0
        %6275 = vmatmul.mubr.f32.gmra.mrb[0].mxu0 %v3809
        %v6276 = vpop.f32.mrb[0].mxu0
        %v6277 = vadd.f32 0.0, %v6276
        %v6278 = vpop.f32.mrb[0].mxu0
        %6279 = vmatprep.mubr.f32.mxu0 0.0
        %6280 = vmatmul.mubr.f32.gmra.mrb[0].mxu0 %v3810
        %v6281 = vpop.f32.mrb[0].mxu0
        %v6282 = vadd.f32 0.0, %v6281
        %v6283 = vpop.f32.mrb[0].mxu0
        %6284 = vmatprep.mubr.f32.mxu0 0.0
        %6285 = vmatmul.mubr.f32.gmra.mrb[0].mxu0 %v3812
        %v6286 = vpop.f32.mrb[0].mxu0
        %v6287 = vadd.f32 0.0, %v6286
        %v6288 = vpop.f32.mrb[0].mxu0
        %6289 = vmatprep.mubr.f32.mxu0 0.0
        %6290 = vmatmul.mubr.f32.gmra.mrb[0].mxu0 %v3813
        %v6291 = vpop.f32.mrb[0].mxu0
        %v6292 = vadd.f32 0.0, %v6291
        %v6293 = vpop.f32.mrb[0].mxu0
        %6294 = vmatprep.mubr.f32.mxu0 0.0
        %6295 = vmatmul.mubr.f32.gmra.mrb[0].mxu0 %v3815
        %v6296 = vpop.f32.mrb[0].mxu0
        %v6297 = vadd.f32 0.0, %v6296
        %v6298 = vpop.f32.mrb[0].mxu0
        %6299 = vmatprep.mubr.f32.mxu0 0.0
        %6300 = vmatmul.mubr.f32.gmra.mrb[0].mxu0 %v3816
        %v6301 = vpop.f32.mrb[0].mxu0
        %v6302 = vadd.f32 0.0, %v6301
        %v6303 = vpop.f32.mrb[0].mxu0
        %6304 = vmatprep.mubr.f32.mxu0 0.0
        %6305 = vmatmul.mubr.f32.gmra.mrb[0].mxu0 %v3818
        %v6306 = vpop.f32.mrb[0].mxu0
        %v6307 = vadd.f32 0.0, %v6306
        %v6308 = vpop.f32.mrb[0].mxu0
        %6309 = vmatprep.mubr.f32.mxu0 0.0
        %6310 = vmatmul.mubr.f32.gmra.mrb[0].mxu0 %v3819
        %v6311 = vpop.f32.mrb[0].mxu0
        %v6312 = vadd.f32 0.0, %v6311
        %v6313 = vpop.f32.mrb[0].mxu0
        %6314 = vdwg.mxu0
        %v6315 = vld [vmem:[#allocation2] sm:$0xff]
        %v6316 = vld [vmem:[#allocation2 + $0x8] sm:$0xff]
        %v6317 = vld [vmem:[#allocation2 + $0x10] sm:$0xff]
        %v6318 = vld [vmem:[#allocation2 + $0x18] sm:$0xff]
        %v6319 = vld [vmem:[#allocation2 + $0x20] sm:$0xff]
        %v6320 = vld [vmem:[#allocation2 + $0x28] sm:$0xff]
        %v6321 = vld [vmem:[#allocation2 + $0x30] sm:$0xff]
        %v6322 = vld [vmem:[#allocation2 + $0x38] sm:$0xff]
        %v6323 = vld [vmem:[#allocation2 + $0x40] sm:$0xff]
        %v6324 = vld [vmem:[#allocation2 + $0x48] sm:$0xff]
        %v6325 = vld [vmem:[#allocation2 + $0x50] sm:$0xff]
        %v6326 = vld [vmem:[#allocation2 + $0x58] sm:$0xff]
        %v6327 = vld [vmem:[#allocation2 + $0x60] sm:$0xff]
        %v6328 = vld [vmem:[#allocation2 + $0x68] sm:$0xff]
        %v6329 = vld [vmem:[#allocation2 + $0x70] sm:$0xff]
        %v6330 = vld [vmem:[#allocation2 + $0x78] sm:$0xff]
        %v6331 = vld [vmem:[#allocation2 + $0x80] sm:$0xff]
        %v6332 = vld [vmem:[#allocation2 + $0x88] sm:$0xff]
        %v6333 = vld [vmem:[#allocation2 + $0x90] sm:$0xff]
        %v6334 = vld [vmem:[#allocation2 + $0x98] sm:$0xff]
        %v6335 = vld [vmem:[#allocation2 + $0xa0] sm:$0xff]
        %v6336 = vld [vmem:[#allocation2 + $0xa8] sm:$0xff]
        %v6337 = vld [vmem:[#allocation2 + $0xb0] sm:$0xff]
        %v6338 = vld [vmem:[#allocation2 + $0xb8] sm:$0xff]
        %v6339 = vld [vmem:[#allocation2 + $0xc0] sm:$0xff]
        %v6340 = vld [vmem:[#allocation2 + $0xc8] sm:$0xff]
        %v6341 = vld [vmem:[#allocation2 + $0xd0] sm:$0xff]
        %v6342 = vld [vmem:[#allocation2 + $0xd8] sm:$0xff]
        %v6343 = vld [vmem:[#allocation2 + $0xe0] sm:$0xff]
        %v6344 = vld [vmem:[#allocation2 + $0xe8] sm:$0xff]
        %v6345 = vld [vmem:[#allocation2 + $0xf0] sm:$0xff]
        %v6346 = vld [vmem:[#allocation2 + $0xf8] sm:$0xff]
        %v6347 = vadd.f32 %v6315, %v6157
        %v6348 = vadd.f32 %v6316, %v6162
        %v6349 = vadd.f32 %v6317, %v6167
        %v6350 = vadd.f32 %v6318, %v6172
        %v6351 = vadd.f32 %v6319, %v6177
        %v6352 = vadd.f32 %v6320, %v6182
        %v6353 = vadd.f32 %v6321, %v6187
        %v6354 = vadd.f32 %v6322, %v6192
        %v6355 = vadd.f32 %v6323, %v6197
        %v6356 = vadd.f32 %v6324, %v6202
        %v6357 = vadd.f32 %v6325, %v6207
        %v6358 = vadd.f32 %v6326, %v6212
        %v6359 = vadd.f32 %v6327, %v6217
        %v6360 = vadd.f32 %v6328, %v6222
        %v6361 = vadd.f32 %v6329, %v6227
        %v6362 = vadd.f32 %v6330, %v6232
        %v6363 = vadd.f32 %v6331, %v6237
        %v6364 = vadd.f32 %v6332, %v6242
        %v6365 = vadd.f32 %v6333, %v6247
        %v6366 = vadd.f32 %v6334, %v6252
        %v6367 = vadd.f32 %v6335, %v6257
        %v6368 = vadd.f32 %v6336, %v6262
        %v6369 = vadd.f32 %v6337, %v6267
        %v6370 = vadd.f32 %v6338, %v6272
        %v6371 = vadd.f32 %v6339, %v6277
        %v6372 = vadd.f32 %v6340, %v6282
        %v6373 = vadd.f32 %v6341, %v6287
        %v6374 = vadd.f32 %v6342, %v6292
        %v6375 = vadd.f32 %v6343, %v6297
        %v6376 = vadd.f32 %v6344, %v6302
        %v6377 = vadd.f32 %v6345, %v6307
        %v6378 = vadd.f32 %v6346, %v6312
        %6379 = vst [vmem:[#allocation2] sm:$0xff] %v6347
        %6380 = vst [vmem:[#allocation2 + $0x8] sm:$0xff] %v6348
        %6381 = vst [vmem:[#allocation2 + $0x10] sm:$0xff] %v6349
        %6382 = vst [vmem:[#allocation2 + $0x18] sm:$0xff] %v6350
        %6383 = vst [vmem:[#allocation2 + $0x20] sm:$0xff] %v6351
        %6384 = vst [vmem:[#allocation2 + $0x28] sm:$0xff] %v6352
        %6385 = vst [vmem:[#allocation2 + $0x30] sm:$0xff] %v6353
        %6386 = vst [vmem:[#allocation2 + $0x38] sm:$0xff] %v6354
        %6387 = vst [vmem:[#allocation2 + $0x40] sm:$0xff] %v6355
        %6388 = vst [vmem:[#allocation2 + $0x48] sm:$0xff] %v6356
        %6389 = vst [vmem:[#allocation2 + $0x50] sm:$0xff] %v6357
        %6390 = vst [vmem:[#allocation2 + $0x58] sm:$0xff] %v6358
        %6391 = vst [vmem:[#allocation2 + $0x60] sm:$0xff] %v6359
        %6392 = vst [vmem:[#allocation2 + $0x68] sm:$0xff] %v6360
        %6393 = vst [vmem:[#allocation2 + $0x70] sm:$0xff] %v6361
        %6394 = vst [vmem:[#allocation2 + $0x78] sm:$0xff] %v6362
        %6395 = vst [vmem:[#allocation2 + $0x80] sm:$0xff] %v6363
        %6396 = vst [vmem:[#allocation2 + $0x88] sm:$0xff] %v6364
        %6397 = vst [vmem:[#allocation2 + $0x90] sm:$0xff] %v6365
        %6398 = vst [vmem:[#allocation2 + $0x98] sm:$0xff] %v6366
        %6399 = vst [vmem:[#allocation2 + $0xa0] sm:$0xff] %v6367
        %6400 = vst [vmem:[#allocation2 + $0xa8] sm:$0xff] %v6368
        %6401 = vst [vmem:[#allocation2 + $0xb0] sm:$0xff] %v6369
        %6402 = vst [vmem:[#allocation2 + $0xb8] sm:$0xff] %v6370
        %6403 = vst [vmem:[#allocation2 + $0xc0] sm:$0xff] %v6371
        %6404 = vst [vmem:[#allocation2 + $0xc8] sm:$0xff] %v6372
        %6405 = vst [vmem:[#allocation2 + $0xd0] sm:$0xff] %v6373
        %6406 = vst [vmem:[#allocation2 + $0xd8] sm:$0xff] %v6374
        %6407 = vst [vmem:[#allocation2 + $0xe0] sm:$0xff] %v6375
        %6408 = vst [vmem:[#allocation2 + $0xe8] sm:$0xff] %v6376
        %6409 = vst [vmem:[#allocation2 + $0xf0] sm:$0xff] %v6377
        %6410 = vst [vmem:[#allocation2 + $0xf8] sm:$0xff] %v6378
        %v6414 = vrot.slane %v3818, 1
        %v6415 = vrot.slane %v3819, 1
        %v6416 = vsel %vm613, %v6414, %v6415
        %v6417 = vrot.slane %v3820, 1
        %v6418 = vsel %vm613, %v6415, %v6417
        %s6421 = scalar_lea.vmem [#allocation4], 896
        %v6422 = vld [vmem:[%s6421] sm:$0xff]
        %v6423 = vld [vmem:[%s6421 + $0x8] sm:$0xff]
        %v6424 = vld [vmem:[%s6421 + $0x10] sm:$0xff]
        %v6425 = vld [vmem:[%s6421 + $0x18] sm:$0xff]
        %v6426 = vld [vmem:[%s6421 + $0x20] sm:$0xff]
        %v6427 = vld [vmem:[%s6421 + $0x28] sm:$0xff]
        %v6428 = vld [vmem:[%s6421 + $0x30] sm:$0xff]
        %v6429 = vld [vmem:[%s6421 + $0x38] sm:$0xff]
        %v6430 = vld [vmem:[%s6421 + $0x40] sm:$0xff]
        %v6431 = vld [vmem:[%s6421 + $0x48] sm:$0xff]
        %v6432 = vld [vmem:[%s6421 + $0x50] sm:$0xff]
        %v6433 = vld [vmem:[%s6421 + $0x58] sm:$0xff]
        %v6434 = vld [vmem:[%s6421 + $0x60] sm:$0xff]
        %v6435 = vld [vmem:[%s6421 + $0x68] sm:$0xff]
        %v6436 = vld [vmem:[%s6421 + $0x70] sm:$0xff]
        %v6437 = vld [vmem:[%s6421 + $0x78] sm:$0xff]
        %6438 = vmatprep.subr.mxu0 0.0
        %6439 = vmatpush1.msra.mxu0 %v6422
        %6440 = vmatprep.subr.mxu0 0.0
        %6441 = vmatpush1.msra.mxu0 %v6423
        %6442 = vmatprep.subr.mxu0 0.0
        %6443 = vmatpush1.msra.mxu0 %v6424
        %6444 = vmatprep.subr.mxu0 0.0
        %6445 = vmatpush1.msra.mxu0 %v6425
        %6446 = vmatprep.subr.mxu0 0.0
        %6447 = vmatpush1.msra.mxu0 %v6426
        %6448 = vmatprep.subr.mxu0 0.0
        %6449 = vmatpush1.msra.mxu0 %v6427
        %6450 = vmatprep.subr.mxu0 0.0
        %6451 = vmatpush1.msra.mxu0 %v6428
        %6452 = vmatprep.subr.mxu0 0.0
        %6453 = vmatpush1.msra.mxu0 %v6429
        %6454 = vmatprep.subr.mxu0 0.0
        %6455 = vmatpush1.msra.mxu0 %v6430
        %6456 = vmatprep.subr.mxu0 0.0
        %6457 = vmatpush1.msra.mxu0 %v6431
        %6458 = vmatprep.subr.mxu0 0.0
        %6459 = vmatpush1.msra.mxu0 %v6432
        %6460 = vmatprep.subr.mxu0 0.0
        %6461 = vmatpush1.msra.mxu0 %v6433
        %6462 = vmatprep.subr.mxu0 0.0
        %6463 = vmatpush1.msra.mxu0 %v6434
        %6464 = vmatprep.subr.mxu0 0.0
        %6465 = vmatpush1.msra.mxu0 %v6435
        %6466 = vmatprep.subr.mxu0 0.0
        %6467 = vmatpush1.msra.mxu0 %v6436
        %6468 = vmatprep.subr.mxu0 0.0
        %6469 = vmatpush1.msra.mxu0 %v6437
        %6470 = vmatprep.subr.mxu0 0.0
        %6471 = vmatpush1.msra.mxu0 0.0
        %6472 = vmatprep.subr.mxu0 0.0
        %6473 = vmatpush1.msra.mxu0 0.0
        %6474 = vmatprep.subr.mxu0 0.0
        %6475 = vmatpush1.msra.mxu0 0.0
        %6476 = vmatprep.subr.mxu0 0.0
        %6477 = vmatpush1.msra.mxu0 0.0
        %6478 = vmatprep.subr.mxu0 0.0
        %6479 = vmatpush1.msra.mxu0 0.0
        %6480 = vmatprep.subr.mxu0 0.0
        %6481 = vmatpush1.msra.mxu0 0.0
        %6482 = vmatprep.subr.mxu0 0.0
        %6483 = vmatpush1.msra.mxu0 0.0
        %6484 = vmatprep.subr.mxu0 0.0
        %6485 = vmatpush1.msra.mxu0 0.0
        %6486 = vmatprep.subr.mxu0 0.0
        %6487 = vmatpush1.msra.mxu0 0.0
        %6488 = vmatprep.subr.mxu0 0.0
        %6489 = vmatpush1.msra.mxu0 0.0
        %6490 = vmatprep.subr.mxu0 0.0
        %6491 = vmatpush1.msra.mxu0 0.0
        %6492 = vmatprep.subr.mxu0 0.0
        %6493 = vmatpush1.msra.mxu0 0.0
        %6494 = vmatprep.subr.mxu0 0.0
        %6495 = vmatpush1.msra.mxu0 0.0
        %6496 = vmatprep.subr.mxu0 0.0
        %6497 = vmatpush1.msra.mxu0 0.0
        %6498 = vmatprep.subr.mxu0 0.0
        %6499 = vmatpush1.msra.mxu0 0.0
        %6500 = vmatprep.subr.mxu0 0.0
        %6501 = vmatpush1.msra.mxu0 0.0
        %6502 = vmatprep.mubr.f32.mxu0 0.0
        %6503 = vmatmul.mubr.f32.gmra.mrb[0].mxu0 %v4154
        %v6504 = vpop.f32.mrb[0].mxu0
        %v6505 = vadd.f32 0.0, %v6504
        %v6506 = vpop.f32.mrb[0].mxu0
        %6507 = vmatprep.mubr.f32.mxu0 0.0
        %6508 = vmatmul.mubr.f32.gmra.mrb[0].mxu0 %v4156
        %v6509 = vpop.f32.mrb[0].mxu0
        %v6510 = vadd.f32 0.0, %v6509
        %v6511 = vpop.f32.mrb[0].mxu0
        %6512 = vmatprep.mubr.f32.mxu0 0.0
        %6513 = vmatmul.mubr.f32.gmra.mrb[0].mxu0 %v4159
        %v6514 = vpop.f32.mrb[0].mxu0
        %v6515 = vadd.f32 0.0, %v6514
        %v6516 = vpop.f32.mrb[0].mxu0
        %6517 = vmatprep.mubr.f32.mxu0 0.0
        %6518 = vmatmul.mubr.f32.gmra.mrb[0].mxu0 %v4161
        %v6519 = vpop.f32.mrb[0].mxu0
        %v6520 = vadd.f32 0.0, %v6519
        %v6521 = vpop.f32.mrb[0].mxu0
        %6522 = vmatprep.mubr.f32.mxu0 0.0
        %6523 = vmatmul.mubr.f32.gmra.mrb[0].mxu0 %v4164
        %v6524 = vpop.f32.mrb[0].mxu0
        %v6525 = vadd.f32 0.0, %v6524
        %v6526 = vpop.f32.mrb[0].mxu0
        %6527 = vmatprep.mubr.f32.mxu0 0.0
        %6528 = vmatmul.mubr.f32.gmra.mrb[0].mxu0 %v4166
        %v6529 = vpop.f32.mrb[0].mxu0
        %v6530 = vadd.f32 0.0, %v6529
        %v6531 = vpop.f32.mrb[0].mxu0
        %6532 = vmatprep.mubr.f32.mxu0 0.0
        %6533 = vmatmul.mubr.f32.gmra.mrb[0].mxu0 %v4169
        %v6534 = vpop.f32.mrb[0].mxu0
        %v6535 = vadd.f32 0.0, %v6534
        %v6536 = vpop.f32.mrb[0].mxu0
        %6537 = vmatprep.mubr.f32.mxu0 0.0
        %6538 = vmatmul.mubr.f32.gmra.mrb[0].mxu0 %v4171
        %v6539 = vpop.f32.mrb[0].mxu0
        %v6540 = vadd.f32 0.0, %v6539
        %v6541 = vpop.f32.mrb[0].mxu0
        %6542 = vmatprep.mubr.f32.mxu0 0.0
        %6543 = vmatmul.mubr.f32.gmra.mrb[0].mxu0 %v4174
        %v6544 = vpop.f32.mrb[0].mxu0
        %v6545 = vadd.f32 0.0, %v6544
        %v6546 = vpop.f32.mrb[0].mxu0
        %6547 = vmatprep.mubr.f32.mxu0 0.0
        %6548 = vmatmul.mubr.f32.gmra.mrb[0].mxu0 %v4176
        %v6549 = vpop.f32.mrb[0].mxu0
        %v6550 = vadd.f32 0.0, %v6549
        %v6551 = vpop.f32.mrb[0].mxu0
        %6552 = vmatprep.mubr.f32.mxu0 0.0
        %6553 = vmatmul.mubr.f32.gmra.mrb[0].mxu0 %v4179
        %v6554 = vpop.f32.mrb[0].mxu0
        %v6555 = vadd.f32 0.0, %v6554
        %v6556 = vpop.f32.mrb[0].mxu0
        %6557 = vmatprep.mubr.f32.mxu0 0.0
        %6558 = vmatmul.mubr.f32.gmra.mrb[0].mxu0 %v4181
        %v6559 = vpop.f32.mrb[0].mxu0
        %v6560 = vadd.f32 0.0, %v6559
        %v6561 = vpop.f32.mrb[0].mxu0
        %6562 = vmatprep.mubr.f32.mxu0 0.0
        %6563 = vmatmul.mubr.f32.gmra.mrb[0].mxu0 %v4184
        %v6564 = vpop.f32.mrb[0].mxu0
        %v6565 = vadd.f32 0.0, %v6564
        %v6566 = vpop.f32.mrb[0].mxu0
        %6567 = vmatprep.mubr.f32.mxu0 0.0
        %6568 = vmatmul.mubr.f32.gmra.mrb[0].mxu0 %v4186
        %v6569 = vpop.f32.mrb[0].mxu0
        %v6570 = vadd.f32 0.0, %v6569
        %v6571 = vpop.f32.mrb[0].mxu0
        %6572 = vmatprep.mubr.f32.mxu0 0.0
        %6573 = vmatmul.mubr.f32.gmra.mrb[0].mxu0 %v4189
        %v6574 = vpop.f32.mrb[0].mxu0
        %v6575 = vadd.f32 0.0, %v6574
        %v6576 = vpop.f32.mrb[0].mxu0
        %6577 = vmatprep.mubr.f32.mxu0 0.0
        %6578 = vmatmul.mubr.f32.gmra.mrb[0].mxu0 %v4191
        %v6579 = vpop.f32.mrb[0].mxu0
        %v6580 = vadd.f32 0.0, %v6579
        %v6581 = vpop.f32.mrb[0].mxu0
        %6582 = vmatprep.mubr.f32.mxu0 0.0
        %6583 = vmatmul.mubr.f32.gmra.mrb[0].mxu0 %v4194
        %v6584 = vpop.f32.mrb[0].mxu0
        %v6585 = vadd.f32 0.0, %v6584
        %v6586 = vpop.f32.mrb[0].mxu0
        %6587 = vmatprep.mubr.f32.mxu0 0.0
        %6588 = vmatmul.mubr.f32.gmra.mrb[0].mxu0 %v4196
        %v6589 = vpop.f32.mrb[0].mxu0
        %v6590 = vadd.f32 0.0, %v6589
        %v6591 = vpop.f32.mrb[0].mxu0
        %6592 = vmatprep.mubr.f32.mxu0 0.0
        %6593 = vmatmul.mubr.f32.gmra.mrb[0].mxu0 %v4199
        %v6594 = vpop.f32.mrb[0].mxu0
        %v6595 = vadd.f32 0.0, %v6594
        %v6596 = vpop.f32.mrb[0].mxu0
        %6597 = vmatprep.mubr.f32.mxu0 0.0
        %6598 = vmatmul.mubr.f32.gmra.mrb[0].mxu0 %v4201
        %v6599 = vpop.f32.mrb[0].mxu0
        %v6600 = vadd.f32 0.0, %v6599
        %v6601 = vpop.f32.mrb[0].mxu0
        %6602 = vmatprep.mubr.f32.mxu0 0.0
        %6603 = vmatmul.mubr.f32.gmra.mrb[0].mxu0 %v4204
        %v6604 = vpop.f32.mrb[0].mxu0
        %v6605 = vadd.f32 0.0, %v6604
        %v6606 = vpop.f32.mrb[0].mxu0
        %6607 = vmatprep.mubr.f32.mxu0 0.0
        %6608 = vmatmul.mubr.f32.gmra.mrb[0].mxu0 %v4206
        %v6609 = vpop.f32.mrb[0].mxu0
        %v6610 = vadd.f32 0.0, %v6609
        %v6611 = vpop.f32.mrb[0].mxu0
        %6612 = vmatprep.mubr.f32.mxu0 0.0
        %6613 = vmatmul.mubr.f32.gmra.mrb[0].mxu0 %v4209
        %v6614 = vpop.f32.mrb[0].mxu0
        %v6615 = vadd.f32 0.0, %v6614
        %v6616 = vpop.f32.mrb[0].mxu0
        %6617 = vmatprep.mubr.f32.mxu0 0.0
        %6618 = vmatmul.mubr.f32.gmra.mrb[0].mxu0 %v4211
        %v6619 = vpop.f32.mrb[0].mxu0
        %v6620 = vadd.f32 0.0, %v6619
        %v6621 = vpop.f32.mrb[0].mxu0
        %6622 = vmatprep.mubr.f32.mxu0 0.0
        %6623 = vmatmul.mubr.f32.gmra.mrb[0].mxu0 %v4214
        %v6624 = vpop.f32.mrb[0].mxu0
        %v6625 = vadd.f32 0.0, %v6624
        %v6626 = vpop.f32.mrb[0].mxu0
        %6627 = vmatprep.mubr.f32.mxu0 0.0
        %6628 = vmatmul.mubr.f32.gmra.mrb[0].mxu0 %v4216
        %v6629 = vpop.f32.mrb[0].mxu0
        %v6630 = vadd.f32 0.0, %v6629
        %v6631 = vpop.f32.mrb[0].mxu0
        %6632 = vmatprep.mubr.f32.mxu0 0.0
        %6633 = vmatmul.mubr.f32.gmra.mrb[0].mxu0 %v4219
        %v6634 = vpop.f32.mrb[0].mxu0
        %v6635 = vadd.f32 0.0, %v6634
        %v6636 = vpop.f32.mrb[0].mxu0
        %6637 = vmatprep.mubr.f32.mxu0 0.0
        %6638 = vmatmul.mubr.f32.gmra.mrb[0].mxu0 %v4221
        %v6639 = vpop.f32.mrb[0].mxu0
        %v6640 = vadd.f32 0.0, %v6639
        %v6641 = vpop.f32.mrb[0].mxu0
        %6642 = vmatprep.mubr.f32.mxu0 0.0
        %6643 = vmatmul.mubr.f32.gmra.mrb[0].mxu0 %v5385
        %v6644 = vpop.f32.mrb[0].mxu0
        %v6645 = vadd.f32 0.0, %v6644
        %v6646 = vpop.f32.mrb[0].mxu0
        %6647 = vmatprep.mubr.f32.mxu0 0.0
        %6648 = vmatmul.mubr.f32.gmra.mrb[0].mxu0 %v5387
        %v6649 = vpop.f32.mrb[0].mxu0
        %v6650 = vadd.f32 0.0, %v6649
        %v6651 = vpop.f32.mrb[0].mxu0
        %6652 = vmatprep.mubr.f32.mxu0 0.0
        %6653 = vmatmul.mubr.f32.gmra.mrb[0].mxu0 %v6416
        %v6654 = vpop.f32.mrb[0].mxu0
        %v6655 = vadd.f32 0.0, %v6654
        %v6656 = vpop.f32.mrb[0].mxu0
        %6657 = vmatprep.mubr.f32.mxu0 0.0
        %6658 = vmatmul.mubr.f32.gmra.mrb[0].mxu0 %v6418
        %v6659 = vpop.f32.mrb[0].mxu0
        %v6660 = vadd.f32 0.0, %v6659
        %v6661 = vpop.f32.mrb[0].mxu0
        %6662 = vdwg.mxu0
        %v6663 = vld [vmem:[#allocation2] sm:$0xff]
        %v6664 = vld [vmem:[#allocation2 + $0x8] sm:$0xff]
        %v6665 = vld [vmem:[#allocation2 + $0x10] sm:$0xff]
        %v6666 = vld [vmem:[#allocation2 + $0x18] sm:$0xff]
        %v6667 = vld [vmem:[#allocation2 + $0x20] sm:$0xff]
        %v6668 = vld [vmem:[#allocation2 + $0x28] sm:$0xff]
        %v6669 = vld [vmem:[#allocation2 + $0x30] sm:$0xff]
        %v6670 = vld [vmem:[#allocation2 + $0x38] sm:$0xff]
        %v6671 = vld [vmem:[#allocation2 + $0x40] sm:$0xff]
        %v6672 = vld [vmem:[#allocation2 + $0x48] sm:$0xff]
        %v6673 = vld [vmem:[#allocation2 + $0x50] sm:$0xff]
        %v6674 = vld [vmem:[#allocation2 + $0x58] sm:$0xff]
        %v6675 = vld [vmem:[#allocation2 + $0x60] sm:$0xff]
        %v6676 = vld [vmem:[#allocation2 + $0x68] sm:$0xff]
        %v6677 = vld [vmem:[#allocation2 + $0x70] sm:$0xff]
        %v6678 = vld [vmem:[#allocation2 + $0x78] sm:$0xff]
        %v6679 = vld [vmem:[#allocation2 + $0x80] sm:$0xff]
        %v6680 = vld [vmem:[#allocation2 + $0x88] sm:$0xff]
        %v6681 = vld [vmem:[#allocation2 + $0x90] sm:$0xff]
        %v6682 = vld [vmem:[#allocation2 + $0x98] sm:$0xff]
        %v6683 = vld [vmem:[#allocation2 + $0xa0] sm:$0xff]
        %v6684 = vld [vmem:[#allocation2 + $0xa8] sm:$0xff]
        %v6685 = vld [vmem:[#allocation2 + $0xb0] sm:$0xff]
        %v6686 = vld [vmem:[#allocation2 + $0xb8] sm:$0xff]
        %v6687 = vld [vmem:[#allocation2 + $0xc0] sm:$0xff]
        %v6688 = vld [vmem:[#allocation2 + $0xc8] sm:$0xff]
        %v6689 = vld [vmem:[#allocation2 + $0xd0] sm:$0xff]
        %v6690 = vld [vmem:[#allocation2 + $0xd8] sm:$0xff]
        %v6691 = vld [vmem:[#allocation2 + $0xe0] sm:$0xff]
        %v6692 = vld [vmem:[#allocation2 + $0xe8] sm:$0xff]
        %v6693 = vld [vmem:[#allocation2 + $0xf0] sm:$0xff]
        %v6694 = vld [vmem:[#allocation2 + $0xf8] sm:$0xff]
        %v6695 = vadd.f32 %v6663, %v6505
        %v6696 = vadd.f32 %v6664, %v6510
        %v6697 = vadd.f32 %v6665, %v6515
        %v6698 = vadd.f32 %v6666, %v6520
        %v6699 = vadd.f32 %v6667, %v6525
        %v6700 = vadd.f32 %v6668, %v6530
        %v6701 = vadd.f32 %v6669, %v6535
        %v6702 = vadd.f32 %v6670, %v6540
        %v6703 = vadd.f32 %v6671, %v6545
        %v6704 = vadd.f32 %v6672, %v6550
        %v6705 = vadd.f32 %v6673, %v6555
        %v6706 = vadd.f32 %v6674, %v6560
        %v6707 = vadd.f32 %v6675, %v6565
        %v6708 = vadd.f32 %v6676, %v6570
        %v6709 = vadd.f32 %v6677, %v6575
        %v6710 = vadd.f32 %v6678, %v6580
        %v6711 = vadd.f32 %v6679, %v6585
        %v6712 = vadd.f32 %v6680, %v6590
        %v6713 = vadd.f32 %v6681, %v6595
        %v6714 = vadd.f32 %v6682, %v6600
        %v6715 = vadd.f32 %v6683, %v6605
        %v6716 = vadd.f32 %v6684, %v6610
        %v6717 = vadd.f32 %v6685, %v6615
        %v6718 = vadd.f32 %v6686, %v6620
        %v6719 = vadd.f32 %v6687, %v6625
        %v6720 = vadd.f32 %v6688, %v6630
        %v6721 = vadd.f32 %v6689, %v6635
        %v6722 = vadd.f32 %v6690, %v6640
        %v6723 = vadd.f32 %v6691, %v6645
        %v6724 = vadd.f32 %v6692, %v6650
        %v6725 = vadd.f32 %v6693, %v6655
        %v6726 = vadd.f32 %v6694, %v6660
        %6727 = vst [vmem:[#allocation2] sm:$0xff] %v6695
        %6728 = vst [vmem:[#allocation2 + $0x8] sm:$0xff] %v6696
        %6729 = vst [vmem:[#allocation2 + $0x10] sm:$0xff] %v6697
        %6730 = vst [vmem:[#allocation2 + $0x18] sm:$0xff] %v6698
        %6731 = vst [vmem:[#allocation2 + $0x20] sm:$0xff] %v6699
        %6732 = vst [vmem:[#allocation2 + $0x28] sm:$0xff] %v6700
        %6733 = vst [vmem:[#allocation2 + $0x30] sm:$0xff] %v6701
        %6734 = vst [vmem:[#allocation2 + $0x38] sm:$0xff] %v6702
        %6735 = vst [vmem:[#allocation2 + $0x40] sm:$0xff] %v6703
        %6736 = vst [vmem:[#allocation2 + $0x48] sm:$0xff] %v6704
        %6737 = vst [vmem:[#allocation2 + $0x50] sm:$0xff] %v6705
        %6738 = vst [vmem:[#allocation2 + $0x58] sm:$0xff] %v6706
        %6739 = vst [vmem:[#allocation2 + $0x60] sm:$0xff] %v6707
        %6740 = vst [vmem:[#allocation2 + $0x68] sm:$0xff] %v6708
        %6741 = vst [vmem:[#allocation2 + $0x70] sm:$0xff] %v6709
        %6742 = vst [vmem:[#allocation2 + $0x78] sm:$0xff] %v6710
        %6743 = vst [vmem:[#allocation2 + $0x80] sm:$0xff] %v6711
        %6744 = vst [vmem:[#allocation2 + $0x88] sm:$0xff] %v6712
        %6745 = vst [vmem:[#allocation2 + $0x90] sm:$0xff] %v6713
        %6746 = vst [vmem:[#allocation2 + $0x98] sm:$0xff] %v6714
        %6747 = vst [vmem:[#allocation2 + $0xa0] sm:$0xff] %v6715
        %6748 = vst [vmem:[#allocation2 + $0xa8] sm:$0xff] %v6716
        %6749 = vst [vmem:[#allocation2 + $0xb0] sm:$0xff] %v6717
        %6750 = vst [vmem:[#allocation2 + $0xb8] sm:$0xff] %v6718
        %6751 = vst [vmem:[#allocation2 + $0xc0] sm:$0xff] %v6719
        %6752 = vst [vmem:[#allocation2 + $0xc8] sm:$0xff] %v6720
        %6753 = vst [vmem:[#allocation2 + $0xd0] sm:$0xff] %v6721
        %6754 = vst [vmem:[#allocation2 + $0xd8] sm:$0xff] %v6722
        %6755 = vst [vmem:[#allocation2 + $0xe0] sm:$0xff] %v6723
        %6756 = vst [vmem:[#allocation2 + $0xe8] sm:$0xff] %v6724
        %6757 = vst [vmem:[#allocation2 + $0xf0] sm:$0xff] %v6725
        %6758 = vst [vmem:[#allocation2 + $0xf8] sm:$0xff] %v6726
        %v6759 = vrot.slane %v3818, 2
        %v6760 = vrot.slane %v3819, 2
        %v6761 = vsel %vm1064, %v6759, %v6760
        %v6762 = vrot.slane %v3820, 2
        %v6763 = vsel %vm1064, %v6760, %v6762
        %s6766 = scalar_lea.vmem [#allocation4], 1024
        %v6767 = vld [vmem:[%s6766] sm:$0xff]
        %v6768 = vld [vmem:[%s6766 + $0x8] sm:$0xff]
        %v6769 = vld [vmem:[%s6766 + $0x10] sm:$0xff]
        %v6770 = vld [vmem:[%s6766 + $0x18] sm:$0xff]
        %v6771 = vld [vmem:[%s6766 + $0x20] sm:$0xff]
        %v6772 = vld [vmem:[%s6766 + $0x28] sm:$0xff]
        %v6773 = vld [vmem:[%s6766 + $0x30] sm:$0xff]
        %v6774 = vld [vmem:[%s6766 + $0x38] sm:$0xff]
        %v6775 = vld [vmem:[%s6766 + $0x40] sm:$0xff]
        %v6776 = vld [vmem:[%s6766 + $0x48] sm:$0xff]
        %v6777 = vld [vmem:[%s6766 + $0x50] sm:$0xff]
        %v6778 = vld [vmem:[%s6766 + $0x58] sm:$0xff]
        %v6779 = vld [vmem:[%s6766 + $0x60] sm:$0xff]
        %v6780 = vld [vmem:[%s6766 + $0x68] sm:$0xff]
        %v6781 = vld [vmem:[%s6766 + $0x70] sm:$0xff]
        %v6782 = vld [vmem:[%s6766 + $0x78] sm:$0xff]
        %6783 = vmatprep.subr.mxu0 0.0
        %6784 = vmatpush1.msra.mxu0 %v6767
        %6785 = vmatprep.subr.mxu0 0.0
        %6786 = vmatpush1.msra.mxu0 %v6768
        %6787 = vmatprep.subr.mxu0 0.0
        %6788 = vmatpush1.msra.mxu0 %v6769
        %6789 = vmatprep.subr.mxu0 0.0
        %6790 = vmatpush1.msra.mxu0 %v6770
        %6791 = vmatprep.subr.mxu0 0.0
        %6792 = vmatpush1.msra.mxu0 %v6771
        %6793 = vmatprep.subr.mxu0 0.0
        %6794 = vmatpush1.msra.mxu0 %v6772
        %6795 = vmatprep.subr.mxu0 0.0
        %6796 = vmatpush1.msra.mxu0 %v6773
        %6797 = vmatprep.subr.mxu0 0.0
        %6798 = vmatpush1.msra.mxu0 %v6774
        %6799 = vmatprep.subr.mxu0 0.0
        %6800 = vmatpush1.msra.mxu0 %v6775
        %6801 = vmatprep.subr.mxu0 0.0
        %6802 = vmatpush1.msra.mxu0 %v6776
        %6803 = vmatprep.subr.mxu0 0.0
        %6804 = vmatpush1.msra.mxu0 %v6777
        %6805 = vmatprep.subr.mxu0 0.0
        %6806 = vmatpush1.msra.mxu0 %v6778
        %6807 = vmatprep.subr.mxu0 0.0
        %6808 = vmatpush1.msra.mxu0 %v6779
        %6809 = vmatprep.subr.mxu0 0.0
        %6810 = vmatpush1.msra.mxu0 %v6780
        %6811 = vmatprep.subr.mxu0 0.0
        %6812 = vmatpush1.msra.mxu0 %v6781
        %6813 = vmatprep.subr.mxu0 0.0
        %6814 = vmatpush1.msra.mxu0 %v6782
        %6815 = vmatprep.subr.mxu0 0.0
        %6816 = vmatpush1.msra.mxu0 0.0
        %6817 = vmatprep.subr.mxu0 0.0
        %6818 = vmatpush1.msra.mxu0 0.0
        %6819 = vmatprep.subr.mxu0 0.0
        %6820 = vmatpush1.msra.mxu0 0.0
        %6821 = vmatprep.subr.mxu0 0.0
        %6822 = vmatpush1.msra.mxu0 0.0
        %6823 = vmatprep.subr.mxu0 0.0
        %6824 = vmatpush1.msra.mxu0 0.0
        %6825 = vmatprep.subr.mxu0 0.0
        %6826 = vmatpush1.msra.mxu0 0.0
        %6827 = vmatprep.subr.mxu0 0.0
        %6828 = vmatpush1.msra.mxu0 0.0
        %6829 = vmatprep.subr.mxu0 0.0
        %6830 = vmatpush1.msra.mxu0 0.0
        %6831 = vmatprep.subr.mxu0 0.0
        %6832 = vmatpush1.msra.mxu0 0.0
        %6833 = vmatprep.subr.mxu0 0.0
        %6834 = vmatpush1.msra.mxu0 0.0
        %6835 = vmatprep.subr.mxu0 0.0
        %6836 = vmatpush1.msra.mxu0 0.0
        %6837 = vmatprep.subr.mxu0 0.0
        %6838 = vmatpush1.msra.mxu0 0.0
        %6839 = vmatprep.subr.mxu0 0.0
        %6840 = vmatpush1.msra.mxu0 0.0
        %6841 = vmatprep.subr.mxu0 0.0
        %6842 = vmatpush1.msra.mxu0 0.0
        %6843 = vmatprep.subr.mxu0 0.0
        %6844 = vmatpush1.msra.mxu0 0.0
        %6845 = vmatprep.subr.mxu0 0.0
        %6846 = vmatpush1.msra.mxu0 0.0
        %6847 = vmatprep.mubr.f32.mxu0 0.0
        %6848 = vmatmul.mubr.f32.gmra.mrb[0].mxu0 %v4604
        %v6849 = vpop.f32.mrb[0].mxu0
        %v6850 = vadd.f32 0.0, %v6849
        %v6851 = vpop.f32.mrb[0].mxu0
        %6852 = vmatprep.mubr.f32.mxu0 0.0
        %6853 = vmatmul.mubr.f32.gmra.mrb[0].mxu0 %v4606
        %v6854 = vpop.f32.mrb[0].mxu0
        %v6855 = vadd.f32 0.0, %v6854
        %v6856 = vpop.f32.mrb[0].mxu0
        %6857 = vmatprep.mubr.f32.mxu0 0.0
        %6858 = vmatmul.mubr.f32.gmra.mrb[0].mxu0 %v4609
        %v6859 = vpop.f32.mrb[0].mxu0
        %v6860 = vadd.f32 0.0, %v6859
        %v6861 = vpop.f32.mrb[0].mxu0
        %6862 = vmatprep.mubr.f32.mxu0 0.0
        %6863 = vmatmul.mubr.f32.gmra.mrb[0].mxu0 %v4611
        %v6864 = vpop.f32.mrb[0].mxu0
        %v6865 = vadd.f32 0.0, %v6864
        %v6866 = vpop.f32.mrb[0].mxu0
        %6867 = vmatprep.mubr.f32.mxu0 0.0
        %6868 = vmatmul.mubr.f32.gmra.mrb[0].mxu0 %v4614
        %v6869 = vpop.f32.mrb[0].mxu0
        %v6870 = vadd.f32 0.0, %v6869
        %v6871 = vpop.f32.mrb[0].mxu0
        %6872 = vmatprep.mubr.f32.mxu0 0.0
        %6873 = vmatmul.mubr.f32.gmra.mrb[0].mxu0 %v4616
        %v6874 = vpop.f32.mrb[0].mxu0
        %v6875 = vadd.f32 0.0, %v6874
        %v6876 = vpop.f32.mrb[0].mxu0
        %6877 = vmatprep.mubr.f32.mxu0 0.0
        %6878 = vmatmul.mubr.f32.gmra.mrb[0].mxu0 %v4619
        %v6879 = vpop.f32.mrb[0].mxu0
        %v6880 = vadd.f32 0.0, %v6879
        %v6881 = vpop.f32.mrb[0].mxu0
        %6882 = vmatprep.mubr.f32.mxu0 0.0
        %6883 = vmatmul.mubr.f32.gmra.mrb[0].mxu0 %v4621
        %v6884 = vpop.f32.mrb[0].mxu0
        %v6885 = vadd.f32 0.0, %v6884
        %v6886 = vpop.f32.mrb[0].mxu0
        %6887 = vmatprep.mubr.f32.mxu0 0.0
        %6888 = vmatmul.mubr.f32.gmra.mrb[0].mxu0 %v4624
        %v6889 = vpop.f32.mrb[0].mxu0
        %v6890 = vadd.f32 0.0, %v6889
        %v6891 = vpop.f32.mrb[0].mxu0
        %6892 = vmatprep.mubr.f32.mxu0 0.0
        %6893 = vmatmul.mubr.f32.gmra.mrb[0].mxu0 %v4626
        %v6894 = vpop.f32.mrb[0].mxu0
        %v6895 = vadd.f32 0.0, %v6894
        %v6896 = vpop.f32.mrb[0].mxu0
        %6897 = vmatprep.mubr.f32.mxu0 0.0
        %6898 = vmatmul.mubr.f32.gmra.mrb[0].mxu0 %v4629
        %v6899 = vpop.f32.mrb[0].mxu0
        %v6900 = vadd.f32 0.0, %v6899
        %v6901 = vpop.f32.mrb[0].mxu0
        %6902 = vmatprep.mubr.f32.mxu0 0.0
        %6903 = vmatmul.mubr.f32.gmra.mrb[0].mxu0 %v4631
        %v6904 = vpop.f32.mrb[0].mxu0
        %v6905 = vadd.f32 0.0, %v6904
        %v6906 = vpop.f32.mrb[0].mxu0
        %6907 = vmatprep.mubr.f32.mxu0 0.0
        %6908 = vmatmul.mubr.f32.gmra.mrb[0].mxu0 %v4634
        %v6909 = vpop.f32.mrb[0].mxu0
        %v6910 = vadd.f32 0.0, %v6909
        %v6911 = vpop.f32.mrb[0].mxu0
        %6912 = vmatprep.mubr.f32.mxu0 0.0
        %6913 = vmatmul.mubr.f32.gmra.mrb[0].mxu0 %v4636
        %v6914 = vpop.f32.mrb[0].mxu0
        %v6915 = vadd.f32 0.0, %v6914
        %v6916 = vpop.f32.mrb[0].mxu0
        %6917 = vmatprep.mubr.f32.mxu0 0.0
        %6918 = vmatmul.mubr.f32.gmra.mrb[0].mxu0 %v4639
        %v6919 = vpop.f32.mrb[0].mxu0
        %v6920 = vadd.f32 0.0, %v6919
        %v6921 = vpop.f32.mrb[0].mxu0
        %6922 = vmatprep.mubr.f32.mxu0 0.0
        %6923 = vmatmul.mubr.f32.gmra.mrb[0].mxu0 %v4641
        %v6924 = vpop.f32.mrb[0].mxu0
        %v6925 = vadd.f32 0.0, %v6924
        %v6926 = vpop.f32.mrb[0].mxu0
        %6927 = vmatprep.mubr.f32.mxu0 0.0
        %6928 = vmatmul.mubr.f32.gmra.mrb[0].mxu0 %v4644
        %v6929 = vpop.f32.mrb[0].mxu0
        %v6930 = vadd.f32 0.0, %v6929
        %v6931 = vpop.f32.mrb[0].mxu0
        %6932 = vmatprep.mubr.f32.mxu0 0.0
        %6933 = vmatmul.mubr.f32.gmra.mrb[0].mxu0 %v4646
        %v6934 = vpop.f32.mrb[0].mxu0
        %v6935 = vadd.f32 0.0, %v6934
        %v6936 = vpop.f32.mrb[0].mxu0
        %6937 = vmatprep.mubr.f32.mxu0 0.0
        %6938 = vmatmul.mubr.f32.gmra.mrb[0].mxu0 %v4649
        %v6939 = vpop.f32.mrb[0].mxu0
        %v6940 = vadd.f32 0.0, %v6939
        %v6941 = vpop.f32.mrb[0].mxu0
        %6942 = vmatprep.mubr.f32.mxu0 0.0
        %6943 = vmatmul.mubr.f32.gmra.mrb[0].mxu0 %v4651
        %v6944 = vpop.f32.mrb[0].mxu0
        %v6945 = vadd.f32 0.0, %v6944
        %v6946 = vpop.f32.mrb[0].mxu0
        %6947 = vmatprep.mubr.f32.mxu0 0.0
        %6948 = vmatmul.mubr.f32.gmra.mrb[0].mxu0 %v4654
        %v6949 = vpop.f32.mrb[0].mxu0
        %v6950 = vadd.f32 0.0, %v6949
        %v6951 = vpop.f32.mrb[0].mxu0
        %6952 = vmatprep.mubr.f32.mxu0 0.0
        %6953 = vmatmul.mubr.f32.gmra.mrb[0].mxu0 %v4656
        %v6954 = vpop.f32.mrb[0].mxu0
        %v6955 = vadd.f32 0.0, %v6954
        %v6956 = vpop.f32.mrb[0].mxu0
        %6957 = vmatprep.mubr.f32.mxu0 0.0
        %6958 = vmatmul.mubr.f32.gmra.mrb[0].mxu0 %v4659
        %v6959 = vpop.f32.mrb[0].mxu0
        %v6960 = vadd.f32 0.0, %v6959
        %v6961 = vpop.f32.mrb[0].mxu0
        %6962 = vmatprep.mubr.f32.mxu0 0.0
        %6963 = vmatmul.mubr.f32.gmra.mrb[0].mxu0 %v4661
        %v6964 = vpop.f32.mrb[0].mxu0
        %v6965 = vadd.f32 0.0, %v6964
        %v6966 = vpop.f32.mrb[0].mxu0
        %6967 = vmatprep.mubr.f32.mxu0 0.0
        %6968 = vmatmul.mubr.f32.gmra.mrb[0].mxu0 %v4664
        %v6969 = vpop.f32.mrb[0].mxu0
        %v6970 = vadd.f32 0.0, %v6969
        %v6971 = vpop.f32.mrb[0].mxu0
        %6972 = vmatprep.mubr.f32.mxu0 0.0
        %6973 = vmatmul.mubr.f32.gmra.mrb[0].mxu0 %v4666
        %v6974 = vpop.f32.mrb[0].mxu0
        %v6975 = vadd.f32 0.0, %v6974
        %v6976 = vpop.f32.mrb[0].mxu0
        %6977 = vmatprep.mubr.f32.mxu0 0.0
        %6978 = vmatmul.mubr.f32.gmra.mrb[0].mxu0 %v4669
        %v6979 = vpop.f32.mrb[0].mxu0
        %v6980 = vadd.f32 0.0, %v6979
        %v6981 = vpop.f32.mrb[0].mxu0
        %6982 = vmatprep.mubr.f32.mxu0 0.0
        %6983 = vmatmul.mubr.f32.gmra.mrb[0].mxu0 %v4671
        %v6984 = vpop.f32.mrb[0].mxu0
        %v6985 = vadd.f32 0.0, %v6984
        %v6986 = vpop.f32.mrb[0].mxu0
        %6987 = vmatprep.mubr.f32.mxu0 0.0
        %6988 = vmatmul.mubr.f32.gmra.mrb[0].mxu0 %v5730
        %v6989 = vpop.f32.mrb[0].mxu0
        %v6990 = vadd.f32 0.0, %v6989
        %v6991 = vpop.f32.mrb[0].mxu0
        %6992 = vmatprep.mubr.f32.mxu0 0.0
        %6993 = vmatmul.mubr.f32.gmra.mrb[0].mxu0 %v5732
        %v6994 = vpop.f32.mrb[0].mxu0
        %v6995 = vadd.f32 0.0, %v6994
        %v6996 = vpop.f32.mrb[0].mxu0
        %6997 = vmatprep.mubr.f32.mxu0 0.0
        %6998 = vmatmul.mubr.f32.gmra.mrb[0].mxu0 %v6761
        %v6999 = vpop.f32.mrb[0].mxu0
        %v7000 = vadd.f32 0.0, %v6999
        %v7001 = vpop.f32.mrb[0].mxu0
        %7002 = vmatprep.mubr.f32.mxu0 0.0
        %7003 = vmatmul.mubr.f32.gmra.mrb[0].mxu0 %v6763
        %v7004 = vpop.f32.mrb[0].mxu0
        %v7005 = vadd.f32 0.0, %v7004
        %v7006 = vpop.f32.mrb[0].mxu0
        %7007 = vdwg.mxu0
        %v7008 = vld [vmem:[#allocation2] sm:$0xff]
        %v7009 = vld [vmem:[#allocation2 + $0x8] sm:$0xff]
        %v7010 = vld [vmem:[#allocation2 + $0x10] sm:$0xff]
        %v7011 = vld [vmem:[#allocation2 + $0x18] sm:$0xff]
        %v7012 = vld [vmem:[#allocation2 + $0x20] sm:$0xff]
        %v7013 = vld [vmem:[#allocation2 + $0x28] sm:$0xff]
        %v7014 = vld [vmem:[#allocation2 + $0x30] sm:$0xff]
        %v7015 = vld [vmem:[#allocation2 + $0x38] sm:$0xff]
        %v7016 = vld [vmem:[#allocation2 + $0x40] sm:$0xff]
        %v7017 = vld [vmem:[#allocation2 + $0x48] sm:$0xff]
        %v7018 = vld [vmem:[#allocation2 + $0x50] sm:$0xff]
        %v7019 = vld [vmem:[#allocation2 + $0x58] sm:$0xff]
        %v7020 = vld [vmem:[#allocation2 + $0x60] sm:$0xff]
        %v7021 = vld [vmem:[#allocation2 + $0x68] sm:$0xff]
        %v7022 = vld [vmem:[#allocation2 + $0x70] sm:$0xff]
        %v7023 = vld [vmem:[#allocation2 + $0x78] sm:$0xff]
        %v7024 = vld [vmem:[#allocation2 + $0x80] sm:$0xff]
        %v7025 = vld [vmem:[#allocation2 + $0x88] sm:$0xff]
        %v7026 = vld [vmem:[#allocation2 + $0x90] sm:$0xff]
        %v7027 = vld [vmem:[#allocation2 + $0x98] sm:$0xff]
        %v7028 = vld [vmem:[#allocation2 + $0xa0] sm:$0xff]
        %v7029 = vld [vmem:[#allocation2 + $0xa8] sm:$0xff]
        %v7030 = vld [vmem:[#allocation2 + $0xb0] sm:$0xff]
        %v7031 = vld [vmem:[#allocation2 + $0xb8] sm:$0xff]
        %v7032 = vld [vmem:[#allocation2 + $0xc0] sm:$0xff]
        %v7033 = vld [vmem:[#allocation2 + $0xc8] sm:$0xff]
        %v7034 = vld [vmem:[#allocation2 + $0xd0] sm:$0xff]
        %v7035 = vld [vmem:[#allocation2 + $0xd8] sm:$0xff]
        %v7036 = vld [vmem:[#allocation2 + $0xe0] sm:$0xff]
        %v7037 = vld [vmem:[#allocation2 + $0xe8] sm:$0xff]
        %v7038 = vld [vmem:[#allocation2 + $0xf0] sm:$0xff]
        %v7039 = vld [vmem:[#allocation2 + $0xf8] sm:$0xff]
        %v7040 = vadd.f32 %v7008, %v6850
        %v7041 = vadd.f32 %v7009, %v6855
        %v7042 = vadd.f32 %v7010, %v6860
        %v7043 = vadd.f32 %v7011, %v6865
        %v7044 = vadd.f32 %v7012, %v6870
        %v7045 = vadd.f32 %v7013, %v6875
        %v7046 = vadd.f32 %v7014, %v6880
        %v7047 = vadd.f32 %v7015, %v6885
        %v7048 = vadd.f32 %v7016, %v6890
        %v7049 = vadd.f32 %v7017, %v6895
        %v7050 = vadd.f32 %v7018, %v6900
        %v7051 = vadd.f32 %v7019, %v6905
        %v7052 = vadd.f32 %v7020, %v6910
        %v7053 = vadd.f32 %v7021, %v6915
        %v7054 = vadd.f32 %v7022, %v6920
        %v7055 = vadd.f32 %v7023, %v6925
        %v7056 = vadd.f32 %v7024, %v6930
        %v7057 = vadd.f32 %v7025, %v6935
        %v7058 = vadd.f32 %v7026, %v6940
        %v7059 = vadd.f32 %v7027, %v6945
        %v7060 = vadd.f32 %v7028, %v6950
        %v7061 = vadd.f32 %v7029, %v6955
        %v7062 = vadd.f32 %v7030, %v6960
        %v7063 = vadd.f32 %v7031, %v6965
        %v7064 = vadd.f32 %v7032, %v6970
        %v7065 = vadd.f32 %v7033, %v6975
        %v7066 = vadd.f32 %v7034, %v6980
        %v7067 = vadd.f32 %v7035, %v6985
        %v7068 = vadd.f32 %v7036, %v6990
        %v7069 = vadd.f32 %v7037, %v6995
        %v7070 = vadd.f32 %v7038, %v7000
        %v7071 = vadd.f32 %v7039, %v7005
        %7072 = vst [vmem:[#allocation2] sm:$0xff] %v7040
        %7073 = vst [vmem:[#allocation2 + $0x8] sm:$0xff] %v7041
        %7074 = vst [vmem:[#allocation2 + $0x10] sm:$0xff] %v7042
        %7075 = vst [vmem:[#allocation2 + $0x18] sm:$0xff] %v7043
        %7076 = vst [vmem:[#allocation2 + $0x20] sm:$0xff] %v7044
        %7077 = vst [vmem:[#allocation2 + $0x28] sm:$0xff] %v7045
        %7078 = vst [vmem:[#allocation2 + $0x30] sm:$0xff] %v7046
        %7079 = vst [vmem:[#allocation2 + $0x38] sm:$0xff] %v7047
        %7080 = vst [vmem:[#allocation2 + $0x40] sm:$0xff] %v7048
        %7081 = vst [vmem:[#allocation2 + $0x48] sm:$0xff] %v7049
        %7082 = vst [vmem:[#allocation2 + $0x50] sm:$0xff] %v7050
        %7083 = vst [vmem:[#allocation2 + $0x58] sm:$0xff] %v7051
        %7084 = vst [vmem:[#allocation2 + $0x60] sm:$0xff] %v7052
        %7085 = vst [vmem:[#allocation2 + $0x68] sm:$0xff] %v7053
        %7086 = vst [vmem:[#allocation2 + $0x70] sm:$0xff] %v7054
        %7087 = vst [vmem:[#allocation2 + $0x78] sm:$0xff] %v7055
        %7088 = vst [vmem:[#allocation2 + $0x80] sm:$0xff] %v7056
        %7089 = vst [vmem:[#allocation2 + $0x88] sm:$0xff] %v7057
        %7090 = vst [vmem:[#allocation2 + $0x90] sm:$0xff] %v7058
        %7091 = vst [vmem:[#allocation2 + $0x98] sm:$0xff] %v7059
        %7092 = vst [vmem:[#allocation2 + $0xa0] sm:$0xff] %v7060
        %7093 = vst [vmem:[#allocation2 + $0xa8] sm:$0xff] %v7061
        %7094 = vst [vmem:[#allocation2 + $0xb0] sm:$0xff] %v7062
        %7095 = vst [vmem:[#allocation2 + $0xb8] sm:$0xff] %v7063
        %7096 = vst [vmem:[#allocation2 + $0xc0] sm:$0xff] %v7064
        %7097 = vst [vmem:[#allocation2 + $0xc8] sm:$0xff] %v7065
        %7098 = vst [vmem:[#allocation2 + $0xd0] sm:$0xff] %v7066
        %7099 = vst [vmem:[#allocation2 + $0xd8] sm:$0xff] %v7067
        %7100 = vst [vmem:[#allocation2 + $0xe0] sm:$0xff] %v7068
        %7101 = vst [vmem:[#allocation2 + $0xe8] sm:$0xff] %v7069
        %7102 = vst [vmem:[#allocation2 + $0xf0] sm:$0xff] %v7070
        %7103 = vst [vmem:[#allocation2 + $0xf8] sm:$0xff] %v7071
        %v7104 = vld [vmem:[#allocation2] sm:$0xff]
        %v7105 = vld [vmem:[#allocation2 + $0x8] sm:$0xff]
        %v7106 = vld [vmem:[#allocation2 + $0x10] sm:$0xff]
        %v7107 = vld [vmem:[#allocation2 + $0x18] sm:$0xff]
        %v7108 = vld [vmem:[#allocation2 + $0x20] sm:$0xff]
        %v7109 = vld [vmem:[#allocation2 + $0x28] sm:$0xff]
        %v7110 = vld [vmem:[#allocation2 + $0x30] sm:$0xff]
        %v7111 = vld [vmem:[#allocation2 + $0x38] sm:$0xff]
        %v7112 = vld [vmem:[#allocation2 + $0x40] sm:$0xff]
        %v7113 = vld [vmem:[#allocation2 + $0x48] sm:$0xff]
        %v7114 = vld [vmem:[#allocation2 + $0x50] sm:$0xff]
        %v7115 = vld [vmem:[#allocation2 + $0x58] sm:$0xff]
        %v7116 = vld [vmem:[#allocation2 + $0x60] sm:$0xff]
        %v7117 = vld [vmem:[#allocation2 + $0x68] sm:$0xff]
        %v7118 = vld [vmem:[#allocation2 + $0x70] sm:$0xff]
        %v7119 = vld [vmem:[#allocation2 + $0x78] sm:$0xff]
        %v7120 = vld [vmem:[#allocation2 + $0x80] sm:$0xff]
        %v7121 = vld [vmem:[#allocation2 + $0x88] sm:$0xff]
        %v7122 = vld [vmem:[#allocation2 + $0x90] sm:$0xff]
        %v7123 = vld [vmem:[#allocation2 + $0x98] sm:$0xff]
        %v7124 = vld [vmem:[#allocation2 + $0xa0] sm:$0xff]
        %v7125 = vld [vmem:[#allocation2 + $0xa8] sm:$0xff]
        %v7126 = vld [vmem:[#allocation2 + $0xb0] sm:$0xff]
        %v7127 = vld [vmem:[#allocation2 + $0xb8] sm:$0xff]
        %v7128 = vld [vmem:[#allocation2 + $0xc0] sm:$0xff]
        %v7129 = vld [vmem:[#allocation2 + $0xc8] sm:$0xff]
        %v7130 = vld [vmem:[#allocation2 + $0xd0] sm:$0xff]
        %v7131 = vld [vmem:[#allocation2 + $0xd8] sm:$0xff]
        %v7132 = vld [vmem:[#allocation2 + $0xe0] sm:$0xff]
        %v7133 = vld [vmem:[#allocation2 + $0xe8] sm:$0xff]
        %v7134 = vld [vmem:[#allocation2 + $0xf0] sm:$0xff]
        %v7135 = vld [vmem:[#allocation2 + $0xf8] sm:$0xff]
        %v7136 = vld [vmem:[%s4] sm:$0x1]
        %v7138 = vlaneseq
        %v7139 = vshrl.u32 %v7138, 7
        %v7140 = vsub.s32 0, %v7139
        %v7141 = vrot.slane %v7136, %v7140
        %v7143 = vadd.f32 %v7104, %v7141
        %v7144 = vadd.f32 %v7105, %v7141
        %v7145 = vadd.f32 %v7106, %v7141
        %v7146 = vadd.f32 %v7107, %v7141
        %v7147 = vadd.f32 %v7108, %v7141
        %v7148 = vadd.f32 %v7109, %v7141
        %v7149 = vadd.f32 %v7110, %v7141
        %v7150 = vadd.f32 %v7111, %v7141
        %v7151 = vadd.f32 %v7112, %v7141
        %v7152 = vadd.f32 %v7113, %v7141
        %v7153 = vadd.f32 %v7114, %v7141
        %v7154 = vadd.f32 %v7115, %v7141
        %v7155 = vadd.f32 %v7116, %v7141
        %v7156 = vadd.f32 %v7117, %v7141
        %v7157 = vadd.f32 %v7118, %v7141
        %v7158 = vadd.f32 %v7119, %v7141
        %v7159 = vadd.f32 %v7120, %v7141
        %v7160 = vadd.f32 %v7121, %v7141
        %v7161 = vadd.f32 %v7122, %v7141
        %v7162 = vadd.f32 %v7123, %v7141
        %v7163 = vadd.f32 %v7124, %v7141
        %v7164 = vadd.f32 %v7125, %v7141
        %v7165 = vadd.f32 %v7126, %v7141
        %v7166 = vadd.f32 %v7127, %v7141
        %v7167 = vadd.f32 %v7128, %v7141
        %v7168 = vadd.f32 %v7129, %v7141
        %v7169 = vadd.f32 %v7130, %v7141
        %v7170 = vadd.f32 %v7131, %v7141
        %v7171 = vadd.f32 %v7132, %v7141
        %v7172 = vadd.f32 %v7133, %v7141
        %v7173 = vadd.f32 %v7134, %v7141
        %v7174 = vadd.f32 %v7135, %v7141
        %v7175 = vadd.f32 %v7143, %v621
        %v7176 = vadd.f32 %v7144, %v623
        %v7177 = vadd.f32 %v7145, %v626
        %v7178 = vadd.f32 %v7146, %v628
        %v7179 = vadd.f32 %v7147, %v631
        %v7180 = vadd.f32 %v7148, %v633
        %v7181 = vadd.f32 %v7149, %v636
        %v7182 = vadd.f32 %v7150, %v638
        %v7183 = vadd.f32 %v7151, %v641
        %v7184 = vadd.f32 %v7152, %v643
        %v7185 = vadd.f32 %v7153, %v646
        %v7186 = vadd.f32 %v7154, %v648
        %v7187 = vadd.f32 %v7155, %v651
        %v7188 = vadd.f32 %v7156, %v653
        %v7189 = vadd.f32 %v7157, %v656
        %v7190 = vadd.f32 %v7158, %v658
        %v7191 = vadd.f32 %v7159, %v661
        %v7192 = vadd.f32 %v7160, %v663
        %v7193 = vadd.f32 %v7161, %v666
        %v7194 = vadd.f32 %v7162, %v668
        %v7195 = vadd.f32 %v7163, %v671
        %v7196 = vadd.f32 %v7164, %v673
        %v7197 = vadd.f32 %v7165, %v676
        %v7198 = vadd.f32 %v7166, %v678
        %v7199 = vadd.f32 %v7167, %v681
        %v7200 = vadd.f32 %v7168, %v683
        %v7201 = vadd.f32 %v7169, %v686
        %v7202 = vadd.f32 %v7170, %v688
        %v7203 = vadd.f32 %v7171, %v691
        %v7204 = vadd.f32 %v7172, %v693
        %v7205 = vadd.f32 %v7173, %v1858
        %v7206 = vadd.f32 %v7174, %v1860
        %7207 = vst [vmem:[%s232] sm:$0xff] %v7175
        %7208 = vst [vmem:[%s232 + $0x8] sm:$0xff] %v7176
        %7209 = vst [vmem:[%s232 + $0x10] sm:$0xff] %v7177
        %7210 = vst [vmem:[%s232 + $0x18] sm:$0xff] %v7178
        %7211 = vst [vmem:[%s232 + $0x20] sm:$0xff] %v7179
        %7212 = vst [vmem:[%s232 + $0x28] sm:$0xff] %v7180
        %7213 = vst [vmem:[%s232 + $0x30] sm:$0xff] %v7181
        %7214 = vst [vmem:[%s232 + $0x38] sm:$0xff] %v7182
        %7215 = vst [vmem:[%s232 + $0x40] sm:$0xff] %v7183
        %7216 = vst [vmem:[%s232 + $0x48] sm:$0xff] %v7184
        %7217 = vst [vmem:[%s232 + $0x50] sm:$0xff] %v7185
        %7218 = vst [vmem:[%s232 + $0x58] sm:$0xff] %v7186
        %7219 = vst [vmem:[%s232 + $0x60] sm:$0xff] %v7187
        %7220 = vst [vmem:[%s232 + $0x68] sm:$0xff] %v7188
        %7221 = vst [vmem:[%s232 + $0x70] sm:$0xff] %v7189
        %7222 = vst [vmem:[%s232 + $0x78] sm:$0xff] %v7190
        %7223 = vst [vmem:[%s232 + $0x80] sm:$0xff] %v7191
        %7224 = vst [vmem:[%s232 + $0x88] sm:$0xff] %v7192
        %7225 = vst [vmem:[%s232 + $0x90] sm:$0xff] %v7193
        %7226 = vst [vmem:[%s232 + $0x98] sm:$0xff] %v7194
        %7227 = vst [vmem:[%s232 + $0xa0] sm:$0xff] %v7195
        %7228 = vst [vmem:[%s232 + $0xa8] sm:$0xff] %v7196
        %7229 = vst [vmem:[%s232 + $0xb0] sm:$0xff] %v7197
        %7230 = vst [vmem:[%s232 + $0xb8] sm:$0xff] %v7198
        %7231 = vst [vmem:[%s232 + $0xc0] sm:$0xff] %v7199
        %7232 = vst [vmem:[%s232 + $0xc8] sm:$0xff] %v7200
        %7233 = vst [vmem:[%s232 + $0xd0] sm:$0xff] %v7201
        %7234 = vst [vmem:[%s232 + $0xd8] sm:$0xff] %v7202
        %7235 = vst [vmem:[%s232 + $0xe0] sm:$0xff] %v7203
        %7236 = vst [vmem:[%s232 + $0xe8] sm:$0xff] %v7204
        %7237 = vst [vmem:[%s232 + $0xf0] sm:$0xff] %v7205
        %7238 = vst [vmem:[%s232 + $0xf8] sm:$0xff] %v7206
        %s7239 = sand.u32 %s138, 1
        %s7240 = scalar_lea.sflag [#allocation6], %s7239
        %s7241 = sand.u32 %s138, 1
        %s7242 = smul.addr %s7241, 256
        %s7243 = scalar_lea.vmem [#allocation7], %s7242
        // Predicated region
        $region45: #{tpu_custom_call.1} parent=39 // pred_check
          %p7244 = pneg %p148
        $region46: #{tpu_custom_call.1} parent=39 // pred_check_branch
          %7246 = sbr.rel (%p7244) target = $region48
        $region47: #{tpu_custom_call.1} parent=39 // pred_region
          %s7248 = ssub.s32 4096, 4096
          %7249 = vsyncadd %s7240, %s7248
          %s7250 = smul.addr %s20, 32
          %s7251 = smul.addr %s7250, 128
          %s7252 = scalar_lea.hbm %s5, %s7251
          %s7253 = sshll.u32 %s7243, 4
          %s7254 = int_to_ptr.vmem [resolvable:$true] %s7253
          %7259 = dma.vmem_to_hbm [thread:$0]  %s7254, 4096, %s7252, %s7240, 128, 128, 8
        $region48: #{tpu_custom_call.1} parent=39 // pred_fallthru
          _
      $region40: #{tpu_custom_call.1} parent=5 // pred_fallthru
        _
      %p7260 = scmp.le.s32.totalorder 2, %s15
      // Predicated region
      $region49: #{tpu_custom_call.1} parent=5 // pred_check
        %p7261 = pneg %p7260
      $region50: #{tpu_custom_call.1} parent=5 // pred_check_branch
        %7263 = sbr.rel (%p7261) target = $region52
      $region51: #{tpu_custom_call.1} parent=5 // pred_region
        %s7264 = ssub.s32 %s15, 2
        // Predicated region
        $region53: #{tpu_custom_call.1} parent=51 // pred_check
          %p7265 = pneg %p154
        $region54: #{tpu_custom_call.1} parent=51 // pred_check_branch
          %7267 = sbr.rel (%p7265) target = $region56
        $region55: #{tpu_custom_call.1} parent=51 // pred_region
          %s7268 = sand.u32 %s139, 1
          %s7269 = scalar_lea.sflag [#allocation6], %s7268
          %s7270 = sand.u32 %s139, 1
          %s7271 = smul.addr %s7270, 256
          %s7272 = scalar_lea.vmem [#allocation7], %s7271
          %7273 = dma.done %s7269, 4096
        $region56: #{tpu_custom_call.1} parent=51 // pred_fallthru
          _
      $region52: #{tpu_custom_call.1} parent=5 // pred_fallthru
        _
    $region6: #{tpu_custom_call.1} parent=1 // loop_footer
      %s19 = sadd.s32 1, %s15
    $region7: #{tpu_custom_call.1} parent=1 // loop_footer_branch
      %14 = sbr.rel target = $region3
    $region8: #{tpu_custom_call.1} parent=1 // loop_exit
      _
    %7274 = vsyncpa [#allocation5], 1
    %s7275 = scalar_lea.sflag [#allocation5], 1
    %7276 = vsyncpa %s7275, 1
    %7277 = vsyncpa [#allocation6], 1
    %s7278 = scalar_lea.sflag [#allocation6], 1
    %7279 = vsyncpa %s7278, 1

</llo_original>
